<compile_context>
chip_gen: v7x
topology: tpu7x:2x2x1
jax: 0.10.0
libtpu: 0.0.40
codegen_flags: <defaults>
</compile_context>

<pallas_src>
import functools
import math

import jax
import jax.numpy as jnp
from jax import lax
from jax.experimental import pallas as pl
from jax.experimental.pallas import tpu as pltpu

LRELU_SLOPE = 0.2                      # TODO(synk): assumed ConvBlock LeakyReLU negative slope
VMEM_LIMIT = 32 * 1024 * 1024          # explicit scoped-VMEM cap, safe on v5e/v6e/v7x


# ------------------------------------------------------------------ fused conv kernel -----------

def _conv3x3_bn_lrelu_kernel(x_ref, w_ref, b_ref, o_ref, *, H, Wp, slope):
    """One image per grid step.

    x_ref : (1, (H+3)*Wp, Cin) bf16  zero-padded input, rows flattened (padded-H major, padded-W minor)
    w_ref : (9, Cin, Cout)     bf16  BN-folded conv weights, tap index t = ky*3 + kx
    b_ref : (1, Cout)          f32   BN-folded bias
    o_ref : (1, H*Wp, Cout)    bf16  conv output on the padded-width raster (cols >= W are junk)
    """
    hwp = H * Wp
    cout = w_ref.shape[-1]
    acc = jnp.zeros((hwp, cout), jnp.float32)
    # 3x3 conv == 9 shifted GEMMs; the (ky, kx) shift is absorbed into the VMEM slice offset,
    # so no im2col patches, no in-kernel reshapes/rolls.
    for ky in range(3):
        for kx in range(3):
            win = x_ref[0, pl.ds(ky * Wp + kx, hwp), :]              # (H*Wp, Cin) bf16
            acc = acc + jnp.dot(win, w_ref[ky * 3 + kx],
                                preferred_element_type=jnp.float32)
    acc = acc + b_ref[...]                                           # folded BN bias
    acc = jnp.where(acc >= 0.0, acc, slope * acc)                    # LeakyReLU in f32 (VPU)
    o_ref[0] = acc.astype(o_ref.dtype)


def conv3x3_bn_lrelu(x_nhwc, w9, bias, slope=LRELU_SLOPE):
    """Fused Conv2d(3x3, s=1, zero pad 1) + folded BatchNorm + LeakyReLU.

    x_nhwc : (N, H, W, Cin) bf16, w9: (9, Cin, Cout) bf16, bias: (Cout,) f32.
    Returns (N, H, W+2, Cout) bf16; the last 2 width columns are padding junk and are either
    ignored by maxpool2x2_padded or removed with strip_wpad.
    """
    N, H, W, Cin = x_nhwc.shape
    Cout = w9.shape[-1]
    Wp = W + 2
    # H pad (1, 2): the extra bottom zero row keeps the last shifted in-kernel slice in bounds.
    xp = jnp.pad(x_nhwc, ((0, 0), (1, 2), (1, 1), (0, 0)))
    xflat = xp.reshape(N, (H + 3) * Wp, Cin)                         # free reshape (contiguous)
    out = pl.pallas_call(
        functools.partial(_conv3x3_bn_lrelu_kernel, H=H, Wp=Wp, slope=slope),
        out_shape=jax.ShapeDtypeStruct((N, H * Wp, Cout), jnp.bfloat16),
        grid_spec=pltpu.PrefetchScalarGridSpec(
            num_scalar_prefetch=0,
            grid=(N,),
            in_specs=[
                pl.BlockSpec((1, (H + 3) * Wp, Cin), lambda n: (n, 0, 0)),
                pl.BlockSpec((9, Cin, Cout), lambda n: (0, 0, 0)),
                pl.BlockSpec((1, Cout), lambda n: (0, 0)),
            ],
            out_specs=pl.BlockSpec((1, H * Wp, Cout), lambda n: (n, 0, 0)),
        ),
        compiler_params=pltpu.CompilerParams(
            dimension_semantics=("parallel",),
            vmem_limit_bytes=VMEM_LIMIT,
        ),
    )(xflat, w9, bias.reshape(1, Cout))
    return out.reshape(N, H, Wp, Cout)


def strip_wpad(x_pad4):
    """(N, H, W+2, C) -> (N, H, W, C). Only needed between stacked convs (n_blocks > 1)."""
    return x_pad4[:, :, : x_pad4.shape[2] - 2, :]


# ------------------------------------------------------------------ max-pool kernel -------------

def _maxpool2x2_kernel(x_ref, o_ref, *, W):
    """x_ref: (1, 2, Wp, C) two conv-output rows (padded width); o_ref: (1, 1, W//2, C)."""
    Wp = x_ref.shape[2]
    W2 = W // 2
    r = jnp.maximum(x_ref[0, 0].astype(jnp.float32),
                    x_ref[0, 1].astype(jnp.float32))                 # vertical max, (Wp, C)
    # Horizontal 2->1 max via two 0/1 selection matmuls (MXU); avoids strided sublane slicing
    # in-kernel and zeroes out the junk padding columns (>= W) in the same op.
    row = lax.broadcasted_iota(jnp.int32, (W2, Wp), 0)
    col = lax.broadcasted_iota(jnp.int32, (W2, Wp), 1)
    sel_even = (col == 2 * row).astype(jnp.float32)
    sel_odd = (col == 2 * row + 1).astype(jnp.float32)
    even = jnp.dot(sel_even, r, preferred_element_type=jnp.float32)
    odd = jnp.dot(sel_odd, r, preferred_element_type=jnp.float32)
    o_ref[0, 0] = jnp.maximum(even, odd).astype(o_ref.dtype)


def maxpool2x2_padded(x_pad4):
    """MaxPool2d(2, 2) over the valid region of a (N, H, W+2, C) padded-width conv output."""
    N, H, Wp, C = x_pad4.shape
    W = Wp - 2
    assert H % 2 == 0 and W % 2 == 0, "MaxPool2d(2,2) path requires even spatial dims"
    return pl.pallas_call(
        functools.partial(_maxpool2x2_kernel, W=W),
        out_shape=jax.ShapeDtypeStruct((N, H // 2, W // 2, C), jnp.bfloat16),
        grid_spec=pltpu.PrefetchScalarGridSpec(
            num_scalar_prefetch=0,
            grid=(N, H // 2),
            in_specs=[pl.BlockSpec((1, 2, Wp, C), lambda n, i: (n, i, 0, 0))],
            out_specs=pl.BlockSpec((1, 1, W // 2, C), lambda n, i: (n, i, 0, 0)),
        ),
        compiler_params=pltpu.CompilerParams(
            dimension_semantics=("parallel", "parallel"),
            vmem_limit_bytes=VMEM_LIMIT,
        ),
    )(x_pad4)


# ------------------------------------------------------------------ fused matmul kernel ---------

def _matmul_bias_kernel(x_ref, w_ref, b_ref, o_ref, *, act):
    acc = jnp.dot(x_ref[...], w_ref[...], preferred_element_type=jnp.float32)
    acc = acc + b_ref[...]
    if act == "tanh":
        acc = jnp.tanh(acc)
    o_ref[...] = acc.astype(o_ref.dtype)


def linear(x, w, b, act="none", out_dtype=jnp.float32):
    """x:(M,K) bf16 @ w:(K,Nout) bf16 + b:(Nout,), tiled over 128-wide output columns."""
    M, K = x.shape
    Nout = w.shape[1]
    TN = 128 if Nout % 128 == 0 else Nout
    return pl.pallas_call(
        functools.partial(_matmul_bias_kernel, act=act),
        out_shape=jax.ShapeDtypeStruct((M, Nout), out_dtype),
        grid_spec=pltpu.PrefetchScalarGridSpec(
            num_scalar_prefetch=0,
            grid=(Nout // TN,),
            in_specs=[
                pl.BlockSpec((M, K), lambda j: (0, 0)),
                pl.BlockSpec((K, TN), lambda j: (0, j)),
                pl.BlockSpec((1, TN), lambda j: (0, j)),
            ],
            out_specs=pl.BlockSpec((M, TN), lambda j: (0, j)),
        ),
        compiler_params=pltpu.CompilerParams(
            dimension_semantics=("parallel",),
            vmem_limit_bytes=VMEM_LIMIT,
        ),
    )(x, w, b.reshape(1, Nout))


# ------------------------------------------------------------------ params ----------------------

def _uniform(key, shape, bound):
    return jax.random.uniform(key, shape, jnp.float32, -bound, bound)


def init_params(key, img_dim, base_channels, n_layers, n_blocks, latent_dim):
    C0, H0, W0 = img_dim
    keys = jax.random.split(key, n_layers * n_blocks + 2)
    ki = iter(keys)
    layers = []
    for i in range(n_layers):
        cin = C0 if i == 0 else base_channels * 2 ** i
        cout = base_channels * 2 ** (i + 1)
        blocks = []
        for j in range(n_blocks):
            c_in = cin if j == 0 else cout
            k1, k2 = jax.random.split(next(ki))
            bound = 1.0 / math.sqrt(c_in * 9)
            blocks.append(dict(
                w=_uniform(k1, (cout, c_in, 3, 3), bound),
                b=_uniform(k2, (cout,), bound),
                gamma=jnp.ones((cout,), jnp.float32),
                beta=jnp.zeros((cout,), jnp.float32),
                mean=jnp.zeros((cout,), jnp.float32),
                var=jnp.ones((cout,), jnp.float32),
            ))
        layers.append(blocks)
    # linear head, same ds_size formula as the PyTorch module
    oh, ow = H0, W0
    for _ in range(n_layers):
        oh, ow = math.ceil(oh / 2), math.ceil(ow / 2)
    feat = base_channels * 2 ** n_layers * oh * ow
    k1, k2 = jax.random.split(next(ki))
    bound = 1.0 / math.sqrt(feat)
    l1_w = _uniform(k1, (feat, latent_dim), bound)
    l1_b = _uniform(k2, (latent_dim,), bound)
    # TODO(synk): stand-in generator weights (Linear latent -> C*H*W, tanh).
    k1, k2 = jax.random.split(next(ki))
    bound = 1.0 / math.sqrt(latent_dim)
    gen_w = _uniform(k1, (latent_dim, C0 * H0 * W0), bound)
    gen_b = _uniform(k2, (C0 * H0 * W0,), bound)
    return dict(layers=layers, l1_w=l1_w, l1_b=l1_b, gen_w=gen_w, gen_b=gen_b)


def fold_bn(w, b, gamma, beta, mean, var, eps=1e-5):
    scale = gamma / jnp.sqrt(var + eps)
    return w * scale[:, None, None, None], (b - mean) * scale + beta


def prepare_inference_params(params):
    """Fold eval-mode BN into the convs, lay weights out as (9, Cin, Cout), cast MXU operands to bf16."""
    layers = []
    for blocks in params["layers"]:
        pb = []
        for blk in blocks:
            wf, bf = fold_bn(blk["w"], blk["b"], blk["gamma"], blk["beta"],
                             blk["mean"], blk["var"])
            w9 = jnp.transpose(wf, (2, 3, 1, 0)).reshape(9, wf.shape[1], wf.shape[0])
            pb.append(dict(w9=w9.astype(jnp.bfloat16), b=bf.astype(jnp.float32)))
        layers.append(pb)
    return dict(
        layers=layers,
        l1_w=params["l1_w"].astype(jnp.bfloat16), l1_b=params["l1_b"],
        gen_w=params["gen_w"].astype(jnp.bfloat16), gen_b=params["gen_b"],
    )


# ------------------------------------------------------------------ forward ---------------------

def encoder_latent_forward(prepped, img_nchw):
    """Matches EncoderLatent.forward: z = l1(flatten(conv_blocks(img))); img_rec = generator(z)."""
    N, C0, H0, W0 = img_nchw.shape
    x = jnp.transpose(img_nchw, (0, 2, 3, 1)).astype(jnp.bfloat16)   # NCHW -> NHWC, bf16 activations
    for blocks in prepped["layers"]:
        for j, blk in enumerate(blocks):
            if j > 0:
                x = strip_wpad(x)
            x = conv3x3_bn_lrelu(x, blk["w9"], blk["b"])             # (N, H, W+2, Cout)
        x = maxpool2x2_padded(x)                                     # (N, H/2, W/2, Cout)
    # flatten in NCHW (C, H, W) order to match torch's img.view(B, -1)
    flat = jnp.transpose(x, (0, 3, 1, 2)).reshape(N, -1)
    z = linear(flat, prepped["l1_w"], prepped["l1_b"], act="none", out_dtype=jnp.float32)
    # TODO(synk): external frozen generator replaced by a Linear+tanh stand-in.
    img_rec = linear(z.astype(jnp.bfloat16), prepped["gen_w"], prepped["gen_b"],
                     act="tanh", out_dtype=jnp.float32)
    img_rec = img_rec.reshape(N, C0, H0, W0)
    return z, img_rec


# ------------------------------------------------------------------ main ------------------------

if __name__ == "__main__":
    img_dim = (4, 16, 16)      # (C, H, W) -- small, even spatial dims (MaxPool2d(2,2) requirement)
    base_channels = 8
    n_layers = 2
    n_blocks = 1
    latent_dim = 128           # lane-dense (multiple of 128) latent keeps the head matmul dense
    batch = 2

    key = jax.random.PRNGKey(0)
    kp, kx = jax.random.split(key)
    params = init_params(kp, img_dim, base_channels, n_layers, n_blocks, latent_dim)
    prepped = prepare_inference_params(params)
    img = jax.random.normal(kx, (batch,) + img_dim, jnp.float32)

    fwd = jax.jit(encoder_latent_forward)
    z, img_rec = fwd(prepped, img)
    z, img_rec = jax.block_until_ready((z, img_rec))

    assert z.shape == (batch, latent_dim), z.shape
    assert img_rec.shape == (batch,) + img_dim, img_rec.shape
    assert bool(jnp.all(jnp.isfinite(z))), "non-finite latent"
    assert bool(jnp.all(jnp.abs(img_rec) <= 1.0)), "tanh output out of range"
    print("KERNEL_OK")
</pallas_src>

<mosaic_0001>
module attributes {stable_mosaic.version = 11 : i64} {
  func.func @_maxpool2x2_kernel(%arg0: i32, %arg1: i32, %arg2: memref<1x2x18x16xbf16, #tpu.memory_space<vmem>>, %arg3: memref<1x1x8x16xbf16, #tpu.memory_space<vmem>>) attributes {dimension_semantics = [#tpu.dimension_semantics<parallel>, #tpu.dimension_semantics<parallel>], iteration_bounds = array<i64: 2, 8>, scalar_prefetch = 0 : i64, scratch_operands = 0 : i64, tpu.core_type = #tpu.core_type<tc>, window_params = [{transform_indices = @transform_0, window_bounds = array<i64: 1, 2, 18, 16>}, {transform_indices = @transform_1, window_bounds = array<i64: 1, 1, 8, 16>}]} {
    %c0 = arith.constant 0 : index
    %c0_0 = arith.constant 0 : index
    %c0_1 = arith.constant 0 : index
    %c0_2 = arith.constant 0 : index
    %0 = vector.load %arg2[%c0, %c0_0, %c0_1, %c0_2] : memref<1x2x18x16xbf16, #tpu.memory_space<vmem>>, vector<1x1x18x16xbf16>
    %1 = vector.shape_cast %0 : vector<1x1x18x16xbf16> to vector<18x16xbf16>
    %2 = arith.extf %1 : vector<18x16xbf16> to vector<18x16xf32>
    %c0_3 = arith.constant 0 : index
    %c1 = arith.constant 1 : index
    %c0_4 = arith.constant 0 : index
    %c0_5 = arith.constant 0 : index
    %3 = vector.load %arg2[%c0_3, %c1, %c0_4, %c0_5] : memref<1x2x18x16xbf16, #tpu.memory_space<vmem>>, vector<1x1x18x16xbf16>
    %4 = vector.shape_cast %3 : vector<1x1x18x16xbf16> to vector<18x16xbf16>
    %5 = arith.extf %4 : vector<18x16xbf16> to vector<18x16xf32>
    %6 = arith.maximumf %2, %5 : vector<18x16xf32>
    %7 = tpu.iota {dimensions = array<i32: 0>} : vector<8x18xi32>
    %8 = tpu.iota {dimensions = array<i32: 1>} : vector<8x18xi32>
    %c2_i32 = arith.constant 2 : i32
    %9 = vector.broadcast %c2_i32 : i32 to vector<8x18xi32>
    %10 = arith.muli %9, %7 : vector<8x18xi32>
    %11 = arith.cmpi eq, %8, %10 : vector<8x18xi32>
    %12 = arith.extui %11 : vector<8x18xi1> to vector<8x18xi32>
    %13 = arith.sitofp %12 : vector<8x18xi32> to vector<8x18xf32>
    %c2_i32_6 = arith.constant 2 : i32
    %14 = vector.broadcast %c2_i32_6 : i32 to vector<8x18xi32>
    %15 = arith.muli %14, %7 : vector<8x18xi32>
    %c1_i32 = arith.constant 1 : i32
    %16 = vector.broadcast %c1_i32 : i32 to vector<8x18xi32>
    %17 = arith.addi %15, %16 : vector<8x18xi32>
    %18 = arith.cmpi eq, %8, %17 : vector<8x18xi32>
    %19 = arith.extui %18 : vector<8x18xi1> to vector<8x18xi32>
    %20 = arith.sitofp %19 : vector<8x18xi32> to vector<8x18xf32>
    %cst = arith.constant dense<0.000000e+00> : vector<8x16xf32>
    %21 = tpu.matmul %13, %6, %cst {dimension_numbers = #tpu.dot_dimension_numbers<[1], [0], [0], [1], [0, 0, 1, 1], [], []>} : vector<8x18xf32>, vector<18x16xf32>, vector<8x16xf32> -> vector<8x16xf32>
    %cst_7 = arith.constant dense<0.000000e+00> : vector<8x16xf32>
    %22 = tpu.matmul %20, %6, %cst_7 {dimension_numbers = #tpu.dot_dimension_numbers<[1], [0], [0], [1], [0, 0, 1, 1], [], []>} : vector<8x18xf32>, vector<18x16xf32>, vector<8x16xf32> -> vector<8x16xf32>
    %23 = arith.maximumf %21, %22 : vector<8x16xf32>
    %24 = arith.truncf %23 : vector<8x16xf32> to vector<8x16xbf16>
    %c0_8 = arith.constant 0 : index
    %c0_9 = arith.constant 0 : index
    %c0_10 = arith.constant 0 : index
    %c0_11 = arith.constant 0 : index
    %25 = vector.load %arg3[%c0_8, %c0_9, %c0_10, %c0_11] : memref<1x1x8x16xbf16, #tpu.memory_space<vmem>>, vector<1x1x8x16xbf16>
    %26 = vector.shape_cast %25 : vector<1x1x8x16xbf16> to vector<8x16xbf16>
    %27 = vector.shape_cast %24 : vector<8x16xbf16> to vector<1x1x8x16xbf16>
    tpu.vector_store %arg3[%c0_8, %c0_9, %c0_10, %c0_11], %27 {strides = array<i32>} : memref<1x1x8x16xbf16, #tpu.memory_space<vmem>>, vector<1x1x8x16xbf16>,
    return
  }
  func.func @transform_0(%arg0: i32, %arg1: i32) -> (i32, i32, i32, i32) {
    %c0_i32 = arith.constant 0 : i32
    %c0_i32_0 = arith.constant 0 : i32
    %c0_i32_1 = arith.constant 0 : i32
    return %arg0, %arg1, %c0_i32, %c0_i32_0 : i32, i32, i32, i32
  }
  func.func @transform_1(%arg0: i32, %arg1: i32) -> (i32, i32, i32, i32) {
    %c0_i32 = arith.constant 0 : i32
    %c0_i32_0 = arith.constant 0 : i32
    %c0_i32_1 = arith.constant 0 : i32
    return %arg0, %arg1, %c0_i32, %c0_i32_0 : i32, i32, i32, i32
  }
}

module attributes {stable_mosaic.version = 11 : i64} {
  func.func @_conv3x3_bn_lrelu_kernel(%arg0: i32, %arg1: memref<1x342x4xbf16, #tpu.memory_space<vmem>>, %arg2: memref<9x4x16xbf16, #tpu.memory_space<vmem>>, %arg3: memref<1x16xf32, #tpu.memory_space<vmem>>, %arg4: memref<1x288x16xbf16, #tpu.memory_space<vmem>>) attributes {dimension_semantics = [#tpu.dimension_semantics<parallel>], iteration_bounds = array<i64: 2>, scalar_prefetch = 0 : i64, scratch_operands = 0 : i64, tpu.core_type = #tpu.core_type<tc>, window_params = [{transform_indices = @transform_0, window_bounds = array<i64: 1, 342, 4>}, {pipeline_mode = #tpu.pipeline_mode<synchronous>, transform_indices = @transform_1, window_bounds = array<i64: 9, 4, 16>}, {pipeline_mode = #tpu.pipeline_mode<synchronous>, transform_indices = @transform_2, window_bounds = array<i64: 1, 16>}, {transform_indices = @transform_3, window_bounds = array<i64: 1, 288, 16>}]} {
    %cst = arith.constant 0.000000e+00 : f32
    %0 = vector.broadcast %cst : f32 to vector<288x16xf32>
    %c0 = arith.constant 0 : index
    %c0_0 = arith.constant 0 : index
    %c0_1 = arith.constant 0 : index
    %1 = vector.load %arg1[%c0, %c0_0, %c0_1] : memref<1x342x4xbf16, #tpu.memory_space<vmem>>, vector<1x288x4xbf16>
    %2 = vector.shape_cast %1 : vector<1x288x4xbf16> to vector<288x4xbf16>
    %c0_2 = arith.constant 0 : index
    %c0_3 = arith.constant 0 : index
    %c0_4 = arith.constant 0 : index
    %3 = vector.load %arg2[%c0_2, %c0_3, %c0_4] : memref<9x4x16xbf16, #tpu.memory_space<vmem>>, vector<1x4x16xbf16>
    %4 = vector.shape_cast %3 : vector<1x4x16xbf16> to vector<4x16xbf16>
    %cst_5 = arith.constant dense<0.000000e+00> : vector<288x16xf32>
    %5 = tpu.matmul %2, %4, %cst_5 {dimension_numbers = #tpu.dot_dimension_numbers<[1], [0], [0], [1], [0, 0, 1, 1], [], []>} : vector<288x4xbf16>, vector<4x16xbf16>, vector<288x16xf32> -> vector<288x16xf32>
    %6 = arith.addf %0, %5 : vector<288x16xf32>
    %c0_6 = arith.constant 0 : index
    %c1 = arith.constant 1 : index
    %c0_7 = arith.constant 0 : index
    %7 = vector.load %arg1[%c0_6, %c1, %c0_7] : memref<1x342x4xbf16, #tpu.memory_space<vmem>>, vector<1x288x4xbf16>
    %8 = vector.shape_cast %7 : vector<1x288x4xbf16> to vector<288x4xbf16>
    %c1_8 = arith.constant 1 : index
    %c0_9 = arith.constant 0 : index
    %c0_10 = arith.constant 0 : index
    %9 = vector.load %arg2[%c1_8, %c0_9, %c0_10] : memref<9x4x16xbf16, #tpu.memory_space<vmem>>, vector<1x4x16xbf16>
    %10 = vector.shape_cast %9 : vector<1x4x16xbf16> to vector<4x16xbf16>
    %cst_11 = arith.constant dense<0.000000e+00> : vector<288x16xf32>
    %11 = tpu.matmul %8, %10, %cst_11 {dimension_numbers = #tpu.dot_dimension_numbers<[1], [0], [0], [1], [0, 0, 1, 1], [], []>} : vector<288x4xbf16>, vector<4x16xbf16>, vector<288x16xf32> -> vector<288x16xf32>
    %12 = arith.addf %6, %11 : vector<288x16xf32>
    %c0_12 = arith.constant 0 : index
    %c2 = arith.constant 2 : index
    %c0_13 = arith.constant 0 : index
    %13 = vector.load %arg1[%c0_12, %c2, %c0_13] : memref<1x342x4xbf16, #tpu.memory_space<vmem>>, vector<1x288x4xbf16>
    %14 = vector.shape_cast %13 : vector<1x288x4xbf16> to vector<288x4xbf16>
    %c2_14 = arith.constant 2 : index
    %c0_15 = arith.constant 0 : index
    %c0_16 = arith.constant 0 : index
    %15 = vector.load %arg2[%c2_14, %c0_15, %c0_16] : memref<9x4x16xbf16, #tpu.memory_space<vmem>>, vector<1x4x16xbf16>
    %16 = vector.shape_cast %15 : vector<1x4x16xbf16> to vector<4x16xbf16>
    %cst_17 = arith.constant dense<0.000000e+00> : vector<288x16xf32>
    %17 = tpu.matmul %14, %16, %cst_17 {dimension_numbers = #tpu.dot_dimension_numbers<[1], [0], [0], [1], [0, 0, 1, 1], [], []>} : vector<288x4xbf16>, vector<4x16xbf16>, vector<288x16xf32> -> vector<288x16xf32>
    %18 = arith.addf %12, %17 : vector<288x16xf32>
    %c0_18 = arith.constant 0 : index
    %c18 = arith.constant 18 : index
    %c0_19 = arith.constant 0 : index
    %19 = vector.load %arg1[%c0_18, %c18, %c0_19] : memref<1x342x4xbf16, #tpu.memory_space<vmem>>, vector<1x288x4xbf16>
    %20 = vector.shape_cast %19 : vector<1x288x4xbf16> to vector<288x4xbf16>
    %c3 = arith.constant 3 : index
    %c0_20 = arith.constant 0 : index
    %c0_21 = arith.constant 0 : index
    %21 = vector.load %arg2[%c3, %c0_20, %c0_21] : memref<9x4x16xbf16, #tpu.memory_space<vmem>>, vector<1x4x16xbf16>
    %22 = vector.shape_cast %21 : vector<1x4x16xbf16> to vector<4x16xbf16>
    %cst_22 = arith.constant dense<0.000000e+00> : vector<288x16xf32>
    %23 = tpu.matmul %20, %22, %cst_22 {dimension_numbers = #tpu.dot_dimension_numbers<[1], [0], [0], [1], [0, 0, 1, 1], [], []>} : vector<288x4xbf16>, vector<4x16xbf16>, vector<288x16xf32> -> vector<288x16xf32>
    %24 = arith.addf %18, %23 : vector<288x16xf32>
    %c0_23 = arith.constant 0 : index
    %c19 = arith.constant 19 : index
    %c0_24 = arith.constant 0 : index
    %25 = vector.load %arg1[%c0_23, %c19, %c0_24] : memref<1x342x4xbf16, #tpu.memory_space<vmem>>, vector<1x288x4xbf16>
    %26 = vector.shape_cast %25 : vector<1x288x4xbf16> to vector<288x4xbf16>
    %c4 = arith.constant 4 : index
    %c0_25 = arith.constant 0 : index
    %c0_26 = arith.constant 0 : index
    %27 = vector.load %arg2[%c4, %c0_25, %c0_26] : memref<9x4x16xbf16, #tpu.memory_space<vmem>>, vector<1x4x16xbf16>
    %28 = vector.shape_cast %27 : vector<1x4x16xbf16> to vector<4x16xbf16>
    %cst_27 = arith.constant dense<0.000000e+00> : vector<288x16xf32>
    %29 = tpu.matmul %26, %28, %cst_27 {dimension_numbers = #tpu.dot_dimension_numbers<[1], [0], [0], [1], [0, 0, 1, 1], [], []>} : vector<288x4xbf16>, vector<4x16xbf16>, vector<288x16xf32> -> vector<288x16xf32>
    %30 = arith.addf %24, %29 : vector<288x16xf32>
    %c0_28 = arith.constant 0 : index
    %c20 = arith.constant 20 : index
    %c0_29 = arith.constant 0 : index
    %31 = vector.load %arg1[%c0_28, %c20, %c0_29] : memref<1x342x4xbf16, #tpu.memory_space<vmem>>, vector<1x288x4xbf16>
    %32 = vector.shape_cast %31 : vector<1x288x4xbf16> to vector<288x4xbf16>
    %c5 = arith.constant 5 : index
    %c0_30 = arith.constant 0 : index
    %c0_31 = arith.constant 0 : index
    %33 = vector.load %arg2[%c5, %c0_30, %c0_31] : memref<9x4x16xbf16, #tpu.memory_space<vmem>>, vector<1x4x16xbf16>
    %34 = vector.shape_cast %33 : vector<1x4x16xbf16> to vector<4x16xbf16>
    %cst_32 = arith.constant dense<0.000000e+00> : vector<288x16xf32>
    %35 = tpu.matmul %32, %34, %cst_32 {dimension_numbers = #tpu.dot_dimension_numbers<[1], [0], [0], [1], [0, 0, 1, 1], [], []>} : vector<288x4xbf16>, vector<4x16xbf16>, vector<288x16xf32> -> vector<288x16xf32>
    %36 = arith.addf %30, %35 : vector<288x16xf32>
    %c0_33 = arith.constant 0 : index
    %c36 = arith.constant 36 : index
    %c0_34 = arith.constant 0 : index
    %37 = vector.load %arg1[%c0_33, %c36, %c0_34] : memref<1x342x4xbf16, #tpu.memory_space<vmem>>, vector<1x288x4xbf16>
    %38 = vector.shape_cast %37 : vector<1x288x4xbf16> to vector<288x4xbf16>
    %c6 = arith.constant 6 : index
    %c0_35 = arith.constant 0 : index
    %c0_36 = arith.constant 0 : index
    %39 = vector.load %arg2[%c6, %c0_35, %c0_36] : memref<9x4x16xbf16, #tpu.memory_space<vmem>>, vector<1x4x16xbf16>
    %40 = vector.shape_cast %39 : vector<1x4x16xbf16> to vector<4x16xbf16>
    %cst_37 = arith.constant dense<0.000000e+00> : vector<288x16xf32>
    %41 = tpu.matmul %38, %40, %cst_37 {dimension_numbers = #tpu.dot_dimension_numbers<[1], [0], [0], [1], [0, 0, 1, 1], [], []>} : vector<288x4xbf16>, vector<4x16xbf16>, vector<288x16xf32> -> vector<288x16xf32>
    %42 = arith.addf %36, %41 : vector<288x16xf32>
    %c0_38 = arith.constant 0 : index
    %c37 = arith.constant 37 : index
    %c0_39 = arith.constant 0 : index
    %43 = vector.load %arg1[%c0_38, %c37, %c0_39] : memref<1x342x4xbf16, #tpu.memory_space<vmem>>, vector<1x288x4xbf16>
    %44 = vector.shape_cast %43 : vector<1x288x4xbf16> to vector<288x4xbf16>
    %c7 = arith.constant 7 : index
    %c0_40 = arith.constant 0 : index
    %c0_41 = arith.constant 0 : index
    %45 = vector.load %arg2[%c7, %c0_40, %c0_41] : memref<9x4x16xbf16, #tpu.memory_space<vmem>>, vector<1x4x16xbf16>
    %46 = vector.shape_cast %45 : vector<1x4x16xbf16> to vector<4x16xbf16>
    %cst_42 = arith.constant dense<0.000000e+00> : vector<288x16xf32>
    %47 = tpu.matmul %44, %46, %cst_42 {dimension_numbers = #tpu.dot_dimension_numbers<[1], [0], [0], [1], [0, 0, 1, 1], [], []>} : vector<288x4xbf16>, vector<4x16xbf16>, vector<288x16xf32> -> vector<288x16xf32>
    %48 = arith.addf %42, %47 : vector<288x16xf32>
    %c0_43 = arith.constant 0 : index
    %c38 = arith.constant 38 : index
    %c0_44 = arith.constant 0 : index
    %49 = vector.load %arg1[%c0_43, %c38, %c0_44] : memref<1x342x4xbf16, #tpu.memory_space<vmem>>, vector<1x288x4xbf16>
    %50 = vector.shape_cast %49 : vector<1x288x4xbf16> to vector<288x4xbf16>
    %c8 = arith.constant 8 : index
    %c0_45 = arith.constant 0 : index
    %c0_46 = arith.constant 0 : index
    %51 = vector.load %arg2[%c8, %c0_45, %c0_46] : memref<9x4x16xbf16, #tpu.memory_space<vmem>>, vector<1x4x16xbf16>
    %52 = vector.shape_cast %51 : vector<1x4x16xbf16> to vector<4x16xbf16>
    %cst_47 = arith.constant dense<0.000000e+00> : vector<288x16xf32>
    %53 = tpu.matmul %50, %52, %cst_47 {dimension_numbers = #tpu.dot_dimension_numbers<[1], [0], [0], [1], [0, 0, 1, 1], [], []>} : vector<288x4xbf16>, vector<4x16xbf16>, vector<288x16xf32> -> vector<288x16xf32>
    %54 = arith.addf %48, %53 : vector<288x16xf32>
    %c0_48 = arith.constant 0 : index
    %c0_49 = arith.constant 0 : index
    %55 = vector.load %arg3[%c0_48, %c0_49] : memref<1x16xf32, #tpu.memory_space<vmem>>, vector<1x16xf32>
    %56 = vector.broadcast %55 : vector<1x16xf32> to vector<288x16xf32>
    %57 = arith.addf %54, %56 : vector<288x16xf32>
    %cst_50 = arith.constant 0.000000e+00 : f32
    %58 = vector.broadcast %cst_50 : f32 to vector<288x16xf32>
    %59 = arith.cmpf oge, %57, %58 : vector<288x16xf32>
    %cst_51 = arith.constant 2.000000e-01 : f32
    %60 = vector.broadcast %cst_51 : f32 to vector<288x16xf32>
    %61 = arith.mulf %60, %57 : vector<288x16xf32>
    %62 = arith.select %59, %57, %61 : vector<288x16xi1>, vector<288x16xf32>
    %63 = arith.truncf %62 : vector<288x16xf32> to vector<288x16xbf16>
    %c0_52 = arith.constant 0 : index
    %c0_53 = arith.constant 0 : index
    %c0_54 = arith.constant 0 : index
    %64 = vector.load %arg4[%c0_52, %c0_53, %c0_54] : memref<1x288x16xbf16, #tpu.memory_space<vmem>>, vector<1x288x16xbf16>
    %65 = vector.shape_cast %64 : vector<1x288x16xbf16> to vector<288x16xbf16>
    %66 = vector.shape_cast %63 : vector<288x16xbf16> to vector<1x288x16xbf16>
    tpu.vector_store %arg4[%c0_52, %c0_53, %c0_54], %66 {strides = array<i32>} : memref<1x288x16xbf16, #tpu.memory_space<vmem>>, vector<1x288x16xbf16>,
    return
  }
  func.func @transform_0(%arg0: i32) -> (i32, i32, i32) {
    %c0_i32 = arith.constant 0 : i32
    %c0_i32_0 = arith.constant 0 : i32
    %c0_i32_1 = arith.constant 0 : i32
    return %arg0, %c0_i32, %c0_i32_0 : i32, i32, i32
  }
  func.func @transform_1(%arg0: i32) -> (i32, i32, i32) {
    %c0_i32 = arith.constant 0 : i32
    %c0_i32_0 = arith.constant 0 : i32
    %c0_i32_1 = arith.constant 0 : i32
    %c0_i32_2 = arith.constant 0 : i32
    return %c0_i32, %c0_i32_0, %c0_i32_1 : i32, i32, i32
  }
  func.func @transform_2(%arg0: i32) -> (i32, i32) {
    %c0_i32 = arith.constant 0 : i32
    %c0_i32_0 = arith.constant 0 : i32
    %c0_i32_1 = arith.constant 0 : i32
    return %c0_i32, %c0_i32_0 : i32, i32
  }
  func.func @transform_3(%arg0: i32) -> (i32, i32, i32) {
    %c0_i32 = arith.constant 0 : i32
    %c0_i32_0 = arith.constant 0 : i32
    %c0_i32_1 = arith.constant 0 : i32
    return %arg0, %c0_i32, %c0_i32_0 : i32, i32, i32
  }
}

module attributes {stable_mosaic.version = 11 : i64} {
  func.func @_conv3x3_bn_lrelu_kernel(%arg0: i32, %arg1: memref<1x110x16xbf16, #tpu.memory_space<vmem>>, %arg2: memref<9x16x32xbf16, #tpu.memory_space<vmem>>, %arg3: memref<1x32xf32, #tpu.memory_space<vmem>>, %arg4: memref<1x80x32xbf16, #tpu.memory_space<vmem>>) attributes {dimension_semantics = [#tpu.dimension_semantics<parallel>], iteration_bounds = array<i64: 2>, scalar_prefetch = 0 : i64, scratch_operands = 0 : i64, tpu.core_type = #tpu.core_type<tc>, window_params = [{transform_indices = @transform_0, window_bounds = array<i64: 1, 110, 16>}, {pipeline_mode = #tpu.pipeline_mode<synchronous>, transform_indices = @transform_1, window_bounds = array<i64: 9, 16, 32>}, {pipeline_mode = #tpu.pipeline_mode<synchronous>, transform_indices = @transform_2, window_bounds = array<i64: 1, 32>}, {transform_indices = @transform_3, window_bounds = array<i64: 1, 80, 32>}]} {
    %cst = arith.constant 0.000000e+00 : f32
    %0 = vector.broadcast %cst : f32 to vector<80x32xf32>
    %c0 = arith.constant 0 : index
    %c0_0 = arith.constant 0 : index
    %c0_1 = arith.constant 0 : index
    %1 = vector.load %arg1[%c0, %c0_0, %c0_1] : memref<1x110x16xbf16, #tpu.memory_space<vmem>>, vector<1x80x16xbf16>
    %2 = vector.shape_cast %1 : vector<1x80x16xbf16> to vector<80x16xbf16>
    %c0_2 = arith.constant 0 : index
    %c0_3 = arith.constant 0 : index
    %c0_4 = arith.constant 0 : index
    %3 = vector.load %arg2[%c0_2, %c0_3, %c0_4] : memref<9x16x32xbf16, #tpu.memory_space<vmem>>, vector<1x16x32xbf16>
    %4 = vector.shape_cast %3 : vector<1x16x32xbf16> to vector<16x32xbf16>
    %cst_5 = arith.constant dense<0.000000e+00> : vector<80x32xf32>
    %5 = tpu.matmul %2, %4, %cst_5 {dimension_numbers = #tpu.dot_dimension_numbers<[1], [0], [0], [1], [0, 0, 1, 1], [], []>} : vector<80x16xbf16>, vector<16x32xbf16>, vector<80x32xf32> -> vector<80x32xf32>
    %6 = arith.addf %0, %5 : vector<80x32xf32>
    %c0_6 = arith.constant 0 : index
    %c1 = arith.constant 1 : index
    %c0_7 = arith.constant 0 : index
    %7 = vector.load %arg1[%c0_6, %c1, %c0_7] : memref<1x110x16xbf16, #tpu.memory_space<vmem>>, vector<1x80x16xbf16>
    %8 = vector.shape_cast %7 : vector<1x80x16xbf16> to vector<80x16xbf16>
    %c1_8 = arith.constant 1 : index
    %c0_9 = arith.constant 0 : index
    %c0_10 = arith.constant 0 : index
    %9 = vector.load %arg2[%c1_8, %c0_9, %c0_10] : memref<9x16x32xbf16, #tpu.memory_space<vmem>>, vector<1x16x32xbf16>
    %10 = vector.shape_cast %9 : vector<1x16x32xbf16> to vector<16x32xbf16>
    %cst_11 = arith.constant dense<0.000000e+00> : vector<80x32xf32>
    %11 = tpu.matmul %8, %10, %cst_11 {dimension_numbers = #tpu.dot_dimension_numbers<[1], [0], [0], [1], [0, 0, 1, 1], [], []>} : vector<80x16xbf16>, vector<16x32xbf16>, vector<80x32xf32> -> vector<80x32xf32>
    %12 = arith.addf %6, %11 : vector<80x32xf32>
    %c0_12 = arith.constant 0 : index
    %c2 = arith.constant 2 : index
    %c0_13 = arith.constant 0 : index
    %13 = vector.load %arg1[%c0_12, %c2, %c0_13] : memref<1x110x16xbf16, #tpu.memory_space<vmem>>, vector<1x80x16xbf16>
    %14 = vector.shape_cast %13 : vector<1x80x16xbf16> to vector<80x16xbf16>
    %c2_14 = arith.constant 2 : index
    %c0_15 = arith.constant 0 : index
    %c0_16 = arith.constant 0 : index
    %15 = vector.load %arg2[%c2_14, %c0_15, %c0_16] : memref<9x16x32xbf16, #tpu.memory_space<vmem>>, vector<1x16x32xbf16>
    %16 = vector.shape_cast %15 : vector<1x16x32xbf16> to vector<16x32xbf16>
    %cst_17 = arith.constant dense<0.000000e+00> : vector<80x32xf32>
    %17 = tpu.matmul %14, %16, %cst_17 {dimension_numbers = #tpu.dot_dimension_numbers<[1], [0], [0], [1], [0, 0, 1, 1], [], []>} : vector<80x16xbf16>, vector<16x32xbf16>, vector<80x32xf32> -> vector<80x32xf32>
    %18 = arith.addf %12, %17 : vector<80x32xf32>
    %c0_18 = arith.constant 0 : index
    %c10 = arith.constant 10 : index
    %c0_19 = arith.constant 0 : index
    %19 = vector.load %arg1[%c0_18, %c10, %c0_19] : memref<1x110x16xbf16, #tpu.memory_space<vmem>>, vector<1x80x16xbf16>
    %20 = vector.shape_cast %19 : vector<1x80x16xbf16> to vector<80x16xbf16>
    %c3 = arith.constant 3 : index
    %c0_20 = arith.constant 0 : index
    %c0_21 = arith.constant 0 : index
    %21 = vector.load %arg2[%c3, %c0_20, %c0_21] : memref<9x16x32xbf16, #tpu.memory_space<vmem>>, vector<1x16x32xbf16>
    %22 = vector.shape_cast %21 : vector<1x16x32xbf16> to vector<16x32xbf16>
    %cst_22 = arith.constant dense<0.000000e+00> : vector<80x32xf32>
    %23 = tpu.matmul %20, %22, %cst_22 {dimension_numbers = #tpu.dot_dimension_numbers<[1], [0], [0], [1], [0, 0, 1, 1], [], []>} : vector<80x16xbf16>, vector<16x32xbf16>, vector<80x32xf32> -> vector<80x32xf32>
    %24 = arith.addf %18, %23 : vector<80x32xf32>
    %c0_23 = arith.constant 0 : index
    %c11 = arith.constant 11 : index
    %c0_24 = arith.constant 0 : index
    %25 = vector.load %arg1[%c0_23, %c11, %c0_24] : memref<1x110x16xbf16, #tpu.memory_space<vmem>>, vector<1x80x16xbf16>
    %26 = vector.shape_cast %25 : vector<1x80x16xbf16> to vector<80x16xbf16>
    %c4 = arith.constant 4 : index
    %c0_25 = arith.constant 0 : index
    %c0_26 = arith.constant 0 : index
    %27 = vector.load %arg2[%c4, %c0_25, %c0_26] : memref<9x16x32xbf16, #tpu.memory_space<vmem>>, vector<1x16x32xbf16>
    %28 = vector.shape_cast %27 : vector<1x16x32xbf16> to vector<16x32xbf16>
    %cst_27 = arith.constant dense<0.000000e+00> : vector<80x32xf32>
    %29 = tpu.matmul %26, %28, %cst_27 {dimension_numbers = #tpu.dot_dimension_numbers<[1], [0], [0], [1], [0, 0, 1, 1], [], []>} : vector<80x16xbf16>, vector<16x32xbf16>, vector<80x32xf32> -> vector<80x32xf32>
    %30 = arith.addf %24, %29 : vector<80x32xf32>
    %c0_28 = arith.constant 0 : index
    %c12 = arith.constant 12 : index
    %c0_29 = arith.constant 0 : index
    %31 = vector.load %arg1[%c0_28, %c12, %c0_29] : memref<1x110x16xbf16, #tpu.memory_space<vmem>>, vector<1x80x16xbf16>
    %32 = vector.shape_cast %31 : vector<1x80x16xbf16> to vector<80x16xbf16>
    %c5 = arith.constant 5 : index
    %c0_30 = arith.constant 0 : index
    %c0_31 = arith.constant 0 : index
    %33 = vector.load %arg2[%c5, %c0_30, %c0_31] : memref<9x16x32xbf16, #tpu.memory_space<vmem>>, vector<1x16x32xbf16>
    %34 = vector.shape_cast %33 : vector<1x16x32xbf16> to vector<16x32xbf16>
    %cst_32 = arith.constant dense<0.000000e+00> : vector<80x32xf32>
    %35 = tpu.matmul %32, %34, %cst_32 {dimension_numbers = #tpu.dot_dimension_numbers<[1], [0], [0], [1], [0, 0, 1, 1], [], []>} : vector<80x16xbf16>, vector<16x32xbf16>, vector<80x32xf32> -> vector<80x32xf32>
    %36 = arith.addf %30, %35 : vector<80x32xf32>
    %c0_33 = arith.constant 0 : index
    %c20 = arith.constant 20 : index
    %c0_34 = arith.constant 0 : index
    %37 = vector.load %arg1[%c0_33, %c20, %c0_34] : memref<1x110x16xbf16, #tpu.memory_space<vmem>>, vector<1x80x16xbf16>
    %38 = vector.shape_cast %37 : vector<1x80x16xbf16> to vector<80x16xbf16>
    %c6 = arith.constant 6 : index
    %c0_35 = arith.constant 0 : index
    %c0_36 = arith.constant 0 : index
    %39 = vector.load %arg2[%c6, %c0_35, %c0_36] : memref<9x16x32xbf16, #tpu.memory_space<vmem>>, vector<1x16x32xbf16>
    %40 = vector.shape_cast %39 : vector<1x16x32xbf16> to vector<16x32xbf16>
    %cst_37 = arith.constant dense<0.000000e+00> : vector<80x32xf32>
    %41 = tpu.matmul %38, %40, %cst_37 {dimension_numbers = #tpu.dot_dimension_numbers<[1], [0], [0], [1], [0, 0, 1, 1], [], []>} : vector<80x16xbf16>, vector<16x32xbf16>, vector<80x32xf32> -> vector<80x32xf32>
    %42 = arith.addf %36, %41 : vector<80x32xf32>
    %c0_38 = arith.constant 0 : index
    %c21 = arith.constant 21 : index
    %c0_39 = arith.constant 0 : index
    %43 = vector.load %arg1[%c0_38, %c21, %c0_39] : memref<1x110x16xbf16, #tpu.memory_space<vmem>>, vector<1x80x16xbf16>
    %44 = vector.shape_cast %43 : vector<1x80x16xbf16> to vector<80x16xbf16>
    %c7 = arith.constant 7 : index
    %c0_40 = arith.constant 0 : index
    %c0_41 = arith.constant 0 : index
    %45 = vector.load %arg2[%c7, %c0_40, %c0_41] : memref<9x16x32xbf16, #tpu.memory_space<vmem>>, vector<1x16x32xbf16>
    %46 = vector.shape_cast %45 : vector<1x16x32xbf16> to vector<16x32xbf16>
    %cst_42 = arith.constant dense<0.000000e+00> : vector<80x32xf32>
    %47 = tpu.matmul %44, %46, %cst_42 {dimension_numbers = #tpu.dot_dimension_numbers<[1], [0], [0], [1], [0, 0, 1, 1], [], []>} : vector<80x16xbf16>, vector<16x32xbf16>, vector<80x32xf32> -> vector<80x32xf32>
    %48 = arith.addf %42, %47 : vector<80x32xf32>
    %c0_43 = arith.constant 0 : index
    %c22 = arith.constant 22 : index
    %c0_44 = arith.constant 0 : index
    %49 = vector.load %arg1[%c0_43, %c22, %c0_44] : memref<1x110x16xbf16, #tpu.memory_space<vmem>>, vector<1x80x16xbf16>
    %50 = vector.shape_cast %49 : vector<1x80x16xbf16> to vector<80x16xbf16>
    %c8 = arith.constant 8 : index
    %c0_45 = arith.constant 0 : index
    %c0_46 = arith.constant 0 : index
    %51 = vector.load %arg2[%c8, %c0_45, %c0_46] : memref<9x16x32xbf16, #tpu.memory_space<vmem>>, vector<1x16x32xbf16>
    %52 = vector.shape_cast %51 : vector<1x16x32xbf16> to vector<16x32xbf16>
    %cst_47 = arith.constant dense<0.000000e+00> : vector<80x32xf32>
    %53 = tpu.matmul %50, %52, %cst_47 {dimension_numbers = #tpu.dot_dimension_numbers<[1], [0], [0], [1], [0, 0, 1, 1], [], []>} : vector<80x16xbf16>, vector<16x32xbf16>, vector<80x32xf32> -> vector<80x32xf32>
    %54 = arith.addf %48, %53 : vector<80x32xf32>
    %c0_48 = arith.constant 0 : index
    %c0_49 = arith.constant 0 : index
    %55 = vector.load %arg3[%c0_48, %c0_49] : memref<1x32xf32, #tpu.memory_space<vmem>>, vector<1x32xf32>
    %56 = vector.broadcast %55 : vector<1x32xf32> to vector<80x32xf32>
    %57 = arith.addf %54, %56 : vector<80x32xf32>
    %cst_50 = arith.constant 0.000000e+00 : f32
    %58 = vector.broadcast %cst_50 : f32 to vector<80x32xf32>
    %59 = arith.cmpf oge, %57, %58 : vector<80x32xf32>
    %cst_51 = arith.constant 2.000000e-01 : f32
    %60 = vector.broadcast %cst_51 : f32 to vector<80x32xf32>
    %61 = arith.mulf %60, %57 : vector<80x32xf32>
    %62 = arith.select %59, %57, %61 : vector<80x32xi1>, vector<80x32xf32>
    %63 = arith.truncf %62 : vector<80x32xf32> to vector<80x32xbf16>
    %c0_52 = arith.constant 0 : index
    %c0_53 = arith.constant 0 : index
    %c0_54 = arith.constant 0 : index
    %64 = vector.load %arg4[%c0_52, %c0_53, %c0_54] : memref<1x80x32xbf16, #tpu.memory_space<vmem>>, vector<1x80x32xbf16>
    %65 = vector.shape_cast %64 : vector<1x80x32xbf16> to vector<80x32xbf16>
    %66 = vector.shape_cast %63 : vector<80x32xbf16> to vector<1x80x32xbf16>
    tpu.vector_store %arg4[%c0_52, %c0_53, %c0_54], %66 {strides = array<i32>} : memref<1x80x32xbf16, #tpu.memory_space<vmem>>, vector<1x80x32xbf16>,
    return
  }
  func.func @transform_0(%arg0: i32) -> (i32, i32, i32) {
    %c0_i32 = arith.constant 0 : i32
    %c0_i32_0 = arith.constant 0 : i32
    %c0_i32_1 = arith.constant 0 : i32
    return %arg0, %c0_i32, %c0_i32_0 : i32, i32, i32
  }
  func.func @transform_1(%arg0: i32) -> (i32, i32, i32) {
    %c0_i32 = arith.constant 0 : i32
    %c0_i32_0 = arith.constant 0 : i32
    %c0_i32_1 = arith.constant 0 : i32
    %c0_i32_2 = arith.constant 0 : i32
    return %c0_i32, %c0_i32_0, %c0_i32_1 : i32, i32, i32
  }
  func.func @transform_2(%arg0: i32) -> (i32, i32) {
    %c0_i32 = arith.constant 0 : i32
    %c0_i32_0 = arith.constant 0 : i32
    %c0_i32_1 = arith.constant 0 : i32
    return %c0_i32, %c0_i32_0 : i32, i32
  }
  func.func @transform_3(%arg0: i32) -> (i32, i32, i32) {
    %c0_i32 = arith.constant 0 : i32
    %c0_i32_0 = arith.constant 0 : i32
    %c0_i32_1 = arith.constant 0 : i32
    return %arg0, %c0_i32, %c0_i32_0 : i32, i32, i32
  }
}

module attributes {stable_mosaic.version = 11 : i64} {
  func.func @_maxpool2x2_kernel(%arg0: i32, %arg1: i32, %arg2: memref<1x2x10x32xbf16, #tpu.memory_space<vmem>>, %arg3: memref<1x1x4x32xbf16, #tpu.memory_space<vmem>>) attributes {dimension_semantics = [#tpu.dimension_semantics<parallel>, #tpu.dimension_semantics<parallel>], iteration_bounds = array<i64: 2, 4>, scalar_prefetch = 0 : i64, scratch_operands = 0 : i64, tpu.core_type = #tpu.core_type<tc>, window_params = [{transform_indices = @transform_0, window_bounds = array<i64: 1, 2, 10, 32>}, {transform_indices = @transform_1, window_bounds = array<i64: 1, 1, 4, 32>}]} {
    %c0 = arith.constant 0 : index
    %c0_0 = arith.constant 0 : index
    %c0_1 = arith.constant 0 : index
    %c0_2 = arith.constant 0 : index
    %0 = vector.load %arg2[%c0, %c0_0, %c0_1, %c0_2] : memref<1x2x10x32xbf16, #tpu.memory_space<vmem>>, vector<1x1x10x32xbf16>
    %1 = vector.shape_cast %0 : vector<1x1x10x32xbf16> to vector<10x32xbf16>
    %2 = arith.extf %1 : vector<10x32xbf16> to vector<10x32xf32>
    %c0_3 = arith.constant 0 : index
    %c1 = arith.constant 1 : index
    %c0_4 = arith.constant 0 : index
    %c0_5 = arith.constant 0 : index
    %3 = vector.load %arg2[%c0_3, %c1, %c0_4, %c0_5] : memref<1x2x10x32xbf16, #tpu.memory_space<vmem>>, vector<1x1x10x32xbf16>
    %4 = vector.shape_cast %3 : vector<1x1x10x32xbf16> to vector<10x32xbf16>
    %5 = arith.extf %4 : vector<10x32xbf16> to vector<10x32xf32>
    %6 = arith.maximumf %2, %5 : vector<10x32xf32>
    %7 = tpu.iota {dimensions = array<i32: 0>} : vector<4x10xi32>
    %8 = tpu.iota {dimensions = array<i32: 1>} : vector<4x10xi32>
    %c2_i32 = arith.constant 2 : i32
    %9 = vector.broadcast %c2_i32 : i32 to vector<4x10xi32>
    %10 = arith.muli %9, %7 : vector<4x10xi32>
    %11 = arith.cmpi eq, %8, %10 : vector<4x10xi32>
    %12 = arith.extui %11 : vector<4x10xi1> to vector<4x10xi32>
    %13 = arith.sitofp %12 : vector<4x10xi32> to vector<4x10xf32>
    %c2_i32_6 = arith.constant 2 : i32
    %14 = vector.broadcast %c2_i32_6 : i32 to vector<4x10xi32>
    %15 = arith.muli %14, %7 : vector<4x10xi32>
    %c1_i32 = arith.constant 1 : i32
    %16 = vector.broadcast %c1_i32 : i32 to vector<4x10xi32>
    %17 = arith.addi %15, %16 : vector<4x10xi32>
    %18 = arith.cmpi eq, %8, %17 : vector<4x10xi32>
    %19 = arith.extui %18 : vector<4x10xi1> to vector<4x10xi32>
    %20 = arith.sitofp %19 : vector<4x10xi32> to vector<4x10xf32>
    %cst = arith.constant dense<0.000000e+00> : vector<4x32xf32>
    %21 = tpu.matmul %13, %6, %cst {dimension_numbers = #tpu.dot_dimension_numbers<[1], [0], [0], [1], [0, 0, 1, 1], [], []>} : vector<4x10xf32>, vector<10x32xf32>, vector<4x32xf32> -> vector<4x32xf32>
    %cst_7 = arith.constant dense<0.000000e+00> : vector<4x32xf32>
    %22 = tpu.matmul %20, %6, %cst_7 {dimension_numbers = #tpu.dot_dimension_numbers<[1], [0], [0], [1], [0, 0, 1, 1], [], []>} : vector<4x10xf32>, vector<10x32xf32>, vector<4x32xf32> -> vector<4x32xf32>
    %23 = arith.maximumf %21, %22 : vector<4x32xf32>
    %24 = arith.truncf %23 : vector<4x32xf32> to vector<4x32xbf16>
    %c0_8 = arith.constant 0 : index
    %c0_9 = arith.constant 0 : index
    %c0_10 = arith.constant 0 : index
    %c0_11 = arith.constant 0 : index
    %25 = vector.load %arg3[%c0_8, %c0_9, %c0_10, %c0_11] : memref<1x1x4x32xbf16, #tpu.memory_space<vmem>>, vector<1x1x4x32xbf16>
    %26 = vector.shape_cast %25 : vector<1x1x4x32xbf16> to vector<4x32xbf16>
    %27 = vector.shape_cast %24 : vector<4x32xbf16> to vector<1x1x4x32xbf16>
    tpu.vector_store %arg3[%c0_8, %c0_9, %c0_10, %c0_11], %27 {strides = array<i32>} : memref<1x1x4x32xbf16, #tpu.memory_space<vmem>>, vector<1x1x4x32xbf16>,
    return
  }
  func.func @transform_0(%arg0: i32, %arg1: i32) -> (i32, i32, i32, i32) {
    %c0_i32 = arith.constant 0 : i32
    %c0_i32_0 = arith.constant 0 : i32
    %c0_i32_1 = arith.constant 0 : i32
    return %arg0, %arg1, %c0_i32, %c0_i32_0 : i32, i32, i32, i32
  }
  func.func @transform_1(%arg0: i32, %arg1: i32) -> (i32, i32, i32, i32) {
    %c0_i32 = arith.constant 0 : i32
    %c0_i32_0 = arith.constant 0 : i32
    %c0_i32_1 = arith.constant 0 : i32
    return %arg0, %arg1, %c0_i32, %c0_i32_0 : i32, i32, i32, i32
  }
}

module attributes {stable_mosaic.version = 11 : i64} {
  func.func @_matmul_bias_kernel(%arg0: i32, %arg1: memref<2x128xbf16, #tpu.memory_space<vmem>>, %arg2: memref<128x128xbf16, #tpu.memory_space<vmem>>, %arg3: memref<1x128xf32, #tpu.memory_space<vmem>>, %arg4: memref<2x128xf32, #tpu.memory_space<vmem>>) attributes {dimension_semantics = [#tpu.dimension_semantics<parallel>], iteration_bounds = array<i64: 8>, scalar_prefetch = 0 : i64, scratch_operands = 0 : i64, tpu.core_type = #tpu.core_type<tc>, window_params = [{pipeline_mode = #tpu.pipeline_mode<synchronous>, transform_indices = @transform_0, window_bounds = array<i64: 2, 128>}, {transform_indices = @transform_1, window_bounds = array<i64: 128, 128>}, {transform_indices = @transform_2, window_bounds = array<i64: 1, 128>}, {transform_indices = @transform_3, window_bounds = array<i64: 2, 128>}]} {
    %c0 = arith.constant 0 : index
    %c0_0 = arith.constant 0 : index
    %0 = vector.load %arg1[%c0, %c0_0] : memref<2x128xbf16, #tpu.memory_space<vmem>>, vector<2x128xbf16>
    %c0_1 = arith.constant 0 : index
    %c0_2 = arith.constant 0 : index
    %1 = vector.load %arg2[%c0_1, %c0_2] : memref<128x128xbf16, #tpu.memory_space<vmem>>, vector<128x128xbf16>
    %cst = arith.constant dense<0.000000e+00> : vector<2x128xf32>
    %2 = tpu.matmul %0, %1, %cst {dimension_numbers = #tpu.dot_dimension_numbers<[1], [0], [0], [1], [0, 0, 1, 1], [], []>} : vector<2x128xbf16>, vector<128x128xbf16>, vector<2x128xf32> -> vector<2x128xf32>
    %c0_3 = arith.constant 0 : index
    %c0_4 = arith.constant 0 : index
    %3 = vector.load %arg3[%c0_3, %c0_4] : memref<1x128xf32, #tpu.memory_space<vmem>>, vector<1x128xf32>
    %4 = vector.broadcast %3 : vector<1x128xf32> to vector<2x128xf32>
    %5 = arith.addf %2, %4 : vector<2x128xf32>
    %6 = math.tanh %5 : vector<2x128xf32>
    %c0_5 = arith.constant 0 : index
    %c0_6 = arith.constant 0 : index
    %7 = vector.load %arg4[%c0_5, %c0_6] : memref<2x128xf32, #tpu.memory_space<vmem>>, vector<2x128xf32>
    tpu.vector_store %arg4[%c0_5, %c0_6], %6 {strides = array<i32>} : memref<2x128xf32, #tpu.memory_space<vmem>>, vector<2x128xf32>,
    return
  }
  func.func @transform_0(%arg0: i32) -> (i32, i32) {
    %c0_i32 = arith.constant 0 : i32
    %c0_i32_0 = arith.constant 0 : i32
    %c0_i32_1 = arith.constant 0 : i32
    return %c0_i32, %c0_i32_0 : i32, i32
  }
  func.func @transform_1(%arg0: i32) -> (i32, i32) {
    %c0_i32 = arith.constant 0 : i32
    %c0_i32_0 = arith.constant 0 : i32
    return %c0_i32, %arg0 : i32, i32
  }
  func.func @transform_2(%arg0: i32) -> (i32, i32) {
    %c0_i32 = arith.constant 0 : i32
    %c0_i32_0 = arith.constant 0 : i32
    return %c0_i32, %arg0 : i32, i32
  }
  func.func @transform_3(%arg0: i32) -> (i32, i32) {
    %c0_i32 = arith.constant 0 : i32
    %c0_i32_0 = arith.constant 0 : i32
    return %c0_i32, %arg0 : i32, i32
  }
}

module attributes {stable_mosaic.version = 11 : i64} {
  func.func @_matmul_bias_kernel(%arg0: i32, %arg1: memref<2x512xbf16, #tpu.memory_space<vmem>>, %arg2: memref<512x128xbf16, #tpu.memory_space<vmem>>, %arg3: memref<1x128xf32, #tpu.memory_space<vmem>>, %arg4: memref<2x128xf32, #tpu.memory_space<vmem>>) attributes {dimension_semantics = [#tpu.dimension_semantics<parallel>], iteration_bounds = array<i64: 1>, scalar_prefetch = 0 : i64, scratch_operands = 0 : i64, tpu.core_type = #tpu.core_type<tc>, window_params = [{pipeline_mode = #tpu.pipeline_mode<synchronous>, transform_indices = @transform_0, window_bounds = array<i64: 2, 512>}, {transform_indices = @transform_1, window_bounds = array<i64: 512, 128>}, {transform_indices = @transform_2, window_bounds = array<i64: 1, 128>}, {transform_indices = @transform_3, window_bounds = array<i64: 2, 128>}]} {
    %c0 = arith.constant 0 : index
    %c0_0 = arith.constant 0 : index
    %0 = vector.load %arg1[%c0, %c0_0] : memref<2x512xbf16, #tpu.memory_space<vmem>>, vector<2x512xbf16>
    %c0_1 = arith.constant 0 : index
    %c0_2 = arith.constant 0 : index
    %1 = vector.load %arg2[%c0_1, %c0_2] : memref<512x128xbf16, #tpu.memory_space<vmem>>, vector<512x128xbf16>
    %cst = arith.constant dense<0.000000e+00> : vector<2x128xf32>
    %2 = tpu.matmul %0, %1, %cst {dimension_numbers = #tpu.dot_dimension_numbers<[1], [0], [0], [1], [0, 0, 1, 1], [], []>} : vector<2x512xbf16>, vector<512x128xbf16>, vector<2x128xf32> -> vector<2x128xf32>
    %c0_3 = arith.constant 0 : index
    %c0_4 = arith.constant 0 : index
    %3 = vector.load %arg3[%c0_3, %c0_4] : memref<1x128xf32, #tpu.memory_space<vmem>>, vector<1x128xf32>
    %4 = vector.broadcast %3 : vector<1x128xf32> to vector<2x128xf32>
    %5 = arith.addf %2, %4 : vector<2x128xf32>
    %c0_5 = arith.constant 0 : index
    %c0_6 = arith.constant 0 : index
    %6 = vector.load %arg4[%c0_5, %c0_6] : memref<2x128xf32, #tpu.memory_space<vmem>>, vector<2x128xf32>
    tpu.vector_store %arg4[%c0_5, %c0_6], %5 {strides = array<i32>} : memref<2x128xf32, #tpu.memory_space<vmem>>, vector<2x128xf32>,
    return
  }
  func.func @transform_0(%arg0: i32) -> (i32, i32) {
    %c0_i32 = arith.constant 0 : i32
    %c0_i32_0 = arith.constant 0 : i32
    %c0_i32_1 = arith.constant 0 : i32
    return %c0_i32, %c0_i32_0 : i32, i32
  }
  func.func @transform_1(%arg0: i32) -> (i32, i32) {
    %c0_i32 = arith.constant 0 : i32
    %c0_i32_0 = arith.constant 0 : i32
    return %c0_i32, %arg0 : i32, i32
  }
  func.func @transform_2(%arg0: i32) -> (i32, i32) {
    %c0_i32 = arith.constant 0 : i32
    %c0_i32_0 = arith.constant 0 : i32
    return %c0_i32, %arg0 : i32, i32
  }
  func.func @transform_3(%arg0: i32) -> (i32, i32) {
    %c0_i32 = arith.constant 0 : i32
    %c0_i32_0 = arith.constant 0 : i32
    return %c0_i32, %arg0 : i32, i32
  }
}

</mosaic_0001>

<llo_original>
// kernel: encoder_latent_forward.7
$region0: #{encoder_latent_forward.7}
  #allocation0 [shape = 'u32[]', space=smem, size = 0x4, offset = 0x4, fixed_abs, tag = 'smem constant byte address 0x4 - core index']
  #allocation1 [shape = 'u32[144,128]{1,0:T(1,128)}', space=vmem, size = 0x12000, scoped, tag = 'internal scratch']
  %s0 = inlined_call_operand.vmem [shape: bf16[2,16,18,16], index: 0, kind: input, shape index: {}]
  %s1 = inlined_call_operand.vmem [shape: bf16[2,8,8,16], index: 1, kind: output, shape index: {}]
  %s2 = sld [smem:[#allocation0]]
  $region37: #{encoder_latent_forward.7} parent=0
    _
  %s4 = ssub.s32 1, %s2
  %s5 = scalar_select 0, %s4, %s2
  loop: start=0, step=1, limit=18
  $region2: #{encoder_latent_forward.7} parent=0 // loop_pre_header
    _
  $region3: #{encoder_latent_forward.7} parent=0 // loop_header
    %s7 = sphi 0, %s11
    %p8 = scmp.ge.s32.totalorder %s7, 18
    %s14 = sphi 0, %s26
    %s15 = sphi 0, %s22
    %s16 = sphi 0, %s14
    %s17 = sphi 0, %s15
    %s18 = sphi 0, %s16
    %s19 = sphi 0, %s17
    %s31 = sphi 0, %s33
    %s34 = sphi 0, %s31
    %s35 = sphi 0, %s34
    %s51 = sphi 0, %s35
    %s59 = sphi 0, %s61
    %s62 = sphi 0, %s59
    %s63 = sphi 0, %s62
    %s79 = sphi 0, %s63
  $region4: #{encoder_latent_forward.7} parent=0 // loop_header_branch
    %10 = sbr.rel (%p8) target = $region8
  $region5: #{encoder_latent_forward.7} parent=0 // loop_body
    %s12 = ssub.s32 %s7, 1
    %s13 = ssub.s32 %s7, 2
    %s20 = sadd.s32 1, %s15
    %p21 = scmp.ge.s32.totalorder %s20, 8
    %s22 = scalar_select %p21, 0, %s20
    %s23 = sadd.s32 1, %s14
    %s24 = scalar_select %p21, %s23, %s14
    %p25 = scmp.ge.s32.totalorder %s24, 2
    %s26 = scalar_select %p25, 0, %s24
    %s27 = ssub.s32 %s14, %s26
    %s28 = ssub.s32 %s15, %s22
    %s29 = sor.u32 %s27, %s28
    %p30 = scmp.eq.s32.totalorder %s29, 0
    %s32 = sadd.s32 %s31, 1
    %s33 = scalar_select %p30, %s31, %s32
    %p36 = pneg %p30
    %p37 = scmp.eq.s32.totalorder %s7, 15
    %p38 = por %p36, %p37
    %p39 = scmp.ne.s32.totalorder %s31, %s34
    %p40 = scmp.eq.s32.totalorder %s7, 0
    %p41 = por %p39, %p40
    %p42 = scmp.ne.s32.totalorder %s31, %s34
    %p43 = scmp.eq.s32.totalorder %s12, 15
    %p44 = por %p42, %p43
    %p45 = scmp.ne.s32.totalorder %s34, %s35
    %p46 = scmp.eq.s32.totalorder %s12, 0
    %p47 = por %p45, %p46
    %p48 = scmp.ne.s32.totalorder %s34, %s35
    %p49 = scmp.eq.s32.totalorder %s13, 15
    %p50 = por %p48, %p49
    %p52 = scmp.ne.s32.totalorder %s35, %s51
    %p53 = scmp.eq.s32.totalorder %s13, 0
    %p54 = por %p52, %p53
    %s55 = ssub.s32 %s14, %s26
    %s56 = ssub.s32 %s15, %s22
    %s57 = sor.u32 %s55, %s56
    %p58 = scmp.eq.s32.totalorder %s57, 0
    %s60 = sadd.s32 %s59, 1
    %s61 = scalar_select %p58, %s59, %s60
    %p64 = pneg %p58
    %p65 = scmp.eq.s32.totalorder %s7, 15
    %p66 = por %p64, %p65
    %p67 = scmp.ne.s32.totalorder %s59, %s62
    %p68 = scmp.eq.s32.totalorder %s7, 0
    %p69 = por %p67, %p68
    %p70 = scmp.ne.s32.totalorder %s59, %s62
    %p71 = scmp.eq.s32.totalorder %s12, 15
    %p72 = por %p70, %p71
    %p73 = scmp.ne.s32.totalorder %s62, %s63
    %p74 = scmp.eq.s32.totalorder %s12, 0
    %p75 = por %p73, %p74
    %p76 = scmp.ne.s32.totalorder %s62, %s63
    %p77 = scmp.eq.s32.totalorder %s13, 15
    %p78 = por %p76, %p77
    %p80 = scmp.ne.s32.totalorder %s63, %s79
    %p81 = scmp.eq.s32.totalorder %s13, 0
    %p82 = por %p80, %p81
    %p83 = scmp.le.s32.totalorder 1, %s7
    %p84 = scmp.lt.s32.totalorder %s7, 17
    %p85 = pnand %p83, %p84
    %p86 = pneg %p85
    // Predicated region
    $region9: #{encoder_latent_forward.7} parent=5 // pred_check
      _
    $region10: #{encoder_latent_forward.7} parent=5 // pred_check_branch
      %88 = sbr.rel (%p85) target = $region12
    $region11: #{encoder_latent_forward.7} parent=5 // pred_region
      %s89 = ssub.s32 %s7, 1
    $region12: #{encoder_latent_forward.7} parent=5 // pred_fallthru
      _
    %p90 = scmp.lt.s32.totalorder %s7, 16
    // Predicated region
    $region13: #{encoder_latent_forward.7} parent=5 // pred_check
      %p91 = pneg %p90
    $region14: #{encoder_latent_forward.7} parent=5 // pred_check_branch
      %93 = sbr.rel (%p91) target = $region16
    $region15: #{encoder_latent_forward.7} parent=5 // pred_region
      // Predicated region
      $region17: #{encoder_latent_forward.7} parent=15 // pred_check
        %p94 = pneg %p41
      $region18: #{encoder_latent_forward.7} parent=15 // pred_check_branch
        %96 = sbr.rel (%p94) target = $region20
      $region19: #{encoder_latent_forward.7} parent=15 // pred_region
        %s97 = smul.u32 2, %s15
        %p98 = scmp.lt.s32.totalorder %s14, 1
        %s99 = scalar_select %p98, %s14, 1
        %p100 = scmp.lt.s32.totalorder %s97, 15
        %s101 = scalar_select %p100, %s97, 15
        %s102 = smul.addr %s101, 3
        %s103 = smul.addr %s99, 48
        %s104 = sadd.s32 %s102, %s103
        %s105 = smul.addr %s104, 4
        %s106 = scalar_lea.vmem %s0, %s105
        %s107 = smul.u32 2, %s15
      $region20: #{encoder_latent_forward.7} parent=15 // pred_fallthru
        _
    $region16: #{encoder_latent_forward.7} parent=5 // pred_fallthru
      _
    %p108 = scmp.le.s32.totalorder 1, %s7
    %p109 = scmp.lt.s32.totalorder %s7, 17
    %p110 = pnand %p108, %p109
    %p111 = pneg %p110
    // Predicated region
    $region21: #{encoder_latent_forward.7} parent=5 // pred_check
      _
    $region22: #{encoder_latent_forward.7} parent=5 // pred_check_branch
      %113 = sbr.rel (%p110) target = $region24
    $region23: #{encoder_latent_forward.7} parent=5 // pred_region
      %s114 = ssub.s32 %s7, 1
      %s115 = smul.u32 2, %s17
      %p116 = scmp.lt.s32.totalorder %s16, 1
      %s117 = scalar_select %p116, %s16, 1
      %p118 = scmp.lt.s32.totalorder %s115, 15
      %s119 = scalar_select %p118, %s115, 15
      %s120 = smul.addr %s119, 3
      %s121 = smul.addr %s117, 48
      %s122 = sadd.s32 %s120, %s121
      %s123 = smul.addr %s122, 4
      %s124 = scalar_lea.vmem %s0, %s123
      %p125 = pneg %p47
      %p126 = pneg %p44
      %p127 = pneg %p75
      %p128 = pneg %p72
      %p129 = scmp.lt.s32.totalorder %s16, 1
      %s130 = scalar_select %p129, %s16, 1
      %p131 = scmp.lt.s32.totalorder %s17, 7
      %s132 = scalar_select %p131, %s17, 7
      %s133 = smul.addr %s130, 8
      %s134 = sadd.s32 %s132, %s133
      %s135 = smul.addr %s134, 4
      %s136 = scalar_lea.vmem %s1, %s135
      %s137 = smul.u32 2, %s17
      %p138 = scmp.lt.s32.totalorder %s16, 1
      %s139 = scalar_select %p138, %s16, 1
      %p140 = scmp.lt.s32.totalorder %s137, 15
      %s141 = scalar_select %p140, %s137, 15
      %s142 = smul.addr %s141, 3
      %s143 = smul.addr %s139, 48
      %s144 = sadd.s32 %s142, %s143
      %s145 = smul.addr %s144, 4
      %s146 = scalar_lea.vmem %s0, %s145
      %s147 = smul.u32 2, %s17
      %p148 = scmp.lt.s32.totalorder %s16, 1
      %s149 = scalar_select %p148, %s16, 1
      %p150 = scmp.lt.s32.totalorder %s17, 7
      %s151 = scalar_select %p150, %s17, 7
      %s152 = smul.addr %s149, 8
      %s153 = sadd.s32 %s151, %s152
      %s154 = smul.addr %s153, 4
      %s155 = scalar_lea.vmem %s1, %s154
      %v156 = vld [vmem:[%s146] sm:$0xf]
      %v157 = vld [vmem:[%s146 + $0x4] sm:$0xf]
      %v158 = vld [vmem:[%s146 + $0x8] sm:$0x1]
      %v159 = vunpack.c.l.bf16 %v156
      %v160 = vunpack.c.l.bf16 %v157
      %v161 = vunpack.c.l.bf16 %v158
      %s162 = scalar_lea.vmem %s146, 12
      %v163 = vld [vmem:[%s162] sm:$0xf]
      %v164 = vld [vmem:[%s162 + $0x4] sm:$0xf]
      %v165 = vld [vmem:[%s162 + $0x8] sm:$0x1]
      %v166 = vunpack.c.l.bf16 %v163
      %v167 = vunpack.c.l.bf16 %v164
      %v168 = vunpack.c.l.bf16 %v165
      %v169 = vmax.f32 %v159, %v166
      %v170 = vmax.f32 %v160, %v167
      %v171 = vmax.f32 %v161, %v168
      %v172 = vlaneseq
      %v173 = vshrl.u32 %v172, 7
      %v174 = vlaneseq
      %v175 = vand.u32 %v174, 127
      %v176 = vmul.u32 %v173, 2
      %vm177 = vcmp.eq.s32.totalorder %v175, %v176
      %v178 = vsel %vm177, 1, 0
      %v179 = vcvt.s32.f32 %v178
      %v180 = vadd.s32 %v176, 1
      %vm181 = vcmp.eq.s32.totalorder %v175, %v180
      %v182 = vsel %vm181, 1, 0
      %v183 = vcvt.s32.f32 %v182
      %vm184 = vcmask 146432
      %v186 = vsel %vm184, %v179, 0
      %vm188 = vcmask 1041408
      %v190 = vsel %vm188, %v171, 0
      %192 = vmatprep.subr.mxu0 0.0
      %193 = vmatpush1.msra.mxu0 %v169
      %194 = vmatprep.subr.mxu0 0.0
      %195 = vmatpush1.msra.mxu0 %v170
      %196 = vmatprep.subr.mxu0 0.0
      %197 = vmatpush1.msra.mxu0 %v190
      %198 = vmatprep.subr.mxu0 0.0
      %199 = vmatpush1.msra.mxu0 0.0
      %200 = vmatprep.subr.mxu0 0.0
      %201 = vmatpush1.msra.mxu0 0.0
      %202 = vmatprep.subr.mxu0 0.0
      %203 = vmatpush1.msra.mxu0 0.0
      %204 = vmatprep.subr.mxu0 0.0
      %205 = vmatpush1.msra.mxu0 0.0
      %206 = vmatprep.subr.mxu0 0.0
      %207 = vmatpush1.msra.mxu0 0.0
      %208 = vmatprep.subr.mxu0 0.0
      %209 = vmatpush1.msra.mxu0 0.0
      %210 = vmatprep.subr.mxu0 0.0
      %211 = vmatpush1.msra.mxu0 0.0
      %212 = vmatprep.subr.mxu0 0.0
      %213 = vmatpush1.msra.mxu0 0.0
      %214 = vmatprep.subr.mxu0 0.0
      %215 = vmatpush1.msra.mxu0 0.0
      %216 = vmatprep.subr.mxu0 0.0
      %217 = vmatpush1.msra.mxu0 0.0
      %218 = vmatprep.subr.mxu0 0.0
      %219 = vmatpush1.msra.mxu0 0.0
      %220 = vmatprep.subr.mxu0 0.0
      %221 = vmatpush1.msra.mxu0 0.0
      %222 = vmatprep.subr.mxu0 0.0
      %223 = vmatpush1.msra.mxu0 0.0
      %224 = vmatprep.subr.mxu0 0.0
      %225 = vmatpush1.msra.mxu0 0.0
      %226 = vmatprep.subr.mxu0 0.0
      %227 = vmatpush1.msra.mxu0 0.0
      %228 = vmatprep.subr.mxu0 0.0
      %229 = vmatpush1.msra.mxu0 0.0
      %230 = vmatprep.subr.mxu0 0.0
      %231 = vmatpush1.msra.mxu0 0.0
      %232 = vmatprep.subr.mxu0 0.0
      %233 = vmatpush1.msra.mxu0 0.0
      %234 = vmatprep.subr.mxu0 0.0
      %235 = vmatpush1.msra.mxu0 0.0
      %236 = vmatprep.subr.mxu0 0.0
      %237 = vmatpush1.msra.mxu0 0.0
      %238 = vmatprep.subr.mxu0 0.0
      %239 = vmatpush1.msra.mxu0 0.0
      %240 = vmatprep.subr.mxu0 0.0
      %241 = vmatpush1.msra.mxu0 0.0
      %242 = vmatprep.subr.mxu0 0.0
      %243 = vmatpush1.msra.mxu0 0.0
      %244 = vmatprep.subr.mxu0 0.0
      %245 = vmatpush1.msra.mxu0 0.0
      %246 = vmatprep.subr.mxu0 0.0
      %247 = vmatpush1.msra.mxu0 0.0
      %248 = vmatprep.subr.mxu0 0.0
      %249 = vmatpush1.msra.mxu0 0.0
      %250 = vmatprep.subr.mxu0 0.0
      %251 = vmatpush1.msra.mxu0 0.0
      %252 = vmatprep.subr.mxu0 0.0
      %253 = vmatpush1.msra.mxu0 0.0
      %254 = vmatprep.subr.mxu0 0.0
      %255 = vmatpush1.msra.mxu0 0.0
      %256 = vmatprep.mubr.f32.mxu0 0.0
      %257 = vmatmul.mubr.f32.gmra.mrb[0].mxu0 %v186
      %v258 = vpop.f32.mrb[0].mxu0
      %v259 = vadd.f32 0.0, %v258
      %v260 = vpop.f32.mrb[0].mxu0
      %261 = vdwg.mxu0
      %v263 = vsel %vm184, %v183, 0
      %265 = vmatprep.subr.mxu0 0.0
      %266 = vmatpush1.msra.mxu0 %v169
      %267 = vmatprep.subr.mxu0 0.0
      %268 = vmatpush1.msra.mxu0 %v170
      %269 = vmatprep.subr.mxu0 0.0
      %270 = vmatpush1.msra.mxu0 %v190
      %271 = vmatprep.subr.mxu0 0.0
      %272 = vmatpush1.msra.mxu0 0.0
      %273 = vmatprep.subr.mxu0 0.0
      %274 = vmatpush1.msra.mxu0 0.0
      %275 = vmatprep.subr.mxu0 0.0
      %276 = vmatpush1.msra.mxu0 0.0
      %277 = vmatprep.subr.mxu0 0.0
      %278 = vmatpush1.msra.mxu0 0.0
      %279 = vmatprep.subr.mxu0 0.0
      %280 = vmatpush1.msra.mxu0 0.0
      %281 = vmatprep.subr.mxu0 0.0
      %282 = vmatpush1.msra.mxu0 0.0
      %283 = vmatprep.subr.mxu0 0.0
      %284 = vmatpush1.msra.mxu0 0.0
      %285 = vmatprep.subr.mxu0 0.0
      %286 = vmatpush1.msra.mxu0 0.0
      %287 = vmatprep.subr.mxu0 0.0
      %288 = vmatpush1.msra.mxu0 0.0
      %289 = vmatprep.subr.mxu0 0.0
      %290 = vmatpush1.msra.mxu0 0.0
      %291 = vmatprep.subr.mxu0 0.0
      %292 = vmatpush1.msra.mxu0 0.0
      %293 = vmatprep.subr.mxu0 0.0
      %294 = vmatpush1.msra.mxu0 0.0
      %295 = vmatprep.subr.mxu0 0.0
      %296 = vmatpush1.msra.mxu0 0.0
      %297 = vmatprep.subr.mxu0 0.0
      %298 = vmatpush1.msra.mxu0 0.0
      %299 = vmatprep.subr.mxu0 0.0
      %300 = vmatpush1.msra.mxu0 0.0
      %301 = vmatprep.subr.mxu0 0.0
      %302 = vmatpush1.msra.mxu0 0.0
      %303 = vmatprep.subr.mxu0 0.0
      %304 = vmatpush1.msra.mxu0 0.0
      %305 = vmatprep.subr.mxu0 0.0
      %306 = vmatpush1.msra.mxu0 0.0
      %307 = vmatprep.subr.mxu0 0.0
      %308 = vmatpush1.msra.mxu0 0.0
      %309 = vmatprep.subr.mxu0 0.0
      %310 = vmatpush1.msra.mxu0 0.0
      %311 = vmatprep.subr.mxu0 0.0
      %312 = vmatpush1.msra.mxu0 0.0
      %313 = vmatprep.subr.mxu0 0.0
      %314 = vmatpush1.msra.mxu0 0.0
      %315 = vmatprep.subr.mxu0 0.0
      %316 = vmatpush1.msra.mxu0 0.0
      %317 = vmatprep.subr.mxu0 0.0
      %318 = vmatpush1.msra.mxu0 0.0
      %319 = vmatprep.subr.mxu0 0.0
      %320 = vmatpush1.msra.mxu0 0.0
      %321 = vmatprep.subr.mxu0 0.0
      %322 = vmatpush1.msra.mxu0 0.0
      %323 = vmatprep.subr.mxu0 0.0
      %324 = vmatpush1.msra.mxu0 0.0
      %325 = vmatprep.subr.mxu0 0.0
      %326 = vmatpush1.msra.mxu0 0.0
      %327 = vmatprep.subr.mxu0 0.0
      %328 = vmatpush1.msra.mxu0 0.0
      %329 = vmatprep.mubr.f32.mxu0 0.0
      %330 = vmatmul.mubr.f32.gmra.mrb[0].mxu0 %v263
      %v331 = vpop.f32.mrb[0].mxu0
      %v332 = vadd.f32 0.0, %v331
      %v333 = vpop.f32.mrb[0].mxu0
      %334 = vdwg.mxu0
      %v335 = vmax.f32 %v259, %v332
      %v336 = vpack.c.bf16 %v335, %v335
      %vm337 = vcmask 125952
      %338 = vst.msk [vmem:[%s155] sm:$0xf] %vm337, %v336
      %p339 = scmp.lt.s32.totalorder %s16, 1
      %s340 = scalar_select %p339, %s16, 1
      %p341 = scmp.lt.s32.totalorder %s17, 7
      %s342 = scalar_select %p341, %s17, 7
      %s343 = smul.addr %s340, 8
      %s344 = sadd.s32 %s342, %s343
      %s345 = smul.addr %s344, 4
      %s346 = scalar_lea.vmem %s1, %s345
      // Predicated region
      $region25: #{encoder_latent_forward.7} parent=23 // pred_check
        %p347 = pneg %p72
      $region26: #{encoder_latent_forward.7} parent=23 // pred_check_branch
        %349 = sbr.rel (%p347) target = $region28
      $region27: #{encoder_latent_forward.7} parent=23 // pred_region
        _
      $region28: #{encoder_latent_forward.7} parent=23 // pred_fallthru
        _
    $region24: #{encoder_latent_forward.7} parent=5 // pred_fallthru
      _
    %p350 = scmp.le.s32.totalorder 2, %s7
    // Predicated region
    $region29: #{encoder_latent_forward.7} parent=5 // pred_check
      %p351 = pneg %p350
    $region30: #{encoder_latent_forward.7} parent=5 // pred_check_branch
      %353 = sbr.rel (%p351) target = $region32
    $region31: #{encoder_latent_forward.7} parent=5 // pred_region
      %s354 = ssub.s32 %s7, 2
      // Predicated region
      $region33: #{encoder_latent_forward.7} parent=31 // pred_check
        %p355 = pneg %p78
      $region34: #{encoder_latent_forward.7} parent=31 // pred_check_branch
        %357 = sbr.rel (%p355) target = $region36
      $region35: #{encoder_latent_forward.7} parent=31 // pred_region
        %p358 = scmp.lt.s32.totalorder %s18, 1
        %s359 = scalar_select %p358, %s18, 1
        %p360 = scmp.lt.s32.totalorder %s19, 7
        %s361 = scalar_select %p360, %s19, 7
        %s362 = smul.addr %s359, 8
        %s363 = sadd.s32 %s361, %s362
        %s364 = smul.addr %s363, 4
        %s365 = scalar_lea.vmem %s1, %s364
      $region36: #{encoder_latent_forward.7} parent=31 // pred_fallthru
        _
    $region32: #{encoder_latent_forward.7} parent=5 // pred_fallthru
      _
  $region6: #{encoder_latent_forward.7} parent=0 // loop_footer
    %s11 = sadd.s32 1, %s7
  $region7: #{encoder_latent_forward.7} parent=0 // loop_footer_branch
    %6 = sbr.rel target = $region3
  $region8: #{encoder_latent_forward.7} parent=0 // loop_exit
    _

// kernel: encoder_latent_forward.8
$region0: #{encoder_latent_forward.8}
  #allocation0 [shape = 'u32[]', space=smem, size = 0x4, offset = 0x4, fixed_abs, tag = 'smem constant byte address 0x4 - core index']
  #allocation1 [shape = 'u32[144,128]{1,0:T(1,128)}', space=vmem, size = 0x12000, scoped, tag = 'internal scratch']
  %s0 = inlined_call_operand.vmem [shape: bf16[2,110,16], index: 0, kind: input, shape index: {}]
  %s1 = inlined_call_operand.vmem [shape: bf16[9,16,32], index: 1, kind: input, shape index: {}]
  %s2 = inlined_call_operand.vmem [shape: f32[1,32], index: 2, kind: input, shape index: {}]
  %s3 = inlined_call_operand.vmem [shape: bf16[2,80,32], index: 3, kind: output, shape index: {}]
  %s4 = sld [smem:[#allocation0]]
  $region45: #{encoder_latent_forward.8} parent=0
    _
  %s6 = ssub.s32 1, %s4
  %s7 = scalar_select 0, %s6, %s4
  loop: start=0, step=1, limit=4
  $region2: #{encoder_latent_forward.8} parent=0 // loop_pre_header
    _
  $region3: #{encoder_latent_forward.8} parent=0 // loop_header
    %s9 = sphi 0, %s13
    %p10 = scmp.ge.s32.totalorder %s9, 4
    %s19 = sphi 0, %s21
    %s22 = sphi 0, %s19
    %s23 = sphi 0, %s22
    %s39 = sphi 0, %s23
    %s43 = sphi 0, %s43
    %s45 = sphi 0, %s43
    %s46 = sphi 0, %s45
    %s60 = sphi 0, %s46
    %s64 = sphi 0, %s64
    %s66 = sphi 0, %s64
    %s67 = sphi 0, %s66
    %s81 = sphi 0, %s67
    %s87 = sphi 0, %s89
    %s90 = sphi 0, %s87
    %s91 = sphi 0, %s90
    %s107 = sphi 0, %s91
  $region4: #{encoder_latent_forward.8} parent=0 // loop_header_branch
    %12 = sbr.rel (%p10) target = $region8
  $region5: #{encoder_latent_forward.8} parent=0 // loop_body
    %s14 = ssub.s32 %s9, 1
    %s15 = ssub.s32 %s9, 2
    %s16 = sadd.s32 %s9, 1
    %s17 = ssub.s32 %s9, %s16
    %p18 = scmp.eq.s32.totalorder %s17, 0
    %s20 = sadd.s32 %s19, 1
    %s21 = scalar_select %p18, %s19, %s20
    %p24 = pneg %p18
    %p25 = scmp.eq.s32.totalorder %s9, 1
    %p26 = por %p24, %p25
    %p27 = scmp.ne.s32.totalorder %s19, %s22
    %p28 = scmp.eq.s32.totalorder %s9, 0
    %p29 = por %p27, %p28
    %p30 = scmp.ne.s32.totalorder %s19, %s22
    %p31 = scmp.eq.s32.totalorder %s14, 1
    %p32 = por %p30, %p31
    %p33 = scmp.ne.s32.totalorder %s22, %s23
    %p34 = scmp.eq.s32.totalorder %s14, 0
    %p35 = por %p33, %p34
    %p36 = scmp.ne.s32.totalorder %s22, %s23
    %p37 = scmp.eq.s32.totalorder %s15, 1
    %p38 = por %p36, %p37
    %p40 = scmp.ne.s32.totalorder %s23, %s39
    %p41 = scmp.eq.s32.totalorder %s15, 0
    %p42 = por %p40, %p41
    %s44 = sadd.s32 %s43, 1
    %p47 = scmp.eq.s32.totalorder %s9, 1
    %p48 = scmp.ne.s32.totalorder %s43, %s45
    %p49 = scmp.eq.s32.totalorder %s9, 0
    %p50 = por %p48, %p49
    %p51 = scmp.ne.s32.totalorder %s43, %s45
    %p52 = scmp.eq.s32.totalorder %s14, 1
    %p53 = por %p51, %p52
    %p54 = scmp.ne.s32.totalorder %s45, %s46
    %p55 = scmp.eq.s32.totalorder %s14, 0
    %p56 = por %p54, %p55
    %p57 = scmp.ne.s32.totalorder %s45, %s46
    %p58 = scmp.eq.s32.totalorder %s15, 1
    %p59 = por %p57, %p58
    %p61 = scmp.ne.s32.totalorder %s46, %s60
    %p62 = scmp.eq.s32.totalorder %s15, 0
    %p63 = por %p61, %p62
    %s65 = sadd.s32 %s64, 1
    %p68 = scmp.eq.s32.totalorder %s9, 1
    %p69 = scmp.ne.s32.totalorder %s64, %s66
    %p70 = scmp.eq.s32.totalorder %s9, 0
    %p71 = por %p69, %p70
    %p72 = scmp.ne.s32.totalorder %s64, %s66
    %p73 = scmp.eq.s32.totalorder %s14, 1
    %p74 = por %p72, %p73
    %p75 = scmp.ne.s32.totalorder %s66, %s67
    %p76 = scmp.eq.s32.totalorder %s14, 0
    %p77 = por %p75, %p76
    %p78 = scmp.ne.s32.totalorder %s66, %s67
    %p79 = scmp.eq.s32.totalorder %s15, 1
    %p80 = por %p78, %p79
    %p82 = scmp.ne.s32.totalorder %s67, %s81
    %p83 = scmp.eq.s32.totalorder %s15, 0
    %p84 = por %p82, %p83
    %s85 = ssub.s32 %s9, %s16
    %p86 = scmp.eq.s32.totalorder %s85, 0
    %s88 = sadd.s32 %s87, 1
    %s89 = scalar_select %p86, %s87, %s88
    %p92 = pneg %p86
    %p93 = scmp.eq.s32.totalorder %s9, 1
    %p94 = por %p92, %p93
    %p95 = scmp.ne.s32.totalorder %s87, %s90
    %p96 = scmp.eq.s32.totalorder %s9, 0
    %p97 = por %p95, %p96
    %p98 = scmp.ne.s32.totalorder %s87, %s90
    %p99 = scmp.eq.s32.totalorder %s14, 1
    %p100 = por %p98, %p99
    %p101 = scmp.ne.s32.totalorder %s90, %s91
    %p102 = scmp.eq.s32.totalorder %s14, 0
    %p103 = por %p101, %p102
    %p104 = scmp.ne.s32.totalorder %s90, %s91
    %p105 = scmp.eq.s32.totalorder %s15, 1
    %p106 = por %p104, %p105
    %p108 = scmp.ne.s32.totalorder %s91, %s107
    %p109 = scmp.eq.s32.totalorder %s15, 0
    %p110 = por %p108, %p109
    %p111 = scmp.le.s32.totalorder 1, %s9
    %p112 = scmp.lt.s32.totalorder %s9, 3
    %p113 = pnand %p111, %p112
    %p114 = pneg %p113
    // Predicated region
    $region9: #{encoder_latent_forward.8} parent=5 // pred_check
      _
    $region10: #{encoder_latent_forward.8} parent=5 // pred_check_branch
      %116 = sbr.rel (%p113) target = $region12
    $region11: #{encoder_latent_forward.8} parent=5 // pred_region
      %s117 = ssub.s32 %s9, 1
      // Predicated region
      $region13: #{encoder_latent_forward.8} parent=11 // pred_check
        %p118 = pneg %p56
      $region14: #{encoder_latent_forward.8} parent=11 // pred_check_branch
        %120 = sbr.rel (%p118) target = $region16
      $region15: #{encoder_latent_forward.8} parent=11 // pred_region
        _
      $region16: #{encoder_latent_forward.8} parent=11 // pred_fallthru
        _
      // Predicated region
      $region17: #{encoder_latent_forward.8} parent=11 // pred_check
        %p121 = pneg %p77
      $region18: #{encoder_latent_forward.8} parent=11 // pred_check_branch
        %123 = sbr.rel (%p121) target = $region20
      $region19: #{encoder_latent_forward.8} parent=11 // pred_region
        _
      $region20: #{encoder_latent_forward.8} parent=11 // pred_fallthru
        _
    $region12: #{encoder_latent_forward.8} parent=5 // pred_fallthru
      _
    %p124 = scmp.lt.s32.totalorder %s9, 2
    // Predicated region
    $region21: #{encoder_latent_forward.8} parent=5 // pred_check
      %p125 = pneg %p124
    $region22: #{encoder_latent_forward.8} parent=5 // pred_check_branch
      %127 = sbr.rel (%p125) target = $region24
    $region23: #{encoder_latent_forward.8} parent=5 // pred_region
      // Predicated region
      $region25: #{encoder_latent_forward.8} parent=23 // pred_check
        %p128 = pneg %p29
      $region26: #{encoder_latent_forward.8} parent=23 // pred_check_branch
        %130 = sbr.rel (%p128) target = $region28
      $region27: #{encoder_latent_forward.8} parent=23 // pred_region
        %p131 = scmp.lt.s32.totalorder %s9, 1
        %s132 = scalar_select %p131, %s9, 1
        %s133 = smul.addr %s132, 14
        %s134 = smul.addr %s133, 4
        %s135 = scalar_lea.vmem %s0, %s134
      $region28: #{encoder_latent_forward.8} parent=23 // pred_fallthru
        _
    $region24: #{encoder_latent_forward.8} parent=5 // pred_fallthru
      _
    %p136 = scmp.le.s32.totalorder 1, %s9
    %p137 = scmp.lt.s32.totalorder %s9, 3
    %p138 = pnand %p136, %p137
    %p139 = pneg %p138
    // Predicated region
    $region29: #{encoder_latent_forward.8} parent=5 // pred_check
      _
    $region30: #{encoder_latent_forward.8} parent=5 // pred_check_branch
      %141 = sbr.rel (%p138) target = $region32
    $region31: #{encoder_latent_forward.8} parent=5 // pred_region
      %s142 = ssub.s32 %s9, 1
      %p143 = scmp.lt.s32.totalorder %s14, 1
      %s144 = scalar_select %p143, %s14, 1
      %s145 = smul.addr %s144, 14
      %s146 = smul.addr %s145, 4
      %s147 = scalar_lea.vmem %s0, %s146
      %p148 = pneg %p35
      %p149 = pneg %p32
      %p150 = pneg %p56
      %p151 = pneg %p53
      %p152 = pneg %p77
      %p153 = pneg %p74
      %p154 = pneg %p103
      %p155 = pneg %p100
      %p156 = scmp.lt.s32.totalorder %s14, 1
      %s157 = scalar_select %p156, %s14, 1
      %s158 = smul.addr %s157, 10
      %s159 = smul.addr %s158, 4
      %s160 = scalar_lea.vmem %s3, %s159
      %p161 = scmp.lt.s32.totalorder %s14, 1
      %s162 = scalar_select %p161, %s14, 1
      %s163 = smul.addr %s162, 14
      %s164 = smul.addr %s163, 4
      %s165 = scalar_lea.vmem %s0, %s164
      %p166 = scmp.lt.s32.totalorder %s14, 1
      %s167 = scalar_select %p166, %s14, 1
      %s168 = smul.addr %s167, 10
      %s169 = smul.addr %s168, 4
      %s170 = scalar_lea.vmem %s3, %s169
      %v172 = vld [vmem:[%s165] sm:$0xf]
      %v173 = vld [vmem:[%s165 + $0x4] sm:$0xf]
      %v174 = vld [vmem:[%s165 + $0x8] sm:$0xf]
      %v175 = vld [vmem:[%s165 + $0xc] sm:$0xf]
      %v176 = vld [vmem:[%s165 + $0x10] sm:$0xf]
      %v177 = vld [vmem:[%s165 + $0x14] sm:$0xf]
      %v178 = vld [vmem:[%s165 + $0x18] sm:$0xf]
      %v179 = vld [vmem:[%s165 + $0x1c] sm:$0xf]
      %v180 = vld [vmem:[%s165 + $0x20] sm:$0xf]
      %v181 = vld [vmem:[%s165 + $0x24] sm:$0xf]
      %v182 = vld [vmem:[%s1] sm:$0xf]
      %v183 = vld [vmem:[%s1 + $0x4] sm:$0xf]
      %v184 = vld [vmem:[%s165 + $0x28] sm:$0x1]
      %s185 = scalar_lea.vmem %s1, 8
      %v186 = vld [vmem:[%s185] sm:$0xf]
      %v187 = vld [vmem:[%s185 + $0x4] sm:$0xf]
      %v199 = vunpack.c.l.b16 %v172
      %v200 = vunpack.c.l.b16 %v173
      %v201 = vunpack.c.l.b16 %v174
      %v202 = vunpack.c.l.b16 %v175
      %v203 = vunpack.c.l.b16 %v176
      %v204 = vunpack.c.l.b16 %v177
      %v205 = vunpack.c.l.b16 %v178
      %v206 = vunpack.c.l.b16 %v179
      %v207 = vunpack.c.l.b16 %v180
      %v208 = vunpack.c.l.b16 %v181
      %v209 = vunpack.c.l.b16 %v184
      %v210 = vpack.c.b16 %v200, %v199
      %v211 = vpack.c.b16 %v202, %v201
      %v212 = vpack.c.b16 %v204, %v203
      %v213 = vpack.c.b16 %v206, %v205
      %v214 = vpack.c.b16 %v208, %v207
      %v215 = vpack.c.b16 %v209, %v209
      %vm216 = vsmask.f32 7424
      %v218 = vshrl.u32 %v210, 16
      %v220 = vshll.u32 %v210, 16
      %v222 = vrot.slane %v220, 1
      %v223 = vor.u32 %v218, %v222
      %v225 = vshll.u32 %v211, 16
      %v227 = vrot.slane %v225, 1
      %v228 = vsel %vm216, %v223, %v227
      %v229 = vshrl.u32 %v211, 16
      %v231 = vor.u32 %v229, %v227
      %v233 = vshll.u32 %v212, 16
      %v235 = vrot.slane %v233, 1
      %v236 = vsel %vm216, %v231, %v235
      %v237 = vshrl.u32 %v212, 16
      %v239 = vor.u32 %v237, %v235
      %v241 = vshll.u32 %v213, 16
      %v243 = vrot.slane %v241, 1
      %v244 = vsel %vm216, %v239, %v243
      %v245 = vshrl.u32 %v213, 16
      %v247 = vor.u32 %v245, %v243
      %v249 = vshll.u32 %v214, 16
      %v251 = vrot.slane %v249, 1
      %v252 = vsel %vm216, %v247, %v251
      %v253 = vshrl.u32 %v214, 16
      %v255 = vor.u32 %v253, %v251
      %v257 = vshll.u32 %v215, 16
      %v259 = vrot.slane %v257, 1
      %v260 = vsel %vm216, %v255, %v259
      %v263 = vunpack.c.l.b16 %v186
      %v264 = vunpack.c.l.b16 %v187
      %v265 = vpack.c.b16 %v264, %v263
      %vm267 = vcmask 130048
      %v269 = vsel %vm267, %v228, 0
      %v272 = vsel %vm267, %v236, 0
      %v275 = vsel %vm267, %v244, 0
      %v278 = vsel %vm267, %v252, 0
      %v281 = vsel %vm267, %v260, 0
      %283 = vmatprep.subr.bf16.mxu0 0
      %284 = vmatpush1.bf16.msra.mxu0 %v265
      %285 = vmatprep.subr.bf16.mxu0 0
      %286 = vmatpush1.bf16.msra.mxu0 0
      %287 = vmatprep.subr.bf16.mxu0 0
      %288 = vmatpush1.bf16.msra.mxu0 0
      %289 = vmatprep.subr.bf16.mxu0 0
      %290 = vmatpush1.bf16.msra.mxu0 0
      %291 = vmatprep.subr.bf16.mxu0 0
      %292 = vmatpush1.bf16.msra.mxu0 0
      %293 = vmatprep.subr.bf16.mxu0 0
      %294 = vmatpush1.bf16.msra.mxu0 0
      %295 = vmatprep.subr.bf16.mxu0 0
      %296 = vmatpush1.bf16.msra.mxu0 0
      %297 = vmatprep.subr.bf16.mxu0 0
      %298 = vmatpush1.bf16.msra.mxu0 0
      %299 = vmatprep.subr.bf16.mxu0 0
      %300 = vmatpush1.bf16.msra.mxu0 0
      %301 = vmatprep.subr.bf16.mxu0 0
      %302 = vmatpush1.bf16.msra.mxu0 0
      %303 = vmatprep.subr.bf16.mxu0 0
      %304 = vmatpush1.bf16.msra.mxu0 0
      %305 = vmatprep.subr.bf16.mxu0 0
      %306 = vmatpush1.bf16.msra.mxu0 0
      %307 = vmatprep.subr.bf16.mxu0 0
      %308 = vmatpush1.bf16.msra.mxu0 0
      %309 = vmatprep.subr.bf16.mxu0 0
      %310 = vmatpush1.bf16.msra.mxu0 0
      %311 = vmatprep.subr.bf16.mxu0 0
      %312 = vmatpush1.bf16.msra.mxu0 0
      %313 = vmatprep.subr.bf16.mxu0 0
      %314 = vmatpush1.bf16.msra.mxu0 0
      %315 = vmatprep.mubr.bf16.mxu0 0
      %316 = vmatmul.mubr.bf16.gmra.mrb[0].mxu0 %v269
      %v317 = vpop.f32.mrb[0].mxu0
      %v318 = vadd.f32 0.0, %v317
      %v319 = vpop.f32.mrb[0].mxu0
      %v320 = vpop.f32.mrb[0].mxu0
      %v321 = vadd.f32 0.0, %v320
      %v322 = vpop.f32.mrb[0].mxu0
      %323 = vmatprep.mubr.bf16.mxu0 0
      %324 = vmatmul.mubr.bf16.gmra.mrb[0].mxu0 %v272
      %v325 = vpop.f32.mrb[0].mxu0
      %v326 = vadd.f32 0.0, %v325
      %v327 = vpop.f32.mrb[0].mxu0
      %v328 = vpop.f32.mrb[0].mxu0
      %v329 = vadd.f32 0.0, %v328
      %v330 = vpop.f32.mrb[0].mxu0
      %331 = vmatprep.mubr.bf16.mxu0 0
      %332 = vmatmul.mubr.bf16.gmra.mrb[0].mxu0 %v275
      %v333 = vpop.f32.mrb[0].mxu0
      %v334 = vadd.f32 0.0, %v333
      %v335 = vpop.f32.mrb[0].mxu0
      %v336 = vpop.f32.mrb[0].mxu0
      %v337 = vadd.f32 0.0, %v336
      %v338 = vpop.f32.mrb[0].mxu0
      %339 = vmatprep.mubr.bf16.mxu0 0
      %340 = vmatmul.mubr.bf16.gmra.mrb[0].mxu0 %v278
      %v341 = vpop.f32.mrb[0].mxu0
      %v342 = vadd.f32 0.0, %v341
      %v343 = vpop.f32.mrb[0].mxu0
      %v344 = vpop.f32.mrb[0].mxu0
      %v345 = vadd.f32 0.0, %v344
      %v346 = vpop.f32.mrb[0].mxu0
      %347 = vmatprep.mubr.bf16.mxu0 0
      %348 = vmatmul.mubr.bf16.gmra.mrb[0].mxu0 %v281
      %v349 = vpop.f32.mrb[0].mxu0
      %v350 = vadd.f32 0.0, %v349
      %v351 = vpop.f32.mrb[0].mxu0
      %v352 = vpop.f32.mrb[0].mxu0
      %v353 = vadd.f32 0.0, %v352
      %v354 = vpop.f32.mrb[0].mxu0
      %355 = vdwg.mxu0
      %v358 = vunpack.c.l.b16 %v182
      %v359 = vunpack.c.l.b16 %v183
      %v360 = vpack.c.b16 %v359, %v358
      %v362 = vsel %vm267, %v210, 0
      %v364 = vsel %vm267, %v211, 0
      %v366 = vsel %vm267, %v212, 0
      %v368 = vsel %vm267, %v213, 0
      %v370 = vsel %vm267, %v214, 0
      %372 = vmatprep.subr.bf16.mxu0 0
      %373 = vmatpush1.bf16.msra.mxu0 %v360
      %374 = vmatprep.subr.bf16.mxu0 0
      %375 = vmatpush1.bf16.msra.mxu0 0
      %376 = vmatprep.subr.bf16.mxu0 0
      %377 = vmatpush1.bf16.msra.mxu0 0
      %378 = vmatprep.subr.bf16.mxu0 0
      %379 = vmatpush1.bf16.msra.mxu0 0
      %380 = vmatprep.subr.bf16.mxu0 0
      %381 = vmatpush1.bf16.msra.mxu0 0
      %382 = vmatprep.subr.bf16.mxu0 0
      %383 = vmatpush1.bf16.msra.mxu0 0
      %384 = vmatprep.subr.bf16.mxu0 0
      %385 = vmatpush1.bf16.msra.mxu0 0
      %386 = vmatprep.subr.bf16.mxu0 0
      %387 = vmatpush1.bf16.msra.mxu0 0
      %388 = vmatprep.subr.bf16.mxu0 0
      %389 = vmatpush1.bf16.msra.mxu0 0
      %390 = vmatprep.subr.bf16.mxu0 0
      %391 = vmatpush1.bf16.msra.mxu0 0
      %392 = vmatprep.subr.bf16.mxu0 0
      %393 = vmatpush1.bf16.msra.mxu0 0
      %394 = vmatprep.subr.bf16.mxu0 0
      %395 = vmatpush1.bf16.msra.mxu0 0
      %396 = vmatprep.subr.bf16.mxu0 0
      %397 = vmatpush1.bf16.msra.mxu0 0
      %398 = vmatprep.subr.bf16.mxu0 0
      %399 = vmatpush1.bf16.msra.mxu0 0
      %400 = vmatprep.subr.bf16.mxu0 0
      %401 = vmatpush1.bf16.msra.mxu0 0
      %402 = vmatprep.subr.bf16.mxu0 0
      %403 = vmatpush1.bf16.msra.mxu0 0
      %404 = vmatprep.mubr.bf16.mxu0 0
      %405 = vmatmul.mubr.bf16.gmra.mrb[0].mxu0 %v362
      %v406 = vpop.f32.mrb[0].mxu0
      %v407 = vadd.f32 %v318, %v406
      %v408 = vpop.f32.mrb[0].mxu0
      %v409 = vpop.f32.mrb[0].mxu0
      %v410 = vadd.f32 %v321, %v409
      %v411 = vpop.f32.mrb[0].mxu0
      %412 = vmatprep.mubr.bf16.mxu0 0
      %413 = vmatmul.mubr.bf16.gmra.mrb[0].mxu0 %v364
      %v414 = vpop.f32.mrb[0].mxu0
      %v415 = vadd.f32 %v326, %v414
      %v416 = vpop.f32.mrb[0].mxu0
      %v417 = vpop.f32.mrb[0].mxu0
      %v418 = vadd.f32 %v329, %v417
      %v419 = vpop.f32.mrb[0].mxu0
      %420 = vmatprep.mubr.bf16.mxu0 0
      %421 = vmatmul.mubr.bf16.gmra.mrb[0].mxu0 %v366
      %v422 = vpop.f32.mrb[0].mxu0
      %v423 = vadd.f32 %v334, %v422
      %v424 = vpop.f32.mrb[0].mxu0
      %v425 = vpop.f32.mrb[0].mxu0
      %v426 = vadd.f32 %v337, %v425
      %v427 = vpop.f32.mrb[0].mxu0
      %428 = vmatprep.mubr.bf16.mxu0 0
      %429 = vmatmul.mubr.bf16.gmra.mrb[0].mxu0 %v368
      %v430 = vpop.f32.mrb[0].mxu0
      %v431 = vadd.f32 %v342, %v430
      %v432 = vpop.f32.mrb[0].mxu0
      %v433 = vpop.f32.mrb[0].mxu0
      %v434 = vadd.f32 %v345, %v433
      %v435 = vpop.f32.mrb[0].mxu0
      %436 = vmatprep.mubr.bf16.mxu0 0
      %437 = vmatmul.mubr.bf16.gmra.mrb[0].mxu0 %v370
      %v438 = vpop.f32.mrb[0].mxu0
      %v439 = vadd.f32 %v350, %v438
      %v440 = vpop.f32.mrb[0].mxu0
      %v441 = vpop.f32.mrb[0].mxu0
      %v442 = vadd.f32 %v353, %v441
      %v443 = vpop.f32.mrb[0].mxu0
      %444 = vdwg.mxu0
      %v445 = vld [vmem:[%s165] sm:$0xe]
      %s446 = scalar_lea.vmem %s1, 16
      %v447 = vld [vmem:[%s446] sm:$0xf]
      %v448 = vld [vmem:[%s446 + $0x4] sm:$0xf]
      %v450 = vunpack.c.l.b16 %v445
      %v451 = vpack.c.b16 %v200, %v450
      %vm452 = vcmask 1046528
      %v453 = vrot.slane %v451, 1
      %v454 = vrot.slane %v211, 1
      %v455 = vsel %vm452, %v453, %v454
      %v456 = vrot.slane %v212, 1
      %v457 = vsel %vm452, %v454, %v456
      %v458 = vrot.slane %v213, 1
      %v459 = vsel %vm452, %v456, %v458
      %v460 = vrot.slane %v214, 1
      %v461 = vsel %vm452, %v458, %v460
      %v462 = vrot.slane %v215, 1
      %v463 = vsel %vm452, %v460, %v462
      %v466 = vunpack.c.l.b16 %v447
      %v467 = vunpack.c.l.b16 %v448
      %v468 = vpack.c.b16 %v467, %v466
      %v471 = vsel %vm267, %v455, 0
      %v474 = vsel %vm267, %v457, 0
      %v477 = vsel %vm267, %v459, 0
      %v480 = vsel %vm267, %v461, 0
      %v483 = vsel %vm267, %v463, 0
      %485 = vmatprep.subr.bf16.mxu0 0
      %486 = vmatpush1.bf16.msra.mxu0 %v468
      %487 = vmatprep.subr.bf16.mxu0 0
      %488 = vmatpush1.bf16.msra.mxu0 0
      %489 = vmatprep.subr.bf16.mxu0 0
      %490 = vmatpush1.bf16.msra.mxu0 0
      %491 = vmatprep.subr.bf16.mxu0 0
      %492 = vmatpush1.bf16.msra.mxu0 0
      %493 = vmatprep.subr.bf16.mxu0 0
      %494 = vmatpush1.bf16.msra.mxu0 0
      %495 = vmatprep.subr.bf16.mxu0 0
      %496 = vmatpush1.bf16.msra.mxu0 0
      %497 = vmatprep.subr.bf16.mxu0 0
      %498 = vmatpush1.bf16.msra.mxu0 0
      %499 = vmatprep.subr.bf16.mxu0 0
      %500 = vmatpush1.bf16.msra.mxu0 0
      %501 = vmatprep.subr.bf16.mxu0 0
      %502 = vmatpush1.bf16.msra.mxu0 0
      %503 = vmatprep.subr.bf16.mxu0 0
      %504 = vmatpush1.bf16.msra.mxu0 0
      %505 = vmatprep.subr.bf16.mxu0 0
      %506 = vmatpush1.bf16.msra.mxu0 0
      %507 = vmatprep.subr.bf16.mxu0 0
      %508 = vmatpush1.bf16.msra.mxu0 0
      %509 = vmatprep.subr.bf16.mxu0 0
      %510 = vmatpush1.bf16.msra.mxu0 0
      %511 = vmatprep.subr.bf16.mxu0 0
      %512 = vmatpush1.bf16.msra.mxu0 0
      %513 = vmatprep.subr.bf16.mxu0 0
      %514 = vmatpush1.bf16.msra.mxu0 0
      %515 = vmatprep.subr.bf16.mxu0 0
      %516 = vmatpush1.bf16.msra.mxu0 0
      %517 = vmatprep.mubr.bf16.mxu0 0
      %518 = vmatmul.mubr.bf16.gmra.mrb[0].mxu0 %v471
      %v519 = vpop.f32.mrb[0].mxu0
      %v520 = vadd.f32 0.0, %v519
      %v521 = vpop.f32.mrb[0].mxu0
      %v522 = vpop.f32.mrb[0].mxu0
      %v523 = vadd.f32 0.0, %v522
      %v524 = vpop.f32.mrb[0].mxu0
      %525 = vmatprep.mubr.bf16.mxu0 0
      %526 = vmatmul.mubr.bf16.gmra.mrb[0].mxu0 %v474
      %v527 = vpop.f32.mrb[0].mxu0
      %v528 = vadd.f32 0.0, %v527
      %v529 = vpop.f32.mrb[0].mxu0
      %v530 = vpop.f32.mrb[0].mxu0
      %v531 = vadd.f32 0.0, %v530
      %v532 = vpop.f32.mrb[0].mxu0
      %533 = vmatprep.mubr.bf16.mxu0 0
      %534 = vmatmul.mubr.bf16.gmra.mrb[0].mxu0 %v477
      %v535 = vpop.f32.mrb[0].mxu0
      %v536 = vadd.f32 0.0, %v535
      %v537 = vpop.f32.mrb[0].mxu0
      %v538 = vpop.f32.mrb[0].mxu0
      %v539 = vadd.f32 0.0, %v538
      %v540 = vpop.f32.mrb[0].mxu0
      %541 = vmatprep.mubr.bf16.mxu0 0
      %542 = vmatmul.mubr.bf16.gmra.mrb[0].mxu0 %v480
      %v543 = vpop.f32.mrb[0].mxu0
      %v544 = vadd.f32 0.0, %v543
      %v545 = vpop.f32.mrb[0].mxu0
      %v546 = vpop.f32.mrb[0].mxu0
      %v547 = vadd.f32 0.0, %v546
      %v548 = vpop.f32.mrb[0].mxu0
      %549 = vmatprep.mubr.bf16.mxu0 0
      %550 = vmatmul.mubr.bf16.gmra.mrb[0].mxu0 %v483
      %v551 = vpop.f32.mrb[0].mxu0
      %v552 = vadd.f32 0.0, %v551
      %v553 = vpop.f32.mrb[0].mxu0
      %v554 = vpop.f32.mrb[0].mxu0
      %v555 = vadd.f32 0.0, %v554
      %v556 = vpop.f32.mrb[0].mxu0
      %557 = vdwg.mxu0
      %v558 = vadd.f32 %v407, %v520
      %v559 = vadd.f32 %v410, %v523
      %v560 = vadd.f32 %v415, %v528
      %v561 = vadd.f32 %v418, %v531
      %v562 = vadd.f32 %v423, %v536
      %v563 = vadd.f32 %v426, %v539
      %v564 = vadd.f32 %v431, %v544
      %v565 = vadd.f32 %v434, %v547
      %v566 = vadd.f32 %v439, %v552
      %v567 = vadd.f32 %v442, %v555
      %v568 = vld [vmem:[%s165 + $0x4] sm:$0xe]
      %v569 = vld [vmem:[%s165 + $0x8] sm:$0xf]
      %v570 = vld [vmem:[%s165 + $0xc] sm:$0xf]
      %v571 = vld [vmem:[%s165 + $0x10] sm:$0xf]
      %v572 = vld [vmem:[%s165 + $0x14] sm:$0xf]
      %v573 = vld [vmem:[%s165 + $0x18] sm:$0xf]
      %v574 = vld [vmem:[%s165 + $0x1c] sm:$0xf]
      %v575 = vld [vmem:[%s165 + $0x20] sm:$0xf]
      %v576 = vld [vmem:[%s165 + $0x24] sm:$0xf]
      %v577 = vld [vmem:[%s165 + $0x28] sm:$0xf]
      %v578 = vld [vmem:[%s165 + $0x2c] sm:$0x1]
      %s579 = scalar_lea.vmem %s1, 24
      %v580 = vld [vmem:[%s579] sm:$0xf]
      %v581 = vld [vmem:[%s579 + $0x4] sm:$0xf]
      %v593 = vunpack.c.l.b16 %v568
      %v594 = vunpack.c.l.b16 %v569
      %v595 = vunpack.c.l.b16 %v570
      %v596 = vunpack.c.l.b16 %v571
      %v597 = vunpack.c.l.b16 %v572
      %v598 = vunpack.c.l.b16 %v573
      %v599 = vunpack.c.l.b16 %v574
      %v600 = vunpack.c.l.b16 %v575
      %v601 = vunpack.c.l.b16 %v576
      %v602 = vunpack.c.l.b16 %v577
      %v603 = vunpack.c.l.b16 %v578
      %v604 = vpack.c.b16 %v594, %v593
      %v605 = vpack.c.b16 %v596, %v595
      %v606 = vpack.c.b16 %v598, %v597
      %v607 = vpack.c.b16 %v600, %v599
      %v608 = vpack.c.b16 %v602, %v601
      %v609 = vpack.c.b16 %v603, %v603
      %v610 = vrot.slane %v604, 1
      %v611 = vrot.slane %v605, 1
      %v612 = vsel %vm452, %v610, %v611
      %v613 = vrot.slane %v606, 1
      %v614 = vsel %vm452, %v611, %v613
      %v615 = vrot.slane %v607, 1
      %v616 = vsel %vm452, %v613, %v615
      %v617 = vrot.slane %v608, 1
      %v618 = vsel %vm452, %v615, %v617
      %v619 = vrot.slane %v609, 1
      %v620 = vsel %vm452, %v617, %v619
      %v623 = vunpack.c.l.b16 %v580
      %v624 = vunpack.c.l.b16 %v581
      %v625 = vpack.c.b16 %v624, %v623
      %v628 = vsel %vm267, %v612, 0
      %v631 = vsel %vm267, %v614, 0
      %v634 = vsel %vm267, %v616, 0
      %v637 = vsel %vm267, %v618, 0
      %v640 = vsel %vm267, %v620, 0
      %642 = vmatprep.subr.bf16.mxu0 0
      %643 = vmatpush1.bf16.msra.mxu0 %v625
      %644 = vmatprep.subr.bf16.mxu0 0
      %645 = vmatpush1.bf16.msra.mxu0 0
      %646 = vmatprep.subr.bf16.mxu0 0
      %647 = vmatpush1.bf16.msra.mxu0 0
      %648 = vmatprep.subr.bf16.mxu0 0
      %649 = vmatpush1.bf16.msra.mxu0 0
      %650 = vmatprep.subr.bf16.mxu0 0
      %651 = vmatpush1.bf16.msra.mxu0 0
      %652 = vmatprep.subr.bf16.mxu0 0
      %653 = vmatpush1.bf16.msra.mxu0 0
      %654 = vmatprep.subr.bf16.mxu0 0
      %655 = vmatpush1.bf16.msra.mxu0 0
      %656 = vmatprep.subr.bf16.mxu0 0
      %657 = vmatpush1.bf16.msra.mxu0 0
      %658 = vmatprep.subr.bf16.mxu0 0
      %659 = vmatpush1.bf16.msra.mxu0 0
      %660 = vmatprep.subr.bf16.mxu0 0
      %661 = vmatpush1.bf16.msra.mxu0 0
      %662 = vmatprep.subr.bf16.mxu0 0
      %663 = vmatpush1.bf16.msra.mxu0 0
      %664 = vmatprep.subr.bf16.mxu0 0
      %665 = vmatpush1.bf16.msra.mxu0 0
      %666 = vmatprep.subr.bf16.mxu0 0
      %667 = vmatpush1.bf16.msra.mxu0 0
      %668 = vmatprep.subr.bf16.mxu0 0
      %669 = vmatpush1.bf16.msra.mxu0 0
      %670 = vmatprep.subr.bf16.mxu0 0
      %671 = vmatpush1.bf16.msra.mxu0 0
      %672 = vmatprep.subr.bf16.mxu0 0
      %673 = vmatpush1.bf16.msra.mxu0 0
      %674 = vmatprep.mubr.bf16.mxu0 0
      %675 = vmatmul.mubr.bf16.gmra.mrb[0].mxu0 %v628
      %v676 = vpop.f32.mrb[0].mxu0
      %v677 = vadd.f32 0.0, %v676
      %v678 = vpop.f32.mrb[0].mxu0
      %v679 = vpop.f32.mrb[0].mxu0
      %v680 = vadd.f32 0.0, %v679
      %v681 = vpop.f32.mrb[0].mxu0
      %682 = vmatprep.mubr.bf16.mxu0 0
      %683 = vmatmul.mubr.bf16.gmra.mrb[0].mxu0 %v631
      %v684 = vpop.f32.mrb[0].mxu0
      %v685 = vadd.f32 0.0, %v684
      %v686 = vpop.f32.mrb[0].mxu0
      %v687 = vpop.f32.mrb[0].mxu0
      %v688 = vadd.f32 0.0, %v687
      %v689 = vpop.f32.mrb[0].mxu0
      %690 = vmatprep.mubr.bf16.mxu0 0
      %691 = vmatmul.mubr.bf16.gmra.mrb[0].mxu0 %v634
      %v692 = vpop.f32.mrb[0].mxu0
      %v693 = vadd.f32 0.0, %v692
      %v694 = vpop.f32.mrb[0].mxu0
      %v695 = vpop.f32.mrb[0].mxu0
      %v696 = vadd.f32 0.0, %v695
      %v697 = vpop.f32.mrb[0].mxu0
      %698 = vmatprep.mubr.bf16.mxu0 0
      %699 = vmatmul.mubr.bf16.gmra.mrb[0].mxu0 %v637
      %v700 = vpop.f32.mrb[0].mxu0
      %v701 = vadd.f32 0.0, %v700
      %v702 = vpop.f32.mrb[0].mxu0
      %v703 = vpop.f32.mrb[0].mxu0
      %v704 = vadd.f32 0.0, %v703
      %v705 = vpop.f32.mrb[0].mxu0
      %706 = vmatprep.mubr.bf16.mxu0 0
      %707 = vmatmul.mubr.bf16.gmra.mrb[0].mxu0 %v640
      %v708 = vpop.f32.mrb[0].mxu0
      %v709 = vadd.f32 0.0, %v708
      %v710 = vpop.f32.mrb[0].mxu0
      %v711 = vpop.f32.mrb[0].mxu0
      %v712 = vadd.f32 0.0, %v711
      %v713 = vpop.f32.mrb[0].mxu0
      %714 = vdwg.mxu0
      %v715 = vadd.f32 %v558, %v677
      %v716 = vadd.f32 %v559, %v680
      %v717 = vadd.f32 %v560, %v685
      %v718 = vadd.f32 %v561, %v688
      %v719 = vadd.f32 %v562, %v693
      %v720 = vadd.f32 %v563, %v696
      %v721 = vadd.f32 %v564, %v701
      %v722 = vadd.f32 %v565, %v704
      %v723 = vadd.f32 %v566, %v709
      %v724 = vadd.f32 %v567, %v712
      %v725 = vld [vmem:[%s165 + $0x2c] sm:$0x3]
      %s726 = scalar_lea.vmem %s1, 32
      %v727 = vld [vmem:[%s726] sm:$0xf]
      %v728 = vld [vmem:[%s726 + $0x4] sm:$0xf]
      %v730 = vunpack.c.l.b16 %v725
      %v731 = vpack.c.b16 %v730, %v730
      %vm732 = vsmask.f32 6400
      %v734 = vshrl.u32 %v604, 16
      %v736 = vrot.slane %v734, 1
      %v737 = vshll.u32 %v604, 16
      %v739 = vrot.slane %v737, 2
      %v740 = vor.u32 %v736, %v739
      %v742 = vshrl.u32 %v605, 16
      %v744 = vrot.slane %v742, 1
      %v745 = vshll.u32 %v605, 16
      %v747 = vrot.slane %v745, 2
      %v748 = vor.u32 %v744, %v747
      %v749 = vsel %vm732, %v740, %v748
      %v751 = vshrl.u32 %v606, 16
      %v753 = vrot.slane %v751, 1
      %v754 = vshll.u32 %v606, 16
      %v756 = vrot.slane %v754, 2
      %v757 = vor.u32 %v753, %v756
      %v758 = vsel %vm732, %v748, %v757
      %v760 = vshrl.u32 %v607, 16
      %v762 = vrot.slane %v760, 1
      %v763 = vshll.u32 %v607, 16
      %v765 = vrot.slane %v763, 2
      %v766 = vor.u32 %v762, %v765
      %v767 = vsel %vm732, %v757, %v766
      %v769 = vshrl.u32 %v608, 16
      %v771 = vrot.slane %v769, 1
      %v772 = vshll.u32 %v608, 16
      %v774 = vrot.slane %v772, 2
      %v775 = vor.u32 %v771, %v774
      %v776 = vsel %vm732, %v766, %v775
      %v778 = vshrl.u32 %v731, 16
      %v780 = vrot.slane %v778, 1
      %v781 = vshll.u32 %v731, 16
      %v783 = vrot.slane %v781, 2
      %v784 = vor.u32 %v780, %v783
      %v785 = vsel %vm732, %v775, %v784
      %v788 = vunpack.c.l.b16 %v727
      %v789 = vunpack.c.l.b16 %v728
      %v790 = vpack.c.b16 %v789, %v788
      %v793 = vsel %vm267, %v749, 0
      %v796 = vsel %vm267, %v758, 0
      %v799 = vsel %vm267, %v767, 0
      %v802 = vsel %vm267, %v776, 0
      %v805 = vsel %vm267, %v785, 0
      %807 = vmatprep.subr.bf16.mxu0 0
      %808 = vmatpush1.bf16.msra.mxu0 %v790
      %809 = vmatprep.subr.bf16.mxu0 0
      %810 = vmatpush1.bf16.msra.mxu0 0
      %811 = vmatprep.subr.bf16.mxu0 0
      %812 = vmatpush1.bf16.msra.mxu0 0
      %813 = vmatprep.subr.bf16.mxu0 0
      %814 = vmatpush1.bf16.msra.mxu0 0
      %815 = vmatprep.subr.bf16.mxu0 0
      %816 = vmatpush1.bf16.msra.mxu0 0
      %817 = vmatprep.subr.bf16.mxu0 0
      %818 = vmatpush1.bf16.msra.mxu0 0
      %819 = vmatprep.subr.bf16.mxu0 0
      %820 = vmatpush1.bf16.msra.mxu0 0
      %821 = vmatprep.subr.bf16.mxu0 0
      %822 = vmatpush1.bf16.msra.mxu0 0
      %823 = vmatprep.subr.bf16.mxu0 0
      %824 = vmatpush1.bf16.msra.mxu0 0
      %825 = vmatprep.subr.bf16.mxu0 0
      %826 = vmatpush1.bf16.msra.mxu0 0
      %827 = vmatprep.subr.bf16.mxu0 0
      %828 = vmatpush1.bf16.msra.mxu0 0
      %829 = vmatprep.subr.bf16.mxu0 0
      %830 = vmatpush1.bf16.msra.mxu0 0
      %831 = vmatprep.subr.bf16.mxu0 0
      %832 = vmatpush1.bf16.msra.mxu0 0
      %833 = vmatprep.subr.bf16.mxu0 0
      %834 = vmatpush1.bf16.msra.mxu0 0
      %835 = vmatprep.subr.bf16.mxu0 0
      %836 = vmatpush1.bf16.msra.mxu0 0
      %837 = vmatprep.subr.bf16.mxu0 0
      %838 = vmatpush1.bf16.msra.mxu0 0
      %839 = vmatprep.mubr.bf16.mxu0 0
      %840 = vmatmul.mubr.bf16.gmra.mrb[0].mxu0 %v793
      %v841 = vpop.f32.mrb[0].mxu0
      %v842 = vadd.f32 0.0, %v841
      %v843 = vpop.f32.mrb[0].mxu0
      %v844 = vpop.f32.mrb[0].mxu0
      %v845 = vadd.f32 0.0, %v844
      %v846 = vpop.f32.mrb[0].mxu0
      %847 = vmatprep.mubr.bf16.mxu0 0
      %848 = vmatmul.mubr.bf16.gmra.mrb[0].mxu0 %v796
      %v849 = vpop.f32.mrb[0].mxu0
      %v850 = vadd.f32 0.0, %v849
      %v851 = vpop.f32.mrb[0].mxu0
      %v852 = vpop.f32.mrb[0].mxu0
      %v853 = vadd.f32 0.0, %v852
      %v854 = vpop.f32.mrb[0].mxu0
      %855 = vmatprep.mubr.bf16.mxu0 0
      %856 = vmatmul.mubr.bf16.gmra.mrb[0].mxu0 %v799
      %v857 = vpop.f32.mrb[0].mxu0
      %v858 = vadd.f32 0.0, %v857
      %v859 = vpop.f32.mrb[0].mxu0
      %v860 = vpop.f32.mrb[0].mxu0
      %v861 = vadd.f32 0.0, %v860
      %v862 = vpop.f32.mrb[0].mxu0
      %863 = vmatprep.mubr.bf16.mxu0 0
      %864 = vmatmul.mubr.bf16.gmra.mrb[0].mxu0 %v802
      %v865 = vpop.f32.mrb[0].mxu0
      %v866 = vadd.f32 0.0, %v865
      %v867 = vpop.f32.mrb[0].mxu0
      %v868 = vpop.f32.mrb[0].mxu0
      %v869 = vadd.f32 0.0, %v868
      %v870 = vpop.f32.mrb[0].mxu0
      %871 = vmatprep.mubr.bf16.mxu0 0
      %872 = vmatmul.mubr.bf16.gmra.mrb[0].mxu0 %v805
      %v873 = vpop.f32.mrb[0].mxu0
      %v874 = vadd.f32 0.0, %v873
      %v875 = vpop.f32.mrb[0].mxu0
      %v876 = vpop.f32.mrb[0].mxu0
      %v877 = vadd.f32 0.0, %v876
      %v878 = vpop.f32.mrb[0].mxu0
      %879 = vdwg.mxu0
      %v880 = vadd.f32 %v715, %v842
      %v881 = vadd.f32 %v716, %v845
      %v882 = vadd.f32 %v717, %v850
      %v883 = vadd.f32 %v718, %v853
      %v884 = vadd.f32 %v719, %v858
      %v885 = vadd.f32 %v720, %v861
      %v886 = vadd.f32 %v721, %v866
      %v887 = vadd.f32 %v722, %v869
      %v888 = vadd.f32 %v723, %v874
      %v889 = vadd.f32 %v724, %v877
      %v890 = vld [vmem:[%s165 + $0x4] sm:$0xc]
      %s891 = scalar_lea.vmem %s1, 40
      %v892 = vld [vmem:[%s891] sm:$0xf]
      %v893 = vld [vmem:[%s891 + $0x4] sm:$0xf]
      %v895 = vunpack.c.l.b16 %v890
      %v896 = vpack.c.b16 %v594, %v895
      %vm897 = vcmask 1045504
      %v898 = vrot.slane %v896, 2
      %v899 = vrot.slane %v605, 2
      %v900 = vsel %vm897, %v898, %v899
      %v901 = vrot.slane %v606, 2
      %v902 = vsel %vm897, %v899, %v901
      %v903 = vrot.slane %v607, 2
      %v904 = vsel %vm897, %v901, %v903
      %v905 = vrot.slane %v608, 2
      %v906 = vsel %vm897, %v903, %v905
      %v907 = vrot.slane %v731, 2
      %v908 = vsel %vm897, %v905, %v907
      %v911 = vunpack.c.l.b16 %v892
      %v912 = vunpack.c.l.b16 %v893
      %v913 = vpack.c.b16 %v912, %v911
      %v916 = vsel %vm267, %v900, 0
      %v919 = vsel %vm267, %v902, 0
      %v922 = vsel %vm267, %v904, 0
      %v925 = vsel %vm267, %v906, 0
      %v928 = vsel %vm267, %v908, 0
      %930 = vmatprep.subr.bf16.mxu0 0
      %931 = vmatpush1.bf16.msra.mxu0 %v913
      %932 = vmatprep.subr.bf16.mxu0 0
      %933 = vmatpush1.bf16.msra.mxu0 0
      %934 = vmatprep.subr.bf16.mxu0 0
      %935 = vmatpush1.bf16.msra.mxu0 0
      %936 = vmatprep.subr.bf16.mxu0 0
      %937 = vmatpush1.bf16.msra.mxu0 0
      %938 = vmatprep.subr.bf16.mxu0 0
      %939 = vmatpush1.bf16.msra.mxu0 0
      %940 = vmatprep.subr.bf16.mxu0 0
      %941 = vmatpush1.bf16.msra.mxu0 0
      %942 = vmatprep.subr.bf16.mxu0 0
      %943 = vmatpush1.bf16.msra.mxu0 0
      %944 = vmatprep.subr.bf16.mxu0 0
      %945 = vmatpush1.bf16.msra.mxu0 0
      %946 = vmatprep.subr.bf16.mxu0 0
      %947 = vmatpush1.bf16.msra.mxu0 0
      %948 = vmatprep.subr.bf16.mxu0 0
      %949 = vmatpush1.bf16.msra.mxu0 0
      %950 = vmatprep.subr.bf16.mxu0 0
      %951 = vmatpush1.bf16.msra.mxu0 0
      %952 = vmatprep.subr.bf16.mxu0 0
      %953 = vmatpush1.bf16.msra.mxu0 0
      %954 = vmatprep.subr.bf16.mxu0 0
      %955 = vmatpush1.bf16.msra.mxu0 0
      %956 = vmatprep.subr.bf16.mxu0 0
      %957 = vmatpush1.bf16.msra.mxu0 0
      %958 = vmatprep.subr.bf16.mxu0 0
      %959 = vmatpush1.bf16.msra.mxu0 0
      %960 = vmatprep.subr.bf16.mxu0 0
      %961 = vmatpush1.bf16.msra.mxu0 0
      %962 = vmatprep.mubr.bf16.mxu0 0
      %963 = vmatmul.mubr.bf16.gmra.mrb[0].mxu0 %v916
      %v964 = vpop.f32.mrb[0].mxu0
      %v965 = vadd.f32 0.0, %v964
      %v966 = vpop.f32.mrb[0].mxu0
      %v967 = vpop.f32.mrb[0].mxu0
      %v968 = vadd.f32 0.0, %v967
      %v969 = vpop.f32.mrb[0].mxu0
      %970 = vmatprep.mubr.bf16.mxu0 0
      %971 = vmatmul.mubr.bf16.gmra.mrb[0].mxu0 %v919
      %v972 = vpop.f32.mrb[0].mxu0
      %v973 = vadd.f32 0.0, %v972
      %v974 = vpop.f32.mrb[0].mxu0
      %v975 = vpop.f32.mrb[0].mxu0
      %v976 = vadd.f32 0.0, %v975
      %v977 = vpop.f32.mrb[0].mxu0
      %978 = vmatprep.mubr.bf16.mxu0 0
      %979 = vmatmul.mubr.bf16.gmra.mrb[0].mxu0 %v922
      %v980 = vpop.f32.mrb[0].mxu0
      %v981 = vadd.f32 0.0, %v980
      %v982 = vpop.f32.mrb[0].mxu0
      %v983 = vpop.f32.mrb[0].mxu0
      %v984 = vadd.f32 0.0, %v983
      %v985 = vpop.f32.mrb[0].mxu0
      %986 = vmatprep.mubr.bf16.mxu0 0
      %987 = vmatmul.mubr.bf16.gmra.mrb[0].mxu0 %v925
      %v988 = vpop.f32.mrb[0].mxu0
      %v989 = vadd.f32 0.0, %v988
      %v990 = vpop.f32.mrb[0].mxu0
      %v991 = vpop.f32.mrb[0].mxu0
      %v992 = vadd.f32 0.0, %v991
      %v993 = vpop.f32.mrb[0].mxu0
      %994 = vmatprep.mubr.bf16.mxu0 0
      %995 = vmatmul.mubr.bf16.gmra.mrb[0].mxu0 %v928
      %v996 = vpop.f32.mrb[0].mxu0
      %v997 = vadd.f32 0.0, %v996
      %v998 = vpop.f32.mrb[0].mxu0
      %v999 = vpop.f32.mrb[0].mxu0
      %v1000 = vadd.f32 0.0, %v999
      %v1001 = vpop.f32.mrb[0].mxu0
      %1002 = vdwg.mxu0
      %v1003 = vadd.f32 %v880, %v965
      %v1004 = vadd.f32 %v881, %v968
      %v1005 = vadd.f32 %v882, %v973
      %v1006 = vadd.f32 %v883, %v976
      %v1007 = vadd.f32 %v884, %v981
      %v1008 = vadd.f32 %v885, %v984
      %v1009 = vadd.f32 %v886, %v989
      %v1010 = vadd.f32 %v887, %v992
      %v1011 = vadd.f32 %v888, %v997
      %v1012 = vadd.f32 %v889, %v1000
      %v1013 = vld [vmem:[%s165 + $0x8] sm:$0xc]
      %v1014 = vld [vmem:[%s165 + $0xc] sm:$0xf]
      %v1015 = vld [vmem:[%s165 + $0x10] sm:$0xf]
      %v1016 = vld [vmem:[%s165 + $0x14] sm:$0xf]
      %v1017 = vld [vmem:[%s165 + $0x18] sm:$0xf]
      %v1018 = vld [vmem:[%s165 + $0x1c] sm:$0xf]
      %v1019 = vld [vmem:[%s165 + $0x20] sm:$0xf]
      %v1020 = vld [vmem:[%s165 + $0x24] sm:$0xf]
      %v1021 = vld [vmem:[%s165 + $0x28] sm:$0xf]
      %v1022 = vld [vmem:[%s165 + $0x2c] sm:$0xf]
      %v1023 = vld [vmem:[%s165 + $0x30] sm:$0x3]
      %s1024 = scalar_lea.vmem %s1, 48
      %v1025 = vld [vmem:[%s1024] sm:$0xf]
      %v1026 = vld [vmem:[%s1024 + $0x4] sm:$0xf]
      %v1038 = vunpack.c.l.b16 %v1013
      %v1039 = vunpack.c.l.b16 %v1014
      %v1040 = vunpack.c.l.b16 %v1015
      %v1041 = vunpack.c.l.b16 %v1016
      %v1042 = vunpack.c.l.b16 %v1017
      %v1043 = vunpack.c.l.b16 %v1018
      %v1044 = vunpack.c.l.b16 %v1019
      %v1045 = vunpack.c.l.b16 %v1020
      %v1046 = vunpack.c.l.b16 %v1021
      %v1047 = vunpack.c.l.b16 %v1022
      %v1048 = vunpack.c.l.b16 %v1023
      %v1049 = vpack.c.b16 %v1039, %v1038
      %v1050 = vpack.c.b16 %v1041, %v1040
      %v1051 = vpack.c.b16 %v1043, %v1042
      %v1052 = vpack.c.b16 %v1045, %v1044
      %v1053 = vpack.c.b16 %v1047, %v1046
      %v1054 = vpack.c.b16 %v1048, %v1048
      %v1055 = vrot.slane %v1049, 2
      %v1056 = vrot.slane %v1050, 2
      %v1057 = vsel %vm897, %v1055, %v1056
      %v1058 = vrot.slane %v1051, 2
      %v1059 = vsel %vm897, %v1056, %v1058
      %v1060 = vrot.slane %v1052, 2
      %v1061 = vsel %vm897, %v1058, %v1060
      %v1062 = vrot.slane %v1053, 2
      %v1063 = vsel %vm897, %v1060, %v1062
      %v1064 = vrot.slane %v1054, 2
      %v1065 = vsel %vm897, %v1062, %v1064
      %v1068 = vunpack.c.l.b16 %v1025
      %v1069 = vunpack.c.l.b16 %v1026
      %v1070 = vpack.c.b16 %v1069, %v1068
      %v1073 = vsel %vm267, %v1057, 0
      %v1076 = vsel %vm267, %v1059, 0
      %v1079 = vsel %vm267, %v1061, 0
      %v1082 = vsel %vm267, %v1063, 0
      %v1085 = vsel %vm267, %v1065, 0
      %1087 = vmatprep.subr.bf16.mxu0 0
      %1088 = vmatpush1.bf16.msra.mxu0 %v1070
      %1089 = vmatprep.subr.bf16.mxu0 0
      %1090 = vmatpush1.bf16.msra.mxu0 0
      %1091 = vmatprep.subr.bf16.mxu0 0
      %1092 = vmatpush1.bf16.msra.mxu0 0
      %1093 = vmatprep.subr.bf16.mxu0 0
      %1094 = vmatpush1.bf16.msra.mxu0 0
      %1095 = vmatprep.subr.bf16.mxu0 0
      %1096 = vmatpush1.bf16.msra.mxu0 0
      %1097 = vmatprep.subr.bf16.mxu0 0
      %1098 = vmatpush1.bf16.msra.mxu0 0
      %1099 = vmatprep.subr.bf16.mxu0 0
      %1100 = vmatpush1.bf16.msra.mxu0 0
      %1101 = vmatprep.subr.bf16.mxu0 0
      %1102 = vmatpush1.bf16.msra.mxu0 0
      %1103 = vmatprep.subr.bf16.mxu0 0
      %1104 = vmatpush1.bf16.msra.mxu0 0
      %1105 = vmatprep.subr.bf16.mxu0 0
      %1106 = vmatpush1.bf16.msra.mxu0 0
      %1107 = vmatprep.subr.bf16.mxu0 0
      %1108 = vmatpush1.bf16.msra.mxu0 0
      %1109 = vmatprep.subr.bf16.mxu0 0
      %1110 = vmatpush1.bf16.msra.mxu0 0
      %1111 = vmatprep.subr.bf16.mxu0 0
      %1112 = vmatpush1.bf16.msra.mxu0 0
      %1113 = vmatprep.subr.bf16.mxu0 0
      %1114 = vmatpush1.bf16.msra.mxu0 0
      %1115 = vmatprep.subr.bf16.mxu0 0
      %1116 = vmatpush1.bf16.msra.mxu0 0
      %1117 = vmatprep.subr.bf16.mxu0 0
      %1118 = vmatpush1.bf16.msra.mxu0 0
      %1119 = vmatprep.mubr.bf16.mxu0 0
      %1120 = vmatmul.mubr.bf16.gmra.mrb[0].mxu0 %v1073
      %v1121 = vpop.f32.mrb[0].mxu0
      %v1122 = vadd.f32 0.0, %v1121
      %v1123 = vpop.f32.mrb[0].mxu0
      %v1124 = vpop.f32.mrb[0].mxu0
      %v1125 = vadd.f32 0.0, %v1124
      %v1126 = vpop.f32.mrb[0].mxu0
      %1127 = vmatprep.mubr.bf16.mxu0 0
      %1128 = vmatmul.mubr.bf16.gmra.mrb[0].mxu0 %v1076
      %v1129 = vpop.f32.mrb[0].mxu0
      %v1130 = vadd.f32 0.0, %v1129
      %v1131 = vpop.f32.mrb[0].mxu0
      %v1132 = vpop.f32.mrb[0].mxu0
      %v1133 = vadd.f32 0.0, %v1132
      %v1134 = vpop.f32.mrb[0].mxu0
      %1135 = vmatprep.mubr.bf16.mxu0 0
      %1136 = vmatmul.mubr.bf16.gmra.mrb[0].mxu0 %v1079
      %v1137 = vpop.f32.mrb[0].mxu0
      %v1138 = vadd.f32 0.0, %v1137
      %v1139 = vpop.f32.mrb[0].mxu0
      %v1140 = vpop.f32.mrb[0].mxu0
      %v1141 = vadd.f32 0.0, %v1140
      %v1142 = vpop.f32.mrb[0].mxu0
      %1143 = vmatprep.mubr.bf16.mxu0 0
      %1144 = vmatmul.mubr.bf16.gmra.mrb[0].mxu0 %v1082
      %v1145 = vpop.f32.mrb[0].mxu0
      %v1146 = vadd.f32 0.0, %v1145
      %v1147 = vpop.f32.mrb[0].mxu0
      %v1148 = vpop.f32.mrb[0].mxu0
      %v1149 = vadd.f32 0.0, %v1148
      %v1150 = vpop.f32.mrb[0].mxu0
      %1151 = vmatprep.mubr.bf16.mxu0 0
      %1152 = vmatmul.mubr.bf16.gmra.mrb[0].mxu0 %v1085
      %v1153 = vpop.f32.mrb[0].mxu0
      %v1154 = vadd.f32 0.0, %v1153
      %v1155 = vpop.f32.mrb[0].mxu0
      %v1156 = vpop.f32.mrb[0].mxu0
      %v1157 = vadd.f32 0.0, %v1156
      %v1158 = vpop.f32.mrb[0].mxu0
      %1159 = vdwg.mxu0
      %v1160 = vadd.f32 %v1003, %v1122
      %v1161 = vadd.f32 %v1004, %v1125
      %v1162 = vadd.f32 %v1005, %v1130
      %v1163 = vadd.f32 %v1006, %v1133
      %v1164 = vadd.f32 %v1007, %v1138
      %v1165 = vadd.f32 %v1008, %v1141
      %v1166 = vadd.f32 %v1009, %v1146
      %v1167 = vadd.f32 %v1010, %v1149
      %v1168 = vadd.f32 %v1011, %v1154
      %v1169 = vadd.f32 %v1012, %v1157
      %v1170 = vld [vmem:[%s165 + $0x30] sm:$0x7]
      %s1171 = scalar_lea.vmem %s1, 56
      %v1172 = vld [vmem:[%s1171] sm:$0xf]
      %v1173 = vld [vmem:[%s1171 + $0x4] sm:$0xf]
      %v1175 = vunpack.c.l.b16 %v1170
      %v1176 = vpack.c.b16 %v1175, %v1175
      %vm1177 = vsmask.f32 5376
      %v1179 = vshrl.u32 %v1049, 16
      %v1181 = vrot.slane %v1179, 2
      %v1182 = vshll.u32 %v1049, 16
      %v1184 = vrot.slane %v1182, 3
      %v1185 = vor.u32 %v1181, %v1184
      %v1187 = vshrl.u32 %v1050, 16
      %v1189 = vrot.slane %v1187, 2
      %v1190 = vshll.u32 %v1050, 16
      %v1192 = vrot.slane %v1190, 3
      %v1193 = vor.u32 %v1189, %v1192
      %v1194 = vsel %vm1177, %v1185, %v1193
      %v1196 = vshrl.u32 %v1051, 16
      %v1198 = vrot.slane %v1196, 2
      %v1199 = vshll.u32 %v1051, 16
      %v1201 = vrot.slane %v1199, 3
      %v1202 = vor.u32 %v1198, %v1201
      %v1203 = vsel %vm1177, %v1193, %v1202
      %v1205 = vshrl.u32 %v1052, 16
      %v1207 = vrot.slane %v1205, 2
      %v1208 = vshll.u32 %v1052, 16
      %v1210 = vrot.slane %v1208, 3
      %v1211 = vor.u32 %v1207, %v1210
      %v1212 = vsel %vm1177, %v1202, %v1211
      %v1214 = vshrl.u32 %v1053, 16
      %v1216 = vrot.slane %v1214, 2
      %v1217 = vshll.u32 %v1053, 16
      %v1219 = vrot.slane %v1217, 3
      %v1220 = vor.u32 %v1216, %v1219
      %v1221 = vsel %vm1177, %v1211, %v1220
      %v1223 = vshrl.u32 %v1176, 16
      %v1225 = vrot.slane %v1223, 2
      %v1226 = vshll.u32 %v1176, 16
      %v1228 = vrot.slane %v1226, 3
      %v1229 = vor.u32 %v1225, %v1228
      %v1230 = vsel %vm1177, %v1220, %v1229
      %v1233 = vunpack.c.l.b16 %v1172
      %v1234 = vunpack.c.l.b16 %v1173
      %v1235 = vpack.c.b16 %v1234, %v1233
      %v1238 = vsel %vm267, %v1194, 0
      %v1241 = vsel %vm267, %v1203, 0
      %v1244 = vsel %vm267, %v1212, 0
      %v1247 = vsel %vm267, %v1221, 0
      %v1250 = vsel %vm267, %v1230, 0
      %1252 = vmatprep.subr.bf16.mxu0 0
      %1253 = vmatpush1.bf16.msra.mxu0 %v1235
      %1254 = vmatprep.subr.bf16.mxu0 0
      %1255 = vmatpush1.bf16.msra.mxu0 0
      %1256 = vmatprep.subr.bf16.mxu0 0
      %1257 = vmatpush1.bf16.msra.mxu0 0
      %1258 = vmatprep.subr.bf16.mxu0 0
      %1259 = vmatpush1.bf16.msra.mxu0 0
      %1260 = vmatprep.subr.bf16.mxu0 0
      %1261 = vmatpush1.bf16.msra.mxu0 0
      %1262 = vmatprep.subr.bf16.mxu0 0
      %1263 = vmatpush1.bf16.msra.mxu0 0
      %1264 = vmatprep.subr.bf16.mxu0 0
      %1265 = vmatpush1.bf16.msra.mxu0 0
      %1266 = vmatprep.subr.bf16.mxu0 0
      %1267 = vmatpush1.bf16.msra.mxu0 0
      %1268 = vmatprep.subr.bf16.mxu0 0
      %1269 = vmatpush1.bf16.msra.mxu0 0
      %1270 = vmatprep.subr.bf16.mxu0 0
      %1271 = vmatpush1.bf16.msra.mxu0 0
      %1272 = vmatprep.subr.bf16.mxu0 0
      %1273 = vmatpush1.bf16.msra.mxu0 0
      %1274 = vmatprep.subr.bf16.mxu0 0
      %1275 = vmatpush1.bf16.msra.mxu0 0
      %1276 = vmatprep.subr.bf16.mxu0 0
      %1277 = vmatpush1.bf16.msra.mxu0 0
      %1278 = vmatprep.subr.bf16.mxu0 0
      %1279 = vmatpush1.bf16.msra.mxu0 0
      %1280 = vmatprep.subr.bf16.mxu0 0
      %1281 = vmatpush1.bf16.msra.mxu0 0
      %1282 = vmatprep.subr.bf16.mxu0 0
      %1283 = vmatpush1.bf16.msra.mxu0 0
      %1284 = vmatprep.mubr.bf16.mxu0 0
      %1285 = vmatmul.mubr.bf16.gmra.mrb[0].mxu0 %v1238
      %v1286 = vpop.f32.mrb[0].mxu0
      %v1287 = vadd.f32 0.0, %v1286
      %v1288 = vpop.f32.mrb[0].mxu0
      %v1289 = vpop.f32.mrb[0].mxu0
      %v1290 = vadd.f32 0.0, %v1289
      %v1291 = vpop.f32.mrb[0].mxu0
      %1292 = vmatprep.mubr.bf16.mxu0 0
      %1293 = vmatmul.mubr.bf16.gmra.mrb[0].mxu0 %v1241
      %v1294 = vpop.f32.mrb[0].mxu0
      %v1295 = vadd.f32 0.0, %v1294
      %v1296 = vpop.f32.mrb[0].mxu0
      %v1297 = vpop.f32.mrb[0].mxu0
      %v1298 = vadd.f32 0.0, %v1297
      %v1299 = vpop.f32.mrb[0].mxu0
      %1300 = vmatprep.mubr.bf16.mxu0 0
      %1301 = vmatmul.mubr.bf16.gmra.mrb[0].mxu0 %v1244
      %v1302 = vpop.f32.mrb[0].mxu0
      %v1303 = vadd.f32 0.0, %v1302
      %v1304 = vpop.f32.mrb[0].mxu0
      %v1305 = vpop.f32.mrb[0].mxu0
      %v1306 = vadd.f32 0.0, %v1305
      %v1307 = vpop.f32.mrb[0].mxu0
      %1308 = vmatprep.mubr.bf16.mxu0 0
      %1309 = vmatmul.mubr.bf16.gmra.mrb[0].mxu0 %v1247
      %v1310 = vpop.f32.mrb[0].mxu0
      %v1311 = vadd.f32 0.0, %v1310
      %v1312 = vpop.f32.mrb[0].mxu0
      %v1313 = vpop.f32.mrb[0].mxu0
      %v1314 = vadd.f32 0.0, %v1313
      %v1315 = vpop.f32.mrb[0].mxu0
      %1316 = vmatprep.mubr.bf16.mxu0 0
      %1317 = vmatmul.mubr.bf16.gmra.mrb[0].mxu0 %v1250
      %v1318 = vpop.f32.mrb[0].mxu0
      %v1319 = vadd.f32 0.0, %v1318
      %v1320 = vpop.f32.mrb[0].mxu0
      %v1321 = vpop.f32.mrb[0].mxu0
      %v1322 = vadd.f32 0.0, %v1321
      %v1323 = vpop.f32.mrb[0].mxu0
      %1324 = vdwg.mxu0
      %v1325 = vadd.f32 %v1160, %v1287
      %v1326 = vadd.f32 %v1161, %v1290
      %v1327 = vadd.f32 %v1162, %v1295
      %v1328 = vadd.f32 %v1163, %v1298
      %v1329 = vadd.f32 %v1164, %v1303
      %v1330 = vadd.f32 %v1165, %v1306
      %v1331 = vadd.f32 %v1166, %v1311
      %v1332 = vadd.f32 %v1167, %v1314
      %v1333 = vadd.f32 %v1168, %v1319
      %v1334 = vadd.f32 %v1169, %v1322
      %v1335 = vld [vmem:[%s165 + $0x8] sm:$0x8]
      %s1336 = scalar_lea.vmem %s1, 64
      %v1337 = vld [vmem:[%s1336] sm:$0xf]
      %v1338 = vld [vmem:[%s1336 + $0x4] sm:$0xf]
      %v1340 = vunpack.c.l.b16 %v1335
      %v1341 = vpack.c.b16 %v1039, %v1340
      %vm1342 = vcmask 1044480
      %v1343 = vrot.slane %v1341, 3
      %v1344 = vrot.slane %v1050, 3
      %v1345 = vsel %vm1342, %v1343, %v1344
      %v1346 = vrot.slane %v1051, 3
      %v1347 = vsel %vm1342, %v1344, %v1346
      %v1348 = vrot.slane %v1052, 3
      %v1349 = vsel %vm1342, %v1346, %v1348
      %v1350 = vrot.slane %v1053, 3
      %v1351 = vsel %vm1342, %v1348, %v1350
      %v1352 = vrot.slane %v1176, 3
      %v1353 = vsel %vm1342, %v1350, %v1352
      %v1356 = vunpack.c.l.b16 %v1337
      %v1357 = vunpack.c.l.b16 %v1338
      %v1358 = vpack.c.b16 %v1357, %v1356
      %v1361 = vsel %vm267, %v1345, 0
      %v1364 = vsel %vm267, %v1347, 0
      %v1367 = vsel %vm267, %v1349, 0
      %v1370 = vsel %vm267, %v1351, 0
      %v1373 = vsel %vm267, %v1353, 0
      %1375 = vmatprep.subr.bf16.mxu0 0
      %1376 = vmatpush1.bf16.msra.mxu0 %v1358
      %1377 = vmatprep.subr.bf16.mxu0 0
      %1378 = vmatpush1.bf16.msra.mxu0 0
      %1379 = vmatprep.subr.bf16.mxu0 0
      %1380 = vmatpush1.bf16.msra.mxu0 0
      %1381 = vmatprep.subr.bf16.mxu0 0
      %1382 = vmatpush1.bf16.msra.mxu0 0
      %1383 = vmatprep.subr.bf16.mxu0 0
      %1384 = vmatpush1.bf16.msra.mxu0 0
      %1385 = vmatprep.subr.bf16.mxu0 0
      %1386 = vmatpush1.bf16.msra.mxu0 0
      %1387 = vmatprep.subr.bf16.mxu0 0
      %1388 = vmatpush1.bf16.msra.mxu0 0
      %1389 = vmatprep.subr.bf16.mxu0 0
      %1390 = vmatpush1.bf16.msra.mxu0 0
      %1391 = vmatprep.subr.bf16.mxu0 0
      %1392 = vmatpush1.bf16.msra.mxu0 0
      %1393 = vmatprep.subr.bf16.mxu0 0
      %1394 = vmatpush1.bf16.msra.mxu0 0
      %1395 = vmatprep.subr.bf16.mxu0 0
      %1396 = vmatpush1.bf16.msra.mxu0 0
      %1397 = vmatprep.subr.bf16.mxu0 0
      %1398 = vmatpush1.bf16.msra.mxu0 0
      %1399 = vmatprep.subr.bf16.mxu0 0
      %1400 = vmatpush1.bf16.msra.mxu0 0
      %1401 = vmatprep.subr.bf16.mxu0 0
      %1402 = vmatpush1.bf16.msra.mxu0 0
      %1403 = vmatprep.subr.bf16.mxu0 0
      %1404 = vmatpush1.bf16.msra.mxu0 0
      %1405 = vmatprep.subr.bf16.mxu0 0
      %1406 = vmatpush1.bf16.msra.mxu0 0
      %1407 = vmatprep.mubr.bf16.mxu0 0
      %1408 = vmatmul.mubr.bf16.gmra.mrb[0].mxu0 %v1361
      %v1409 = vpop.f32.mrb[0].mxu0
      %v1410 = vadd.f32 0.0, %v1409
      %v1411 = vpop.f32.mrb[0].mxu0
      %v1412 = vpop.f32.mrb[0].mxu0
      %v1413 = vadd.f32 0.0, %v1412
      %v1414 = vpop.f32.mrb[0].mxu0
      %1415 = vmatprep.mubr.bf16.mxu0 0
      %1416 = vmatmul.mubr.bf16.gmra.mrb[0].mxu0 %v1364
      %v1417 = vpop.f32.mrb[0].mxu0
      %v1418 = vadd.f32 0.0, %v1417
      %v1419 = vpop.f32.mrb[0].mxu0
      %v1420 = vpop.f32.mrb[0].mxu0
      %v1421 = vadd.f32 0.0, %v1420
      %v1422 = vpop.f32.mrb[0].mxu0
      %1423 = vmatprep.mubr.bf16.mxu0 0
      %1424 = vmatmul.mubr.bf16.gmra.mrb[0].mxu0 %v1367
      %v1425 = vpop.f32.mrb[0].mxu0
      %v1426 = vadd.f32 0.0, %v1425
      %v1427 = vpop.f32.mrb[0].mxu0
      %v1428 = vpop.f32.mrb[0].mxu0
      %v1429 = vadd.f32 0.0, %v1428
      %v1430 = vpop.f32.mrb[0].mxu0
      %1431 = vmatprep.mubr.bf16.mxu0 0
      %1432 = vmatmul.mubr.bf16.gmra.mrb[0].mxu0 %v1370
      %v1433 = vpop.f32.mrb[0].mxu0
      %v1434 = vadd.f32 0.0, %v1433
      %v1435 = vpop.f32.mrb[0].mxu0
      %v1436 = vpop.f32.mrb[0].mxu0
      %v1437 = vadd.f32 0.0, %v1436
      %v1438 = vpop.f32.mrb[0].mxu0
      %1439 = vmatprep.mubr.bf16.mxu0 0
      %1440 = vmatmul.mubr.bf16.gmra.mrb[0].mxu0 %v1373
      %v1441 = vpop.f32.mrb[0].mxu0
      %v1442 = vadd.f32 0.0, %v1441
      %v1443 = vpop.f32.mrb[0].mxu0
      %v1444 = vpop.f32.mrb[0].mxu0
      %v1445 = vadd.f32 0.0, %v1444
      %v1446 = vpop.f32.mrb[0].mxu0
      %1447 = vdwg.mxu0
      %v1448 = vadd.f32 %v1325, %v1410
      %v1449 = vadd.f32 %v1326, %v1413
      %v1450 = vadd.f32 %v1327, %v1418
      %v1451 = vadd.f32 %v1328, %v1421
      %v1452 = vadd.f32 %v1329, %v1426
      %v1453 = vadd.f32 %v1330, %v1429
      %v1454 = vadd.f32 %v1331, %v1434
      %v1455 = vadd.f32 %v1332, %v1437
      %v1456 = vadd.f32 %v1333, %v1442
      %v1457 = vadd.f32 %v1334, %v1445
      %v1458 = vld [vmem:[%s2] sm:$0x1]
      %v1460 = vlaneseq
      %v1461 = vshrl.u32 %v1460, 7
      %v1462 = vsub.s32 0, %v1461
      %v1463 = vrot.slane %v1458, %v1462
      %v1465 = vadd.f32 %v1448, %v1463
      %v1466 = vadd.f32 %v1449, %v1463
      %v1467 = vadd.f32 %v1450, %v1463
      %v1468 = vadd.f32 %v1451, %v1463
      %v1469 = vadd.f32 %v1452, %v1463
      %v1470 = vadd.f32 %v1453, %v1463
      %v1471 = vadd.f32 %v1454, %v1463
      %v1472 = vadd.f32 %v1455, %v1463
      %v1473 = vadd.f32 %v1456, %v1463
      %v1474 = vadd.f32 %v1457, %v1463
      %vm1475 = vcmp.ge.f32.partialorder %v1465, 0.0
      %vm1476 = vcmp.ge.f32.partialorder %v1466, 0.0
      %vm1477 = vcmp.ge.f32.partialorder %v1467, 0.0
      %vm1478 = vcmp.ge.f32.partialorder %v1468, 0.0
      %vm1479 = vcmp.ge.f32.partialorder %v1469, 0.0
      %vm1480 = vcmp.ge.f32.partialorder %v1470, 0.0
      %vm1481 = vcmp.ge.f32.partialorder %v1471, 0.0
      %vm1482 = vcmp.ge.f32.partialorder %v1472, 0.0
      %vm1483 = vcmp.ge.f32.partialorder %v1473, 0.0
      %vm1484 = vcmp.ge.f32.partialorder %v1474, 0.0
      %v1485 = vmul.f32 %v1465, 0.2
      %v1486 = vmul.f32 %v1466, 0.2
      %v1487 = vmul.f32 %v1467, 0.2
      %v1488 = vmul.f32 %v1468, 0.2
      %v1489 = vmul.f32 %v1469, 0.2
      %v1490 = vmul.f32 %v1470, 0.2
      %v1491 = vmul.f32 %v1471, 0.2
      %v1492 = vmul.f32 %v1472, 0.2
      %v1493 = vmul.f32 %v1473, 0.2
      %v1494 = vmul.f32 %v1474, 0.2
      %v1495 = vsel %vm1475, %v1465, %v1485
      %v1496 = vsel %vm1476, %v1466, %v1486
      %v1497 = vsel %vm1477, %v1467, %v1487
      %v1498 = vsel %vm1478, %v1468, %v1488
      %v1499 = vsel %vm1479, %v1469, %v1489
      %v1500 = vsel %vm1480, %v1470, %v1490
      %v1501 = vsel %vm1481, %v1471, %v1491
      %v1502 = vsel %vm1482, %v1472, %v1492
      %v1503 = vsel %vm1483, %v1473, %v1493
      %v1504 = vsel %vm1484, %v1474, %v1494
      %v1505 = vpack.c.bf16 %v1496, %v1495
      %v1506 = vpack.c.bf16 %v1498, %v1497
      %v1507 = vpack.c.bf16 %v1500, %v1499
      %v1508 = vpack.c.bf16 %v1502, %v1501
      %v1509 = vpack.c.bf16 %v1504, %v1503
      %v1515 = vunpack.c.l.b16 %v1505
      %v1516 = vunpack.c.h.b16 %v1505
      %v1517 = vunpack.c.l.b16 %v1506
      %v1518 = vunpack.c.h.b16 %v1506
      %v1519 = vunpack.c.l.b16 %v1507
      %v1520 = vunpack.c.h.b16 %v1507
      %v1521 = vunpack.c.l.b16 %v1508
      %v1522 = vunpack.c.h.b16 %v1508
      %v1523 = vunpack.c.l.b16 %v1509
      %v1524 = vunpack.c.h.b16 %v1509
      %v1525 = vpack.c.b16 %v1515, %v1515
      %v1526 = vpack.c.b16 %v1516, %v1516
      %v1527 = vpack.c.b16 %v1517, %v1517
      %v1528 = vpack.c.b16 %v1518, %v1518
      %v1529 = vpack.c.b16 %v1519, %v1519
      %v1530 = vpack.c.b16 %v1520, %v1520
      %v1531 = vpack.c.b16 %v1521, %v1521
      %v1532 = vpack.c.b16 %v1522, %v1522
      %v1533 = vpack.c.b16 %v1523, %v1523
      %v1534 = vpack.c.b16 %v1524, %v1524
      %vm1545 = vcmask 257024
      %1546 = vst.msk [vmem:[%s170] sm:$0xf] %vm1545, %v1525
      %1547 = vst.msk [vmem:[%s170 + $0x4] sm:$0xf] %vm1545, %v1526
      %1548 = vst.msk [vmem:[%s170 + $0x8] sm:$0xf] %vm1545, %v1527
      %1549 = vst.msk [vmem:[%s170 + $0xc] sm:$0xf] %vm1545, %v1528
      %1550 = vst.msk [vmem:[%s170 + $0x10] sm:$0xf] %vm1545, %v1529
      %1551 = vst.msk [vmem:[%s170 + $0x14] sm:$0xf] %vm1545, %v1530
      %1552 = vst.msk [vmem:[%s170 + $0x18] sm:$0xf] %vm1545, %v1531
      %1553 = vst.msk [vmem:[%s170 + $0x1c] sm:$0xf] %vm1545, %v1532
      %1554 = vst.msk [vmem:[%s170 + $0x20] sm:$0xf] %vm1545, %v1533
      %1555 = vst.msk [vmem:[%s170 + $0x24] sm:$0xf] %vm1545, %v1534
      %p1556 = scmp.lt.s32.totalorder %s14, 1
      %s1557 = scalar_select %p1556, %s14, 1
      %s1558 = smul.addr %s1557, 10
      %s1559 = smul.addr %s1558, 4
      %s1560 = scalar_lea.vmem %s3, %s1559
      // Predicated region
      $region33: #{encoder_latent_forward.8} parent=31 // pred_check
        %p1561 = pneg %p100
      $region34: #{encoder_latent_forward.8} parent=31 // pred_check_branch
        %1563 = sbr.rel (%p1561) target = $region36
      $region35: #{encoder_latent_forward.8} parent=31 // pred_region
        _
      $region36: #{encoder_latent_forward.8} parent=31 // pred_fallthru
        _
    $region32: #{encoder_latent_forward.8} parent=5 // pred_fallthru
      _
    %p1564 = scmp.le.s32.totalorder 2, %s9
    // Predicated region
    $region37: #{encoder_latent_forward.8} parent=5 // pred_check
      %p1565 = pneg %p1564
    $region38: #{encoder_latent_forward.8} parent=5 // pred_check_branch
      %1567 = sbr.rel (%p1565) target = $region40
    $region39: #{encoder_latent_forward.8} parent=5 // pred_region
      %s1568 = ssub.s32 %s9, 2
      // Predicated region
      $region41: #{encoder_latent_forward.8} parent=39 // pred_check
        %p1569 = pneg %p106
      $region42: #{encoder_latent_forward.8} parent=39 // pred_check_branch
        %1571 = sbr.rel (%p1569) target = $region44
      $region43: #{encoder_latent_forward.8} parent=39 // pred_region
        %p1572 = scmp.lt.s32.totalorder %s15, 1
        %s1573 = scalar_select %p1572, %s15, 1
        %s1574 = smul.addr %s1573, 10
        %s1575 = smul.addr %s1574, 4
        %s1576 = scalar_lea.vmem %s3, %s1575
      $region44: #{encoder_latent_forward.8} parent=39 // pred_fallthru
        _
    $region40: #{encoder_latent_forward.8} parent=5 // pred_fallthru
      _
  $region6: #{encoder_latent_forward.8} parent=0 // loop_footer
    %s13 = sadd.s32 1, %s9
  $region7: #{encoder_latent_forward.8} parent=0 // loop_footer_branch
    %8 = sbr.rel target = $region3
  $region8: #{encoder_latent_forward.8} parent=0 // loop_exit
    _

// kernel: encoder_latent_forward.9
$region0: #{encoder_latent_forward.9}
  #allocation0 [shape = 'u32[]', space=smem, size = 0x4, offset = 0x4, fixed_abs, tag = 'smem constant byte address 0x4 - core index']
  #allocation1 [shape = 'u32[144,128]{1,0:T(1,128)}', space=vmem, size = 0x12000, scoped, tag = 'internal scratch']
  %s0 = inlined_call_operand.vmem [shape: bf16[2,8,10,32], index: 0, kind: input, shape index: {}]
  %s1 = inlined_call_operand.vmem [shape: bf16[2,4,4,32], index: 1, kind: output, shape index: {}]
  %s2 = sld [smem:[#allocation0]]
  $region37: #{encoder_latent_forward.9} parent=0
    _
  %s4 = ssub.s32 1, %s2
  %s5 = scalar_select 0, %s4, %s2
  loop: start=0, step=1, limit=10
  $region2: #{encoder_latent_forward.9} parent=0 // loop_pre_header
    _
  $region3: #{encoder_latent_forward.9} parent=0 // loop_header
    %s7 = sphi 0, %s11
    %p8 = scmp.ge.s32.totalorder %s7, 10
    %s14 = sphi 0, %s26
    %s15 = sphi 0, %s22
    %s16 = sphi 0, %s14
    %s17 = sphi 0, %s15
    %s18 = sphi 0, %s16
    %s19 = sphi 0, %s17
    %s31 = sphi 0, %s33
    %s34 = sphi 0, %s31
    %s35 = sphi 0, %s34
    %s51 = sphi 0, %s35
    %s59 = sphi 0, %s61
    %s62 = sphi 0, %s59
    %s63 = sphi 0, %s62
    %s79 = sphi 0, %s63
  $region4: #{encoder_latent_forward.9} parent=0 // loop_header_branch
    %10 = sbr.rel (%p8) target = $region8
  $region5: #{encoder_latent_forward.9} parent=0 // loop_body
    %s12 = ssub.s32 %s7, 1
    %s13 = ssub.s32 %s7, 2
    %s20 = sadd.s32 1, %s15
    %p21 = scmp.ge.s32.totalorder %s20, 4
    %s22 = scalar_select %p21, 0, %s20
    %s23 = sadd.s32 1, %s14
    %s24 = scalar_select %p21, %s23, %s14
    %p25 = scmp.ge.s32.totalorder %s24, 2
    %s26 = scalar_select %p25, 0, %s24
    %s27 = ssub.s32 %s14, %s26
    %s28 = ssub.s32 %s15, %s22
    %s29 = sor.u32 %s27, %s28
    %p30 = scmp.eq.s32.totalorder %s29, 0
    %s32 = sadd.s32 %s31, 1
    %s33 = scalar_select %p30, %s31, %s32
    %p36 = pneg %p30
    %p37 = scmp.eq.s32.totalorder %s7, 7
    %p38 = por %p36, %p37
    %p39 = scmp.ne.s32.totalorder %s31, %s34
    %p40 = scmp.eq.s32.totalorder %s7, 0
    %p41 = por %p39, %p40
    %p42 = scmp.ne.s32.totalorder %s31, %s34
    %p43 = scmp.eq.s32.totalorder %s12, 7
    %p44 = por %p42, %p43
    %p45 = scmp.ne.s32.totalorder %s34, %s35
    %p46 = scmp.eq.s32.totalorder %s12, 0
    %p47 = por %p45, %p46
    %p48 = scmp.ne.s32.totalorder %s34, %s35
    %p49 = scmp.eq.s32.totalorder %s13, 7
    %p50 = por %p48, %p49
    %p52 = scmp.ne.s32.totalorder %s35, %s51
    %p53 = scmp.eq.s32.totalorder %s13, 0
    %p54 = por %p52, %p53
    %s55 = ssub.s32 %s14, %s26
    %s56 = ssub.s32 %s15, %s22
    %s57 = sor.u32 %s55, %s56
    %p58 = scmp.eq.s32.totalorder %s57, 0
    %s60 = sadd.s32 %s59, 1
    %s61 = scalar_select %p58, %s59, %s60
    %p64 = pneg %p58
    %p65 = scmp.eq.s32.totalorder %s7, 7
    %p66 = por %p64, %p65
    %p67 = scmp.ne.s32.totalorder %s59, %s62
    %p68 = scmp.eq.s32.totalorder %s7, 0
    %p69 = por %p67, %p68
    %p70 = scmp.ne.s32.totalorder %s59, %s62
    %p71 = scmp.eq.s32.totalorder %s12, 7
    %p72 = por %p70, %p71
    %p73 = scmp.ne.s32.totalorder %s62, %s63
    %p74 = scmp.eq.s32.totalorder %s12, 0
    %p75 = por %p73, %p74
    %p76 = scmp.ne.s32.totalorder %s62, %s63
    %p77 = scmp.eq.s32.totalorder %s13, 7
    %p78 = por %p76, %p77
    %p80 = scmp.ne.s32.totalorder %s63, %s79
    %p81 = scmp.eq.s32.totalorder %s13, 0
    %p82 = por %p80, %p81
    %p83 = scmp.le.s32.totalorder 1, %s7
    %p84 = scmp.lt.s32.totalorder %s7, 9
    %p85 = pnand %p83, %p84
    %p86 = pneg %p85
    // Predicated region
    $region9: #{encoder_latent_forward.9} parent=5 // pred_check
      _
    $region10: #{encoder_latent_forward.9} parent=5 // pred_check_branch
      %88 = sbr.rel (%p85) target = $region12
    $region11: #{encoder_latent_forward.9} parent=5 // pred_region
      %s89 = ssub.s32 %s7, 1
    $region12: #{encoder_latent_forward.9} parent=5 // pred_fallthru
      _
    %p90 = scmp.lt.s32.totalorder %s7, 8
    // Predicated region
    $region13: #{encoder_latent_forward.9} parent=5 // pred_check
      %p91 = pneg %p90
    $region14: #{encoder_latent_forward.9} parent=5 // pred_check_branch
      %93 = sbr.rel (%p91) target = $region16
    $region15: #{encoder_latent_forward.9} parent=5 // pred_region
      // Predicated region
      $region17: #{encoder_latent_forward.9} parent=15 // pred_check
        %p94 = pneg %p41
      $region18: #{encoder_latent_forward.9} parent=15 // pred_check_branch
        %96 = sbr.rel (%p94) target = $region20
      $region19: #{encoder_latent_forward.9} parent=15 // pred_region
        %s97 = smul.u32 2, %s15
        %p98 = scmp.lt.s32.totalorder %s14, 1
        %s99 = scalar_select %p98, %s14, 1
        %p100 = scmp.lt.s32.totalorder %s97, 7
        %s101 = scalar_select %p100, %s97, 7
        %s102 = smul.addr %s101, 2
        %s103 = smul.addr %s99, 16
        %s104 = sadd.s32 %s102, %s103
        %s105 = smul.addr %s104, 4
        %s106 = scalar_lea.vmem %s0, %s105
        %s107 = smul.u32 2, %s15
      $region20: #{encoder_latent_forward.9} parent=15 // pred_fallthru
        _
    $region16: #{encoder_latent_forward.9} parent=5 // pred_fallthru
      _
    %p108 = scmp.le.s32.totalorder 1, %s7
    %p109 = scmp.lt.s32.totalorder %s7, 9
    %p110 = pnand %p108, %p109
    %p111 = pneg %p110
    // Predicated region
    $region21: #{encoder_latent_forward.9} parent=5 // pred_check
      _
    $region22: #{encoder_latent_forward.9} parent=5 // pred_check_branch
      %113 = sbr.rel (%p110) target = $region24
    $region23: #{encoder_latent_forward.9} parent=5 // pred_region
      %s114 = ssub.s32 %s7, 1
      %s115 = smul.u32 2, %s17
      %p116 = scmp.lt.s32.totalorder %s16, 1
      %s117 = scalar_select %p116, %s16, 1
      %p118 = scmp.lt.s32.totalorder %s115, 7
      %s119 = scalar_select %p118, %s115, 7
      %s120 = smul.addr %s119, 2
      %s121 = smul.addr %s117, 16
      %s122 = sadd.s32 %s120, %s121
      %s123 = smul.addr %s122, 4
      %s124 = scalar_lea.vmem %s0, %s123
      %p125 = pneg %p47
      %p126 = pneg %p44
      %p127 = pneg %p75
      %p128 = pneg %p72
      %p129 = scmp.lt.s32.totalorder %s16, 1
      %s130 = scalar_select %p129, %s16, 1
      %p131 = scmp.lt.s32.totalorder %s17, 3
      %s132 = scalar_select %p131, %s17, 3
      %s133 = smul.addr %s130, 4
      %s134 = sadd.s32 %s132, %s133
      %s135 = smul.addr %s134, 2
      %s136 = scalar_lea.vmem %s1, %s135
      %s137 = smul.u32 2, %s17
      %p138 = scmp.lt.s32.totalorder %s16, 1
      %s139 = scalar_select %p138, %s16, 1
      %p140 = scmp.lt.s32.totalorder %s137, 7
      %s141 = scalar_select %p140, %s137, 7
      %s142 = smul.addr %s141, 2
      %s143 = smul.addr %s139, 16
      %s144 = sadd.s32 %s142, %s143
      %s145 = smul.addr %s144, 4
      %s146 = scalar_lea.vmem %s0, %s145
      %s147 = smul.u32 2, %s17
      %p148 = scmp.lt.s32.totalorder %s16, 1
      %s149 = scalar_select %p148, %s16, 1
      %p150 = scmp.lt.s32.totalorder %s17, 3
      %s151 = scalar_select %p150, %s17, 3
      %s152 = smul.addr %s149, 4
      %s153 = sadd.s32 %s151, %s152
      %s154 = smul.addr %s153, 2
      %s155 = scalar_lea.vmem %s1, %s154
      %v156 = vld [vmem:[%s146] sm:$0xf]
      %v157 = vld [vmem:[%s146 + $0x4] sm:$0x1]
      %v158 = vunpack.c.l.bf16 %v156
      %v159 = vunpack.c.l.bf16 %v157
      %s160 = scalar_lea.vmem %s146, 8
      %v161 = vld [vmem:[%s160] sm:$0xf]
      %v162 = vld [vmem:[%s160 + $0x4] sm:$0x1]
      %v163 = vunpack.c.l.bf16 %v161
      %v164 = vunpack.c.l.bf16 %v162
      %v165 = vmax.f32 %v158, %v163
      %v166 = vmax.f32 %v159, %v164
      %v167 = vlaneseq
      %v168 = vshrl.u32 %v167, 7
      %v169 = vlaneseq
      %v170 = vand.u32 %v169, 127
      %v171 = vmul.u32 %v168, 2
      %vm172 = vcmp.eq.s32.totalorder %v170, %v171
      %v173 = vsel %vm172, 1, 0
      %v174 = vcvt.s32.f32 %v173
      %v175 = vadd.s32 %v171, 1
      %vm176 = vcmp.eq.s32.totalorder %v170, %v175
      %v177 = vsel %vm176, 1, 0
      %v178 = vcvt.s32.f32 %v177
      %vm179 = vcmask 80896
      %v181 = vsel %vm179, %v174, 0
      %vm183 = vcmask 1041408
      %v185 = vsel %vm183, %v166, 0
      %187 = vmatprep.subr.mxu0 0.0
      %188 = vmatpush1.msra.mxu0 %v165
      %189 = vmatprep.subr.mxu0 0.0
      %190 = vmatpush1.msra.mxu0 %v185
      %191 = vmatprep.subr.mxu0 0.0
      %192 = vmatpush1.msra.mxu0 0.0
      %193 = vmatprep.subr.mxu0 0.0
      %194 = vmatpush1.msra.mxu0 0.0
      %195 = vmatprep.subr.mxu0 0.0
      %196 = vmatpush1.msra.mxu0 0.0
      %197 = vmatprep.subr.mxu0 0.0
      %198 = vmatpush1.msra.mxu0 0.0
      %199 = vmatprep.subr.mxu0 0.0
      %200 = vmatpush1.msra.mxu0 0.0
      %201 = vmatprep.subr.mxu0 0.0
      %202 = vmatpush1.msra.mxu0 0.0
      %203 = vmatprep.subr.mxu0 0.0
      %204 = vmatpush1.msra.mxu0 0.0
      %205 = vmatprep.subr.mxu0 0.0
      %206 = vmatpush1.msra.mxu0 0.0
      %207 = vmatprep.subr.mxu0 0.0
      %208 = vmatpush1.msra.mxu0 0.0
      %209 = vmatprep.subr.mxu0 0.0
      %210 = vmatpush1.msra.mxu0 0.0
      %211 = vmatprep.subr.mxu0 0.0
      %212 = vmatpush1.msra.mxu0 0.0
      %213 = vmatprep.subr.mxu0 0.0
      %214 = vmatpush1.msra.mxu0 0.0
      %215 = vmatprep.subr.mxu0 0.0
      %216 = vmatpush1.msra.mxu0 0.0
      %217 = vmatprep.subr.mxu0 0.0
      %218 = vmatpush1.msra.mxu0 0.0
      %219 = vmatprep.subr.mxu0 0.0
      %220 = vmatpush1.msra.mxu0 0.0
      %221 = vmatprep.subr.mxu0 0.0
      %222 = vmatpush1.msra.mxu0 0.0
      %223 = vmatprep.subr.mxu0 0.0
      %224 = vmatpush1.msra.mxu0 0.0
      %225 = vmatprep.subr.mxu0 0.0
      %226 = vmatpush1.msra.mxu0 0.0
      %227 = vmatprep.subr.mxu0 0.0
      %228 = vmatpush1.msra.mxu0 0.0
      %229 = vmatprep.subr.mxu0 0.0
      %230 = vmatpush1.msra.mxu0 0.0
      %231 = vmatprep.subr.mxu0 0.0
      %232 = vmatpush1.msra.mxu0 0.0
      %233 = vmatprep.subr.mxu0 0.0
      %234 = vmatpush1.msra.mxu0 0.0
      %235 = vmatprep.subr.mxu0 0.0
      %236 = vmatpush1.msra.mxu0 0.0
      %237 = vmatprep.subr.mxu0 0.0
      %238 = vmatpush1.msra.mxu0 0.0
      %239 = vmatprep.subr.mxu0 0.0
      %240 = vmatpush1.msra.mxu0 0.0
      %241 = vmatprep.subr.mxu0 0.0
      %242 = vmatpush1.msra.mxu0 0.0
      %243 = vmatprep.subr.mxu0 0.0
      %244 = vmatpush1.msra.mxu0 0.0
      %245 = vmatprep.subr.mxu0 0.0
      %246 = vmatpush1.msra.mxu0 0.0
      %247 = vmatprep.subr.mxu0 0.0
      %248 = vmatpush1.msra.mxu0 0.0
      %249 = vmatprep.subr.mxu0 0.0
      %250 = vmatpush1.msra.mxu0 0.0
      %251 = vmatprep.mubr.f32.mxu0 0.0
      %252 = vmatmul.mubr.f32.gmra.mrb[0].mxu0 %v181
      %v253 = vpop.f32.mrb[0].mxu0
      %v254 = vadd.f32 0.0, %v253
      %v255 = vpop.f32.mrb[0].mxu0
      %256 = vdwg.mxu0
      %v258 = vsel %vm179, %v178, 0
      %260 = vmatprep.subr.mxu0 0.0
      %261 = vmatpush1.msra.mxu0 %v165
      %262 = vmatprep.subr.mxu0 0.0
      %263 = vmatpush1.msra.mxu0 %v185
      %264 = vmatprep.subr.mxu0 0.0
      %265 = vmatpush1.msra.mxu0 0.0
      %266 = vmatprep.subr.mxu0 0.0
      %267 = vmatpush1.msra.mxu0 0.0
      %268 = vmatprep.subr.mxu0 0.0
      %269 = vmatpush1.msra.mxu0 0.0
      %270 = vmatprep.subr.mxu0 0.0
      %271 = vmatpush1.msra.mxu0 0.0
      %272 = vmatprep.subr.mxu0 0.0
      %273 = vmatpush1.msra.mxu0 0.0
      %274 = vmatprep.subr.mxu0 0.0
      %275 = vmatpush1.msra.mxu0 0.0
      %276 = vmatprep.subr.mxu0 0.0
      %277 = vmatpush1.msra.mxu0 0.0
      %278 = vmatprep.subr.mxu0 0.0
      %279 = vmatpush1.msra.mxu0 0.0
      %280 = vmatprep.subr.mxu0 0.0
      %281 = vmatpush1.msra.mxu0 0.0
      %282 = vmatprep.subr.mxu0 0.0
      %283 = vmatpush1.msra.mxu0 0.0
      %284 = vmatprep.subr.mxu0 0.0
      %285 = vmatpush1.msra.mxu0 0.0
      %286 = vmatprep.subr.mxu0 0.0
      %287 = vmatpush1.msra.mxu0 0.0
      %288 = vmatprep.subr.mxu0 0.0
      %289 = vmatpush1.msra.mxu0 0.0
      %290 = vmatprep.subr.mxu0 0.0
      %291 = vmatpush1.msra.mxu0 0.0
      %292 = vmatprep.subr.mxu0 0.0
      %293 = vmatpush1.msra.mxu0 0.0
      %294 = vmatprep.subr.mxu0 0.0
      %295 = vmatpush1.msra.mxu0 0.0
      %296 = vmatprep.subr.mxu0 0.0
      %297 = vmatpush1.msra.mxu0 0.0
      %298 = vmatprep.subr.mxu0 0.0
      %299 = vmatpush1.msra.mxu0 0.0
      %300 = vmatprep.subr.mxu0 0.0
      %301 = vmatpush1.msra.mxu0 0.0
      %302 = vmatprep.subr.mxu0 0.0
      %303 = vmatpush1.msra.mxu0 0.0
      %304 = vmatprep.subr.mxu0 0.0
      %305 = vmatpush1.msra.mxu0 0.0
      %306 = vmatprep.subr.mxu0 0.0
      %307 = vmatpush1.msra.mxu0 0.0
      %308 = vmatprep.subr.mxu0 0.0
      %309 = vmatpush1.msra.mxu0 0.0
      %310 = vmatprep.subr.mxu0 0.0
      %311 = vmatpush1.msra.mxu0 0.0
      %312 = vmatprep.subr.mxu0 0.0
      %313 = vmatpush1.msra.mxu0 0.0
      %314 = vmatprep.subr.mxu0 0.0
      %315 = vmatpush1.msra.mxu0 0.0
      %316 = vmatprep.subr.mxu0 0.0
      %317 = vmatpush1.msra.mxu0 0.0
      %318 = vmatprep.subr.mxu0 0.0
      %319 = vmatpush1.msra.mxu0 0.0
      %320 = vmatprep.subr.mxu0 0.0
      %321 = vmatpush1.msra.mxu0 0.0
      %322 = vmatprep.subr.mxu0 0.0
      %323 = vmatpush1.msra.mxu0 0.0
      %324 = vmatprep.mubr.f32.mxu0 0.0
      %325 = vmatmul.mubr.f32.gmra.mrb[0].mxu0 %v258
      %v326 = vpop.f32.mrb[0].mxu0
      %v327 = vadd.f32 0.0, %v326
      %v328 = vpop.f32.mrb[0].mxu0
      %329 = vdwg.mxu0
      %v330 = vmax.f32 %v254, %v327
      %v331 = vpack.c.bf16 %v330, %v330
      %vm332 = vcmask 254976
      %333 = vst.msk [vmem:[%s155] sm:$0x3] %vm332, %v331
      %p334 = scmp.lt.s32.totalorder %s16, 1
      %s335 = scalar_select %p334, %s16, 1
      %p336 = scmp.lt.s32.totalorder %s17, 3
      %s337 = scalar_select %p336, %s17, 3
      %s338 = smul.addr %s335, 4
      %s339 = sadd.s32 %s337, %s338
      %s340 = smul.addr %s339, 2
      %s341 = scalar_lea.vmem %s1, %s340
      // Predicated region
      $region25: #{encoder_latent_forward.9} parent=23 // pred_check
        %p342 = pneg %p72
      $region26: #{encoder_latent_forward.9} parent=23 // pred_check_branch
        %344 = sbr.rel (%p342) target = $region28
      $region27: #{encoder_latent_forward.9} parent=23 // pred_region
        _
      $region28: #{encoder_latent_forward.9} parent=23 // pred_fallthru
        _
    $region24: #{encoder_latent_forward.9} parent=5 // pred_fallthru
      _
    %p345 = scmp.le.s32.totalorder 2, %s7
    // Predicated region
    $region29: #{encoder_latent_forward.9} parent=5 // pred_check
      %p346 = pneg %p345
    $region30: #{encoder_latent_forward.9} parent=5 // pred_check_branch
      %348 = sbr.rel (%p346) target = $region32
    $region31: #{encoder_latent_forward.9} parent=5 // pred_region
      %s349 = ssub.s32 %s7, 2
      // Predicated region
      $region33: #{encoder_latent_forward.9} parent=31 // pred_check
        %p350 = pneg %p78
      $region34: #{encoder_latent_forward.9} parent=31 // pred_check_branch
        %352 = sbr.rel (%p350) target = $region36
      $region35: #{encoder_latent_forward.9} parent=31 // pred_region
        %p353 = scmp.lt.s32.totalorder %s18, 1
        %s354 = scalar_select %p353, %s18, 1
        %p355 = scmp.lt.s32.totalorder %s19, 3
        %s356 = scalar_select %p355, %s19, 3
        %s357 = smul.addr %s354, 4
        %s358 = sadd.s32 %s356, %s357
        %s359 = smul.addr %s358, 2
        %s360 = scalar_lea.vmem %s1, %s359
      $region36: #{encoder_latent_forward.9} parent=31 // pred_fallthru
        _
    $region32: #{encoder_latent_forward.9} parent=5 // pred_fallthru
      _
  $region6: #{encoder_latent_forward.9} parent=0 // loop_footer
    %s11 = sadd.s32 1, %s7
  $region7: #{encoder_latent_forward.9} parent=0 // loop_footer_branch
    %6 = sbr.rel target = $region3
  $region8: #{encoder_latent_forward.9} parent=0 // loop_exit
    _

// kernel: encoder_latent_forward.6
$region0: #{encoder_latent_forward.6}
  #allocation0 [shape = 'u32[]', space=smem, size = 0x4, offset = 0x4, fixed_abs, tag = 'smem constant byte address 0x4 - core index']
  #allocation1 [shape = 'u32[144,128]{1,0:T(1,128)}', space=vmem, size = 0x12000, scoped, tag = 'internal scratch']
  %s0 = inlined_call_operand.vmem [shape: bf16[2,342,4], index: 0, kind: input, shape index: {}]
  %s1 = inlined_call_operand.vmem [shape: bf16[9,4,16], index: 1, kind: input, shape index: {}]
  %s2 = inlined_call_operand.vmem [shape: f32[1,16], index: 2, kind: input, shape index: {}]
  %s3 = inlined_call_operand.vmem [shape: bf16[2,288,16], index: 3, kind: output, shape index: {}]
  %s4 = sld [smem:[#allocation0]]
  $region45: #{encoder_latent_forward.6} parent=0
    _
  %s6 = ssub.s32 1, %s4
  %s7 = scalar_select 0, %s6, %s4
  loop: start=0, step=1, limit=4
  $region2: #{encoder_latent_forward.6} parent=0 // loop_pre_header
    _
  $region3: #{encoder_latent_forward.6} parent=0 // loop_header
    %s9 = sphi 0, %s13
    %p10 = scmp.ge.s32.totalorder %s9, 4
    %s19 = sphi 0, %s21
    %s22 = sphi 0, %s19
    %s23 = sphi 0, %s22
    %s39 = sphi 0, %s23
    %s43 = sphi 0, %s43
    %s45 = sphi 0, %s43
    %s46 = sphi 0, %s45
    %s60 = sphi 0, %s46
    %s64 = sphi 0, %s64
    %s66 = sphi 0, %s64
    %s67 = sphi 0, %s66
    %s81 = sphi 0, %s67
    %s87 = sphi 0, %s89
    %s90 = sphi 0, %s87
    %s91 = sphi 0, %s90
    %s107 = sphi 0, %s91
  $region4: #{encoder_latent_forward.6} parent=0 // loop_header_branch
    %12 = sbr.rel (%p10) target = $region8
  $region5: #{encoder_latent_forward.6} parent=0 // loop_body
    %s14 = ssub.s32 %s9, 1
    %s15 = ssub.s32 %s9, 2
    %s16 = sadd.s32 %s9, 1
    %s17 = ssub.s32 %s9, %s16
    %p18 = scmp.eq.s32.totalorder %s17, 0
    %s20 = sadd.s32 %s19, 1
    %s21 = scalar_select %p18, %s19, %s20
    %p24 = pneg %p18
    %p25 = scmp.eq.s32.totalorder %s9, 1
    %p26 = por %p24, %p25
    %p27 = scmp.ne.s32.totalorder %s19, %s22
    %p28 = scmp.eq.s32.totalorder %s9, 0
    %p29 = por %p27, %p28
    %p30 = scmp.ne.s32.totalorder %s19, %s22
    %p31 = scmp.eq.s32.totalorder %s14, 1
    %p32 = por %p30, %p31
    %p33 = scmp.ne.s32.totalorder %s22, %s23
    %p34 = scmp.eq.s32.totalorder %s14, 0
    %p35 = por %p33, %p34
    %p36 = scmp.ne.s32.totalorder %s22, %s23
    %p37 = scmp.eq.s32.totalorder %s15, 1
    %p38 = por %p36, %p37
    %p40 = scmp.ne.s32.totalorder %s23, %s39
    %p41 = scmp.eq.s32.totalorder %s15, 0
    %p42 = por %p40, %p41
    %s44 = sadd.s32 %s43, 1
    %p47 = scmp.eq.s32.totalorder %s9, 1
    %p48 = scmp.ne.s32.totalorder %s43, %s45
    %p49 = scmp.eq.s32.totalorder %s9, 0
    %p50 = por %p48, %p49
    %p51 = scmp.ne.s32.totalorder %s43, %s45
    %p52 = scmp.eq.s32.totalorder %s14, 1
    %p53 = por %p51, %p52
    %p54 = scmp.ne.s32.totalorder %s45, %s46
    %p55 = scmp.eq.s32.totalorder %s14, 0
    %p56 = por %p54, %p55
    %p57 = scmp.ne.s32.totalorder %s45, %s46
    %p58 = scmp.eq.s32.totalorder %s15, 1
    %p59 = por %p57, %p58
    %p61 = scmp.ne.s32.totalorder %s46, %s60
    %p62 = scmp.eq.s32.totalorder %s15, 0
    %p63 = por %p61, %p62
    %s65 = sadd.s32 %s64, 1
    %p68 = scmp.eq.s32.totalorder %s9, 1
    %p69 = scmp.ne.s32.totalorder %s64, %s66
    %p70 = scmp.eq.s32.totalorder %s9, 0
    %p71 = por %p69, %p70
    %p72 = scmp.ne.s32.totalorder %s64, %s66
    %p73 = scmp.eq.s32.totalorder %s14, 1
    %p74 = por %p72, %p73
    %p75 = scmp.ne.s32.totalorder %s66, %s67
    %p76 = scmp.eq.s32.totalorder %s14, 0
    %p77 = por %p75, %p76
    %p78 = scmp.ne.s32.totalorder %s66, %s67
    %p79 = scmp.eq.s32.totalorder %s15, 1
    %p80 = por %p78, %p79
    %p82 = scmp.ne.s32.totalorder %s67, %s81
    %p83 = scmp.eq.s32.totalorder %s15, 0
    %p84 = por %p82, %p83
    %s85 = ssub.s32 %s9, %s16
    %p86 = scmp.eq.s32.totalorder %s85, 0
    %s88 = sadd.s32 %s87, 1
    %s89 = scalar_select %p86, %s87, %s88
    %p92 = pneg %p86
    %p93 = scmp.eq.s32.totalorder %s9, 1
    %p94 = por %p92, %p93
    %p95 = scmp.ne.s32.totalorder %s87, %s90
    %p96 = scmp.eq.s32.totalorder %s9, 0
    %p97 = por %p95, %p96
    %p98 = scmp.ne.s32.totalorder %s87, %s90
    %p99 = scmp.eq.s32.totalorder %s14, 1
    %p100 = por %p98, %p99
    %p101 = scmp.ne.s32.totalorder %s90, %s91
    %p102 = scmp.eq.s32.totalorder %s14, 0
    %p103 = por %p101, %p102
    %p104 = scmp.ne.s32.totalorder %s90, %s91
    %p105 = scmp.eq.s32.totalorder %s15, 1
    %p106 = por %p104, %p105
    %p108 = scmp.ne.s32.totalorder %s91, %s107
    %p109 = scmp.eq.s32.totalorder %s15, 0
    %p110 = por %p108, %p109
    %p111 = scmp.le.s32.totalorder 1, %s9
    %p112 = scmp.lt.s32.totalorder %s9, 3
    %p113 = pnand %p111, %p112
    %p114 = pneg %p113
    // Predicated region
    $region9: #{encoder_latent_forward.6} parent=5 // pred_check
      _
    $region10: #{encoder_latent_forward.6} parent=5 // pred_check_branch
      %116 = sbr.rel (%p113) target = $region12
    $region11: #{encoder_latent_forward.6} parent=5 // pred_region
      %s117 = ssub.s32 %s9, 1
      // Predicated region
      $region13: #{encoder_latent_forward.6} parent=11 // pred_check
        %p118 = pneg %p56
      $region14: #{encoder_latent_forward.6} parent=11 // pred_check_branch
        %120 = sbr.rel (%p118) target = $region16
      $region15: #{encoder_latent_forward.6} parent=11 // pred_region
        _
      $region16: #{encoder_latent_forward.6} parent=11 // pred_fallthru
        _
      // Predicated region
      $region17: #{encoder_latent_forward.6} parent=11 // pred_check
        %p121 = pneg %p77
      $region18: #{encoder_latent_forward.6} parent=11 // pred_check_branch
        %123 = sbr.rel (%p121) target = $region20
      $region19: #{encoder_latent_forward.6} parent=11 // pred_region
        _
      $region20: #{encoder_latent_forward.6} parent=11 // pred_fallthru
        _
    $region12: #{encoder_latent_forward.6} parent=5 // pred_fallthru
      _
    %p124 = scmp.lt.s32.totalorder %s9, 2
    // Predicated region
    $region21: #{encoder_latent_forward.6} parent=5 // pred_check
      %p125 = pneg %p124
    $region22: #{encoder_latent_forward.6} parent=5 // pred_check_branch
      %127 = sbr.rel (%p125) target = $region24
    $region23: #{encoder_latent_forward.6} parent=5 // pred_region
      // Predicated region
      $region25: #{encoder_latent_forward.6} parent=23 // pred_check
        %p128 = pneg %p29
      $region26: #{encoder_latent_forward.6} parent=23 // pred_check_branch
        %130 = sbr.rel (%p128) target = $region28
      $region27: #{encoder_latent_forward.6} parent=23 // pred_region
        %p131 = scmp.lt.s32.totalorder %s9, 1
        %s132 = scalar_select %p131, %s9, 1
        %s133 = smul.addr %s132, 43
        %s134 = smul.addr %s133, 4
        %s135 = scalar_lea.vmem %s0, %s134
      $region28: #{encoder_latent_forward.6} parent=23 // pred_fallthru
        _
    $region24: #{encoder_latent_forward.6} parent=5 // pred_fallthru
      _
    %p136 = scmp.le.s32.totalorder 1, %s9
    %p137 = scmp.lt.s32.totalorder %s9, 3
    %p138 = pnand %p136, %p137
    %p139 = pneg %p138
    // Predicated region
    $region29: #{encoder_latent_forward.6} parent=5 // pred_check
      _
    $region30: #{encoder_latent_forward.6} parent=5 // pred_check_branch
      %141 = sbr.rel (%p138) target = $region32
    $region31: #{encoder_latent_forward.6} parent=5 // pred_region
      %s142 = ssub.s32 %s9, 1
      %p143 = scmp.lt.s32.totalorder %s14, 1
      %s144 = scalar_select %p143, %s14, 1
      %s145 = smul.addr %s144, 43
      %s146 = smul.addr %s145, 4
      %s147 = scalar_lea.vmem %s0, %s146
      %p148 = pneg %p35
      %p149 = pneg %p32
      %p150 = pneg %p56
      %p151 = pneg %p53
      %p152 = pneg %p77
      %p153 = pneg %p74
      %p154 = pneg %p103
      %p155 = pneg %p100
      %p156 = scmp.lt.s32.totalorder %s14, 1
      %s157 = scalar_select %p156, %s14, 1
      %s158 = smul.addr %s157, 36
      %s159 = smul.addr %s158, 4
      %s160 = scalar_lea.vmem %s3, %s159
      %p161 = scmp.lt.s32.totalorder %s14, 1
      %s162 = scalar_select %p161, %s14, 1
      %s163 = smul.addr %s162, 43
      %s164 = smul.addr %s163, 4
      %s165 = scalar_lea.vmem %s0, %s164
      %p166 = scmp.lt.s32.totalorder %s14, 1
      %s167 = scalar_select %p166, %s14, 1
      %s168 = smul.addr %s167, 36
      %s169 = smul.addr %s168, 4
      %s170 = scalar_lea.vmem %s3, %s169
      %v172 = vld [vmem:[%s165] sm:$0xf]
      %v173 = vld [vmem:[%s165 + $0x4] sm:$0xf]
      %v174 = vld [vmem:[%s165 + $0x8] sm:$0xf]
      %v175 = vld [vmem:[%s165 + $0xc] sm:$0xf]
      %v176 = vld [vmem:[%s165 + $0x10] sm:$0xf]
      %v177 = vld [vmem:[%s165 + $0x14] sm:$0xf]
      %v178 = vld [vmem:[%s165 + $0x18] sm:$0xf]
      %v179 = vld [vmem:[%s165 + $0x1c] sm:$0xf]
      %v180 = vld [vmem:[%s165 + $0x20] sm:$0xf]
      %v181 = vld [vmem:[%s165 + $0x24] sm:$0xf]
      %v182 = vld [vmem:[%s165 + $0x28] sm:$0xf]
      %v183 = vld [vmem:[%s165 + $0x2c] sm:$0xf]
      %v184 = vld [vmem:[%s165 + $0x30] sm:$0xf]
      %v185 = vld [vmem:[%s165 + $0x34] sm:$0xf]
      %v186 = vld [vmem:[%s165 + $0x38] sm:$0xf]
      %v187 = vld [vmem:[%s165 + $0x3c] sm:$0xf]
      %v188 = vld [vmem:[%s165 + $0x40] sm:$0xf]
      %v189 = vld [vmem:[%s165 + $0x44] sm:$0xf]
      %v190 = vld [vmem:[%s165 + $0x48] sm:$0xf]
      %v191 = vld [vmem:[%s165 + $0x4c] sm:$0xf]
      %v192 = vld [vmem:[%s165 + $0x50] sm:$0xf]
      %v193 = vld [vmem:[%s165 + $0x54] sm:$0xf]
      %v194 = vld [vmem:[%s165 + $0x58] sm:$0xf]
      %v195 = vld [vmem:[%s165 + $0x5c] sm:$0xf]
      %v196 = vld [vmem:[%s165 + $0x60] sm:$0xf]
      %v197 = vld [vmem:[%s165 + $0x64] sm:$0xf]
      %v198 = vld [vmem:[%s165 + $0x68] sm:$0xf]
      %v199 = vld [vmem:[%s165 + $0x6c] sm:$0xf]
      %v200 = vld [vmem:[%s165 + $0x70] sm:$0xf]
      %v201 = vld [vmem:[%s165 + $0x74] sm:$0xf]
      %v202 = vld [vmem:[%s165 + $0x78] sm:$0xf]
      %v203 = vld [vmem:[%s165 + $0x7c] sm:$0xf]
      %v204 = vld [vmem:[%s165 + $0x80] sm:$0xf]
      %v205 = vld [vmem:[%s165 + $0x84] sm:$0xf]
      %v206 = vld [vmem:[%s165 + $0x88] sm:$0xf]
      %v207 = vld [vmem:[%s165 + $0x8c] sm:$0xf]
      %v208 = vld [vmem:[%s1] sm:$0x3]
      %v209 = vld [vmem:[%s165 + $0x90] sm:$0x1]
      %s210 = scalar_lea.vmem %s1, 2
      %v211 = vld [vmem:[%s210] sm:$0x3]
      %v249 = vunpack.c.l.b16 %v172
      %v250 = vunpack.c.l.b16 %v173
      %v251 = vunpack.c.l.b16 %v174
      %v252 = vunpack.c.l.b16 %v175
      %v253 = vunpack.c.l.b16 %v176
      %v254 = vunpack.c.l.b16 %v177
      %v255 = vunpack.c.l.b16 %v178
      %v256 = vunpack.c.l.b16 %v179
      %v257 = vunpack.c.l.b16 %v180
      %v258 = vunpack.c.l.b16 %v181
      %v259 = vunpack.c.l.b16 %v182
      %v260 = vunpack.c.l.b16 %v183
      %v261 = vunpack.c.l.b16 %v184
      %v262 = vunpack.c.l.b16 %v185
      %v263 = vunpack.c.l.b16 %v186
      %v264 = vunpack.c.l.b16 %v187
      %v265 = vunpack.c.l.b16 %v188
      %v266 = vunpack.c.l.b16 %v189
      %v267 = vunpack.c.l.b16 %v190
      %v268 = vunpack.c.l.b16 %v191
      %v269 = vunpack.c.l.b16 %v192
      %v270 = vunpack.c.l.b16 %v193
      %v271 = vunpack.c.l.b16 %v194
      %v272 = vunpack.c.l.b16 %v195
      %v273 = vunpack.c.l.b16 %v196
      %v274 = vunpack.c.l.b16 %v197
      %v275 = vunpack.c.l.b16 %v198
      %v276 = vunpack.c.l.b16 %v199
      %v277 = vunpack.c.l.b16 %v200
      %v278 = vunpack.c.l.b16 %v201
      %v279 = vunpack.c.l.b16 %v202
      %v280 = vunpack.c.l.b16 %v203
      %v281 = vunpack.c.l.b16 %v204
      %v282 = vunpack.c.l.b16 %v205
      %v283 = vunpack.c.l.b16 %v206
      %v284 = vunpack.c.l.b16 %v207
      %v285 = vunpack.c.l.b16 %v209
      %v286 = vpack.c.b16 %v250, %v249
      %v287 = vpack.c.b16 %v252, %v251
      %v288 = vpack.c.b16 %v254, %v253
      %v289 = vpack.c.b16 %v256, %v255
      %v290 = vpack.c.b16 %v258, %v257
      %v291 = vpack.c.b16 %v260, %v259
      %v292 = vpack.c.b16 %v262, %v261
      %v293 = vpack.c.b16 %v264, %v263
      %v294 = vpack.c.b16 %v266, %v265
      %v295 = vpack.c.b16 %v268, %v267
      %v296 = vpack.c.b16 %v270, %v269
      %v297 = vpack.c.b16 %v272, %v271
      %v298 = vpack.c.b16 %v274, %v273
      %v299 = vpack.c.b16 %v276, %v275
      %v300 = vpack.c.b16 %v278, %v277
      %v301 = vpack.c.b16 %v280, %v279
      %v302 = vpack.c.b16 %v282, %v281
      %v303 = vpack.c.b16 %v284, %v283
      %v304 = vpack.c.b16 %v285, %v285
      %vm305 = vsmask.f32 7424
      %v307 = vshrl.u32 %v286, 16
      %v309 = vshll.u32 %v286, 16
      %v311 = vrot.slane %v309, 1
      %v312 = vor.u32 %v307, %v311
      %v314 = vshll.u32 %v287, 16
      %v316 = vrot.slane %v314, 1
      %v317 = vsel %vm305, %v312, %v316
      %v318 = vshrl.u32 %v287, 16
      %v320 = vor.u32 %v318, %v316
      %v322 = vshll.u32 %v288, 16
      %v324 = vrot.slane %v322, 1
      %v325 = vsel %vm305, %v320, %v324
      %v326 = vshrl.u32 %v288, 16
      %v328 = vor.u32 %v326, %v324
      %v330 = vshll.u32 %v289, 16
      %v332 = vrot.slane %v330, 1
      %v333 = vsel %vm305, %v328, %v332
      %v334 = vshrl.u32 %v289, 16
      %v336 = vor.u32 %v334, %v332
      %v338 = vshll.u32 %v290, 16
      %v340 = vrot.slane %v338, 1
      %v341 = vsel %vm305, %v336, %v340
      %v342 = vshrl.u32 %v290, 16
      %v344 = vor.u32 %v342, %v340
      %v346 = vshll.u32 %v291, 16
      %v348 = vrot.slane %v346, 1
      %v349 = vsel %vm305, %v344, %v348
      %v350 = vshrl.u32 %v291, 16
      %v352 = vor.u32 %v350, %v348
      %v354 = vshll.u32 %v292, 16
      %v356 = vrot.slane %v354, 1
      %v357 = vsel %vm305, %v352, %v356
      %v358 = vshrl.u32 %v292, 16
      %v360 = vor.u32 %v358, %v356
      %v362 = vshll.u32 %v293, 16
      %v364 = vrot.slane %v362, 1
      %v365 = vsel %vm305, %v360, %v364
      %v366 = vshrl.u32 %v293, 16
      %v368 = vor.u32 %v366, %v364
      %v370 = vshll.u32 %v294, 16
      %v372 = vrot.slane %v370, 1
      %v373 = vsel %vm305, %v368, %v372
      %v374 = vshrl.u32 %v294, 16
      %v376 = vor.u32 %v374, %v372
      %v378 = vshll.u32 %v295, 16
      %v380 = vrot.slane %v378, 1
      %v381 = vsel %vm305, %v376, %v380
      %v382 = vshrl.u32 %v295, 16
      %v384 = vor.u32 %v382, %v380
      %v386 = vshll.u32 %v296, 16
      %v388 = vrot.slane %v386, 1
      %v389 = vsel %vm305, %v384, %v388
      %v390 = vshrl.u32 %v296, 16
      %v392 = vor.u32 %v390, %v388
      %v394 = vshll.u32 %v297, 16
      %v396 = vrot.slane %v394, 1
      %v397 = vsel %vm305, %v392, %v396
      %v398 = vshrl.u32 %v297, 16
      %v400 = vor.u32 %v398, %v396
      %v402 = vshll.u32 %v298, 16
      %v404 = vrot.slane %v402, 1
      %v405 = vsel %vm305, %v400, %v404
      %v406 = vshrl.u32 %v298, 16
      %v408 = vor.u32 %v406, %v404
      %v410 = vshll.u32 %v299, 16
      %v412 = vrot.slane %v410, 1
      %v413 = vsel %vm305, %v408, %v412
      %v414 = vshrl.u32 %v299, 16
      %v416 = vor.u32 %v414, %v412
      %v418 = vshll.u32 %v300, 16
      %v420 = vrot.slane %v418, 1
      %v421 = vsel %vm305, %v416, %v420
      %v422 = vshrl.u32 %v300, 16
      %v424 = vor.u32 %v422, %v420
      %v426 = vshll.u32 %v301, 16
      %v428 = vrot.slane %v426, 1
      %v429 = vsel %vm305, %v424, %v428
      %v430 = vshrl.u32 %v301, 16
      %v432 = vor.u32 %v430, %v428
      %v434 = vshll.u32 %v302, 16
      %v436 = vrot.slane %v434, 1
      %v437 = vsel %vm305, %v432, %v436
      %v438 = vshrl.u32 %v302, 16
      %v440 = vor.u32 %v438, %v436
      %v442 = vshll.u32 %v303, 16
      %v444 = vrot.slane %v442, 1
      %v445 = vsel %vm305, %v440, %v444
      %v446 = vshrl.u32 %v303, 16
      %v448 = vor.u32 %v446, %v444
      %v450 = vshll.u32 %v304, 16
      %v452 = vrot.slane %v450, 1
      %v453 = vsel %vm305, %v448, %v452
      %vm454 = vcmask 31744
      %v456 = vsel %vm454, %v317, 0
      %v459 = vsel %vm454, %v325, 0
      %v462 = vsel %vm454, %v333, 0
      %v465 = vsel %vm454, %v341, 0
      %v468 = vsel %vm454, %v349, 0
      %v471 = vsel %vm454, %v357, 0
      %v474 = vsel %vm454, %v365, 0
      %v477 = vsel %vm454, %v373, 0
      %v480 = vsel %vm454, %v381, 0
      %v483 = vsel %vm454, %v389, 0
      %v486 = vsel %vm454, %v397, 0
      %v489 = vsel %vm454, %v405, 0
      %v492 = vsel %vm454, %v413, 0
      %v495 = vsel %vm454, %v421, 0
      %v498 = vsel %vm454, %v429, 0
      %v501 = vsel %vm454, %v437, 0
      %v504 = vsel %vm454, %v445, 0
      %v507 = vsel %vm454, %v453, 0
      %vm509 = vcmask 1041408
      %v511 = vsel %vm509, %v211, 0
      %513 = vmatprep.subr.bf16.mxu0 0
      %514 = vmatpush1.bf16.msra.mxu0 %v511
      %515 = vmatprep.subr.bf16.mxu0 0
      %516 = vmatpush1.bf16.msra.mxu0 0
      %517 = vmatprep.subr.bf16.mxu0 0
      %518 = vmatpush1.bf16.msra.mxu0 0
      %519 = vmatprep.subr.bf16.mxu0 0
      %520 = vmatpush1.bf16.msra.mxu0 0
      %521 = vmatprep.subr.bf16.mxu0 0
      %522 = vmatpush1.bf16.msra.mxu0 0
      %523 = vmatprep.subr.bf16.mxu0 0
      %524 = vmatpush1.bf16.msra.mxu0 0
      %525 = vmatprep.subr.bf16.mxu0 0
      %526 = vmatpush1.bf16.msra.mxu0 0
      %527 = vmatprep.subr.bf16.mxu0 0
      %528 = vmatpush1.bf16.msra.mxu0 0
      %529 = vmatprep.subr.bf16.mxu0 0
      %530 = vmatpush1.bf16.msra.mxu0 0
      %531 = vmatprep.subr.bf16.mxu0 0
      %532 = vmatpush1.bf16.msra.mxu0 0
      %533 = vmatprep.subr.bf16.mxu0 0
      %534 = vmatpush1.bf16.msra.mxu0 0
      %535 = vmatprep.subr.bf16.mxu0 0
      %536 = vmatpush1.bf16.msra.mxu0 0
      %537 = vmatprep.subr.bf16.mxu0 0
      %538 = vmatpush1.bf16.msra.mxu0 0
      %539 = vmatprep.subr.bf16.mxu0 0
      %540 = vmatpush1.bf16.msra.mxu0 0
      %541 = vmatprep.subr.bf16.mxu0 0
      %542 = vmatpush1.bf16.msra.mxu0 0
      %543 = vmatprep.subr.bf16.mxu0 0
      %544 = vmatpush1.bf16.msra.mxu0 0
      %545 = vmatprep.mubr.bf16.mxu0 0
      %546 = vmatmul.mubr.bf16.gmra.mrb[0].mxu0 %v456
      %v547 = vpop.f32.mrb[0].mxu0
      %v548 = vadd.f32 0.0, %v547
      %v549 = vpop.f32.mrb[0].mxu0
      %v550 = vpop.f32.mrb[0].mxu0
      %v551 = vadd.f32 0.0, %v550
      %v552 = vpop.f32.mrb[0].mxu0
      %553 = vmatprep.mubr.bf16.mxu0 0
      %554 = vmatmul.mubr.bf16.gmra.mrb[0].mxu0 %v459
      %v555 = vpop.f32.mrb[0].mxu0
      %v556 = vadd.f32 0.0, %v555
      %v557 = vpop.f32.mrb[0].mxu0
      %v558 = vpop.f32.mrb[0].mxu0
      %v559 = vadd.f32 0.0, %v558
      %v560 = vpop.f32.mrb[0].mxu0
      %561 = vmatprep.mubr.bf16.mxu0 0
      %562 = vmatmul.mubr.bf16.gmra.mrb[0].mxu0 %v462
      %v563 = vpop.f32.mrb[0].mxu0
      %v564 = vadd.f32 0.0, %v563
      %v565 = vpop.f32.mrb[0].mxu0
      %v566 = vpop.f32.mrb[0].mxu0
      %v567 = vadd.f32 0.0, %v566
      %v568 = vpop.f32.mrb[0].mxu0
      %569 = vmatprep.mubr.bf16.mxu0 0
      %570 = vmatmul.mubr.bf16.gmra.mrb[0].mxu0 %v465
      %v571 = vpop.f32.mrb[0].mxu0
      %v572 = vadd.f32 0.0, %v571
      %v573 = vpop.f32.mrb[0].mxu0
      %v574 = vpop.f32.mrb[0].mxu0
      %v575 = vadd.f32 0.0, %v574
      %v576 = vpop.f32.mrb[0].mxu0
      %577 = vmatprep.mubr.bf16.mxu0 0
      %578 = vmatmul.mubr.bf16.gmra.mrb[0].mxu0 %v468
      %v579 = vpop.f32.mrb[0].mxu0
      %v580 = vadd.f32 0.0, %v579
      %v581 = vpop.f32.mrb[0].mxu0
      %v582 = vpop.f32.mrb[0].mxu0
      %v583 = vadd.f32 0.0, %v582
      %v584 = vpop.f32.mrb[0].mxu0
      %585 = vmatprep.mubr.bf16.mxu0 0
      %586 = vmatmul.mubr.bf16.gmra.mrb[0].mxu0 %v471
      %v587 = vpop.f32.mrb[0].mxu0
      %v588 = vadd.f32 0.0, %v587
      %v589 = vpop.f32.mrb[0].mxu0
      %v590 = vpop.f32.mrb[0].mxu0
      %v591 = vadd.f32 0.0, %v590
      %v592 = vpop.f32.mrb[0].mxu0
      %593 = vmatprep.mubr.bf16.mxu0 0
      %594 = vmatmul.mubr.bf16.gmra.mrb[0].mxu0 %v474
      %v595 = vpop.f32.mrb[0].mxu0
      %v596 = vadd.f32 0.0, %v595
      %v597 = vpop.f32.mrb[0].mxu0
      %v598 = vpop.f32.mrb[0].mxu0
      %v599 = vadd.f32 0.0, %v598
      %v600 = vpop.f32.mrb[0].mxu0
      %601 = vmatprep.mubr.bf16.mxu0 0
      %602 = vmatmul.mubr.bf16.gmra.mrb[0].mxu0 %v477
      %v603 = vpop.f32.mrb[0].mxu0
      %v604 = vadd.f32 0.0, %v603
      %v605 = vpop.f32.mrb[0].mxu0
      %v606 = vpop.f32.mrb[0].mxu0
      %v607 = vadd.f32 0.0, %v606
      %v608 = vpop.f32.mrb[0].mxu0
      %609 = vmatprep.mubr.bf16.mxu0 0
      %610 = vmatmul.mubr.bf16.gmra.mrb[0].mxu0 %v480
      %v611 = vpop.f32.mrb[0].mxu0
      %v612 = vadd.f32 0.0, %v611
      %v613 = vpop.f32.mrb[0].mxu0
      %v614 = vpop.f32.mrb[0].mxu0
      %v615 = vadd.f32 0.0, %v614
      %v616 = vpop.f32.mrb[0].mxu0
      %617 = vmatprep.mubr.bf16.mxu0 0
      %618 = vmatmul.mubr.bf16.gmra.mrb[0].mxu0 %v483
      %v619 = vpop.f32.mrb[0].mxu0
      %v620 = vadd.f32 0.0, %v619
      %v621 = vpop.f32.mrb[0].mxu0
      %v622 = vpop.f32.mrb[0].mxu0
      %v623 = vadd.f32 0.0, %v622
      %v624 = vpop.f32.mrb[0].mxu0
      %625 = vmatprep.mubr.bf16.mxu0 0
      %626 = vmatmul.mubr.bf16.gmra.mrb[0].mxu0 %v486
      %v627 = vpop.f32.mrb[0].mxu0
      %v628 = vadd.f32 0.0, %v627
      %v629 = vpop.f32.mrb[0].mxu0
      %v630 = vpop.f32.mrb[0].mxu0
      %v631 = vadd.f32 0.0, %v630
      %v632 = vpop.f32.mrb[0].mxu0
      %633 = vmatprep.mubr.bf16.mxu0 0
      %634 = vmatmul.mubr.bf16.gmra.mrb[0].mxu0 %v489
      %v635 = vpop.f32.mrb[0].mxu0
      %v636 = vadd.f32 0.0, %v635
      %v637 = vpop.f32.mrb[0].mxu0
      %v638 = vpop.f32.mrb[0].mxu0
      %v639 = vadd.f32 0.0, %v638
      %v640 = vpop.f32.mrb[0].mxu0
      %641 = vmatprep.mubr.bf16.mxu0 0
      %642 = vmatmul.mubr.bf16.gmra.mrb[0].mxu0 %v492
      %v643 = vpop.f32.mrb[0].mxu0
      %v644 = vadd.f32 0.0, %v643
      %v645 = vpop.f32.mrb[0].mxu0
      %v646 = vpop.f32.mrb[0].mxu0
      %v647 = vadd.f32 0.0, %v646
      %v648 = vpop.f32.mrb[0].mxu0
      %649 = vmatprep.mubr.bf16.mxu0 0
      %650 = vmatmul.mubr.bf16.gmra.mrb[0].mxu0 %v495
      %v651 = vpop.f32.mrb[0].mxu0
      %v652 = vadd.f32 0.0, %v651
      %v653 = vpop.f32.mrb[0].mxu0
      %v654 = vpop.f32.mrb[0].mxu0
      %v655 = vadd.f32 0.0, %v654
      %v656 = vpop.f32.mrb[0].mxu0
      %657 = vmatprep.mubr.bf16.mxu0 0
      %658 = vmatmul.mubr.bf16.gmra.mrb[0].mxu0 %v498
      %v659 = vpop.f32.mrb[0].mxu0
      %v660 = vadd.f32 0.0, %v659
      %v661 = vpop.f32.mrb[0].mxu0
      %v662 = vpop.f32.mrb[0].mxu0
      %v663 = vadd.f32 0.0, %v662
      %v664 = vpop.f32.mrb[0].mxu0
      %665 = vmatprep.mubr.bf16.mxu0 0
      %666 = vmatmul.mubr.bf16.gmra.mrb[0].mxu0 %v501
      %v667 = vpop.f32.mrb[0].mxu0
      %v668 = vadd.f32 0.0, %v667
      %v669 = vpop.f32.mrb[0].mxu0
      %v670 = vpop.f32.mrb[0].mxu0
      %v671 = vadd.f32 0.0, %v670
      %v672 = vpop.f32.mrb[0].mxu0
      %673 = vmatprep.mubr.bf16.mxu0 0
      %674 = vmatmul.mubr.bf16.gmra.mrb[0].mxu0 %v504
      %v675 = vpop.f32.mrb[0].mxu0
      %v676 = vadd.f32 0.0, %v675
      %v677 = vpop.f32.mrb[0].mxu0
      %v678 = vpop.f32.mrb[0].mxu0
      %v679 = vadd.f32 0.0, %v678
      %v680 = vpop.f32.mrb[0].mxu0
      %681 = vmatprep.mubr.bf16.mxu0 0
      %682 = vmatmul.mubr.bf16.gmra.mrb[0].mxu0 %v507
      %v683 = vpop.f32.mrb[0].mxu0
      %v684 = vadd.f32 0.0, %v683
      %v685 = vpop.f32.mrb[0].mxu0
      %v686 = vpop.f32.mrb[0].mxu0
      %v687 = vadd.f32 0.0, %v686
      %v688 = vpop.f32.mrb[0].mxu0
      %689 = vdwg.mxu0
      %v690 = vsel %vm454, %v286, 0
      %v692 = vsel %vm454, %v287, 0
      %v694 = vsel %vm454, %v288, 0
      %v696 = vsel %vm454, %v289, 0
      %v698 = vsel %vm454, %v290, 0
      %v700 = vsel %vm454, %v291, 0
      %v702 = vsel %vm454, %v292, 0
      %v704 = vsel %vm454, %v293, 0
      %v706 = vsel %vm454, %v294, 0
      %v708 = vsel %vm454, %v295, 0
      %v710 = vsel %vm454, %v296, 0
      %v712 = vsel %vm454, %v297, 0
      %v714 = vsel %vm454, %v298, 0
      %v716 = vsel %vm454, %v299, 0
      %v718 = vsel %vm454, %v300, 0
      %v720 = vsel %vm454, %v301, 0
      %v722 = vsel %vm454, %v302, 0
      %v724 = vsel %vm454, %v303, 0
      %v727 = vsel %vm509, %v208, 0
      %729 = vmatprep.subr.bf16.mxu0 0
      %730 = vmatpush1.bf16.msra.mxu0 %v727
      %731 = vmatprep.subr.bf16.mxu0 0
      %732 = vmatpush1.bf16.msra.mxu0 0
      %733 = vmatprep.subr.bf16.mxu0 0
      %734 = vmatpush1.bf16.msra.mxu0 0
      %735 = vmatprep.subr.bf16.mxu0 0
      %736 = vmatpush1.bf16.msra.mxu0 0
      %737 = vmatprep.subr.bf16.mxu0 0
      %738 = vmatpush1.bf16.msra.mxu0 0
      %739 = vmatprep.subr.bf16.mxu0 0
      %740 = vmatpush1.bf16.msra.mxu0 0
      %741 = vmatprep.subr.bf16.mxu0 0
      %742 = vmatpush1.bf16.msra.mxu0 0
      %743 = vmatprep.subr.bf16.mxu0 0
      %744 = vmatpush1.bf16.msra.mxu0 0
      %745 = vmatprep.subr.bf16.mxu0 0
      %746 = vmatpush1.bf16.msra.mxu0 0
      %747 = vmatprep.subr.bf16.mxu0 0
      %748 = vmatpush1.bf16.msra.mxu0 0
      %749 = vmatprep.subr.bf16.mxu0 0
      %750 = vmatpush1.bf16.msra.mxu0 0
      %751 = vmatprep.subr.bf16.mxu0 0
      %752 = vmatpush1.bf16.msra.mxu0 0
      %753 = vmatprep.subr.bf16.mxu0 0
      %754 = vmatpush1.bf16.msra.mxu0 0
      %755 = vmatprep.subr.bf16.mxu0 0
      %756 = vmatpush1.bf16.msra.mxu0 0
      %757 = vmatprep.subr.bf16.mxu0 0
      %758 = vmatpush1.bf16.msra.mxu0 0
      %759 = vmatprep.subr.bf16.mxu0 0
      %760 = vmatpush1.bf16.msra.mxu0 0
      %761 = vmatprep.mubr.bf16.mxu0 0
      %762 = vmatmul.mubr.bf16.gmra.mrb[0].mxu0 %v690
      %v763 = vpop.f32.mrb[0].mxu0
      %v764 = vadd.f32 %v548, %v763
      %v765 = vpop.f32.mrb[0].mxu0
      %v766 = vpop.f32.mrb[0].mxu0
      %v767 = vadd.f32 %v551, %v766
      %v768 = vpop.f32.mrb[0].mxu0
      %769 = vmatprep.mubr.bf16.mxu0 0
      %770 = vmatmul.mubr.bf16.gmra.mrb[0].mxu0 %v692
      %v771 = vpop.f32.mrb[0].mxu0
      %v772 = vadd.f32 %v556, %v771
      %v773 = vpop.f32.mrb[0].mxu0
      %v774 = vpop.f32.mrb[0].mxu0
      %v775 = vadd.f32 %v559, %v774
      %v776 = vpop.f32.mrb[0].mxu0
      %777 = vmatprep.mubr.bf16.mxu0 0
      %778 = vmatmul.mubr.bf16.gmra.mrb[0].mxu0 %v694
      %v779 = vpop.f32.mrb[0].mxu0
      %v780 = vadd.f32 %v564, %v779
      %v781 = vpop.f32.mrb[0].mxu0
      %v782 = vpop.f32.mrb[0].mxu0
      %v783 = vadd.f32 %v567, %v782
      %v784 = vpop.f32.mrb[0].mxu0
      %785 = vmatprep.mubr.bf16.mxu0 0
      %786 = vmatmul.mubr.bf16.gmra.mrb[0].mxu0 %v696
      %v787 = vpop.f32.mrb[0].mxu0
      %v788 = vadd.f32 %v572, %v787
      %v789 = vpop.f32.mrb[0].mxu0
      %v790 = vpop.f32.mrb[0].mxu0
      %v791 = vadd.f32 %v575, %v790
      %v792 = vpop.f32.mrb[0].mxu0
      %793 = vmatprep.mubr.bf16.mxu0 0
      %794 = vmatmul.mubr.bf16.gmra.mrb[0].mxu0 %v698
      %v795 = vpop.f32.mrb[0].mxu0
      %v796 = vadd.f32 %v580, %v795
      %v797 = vpop.f32.mrb[0].mxu0
      %v798 = vpop.f32.mrb[0].mxu0
      %v799 = vadd.f32 %v583, %v798
      %v800 = vpop.f32.mrb[0].mxu0
      %801 = vmatprep.mubr.bf16.mxu0 0
      %802 = vmatmul.mubr.bf16.gmra.mrb[0].mxu0 %v700
      %v803 = vpop.f32.mrb[0].mxu0
      %v804 = vadd.f32 %v588, %v803
      %v805 = vpop.f32.mrb[0].mxu0
      %v806 = vpop.f32.mrb[0].mxu0
      %v807 = vadd.f32 %v591, %v806
      %v808 = vpop.f32.mrb[0].mxu0
      %809 = vmatprep.mubr.bf16.mxu0 0
      %810 = vmatmul.mubr.bf16.gmra.mrb[0].mxu0 %v702
      %v811 = vpop.f32.mrb[0].mxu0
      %v812 = vadd.f32 %v596, %v811
      %v813 = vpop.f32.mrb[0].mxu0
      %v814 = vpop.f32.mrb[0].mxu0
      %v815 = vadd.f32 %v599, %v814
      %v816 = vpop.f32.mrb[0].mxu0
      %817 = vmatprep.mubr.bf16.mxu0 0
      %818 = vmatmul.mubr.bf16.gmra.mrb[0].mxu0 %v704
      %v819 = vpop.f32.mrb[0].mxu0
      %v820 = vadd.f32 %v604, %v819
      %v821 = vpop.f32.mrb[0].mxu0
      %v822 = vpop.f32.mrb[0].mxu0
      %v823 = vadd.f32 %v607, %v822
      %v824 = vpop.f32.mrb[0].mxu0
      %825 = vmatprep.mubr.bf16.mxu0 0
      %826 = vmatmul.mubr.bf16.gmra.mrb[0].mxu0 %v706
      %v827 = vpop.f32.mrb[0].mxu0
      %v828 = vadd.f32 %v612, %v827
      %v829 = vpop.f32.mrb[0].mxu0
      %v830 = vpop.f32.mrb[0].mxu0
      %v831 = vadd.f32 %v615, %v830
      %v832 = vpop.f32.mrb[0].mxu0
      %833 = vmatprep.mubr.bf16.mxu0 0
      %834 = vmatmul.mubr.bf16.gmra.mrb[0].mxu0 %v708
      %v835 = vpop.f32.mrb[0].mxu0
      %v836 = vadd.f32 %v620, %v835
      %v837 = vpop.f32.mrb[0].mxu0
      %v838 = vpop.f32.mrb[0].mxu0
      %v839 = vadd.f32 %v623, %v838
      %v840 = vpop.f32.mrb[0].mxu0
      %841 = vmatprep.mubr.bf16.mxu0 0
      %842 = vmatmul.mubr.bf16.gmra.mrb[0].mxu0 %v710
      %v843 = vpop.f32.mrb[0].mxu0
      %v844 = vadd.f32 %v628, %v843
      %v845 = vpop.f32.mrb[0].mxu0
      %v846 = vpop.f32.mrb[0].mxu0
      %v847 = vadd.f32 %v631, %v846
      %v848 = vpop.f32.mrb[0].mxu0
      %849 = vmatprep.mubr.bf16.mxu0 0
      %850 = vmatmul.mubr.bf16.gmra.mrb[0].mxu0 %v712
      %v851 = vpop.f32.mrb[0].mxu0
      %v852 = vadd.f32 %v636, %v851
      %v853 = vpop.f32.mrb[0].mxu0
      %v854 = vpop.f32.mrb[0].mxu0
      %v855 = vadd.f32 %v639, %v854
      %v856 = vpop.f32.mrb[0].mxu0
      %857 = vmatprep.mubr.bf16.mxu0 0
      %858 = vmatmul.mubr.bf16.gmra.mrb[0].mxu0 %v714
      %v859 = vpop.f32.mrb[0].mxu0
      %v860 = vadd.f32 %v644, %v859
      %v861 = vpop.f32.mrb[0].mxu0
      %v862 = vpop.f32.mrb[0].mxu0
      %v863 = vadd.f32 %v647, %v862
      %v864 = vpop.f32.mrb[0].mxu0
      %865 = vmatprep.mubr.bf16.mxu0 0
      %866 = vmatmul.mubr.bf16.gmra.mrb[0].mxu0 %v716
      %v867 = vpop.f32.mrb[0].mxu0
      %v868 = vadd.f32 %v652, %v867
      %v869 = vpop.f32.mrb[0].mxu0
      %v870 = vpop.f32.mrb[0].mxu0
      %v871 = vadd.f32 %v655, %v870
      %v872 = vpop.f32.mrb[0].mxu0
      %873 = vmatprep.mubr.bf16.mxu0 0
      %874 = vmatmul.mubr.bf16.gmra.mrb[0].mxu0 %v718
      %v875 = vpop.f32.mrb[0].mxu0
      %v876 = vadd.f32 %v660, %v875
      %v877 = vpop.f32.mrb[0].mxu0
      %v878 = vpop.f32.mrb[0].mxu0
      %v879 = vadd.f32 %v663, %v878
      %v880 = vpop.f32.mrb[0].mxu0
      %881 = vmatprep.mubr.bf16.mxu0 0
      %882 = vmatmul.mubr.bf16.gmra.mrb[0].mxu0 %v720
      %v883 = vpop.f32.mrb[0].mxu0
      %v884 = vadd.f32 %v668, %v883
      %v885 = vpop.f32.mrb[0].mxu0
      %v886 = vpop.f32.mrb[0].mxu0
      %v887 = vadd.f32 %v671, %v886
      %v888 = vpop.f32.mrb[0].mxu0
      %889 = vmatprep.mubr.bf16.mxu0 0
      %890 = vmatmul.mubr.bf16.gmra.mrb[0].mxu0 %v722
      %v891 = vpop.f32.mrb[0].mxu0
      %v892 = vadd.f32 %v676, %v891
      %v893 = vpop.f32.mrb[0].mxu0
      %v894 = vpop.f32.mrb[0].mxu0
      %v895 = vadd.f32 %v679, %v894
      %v896 = vpop.f32.mrb[0].mxu0
      %897 = vmatprep.mubr.bf16.mxu0 0
      %898 = vmatmul.mubr.bf16.gmra.mrb[0].mxu0 %v724
      %v899 = vpop.f32.mrb[0].mxu0
      %v900 = vadd.f32 %v684, %v899
      %v901 = vpop.f32.mrb[0].mxu0
      %v902 = vpop.f32.mrb[0].mxu0
      %v903 = vadd.f32 %v687, %v902
      %v904 = vpop.f32.mrb[0].mxu0
      %905 = vdwg.mxu0
      %v906 = vld [vmem:[%s165] sm:$0xe]
      %s907 = scalar_lea.vmem %s1, 4
      %v908 = vld [vmem:[%s907] sm:$0x3]
      %v910 = vunpack.c.l.b16 %v906
      %v911 = vpack.c.b16 %v250, %v910
      %vm912 = vcmask 1046528
      %v913 = vrot.slane %v911, 1
      %v914 = vrot.slane %v287, 1
      %v915 = vsel %vm912, %v913, %v914
      %v916 = vrot.slane %v288, 1
      %v917 = vsel %vm912, %v914, %v916
      %v918 = vrot.slane %v289, 1
      %v919 = vsel %vm912, %v916, %v918
      %v920 = vrot.slane %v290, 1
      %v921 = vsel %vm912, %v918, %v920
      %v922 = vrot.slane %v291, 1
      %v923 = vsel %vm912, %v920, %v922
      %v924 = vrot.slane %v292, 1
      %v925 = vsel %vm912, %v922, %v924
      %v926 = vrot.slane %v293, 1
      %v927 = vsel %vm912, %v924, %v926
      %v928 = vrot.slane %v294, 1
      %v929 = vsel %vm912, %v926, %v928
      %v930 = vrot.slane %v295, 1
      %v931 = vsel %vm912, %v928, %v930
      %v932 = vrot.slane %v296, 1
      %v933 = vsel %vm912, %v930, %v932
      %v934 = vrot.slane %v297, 1
      %v935 = vsel %vm912, %v932, %v934
      %v936 = vrot.slane %v298, 1
      %v937 = vsel %vm912, %v934, %v936
      %v938 = vrot.slane %v299, 1
      %v939 = vsel %vm912, %v936, %v938
      %v940 = vrot.slane %v300, 1
      %v941 = vsel %vm912, %v938, %v940
      %v942 = vrot.slane %v301, 1
      %v943 = vsel %vm912, %v940, %v942
      %v944 = vrot.slane %v302, 1
      %v945 = vsel %vm912, %v942, %v944
      %v946 = vrot.slane %v303, 1
      %v947 = vsel %vm912, %v944, %v946
      %v948 = vrot.slane %v304, 1
      %v949 = vsel %vm912, %v946, %v948
      %v951 = vsel %vm454, %v915, 0
      %v954 = vsel %vm454, %v917, 0
      %v957 = vsel %vm454, %v919, 0
      %v960 = vsel %vm454, %v921, 0
      %v963 = vsel %vm454, %v923, 0
      %v966 = vsel %vm454, %v925, 0
      %v969 = vsel %vm454, %v927, 0
      %v972 = vsel %vm454, %v929, 0
      %v975 = vsel %vm454, %v931, 0
      %v978 = vsel %vm454, %v933, 0
      %v981 = vsel %vm454, %v935, 0
      %v984 = vsel %vm454, %v937, 0
      %v987 = vsel %vm454, %v939, 0
      %v990 = vsel %vm454, %v941, 0
      %v993 = vsel %vm454, %v943, 0
      %v996 = vsel %vm454, %v945, 0
      %v999 = vsel %vm454, %v947, 0
      %v1002 = vsel %vm454, %v949, 0
      %v1005 = vsel %vm509, %v908, 0
      %1007 = vmatprep.subr.bf16.mxu0 0
      %1008 = vmatpush1.bf16.msra.mxu0 %v1005
      %1009 = vmatprep.subr.bf16.mxu0 0
      %1010 = vmatpush1.bf16.msra.mxu0 0
      %1011 = vmatprep.subr.bf16.mxu0 0
      %1012 = vmatpush1.bf16.msra.mxu0 0
      %1013 = vmatprep.subr.bf16.mxu0 0
      %1014 = vmatpush1.bf16.msra.mxu0 0
      %1015 = vmatprep.subr.bf16.mxu0 0
      %1016 = vmatpush1.bf16.msra.mxu0 0
      %1017 = vmatprep.subr.bf16.mxu0 0
      %1018 = vmatpush1.bf16.msra.mxu0 0
      %1019 = vmatprep.subr.bf16.mxu0 0
      %1020 = vmatpush1.bf16.msra.mxu0 0
      %1021 = vmatprep.subr.bf16.mxu0 0
      %1022 = vmatpush1.bf16.msra.mxu0 0
      %1023 = vmatprep.subr.bf16.mxu0 0
      %1024 = vmatpush1.bf16.msra.mxu0 0
      %1025 = vmatprep.subr.bf16.mxu0 0
      %1026 = vmatpush1.bf16.msra.mxu0 0
      %1027 = vmatprep.subr.bf16.mxu0 0
      %1028 = vmatpush1.bf16.msra.mxu0 0
      %1029 = vmatprep.subr.bf16.mxu0 0
      %1030 = vmatpush1.bf16.msra.mxu0 0
      %1031 = vmatprep.subr.bf16.mxu0 0
      %1032 = vmatpush1.bf16.msra.mxu0 0
      %1033 = vmatprep.subr.bf16.mxu0 0
      %1034 = vmatpush1.bf16.msra.mxu0 0
      %1035 = vmatprep.subr.bf16.mxu0 0
      %1036 = vmatpush1.bf16.msra.mxu0 0
      %1037 = vmatprep.subr.bf16.mxu0 0
      %1038 = vmatpush1.bf16.msra.mxu0 0
      %1039 = vmatprep.mubr.bf16.mxu0 0
      %1040 = vmatmul.mubr.bf16.gmra.mrb[0].mxu0 %v951
      %v1041 = vpop.f32.mrb[0].mxu0
      %v1042 = vadd.f32 0.0, %v1041
      %v1043 = vpop.f32.mrb[0].mxu0
      %v1044 = vpop.f32.mrb[0].mxu0
      %v1045 = vadd.f32 0.0, %v1044
      %v1046 = vpop.f32.mrb[0].mxu0
      %1047 = vmatprep.mubr.bf16.mxu0 0
      %1048 = vmatmul.mubr.bf16.gmra.mrb[0].mxu0 %v954
      %v1049 = vpop.f32.mrb[0].mxu0
      %v1050 = vadd.f32 0.0, %v1049
      %v1051 = vpop.f32.mrb[0].mxu0
      %v1052 = vpop.f32.mrb[0].mxu0
      %v1053 = vadd.f32 0.0, %v1052
      %v1054 = vpop.f32.mrb[0].mxu0
      %1055 = vmatprep.mubr.bf16.mxu0 0
      %1056 = vmatmul.mubr.bf16.gmra.mrb[0].mxu0 %v957
      %v1057 = vpop.f32.mrb[0].mxu0
      %v1058 = vadd.f32 0.0, %v1057
      %v1059 = vpop.f32.mrb[0].mxu0
      %v1060 = vpop.f32.mrb[0].mxu0
      %v1061 = vadd.f32 0.0, %v1060
      %v1062 = vpop.f32.mrb[0].mxu0
      %1063 = vmatprep.mubr.bf16.mxu0 0
      %1064 = vmatmul.mubr.bf16.gmra.mrb[0].mxu0 %v960
      %v1065 = vpop.f32.mrb[0].mxu0
      %v1066 = vadd.f32 0.0, %v1065
      %v1067 = vpop.f32.mrb[0].mxu0
      %v1068 = vpop.f32.mrb[0].mxu0
      %v1069 = vadd.f32 0.0, %v1068
      %v1070 = vpop.f32.mrb[0].mxu0
      %1071 = vmatprep.mubr.bf16.mxu0 0
      %1072 = vmatmul.mubr.bf16.gmra.mrb[0].mxu0 %v963
      %v1073 = vpop.f32.mrb[0].mxu0
      %v1074 = vadd.f32 0.0, %v1073
      %v1075 = vpop.f32.mrb[0].mxu0
      %v1076 = vpop.f32.mrb[0].mxu0
      %v1077 = vadd.f32 0.0, %v1076
      %v1078 = vpop.f32.mrb[0].mxu0
      %1079 = vmatprep.mubr.bf16.mxu0 0
      %1080 = vmatmul.mubr.bf16.gmra.mrb[0].mxu0 %v966
      %v1081 = vpop.f32.mrb[0].mxu0
      %v1082 = vadd.f32 0.0, %v1081
      %v1083 = vpop.f32.mrb[0].mxu0
      %v1084 = vpop.f32.mrb[0].mxu0
      %v1085 = vadd.f32 0.0, %v1084
      %v1086 = vpop.f32.mrb[0].mxu0
      %1087 = vmatprep.mubr.bf16.mxu0 0
      %1088 = vmatmul.mubr.bf16.gmra.mrb[0].mxu0 %v969
      %v1089 = vpop.f32.mrb[0].mxu0
      %v1090 = vadd.f32 0.0, %v1089
      %v1091 = vpop.f32.mrb[0].mxu0
      %v1092 = vpop.f32.mrb[0].mxu0
      %v1093 = vadd.f32 0.0, %v1092
      %v1094 = vpop.f32.mrb[0].mxu0
      %1095 = vmatprep.mubr.bf16.mxu0 0
      %1096 = vmatmul.mubr.bf16.gmra.mrb[0].mxu0 %v972
      %v1097 = vpop.f32.mrb[0].mxu0
      %v1098 = vadd.f32 0.0, %v1097
      %v1099 = vpop.f32.mrb[0].mxu0
      %v1100 = vpop.f32.mrb[0].mxu0
      %v1101 = vadd.f32 0.0, %v1100
      %v1102 = vpop.f32.mrb[0].mxu0
      %1103 = vmatprep.mubr.bf16.mxu0 0
      %1104 = vmatmul.mubr.bf16.gmra.mrb[0].mxu0 %v975
      %v1105 = vpop.f32.mrb[0].mxu0
      %v1106 = vadd.f32 0.0, %v1105
      %v1107 = vpop.f32.mrb[0].mxu0
      %v1108 = vpop.f32.mrb[0].mxu0
      %v1109 = vadd.f32 0.0, %v1108
      %v1110 = vpop.f32.mrb[0].mxu0
      %1111 = vmatprep.mubr.bf16.mxu0 0
      %1112 = vmatmul.mubr.bf16.gmra.mrb[0].mxu0 %v978
      %v1113 = vpop.f32.mrb[0].mxu0
      %v1114 = vadd.f32 0.0, %v1113
      %v1115 = vpop.f32.mrb[0].mxu0
      %v1116 = vpop.f32.mrb[0].mxu0
      %v1117 = vadd.f32 0.0, %v1116
      %v1118 = vpop.f32.mrb[0].mxu0
      %1119 = vmatprep.mubr.bf16.mxu0 0
      %1120 = vmatmul.mubr.bf16.gmra.mrb[0].mxu0 %v981
      %v1121 = vpop.f32.mrb[0].mxu0
      %v1122 = vadd.f32 0.0, %v1121
      %v1123 = vpop.f32.mrb[0].mxu0
      %v1124 = vpop.f32.mrb[0].mxu0
      %v1125 = vadd.f32 0.0, %v1124
      %v1126 = vpop.f32.mrb[0].mxu0
      %1127 = vmatprep.mubr.bf16.mxu0 0
      %1128 = vmatmul.mubr.bf16.gmra.mrb[0].mxu0 %v984
      %v1129 = vpop.f32.mrb[0].mxu0
      %v1130 = vadd.f32 0.0, %v1129
      %v1131 = vpop.f32.mrb[0].mxu0
      %v1132 = vpop.f32.mrb[0].mxu0
      %v1133 = vadd.f32 0.0, %v1132
      %v1134 = vpop.f32.mrb[0].mxu0
      %1135 = vmatprep.mubr.bf16.mxu0 0
      %1136 = vmatmul.mubr.bf16.gmra.mrb[0].mxu0 %v987
      %v1137 = vpop.f32.mrb[0].mxu0
      %v1138 = vadd.f32 0.0, %v1137
      %v1139 = vpop.f32.mrb[0].mxu0
      %v1140 = vpop.f32.mrb[0].mxu0
      %v1141 = vadd.f32 0.0, %v1140
      %v1142 = vpop.f32.mrb[0].mxu0
      %1143 = vmatprep.mubr.bf16.mxu0 0
      %1144 = vmatmul.mubr.bf16.gmra.mrb[0].mxu0 %v990
      %v1145 = vpop.f32.mrb[0].mxu0
      %v1146 = vadd.f32 0.0, %v1145
      %v1147 = vpop.f32.mrb[0].mxu0
      %v1148 = vpop.f32.mrb[0].mxu0
      %v1149 = vadd.f32 0.0, %v1148
      %v1150 = vpop.f32.mrb[0].mxu0
      %1151 = vmatprep.mubr.bf16.mxu0 0
      %1152 = vmatmul.mubr.bf16.gmra.mrb[0].mxu0 %v993
      %v1153 = vpop.f32.mrb[0].mxu0
      %v1154 = vadd.f32 0.0, %v1153
      %v1155 = vpop.f32.mrb[0].mxu0
      %v1156 = vpop.f32.mrb[0].mxu0
      %v1157 = vadd.f32 0.0, %v1156
      %v1158 = vpop.f32.mrb[0].mxu0
      %1159 = vmatprep.mubr.bf16.mxu0 0
      %1160 = vmatmul.mubr.bf16.gmra.mrb[0].mxu0 %v996
      %v1161 = vpop.f32.mrb[0].mxu0
      %v1162 = vadd.f32 0.0, %v1161
      %v1163 = vpop.f32.mrb[0].mxu0
      %v1164 = vpop.f32.mrb[0].mxu0
      %v1165 = vadd.f32 0.0, %v1164
      %v1166 = vpop.f32.mrb[0].mxu0
      %1167 = vmatprep.mubr.bf16.mxu0 0
      %1168 = vmatmul.mubr.bf16.gmra.mrb[0].mxu0 %v999
      %v1169 = vpop.f32.mrb[0].mxu0
      %v1170 = vadd.f32 0.0, %v1169
      %v1171 = vpop.f32.mrb[0].mxu0
      %v1172 = vpop.f32.mrb[0].mxu0
      %v1173 = vadd.f32 0.0, %v1172
      %v1174 = vpop.f32.mrb[0].mxu0
      %1175 = vmatprep.mubr.bf16.mxu0 0
      %1176 = vmatmul.mubr.bf16.gmra.mrb[0].mxu0 %v1002
      %v1177 = vpop.f32.mrb[0].mxu0
      %v1178 = vadd.f32 0.0, %v1177
      %v1179 = vpop.f32.mrb[0].mxu0
      %v1180 = vpop.f32.mrb[0].mxu0
      %v1181 = vadd.f32 0.0, %v1180
      %v1182 = vpop.f32.mrb[0].mxu0
      %1183 = vdwg.mxu0
      %v1184 = vadd.f32 %v764, %v1042
      %v1185 = vadd.f32 %v767, %v1045
      %v1186 = vadd.f32 %v772, %v1050
      %v1187 = vadd.f32 %v775, %v1053
      %v1188 = vadd.f32 %v780, %v1058
      %v1189 = vadd.f32 %v783, %v1061
      %v1190 = vadd.f32 %v788, %v1066
      %v1191 = vadd.f32 %v791, %v1069
      %v1192 = vadd.f32 %v796, %v1074
      %v1193 = vadd.f32 %v799, %v1077
      %v1194 = vadd.f32 %v804, %v1082
      %v1195 = vadd.f32 %v807, %v1085
      %v1196 = vadd.f32 %v812, %v1090
      %v1197 = vadd.f32 %v815, %v1093
      %v1198 = vadd.f32 %v820, %v1098
      %v1199 = vadd.f32 %v823, %v1101
      %v1200 = vadd.f32 %v828, %v1106
      %v1201 = vadd.f32 %v831, %v1109
      %v1202 = vadd.f32 %v836, %v1114
      %v1203 = vadd.f32 %v839, %v1117
      %v1204 = vadd.f32 %v844, %v1122
      %v1205 = vadd.f32 %v847, %v1125
      %v1206 = vadd.f32 %v852, %v1130
      %v1207 = vadd.f32 %v855, %v1133
      %v1208 = vadd.f32 %v860, %v1138
      %v1209 = vadd.f32 %v863, %v1141
      %v1210 = vadd.f32 %v868, %v1146
      %v1211 = vadd.f32 %v871, %v1149
      %v1212 = vadd.f32 %v876, %v1154
      %v1213 = vadd.f32 %v879, %v1157
      %v1214 = vadd.f32 %v884, %v1162
      %v1215 = vadd.f32 %v887, %v1165
      %v1216 = vadd.f32 %v892, %v1170
      %v1217 = vadd.f32 %v895, %v1173
      %v1218 = vadd.f32 %v900, %v1178
      %v1219 = vadd.f32 %v903, %v1181
      %v1220 = vld [vmem:[%s165 + $0x8] sm:$0xe]
      %v1221 = vld [vmem:[%s165 + $0xc] sm:$0xf]
      %v1222 = vld [vmem:[%s165 + $0x10] sm:$0xf]
      %v1223 = vld [vmem:[%s165 + $0x14] sm:$0xf]
      %v1224 = vld [vmem:[%s165 + $0x18] sm:$0xf]
      %v1225 = vld [vmem:[%s165 + $0x1c] sm:$0xf]
      %v1226 = vld [vmem:[%s165 + $0x20] sm:$0xf]
      %v1227 = vld [vmem:[%s165 + $0x24] sm:$0xf]
      %v1228 = vld [vmem:[%s165 + $0x28] sm:$0xf]
      %v1229 = vld [vmem:[%s165 + $0x2c] sm:$0xf]
      %v1230 = vld [vmem:[%s165 + $0x30] sm:$0xf]
      %v1231 = vld [vmem:[%s165 + $0x34] sm:$0xf]
      %v1232 = vld [vmem:[%s165 + $0x38] sm:$0xf]
      %v1233 = vld [vmem:[%s165 + $0x3c] sm:$0xf]
      %v1234 = vld [vmem:[%s165 + $0x40] sm:$0xf]
      %v1235 = vld [vmem:[%s165 + $0x44] sm:$0xf]
      %v1236 = vld [vmem:[%s165 + $0x48] sm:$0xf]
      %v1237 = vld [vmem:[%s165 + $0x4c] sm:$0xf]
      %v1238 = vld [vmem:[%s165 + $0x50] sm:$0xf]
      %v1239 = vld [vmem:[%s165 + $0x54] sm:$0xf]
      %v1240 = vld [vmem:[%s165 + $0x58] sm:$0xf]
      %v1241 = vld [vmem:[%s165 + $0x5c] sm:$0xf]
      %v1242 = vld [vmem:[%s165 + $0x60] sm:$0xf]
      %v1243 = vld [vmem:[%s165 + $0x64] sm:$0xf]
      %v1244 = vld [vmem:[%s165 + $0x68] sm:$0xf]
      %v1245 = vld [vmem:[%s165 + $0x6c] sm:$0xf]
      %v1246 = vld [vmem:[%s165 + $0x70] sm:$0xf]
      %v1247 = vld [vmem:[%s165 + $0x74] sm:$0xf]
      %v1248 = vld [vmem:[%s165 + $0x78] sm:$0xf]
      %v1249 = vld [vmem:[%s165 + $0x7c] sm:$0xf]
      %v1250 = vld [vmem:[%s165 + $0x80] sm:$0xf]
      %v1251 = vld [vmem:[%s165 + $0x84] sm:$0xf]
      %v1252 = vld [vmem:[%s165 + $0x88] sm:$0xf]
      %v1253 = vld [vmem:[%s165 + $0x8c] sm:$0xf]
      %v1254 = vld [vmem:[%s165 + $0x90] sm:$0xf]
      %v1255 = vld [vmem:[%s165 + $0x94] sm:$0xf]
      %v1256 = vld [vmem:[%s165 + $0x98] sm:$0x1]
      %s1257 = scalar_lea.vmem %s1, 6
      %v1258 = vld [vmem:[%s1257] sm:$0x3]
      %v1296 = vunpack.c.l.b16 %v1220
      %v1297 = vunpack.c.l.b16 %v1221
      %v1298 = vunpack.c.l.b16 %v1222
      %v1299 = vunpack.c.l.b16 %v1223
      %v1300 = vunpack.c.l.b16 %v1224
      %v1301 = vunpack.c.l.b16 %v1225
      %v1302 = vunpack.c.l.b16 %v1226
      %v1303 = vunpack.c.l.b16 %v1227
      %v1304 = vunpack.c.l.b16 %v1228
      %v1305 = vunpack.c.l.b16 %v1229
      %v1306 = vunpack.c.l.b16 %v1230
      %v1307 = vunpack.c.l.b16 %v1231
      %v1308 = vunpack.c.l.b16 %v1232
      %v1309 = vunpack.c.l.b16 %v1233
      %v1310 = vunpack.c.l.b16 %v1234
      %v1311 = vunpack.c.l.b16 %v1235
      %v1312 = vunpack.c.l.b16 %v1236
      %v1313 = vunpack.c.l.b16 %v1237
      %v1314 = vunpack.c.l.b16 %v1238
      %v1315 = vunpack.c.l.b16 %v1239
      %v1316 = vunpack.c.l.b16 %v1240
      %v1317 = vunpack.c.l.b16 %v1241
      %v1318 = vunpack.c.l.b16 %v1242
      %v1319 = vunpack.c.l.b16 %v1243
      %v1320 = vunpack.c.l.b16 %v1244
      %v1321 = vunpack.c.l.b16 %v1245
      %v1322 = vunpack.c.l.b16 %v1246
      %v1323 = vunpack.c.l.b16 %v1247
      %v1324 = vunpack.c.l.b16 %v1248
      %v1325 = vunpack.c.l.b16 %v1249
      %v1326 = vunpack.c.l.b16 %v1250
      %v1327 = vunpack.c.l.b16 %v1251
      %v1328 = vunpack.c.l.b16 %v1252
      %v1329 = vunpack.c.l.b16 %v1253
      %v1330 = vunpack.c.l.b16 %v1254
      %v1331 = vunpack.c.l.b16 %v1255
      %v1332 = vunpack.c.l.b16 %v1256
      %v1333 = vpack.c.b16 %v1297, %v1296
      %v1334 = vpack.c.b16 %v1299, %v1298
      %v1335 = vpack.c.b16 %v1301, %v1300
      %v1336 = vpack.c.b16 %v1303, %v1302
      %v1337 = vpack.c.b16 %v1305, %v1304
      %v1338 = vpack.c.b16 %v1307, %v1306
      %v1339 = vpack.c.b16 %v1309, %v1308
      %v1340 = vpack.c.b16 %v1311, %v1310
      %v1341 = vpack.c.b16 %v1313, %v1312
      %v1342 = vpack.c.b16 %v1315, %v1314
      %v1343 = vpack.c.b16 %v1317, %v1316
      %v1344 = vpack.c.b16 %v1319, %v1318
      %v1345 = vpack.c.b16 %v1321, %v1320
      %v1346 = vpack.c.b16 %v1323, %v1322
      %v1347 = vpack.c.b16 %v1325, %v1324
      %v1348 = vpack.c.b16 %v1327, %v1326
      %v1349 = vpack.c.b16 %v1329, %v1328
      %v1350 = vpack.c.b16 %v1331, %v1330
      %v1351 = vpack.c.b16 %v1332, %v1332
      %v1352 = vrot.slane %v1333, 1
      %v1353 = vrot.slane %v1334, 1
      %v1354 = vsel %vm912, %v1352, %v1353
      %v1355 = vrot.slane %v1335, 1
      %v1356 = vsel %vm912, %v1353, %v1355
      %v1357 = vrot.slane %v1336, 1
      %v1358 = vsel %vm912, %v1355, %v1357
      %v1359 = vrot.slane %v1337, 1
      %v1360 = vsel %vm912, %v1357, %v1359
      %v1361 = vrot.slane %v1338, 1
      %v1362 = vsel %vm912, %v1359, %v1361
      %v1363 = vrot.slane %v1339, 1
      %v1364 = vsel %vm912, %v1361, %v1363
      %v1365 = vrot.slane %v1340, 1
      %v1366 = vsel %vm912, %v1363, %v1365
      %v1367 = vrot.slane %v1341, 1
      %v1368 = vsel %vm912, %v1365, %v1367
      %v1369 = vrot.slane %v1342, 1
      %v1370 = vsel %vm912, %v1367, %v1369
      %v1371 = vrot.slane %v1343, 1
      %v1372 = vsel %vm912, %v1369, %v1371
      %v1373 = vrot.slane %v1344, 1
      %v1374 = vsel %vm912, %v1371, %v1373
      %v1375 = vrot.slane %v1345, 1
      %v1376 = vsel %vm912, %v1373, %v1375
      %v1377 = vrot.slane %v1346, 1
      %v1378 = vsel %vm912, %v1375, %v1377
      %v1379 = vrot.slane %v1347, 1
      %v1380 = vsel %vm912, %v1377, %v1379
      %v1381 = vrot.slane %v1348, 1
      %v1382 = vsel %vm912, %v1379, %v1381
      %v1383 = vrot.slane %v1349, 1
      %v1384 = vsel %vm912, %v1381, %v1383
      %v1385 = vrot.slane %v1350, 1
      %v1386 = vsel %vm912, %v1383, %v1385
      %v1387 = vrot.slane %v1351, 1
      %v1388 = vsel %vm912, %v1385, %v1387
      %v1390 = vsel %vm454, %v1354, 0
      %v1393 = vsel %vm454, %v1356, 0
      %v1396 = vsel %vm454, %v1358, 0
      %v1399 = vsel %vm454, %v1360, 0
      %v1402 = vsel %vm454, %v1362, 0
      %v1405 = vsel %vm454, %v1364, 0
      %v1408 = vsel %vm454, %v1366, 0
      %v1411 = vsel %vm454, %v1368, 0
      %v1414 = vsel %vm454, %v1370, 0
      %v1417 = vsel %vm454, %v1372, 0
      %v1420 = vsel %vm454, %v1374, 0
      %v1423 = vsel %vm454, %v1376, 0
      %v1426 = vsel %vm454, %v1378, 0
      %v1429 = vsel %vm454, %v1380, 0
      %v1432 = vsel %vm454, %v1382, 0
      %v1435 = vsel %vm454, %v1384, 0
      %v1438 = vsel %vm454, %v1386, 0
      %v1441 = vsel %vm454, %v1388, 0
      %v1444 = vsel %vm509, %v1258, 0
      %1446 = vmatprep.subr.bf16.mxu0 0
      %1447 = vmatpush1.bf16.msra.mxu0 %v1444
      %1448 = vmatprep.subr.bf16.mxu0 0
      %1449 = vmatpush1.bf16.msra.mxu0 0
      %1450 = vmatprep.subr.bf16.mxu0 0
      %1451 = vmatpush1.bf16.msra.mxu0 0
      %1452 = vmatprep.subr.bf16.mxu0 0
      %1453 = vmatpush1.bf16.msra.mxu0 0
      %1454 = vmatprep.subr.bf16.mxu0 0
      %1455 = vmatpush1.bf16.msra.mxu0 0
      %1456 = vmatprep.subr.bf16.mxu0 0
      %1457 = vmatpush1.bf16.msra.mxu0 0
      %1458 = vmatprep.subr.bf16.mxu0 0
      %1459 = vmatpush1.bf16.msra.mxu0 0
      %1460 = vmatprep.subr.bf16.mxu0 0
      %1461 = vmatpush1.bf16.msra.mxu0 0
      %1462 = vmatprep.subr.bf16.mxu0 0
      %1463 = vmatpush1.bf16.msra.mxu0 0
      %1464 = vmatprep.subr.bf16.mxu0 0
      %1465 = vmatpush1.bf16.msra.mxu0 0
      %1466 = vmatprep.subr.bf16.mxu0 0
      %1467 = vmatpush1.bf16.msra.mxu0 0
      %1468 = vmatprep.subr.bf16.mxu0 0
      %1469 = vmatpush1.bf16.msra.mxu0 0
      %1470 = vmatprep.subr.bf16.mxu0 0
      %1471 = vmatpush1.bf16.msra.mxu0 0
      %1472 = vmatprep.subr.bf16.mxu0 0
      %1473 = vmatpush1.bf16.msra.mxu0 0
      %1474 = vmatprep.subr.bf16.mxu0 0
      %1475 = vmatpush1.bf16.msra.mxu0 0
      %1476 = vmatprep.subr.bf16.mxu0 0
      %1477 = vmatpush1.bf16.msra.mxu0 0
      %1478 = vmatprep.mubr.bf16.mxu0 0
      %1479 = vmatmul.mubr.bf16.gmra.mrb[0].mxu0 %v1390
      %v1480 = vpop.f32.mrb[0].mxu0
      %v1481 = vadd.f32 0.0, %v1480
      %v1482 = vpop.f32.mrb[0].mxu0
      %v1483 = vpop.f32.mrb[0].mxu0
      %v1484 = vadd.f32 0.0, %v1483
      %v1485 = vpop.f32.mrb[0].mxu0
      %1486 = vmatprep.mubr.bf16.mxu0 0
      %1487 = vmatmul.mubr.bf16.gmra.mrb[0].mxu0 %v1393
      %v1488 = vpop.f32.mrb[0].mxu0
      %v1489 = vadd.f32 0.0, %v1488
      %v1490 = vpop.f32.mrb[0].mxu0
      %v1491 = vpop.f32.mrb[0].mxu0
      %v1492 = vadd.f32 0.0, %v1491
      %v1493 = vpop.f32.mrb[0].mxu0
      %1494 = vmatprep.mubr.bf16.mxu0 0
      %1495 = vmatmul.mubr.bf16.gmra.mrb[0].mxu0 %v1396
      %v1496 = vpop.f32.mrb[0].mxu0
      %v1497 = vadd.f32 0.0, %v1496
      %v1498 = vpop.f32.mrb[0].mxu0
      %v1499 = vpop.f32.mrb[0].mxu0
      %v1500 = vadd.f32 0.0, %v1499
      %v1501 = vpop.f32.mrb[0].mxu0
      %1502 = vmatprep.mubr.bf16.mxu0 0
      %1503 = vmatmul.mubr.bf16.gmra.mrb[0].mxu0 %v1399
      %v1504 = vpop.f32.mrb[0].mxu0
      %v1505 = vadd.f32 0.0, %v1504
      %v1506 = vpop.f32.mrb[0].mxu0
      %v1507 = vpop.f32.mrb[0].mxu0
      %v1508 = vadd.f32 0.0, %v1507
      %v1509 = vpop.f32.mrb[0].mxu0
      %1510 = vmatprep.mubr.bf16.mxu0 0
      %1511 = vmatmul.mubr.bf16.gmra.mrb[0].mxu0 %v1402
      %v1512 = vpop.f32.mrb[0].mxu0
      %v1513 = vadd.f32 0.0, %v1512
      %v1514 = vpop.f32.mrb[0].mxu0
      %v1515 = vpop.f32.mrb[0].mxu0
      %v1516 = vadd.f32 0.0, %v1515
      %v1517 = vpop.f32.mrb[0].mxu0
      %1518 = vmatprep.mubr.bf16.mxu0 0
      %1519 = vmatmul.mubr.bf16.gmra.mrb[0].mxu0 %v1405
      %v1520 = vpop.f32.mrb[0].mxu0
      %v1521 = vadd.f32 0.0, %v1520
      %v1522 = vpop.f32.mrb[0].mxu0
      %v1523 = vpop.f32.mrb[0].mxu0
      %v1524 = vadd.f32 0.0, %v1523
      %v1525 = vpop.f32.mrb[0].mxu0
      %1526 = vmatprep.mubr.bf16.mxu0 0
      %1527 = vmatmul.mubr.bf16.gmra.mrb[0].mxu0 %v1408
      %v1528 = vpop.f32.mrb[0].mxu0
      %v1529 = vadd.f32 0.0, %v1528
      %v1530 = vpop.f32.mrb[0].mxu0
      %v1531 = vpop.f32.mrb[0].mxu0
      %v1532 = vadd.f32 0.0, %v1531
      %v1533 = vpop.f32.mrb[0].mxu0
      %1534 = vmatprep.mubr.bf16.mxu0 0
      %1535 = vmatmul.mubr.bf16.gmra.mrb[0].mxu0 %v1411
      %v1536 = vpop.f32.mrb[0].mxu0
      %v1537 = vadd.f32 0.0, %v1536
      %v1538 = vpop.f32.mrb[0].mxu0
      %v1539 = vpop.f32.mrb[0].mxu0
      %v1540 = vadd.f32 0.0, %v1539
      %v1541 = vpop.f32.mrb[0].mxu0
      %1542 = vmatprep.mubr.bf16.mxu0 0
      %1543 = vmatmul.mubr.bf16.gmra.mrb[0].mxu0 %v1414
      %v1544 = vpop.f32.mrb[0].mxu0
      %v1545 = vadd.f32 0.0, %v1544
      %v1546 = vpop.f32.mrb[0].mxu0
      %v1547 = vpop.f32.mrb[0].mxu0
      %v1548 = vadd.f32 0.0, %v1547
      %v1549 = vpop.f32.mrb[0].mxu0
      %1550 = vmatprep.mubr.bf16.mxu0 0
      %1551 = vmatmul.mubr.bf16.gmra.mrb[0].mxu0 %v1417
      %v1552 = vpop.f32.mrb[0].mxu0
      %v1553 = vadd.f32 0.0, %v1552
      %v1554 = vpop.f32.mrb[0].mxu0
      %v1555 = vpop.f32.mrb[0].mxu0
      %v1556 = vadd.f32 0.0, %v1555
      %v1557 = vpop.f32.mrb[0].mxu0
      %1558 = vmatprep.mubr.bf16.mxu0 0
      %1559 = vmatmul.mubr.bf16.gmra.mrb[0].mxu0 %v1420
      %v1560 = vpop.f32.mrb[0].mxu0
      %v1561 = vadd.f32 0.0, %v1560
      %v1562 = vpop.f32.mrb[0].mxu0
      %v1563 = vpop.f32.mrb[0].mxu0
      %v1564 = vadd.f32 0.0, %v1563
      %v1565 = vpop.f32.mrb[0].mxu0
      %1566 = vmatprep.mubr.bf16.mxu0 0
      %1567 = vmatmul.mubr.bf16.gmra.mrb[0].mxu0 %v1423
      %v1568 = vpop.f32.mrb[0].mxu0
      %v1569 = vadd.f32 0.0, %v1568
      %v1570 = vpop.f32.mrb[0].mxu0
      %v1571 = vpop.f32.mrb[0].mxu0
      %v1572 = vadd.f32 0.0, %v1571
      %v1573 = vpop.f32.mrb[0].mxu0
      %1574 = vmatprep.mubr.bf16.mxu0 0
      %1575 = vmatmul.mubr.bf16.gmra.mrb[0].mxu0 %v1426
      %v1576 = vpop.f32.mrb[0].mxu0
      %v1577 = vadd.f32 0.0, %v1576
      %v1578 = vpop.f32.mrb[0].mxu0
      %v1579 = vpop.f32.mrb[0].mxu0
      %v1580 = vadd.f32 0.0, %v1579
      %v1581 = vpop.f32.mrb[0].mxu0
      %1582 = vmatprep.mubr.bf16.mxu0 0
      %1583 = vmatmul.mubr.bf16.gmra.mrb[0].mxu0 %v1429
      %v1584 = vpop.f32.mrb[0].mxu0
      %v1585 = vadd.f32 0.0, %v1584
      %v1586 = vpop.f32.mrb[0].mxu0
      %v1587 = vpop.f32.mrb[0].mxu0
      %v1588 = vadd.f32 0.0, %v1587
      %v1589 = vpop.f32.mrb[0].mxu0
      %1590 = vmatprep.mubr.bf16.mxu0 0
      %1591 = vmatmul.mubr.bf16.gmra.mrb[0].mxu0 %v1432
      %v1592 = vpop.f32.mrb[0].mxu0
      %v1593 = vadd.f32 0.0, %v1592
      %v1594 = vpop.f32.mrb[0].mxu0
      %v1595 = vpop.f32.mrb[0].mxu0
      %v1596 = vadd.f32 0.0, %v1595
      %v1597 = vpop.f32.mrb[0].mxu0
      %1598 = vmatprep.mubr.bf16.mxu0 0
      %1599 = vmatmul.mubr.bf16.gmra.mrb[0].mxu0 %v1435
      %v1600 = vpop.f32.mrb[0].mxu0
      %v1601 = vadd.f32 0.0, %v1600
      %v1602 = vpop.f32.mrb[0].mxu0
      %v1603 = vpop.f32.mrb[0].mxu0
      %v1604 = vadd.f32 0.0, %v1603
      %v1605 = vpop.f32.mrb[0].mxu0
      %1606 = vmatprep.mubr.bf16.mxu0 0
      %1607 = vmatmul.mubr.bf16.gmra.mrb[0].mxu0 %v1438
      %v1608 = vpop.f32.mrb[0].mxu0
      %v1609 = vadd.f32 0.0, %v1608
      %v1610 = vpop.f32.mrb[0].mxu0
      %v1611 = vpop.f32.mrb[0].mxu0
      %v1612 = vadd.f32 0.0, %v1611
      %v1613 = vpop.f32.mrb[0].mxu0
      %1614 = vmatprep.mubr.bf16.mxu0 0
      %1615 = vmatmul.mubr.bf16.gmra.mrb[0].mxu0 %v1441
      %v1616 = vpop.f32.mrb[0].mxu0
      %v1617 = vadd.f32 0.0, %v1616
      %v1618 = vpop.f32.mrb[0].mxu0
      %v1619 = vpop.f32.mrb[0].mxu0
      %v1620 = vadd.f32 0.0, %v1619
      %v1621 = vpop.f32.mrb[0].mxu0
      %1622 = vdwg.mxu0
      %v1623 = vadd.f32 %v1184, %v1481
      %v1624 = vadd.f32 %v1185, %v1484
      %v1625 = vadd.f32 %v1186, %v1489
      %v1626 = vadd.f32 %v1187, %v1492
      %v1627 = vadd.f32 %v1188, %v1497
      %v1628 = vadd.f32 %v1189, %v1500
      %v1629 = vadd.f32 %v1190, %v1505
      %v1630 = vadd.f32 %v1191, %v1508
      %v1631 = vadd.f32 %v1192, %v1513
      %v1632 = vadd.f32 %v1193, %v1516
      %v1633 = vadd.f32 %v1194, %v1521
      %v1634 = vadd.f32 %v1195, %v1524
      %v1635 = vadd.f32 %v1196, %v1529
      %v1636 = vadd.f32 %v1197, %v1532
      %v1637 = vadd.f32 %v1198, %v1537
      %v1638 = vadd.f32 %v1199, %v1540
      %v1639 = vadd.f32 %v1200, %v1545
      %v1640 = vadd.f32 %v1201, %v1548
      %v1641 = vadd.f32 %v1202, %v1553
      %v1642 = vadd.f32 %v1203, %v1556
      %v1643 = vadd.f32 %v1204, %v1561
      %v1644 = vadd.f32 %v1205, %v1564
      %v1645 = vadd.f32 %v1206, %v1569
      %v1646 = vadd.f32 %v1207, %v1572
      %v1647 = vadd.f32 %v1208, %v1577
      %v1648 = vadd.f32 %v1209, %v1580
      %v1649 = vadd.f32 %v1210, %v1585
      %v1650 = vadd.f32 %v1211, %v1588
      %v1651 = vadd.f32 %v1212, %v1593
      %v1652 = vadd.f32 %v1213, %v1596
      %v1653 = vadd.f32 %v1214, %v1601
      %v1654 = vadd.f32 %v1215, %v1604
      %v1655 = vadd.f32 %v1216, %v1609
      %v1656 = vadd.f32 %v1217, %v1612
      %v1657 = vadd.f32 %v1218, %v1617
      %v1658 = vadd.f32 %v1219, %v1620
      %v1659 = vld [vmem:[%s165 + $0x98] sm:$0x3]
      %s1660 = scalar_lea.vmem %s1, 8
      %v1661 = vld [vmem:[%s1660] sm:$0x3]
      %v1663 = vunpack.c.l.b16 %v1659
      %v1664 = vpack.c.b16 %v1663, %v1663
      %vm1665 = vsmask.f32 6400
      %v1667 = vshrl.u32 %v1333, 16
      %v1669 = vrot.slane %v1667, 1
      %v1670 = vshll.u32 %v1333, 16
      %v1672 = vrot.slane %v1670, 2
      %v1673 = vor.u32 %v1669, %v1672
      %v1675 = vshrl.u32 %v1334, 16
      %v1677 = vrot.slane %v1675, 1
      %v1678 = vshll.u32 %v1334, 16
      %v1680 = vrot.slane %v1678, 2
      %v1681 = vor.u32 %v1677, %v1680
      %v1682 = vsel %vm1665, %v1673, %v1681
      %v1684 = vshrl.u32 %v1335, 16
      %v1686 = vrot.slane %v1684, 1
      %v1687 = vshll.u32 %v1335, 16
      %v1689 = vrot.slane %v1687, 2
      %v1690 = vor.u32 %v1686, %v1689
      %v1691 = vsel %vm1665, %v1681, %v1690
      %v1693 = vshrl.u32 %v1336, 16
      %v1695 = vrot.slane %v1693, 1
      %v1696 = vshll.u32 %v1336, 16
      %v1698 = vrot.slane %v1696, 2
      %v1699 = vor.u32 %v1695, %v1698
      %v1700 = vsel %vm1665, %v1690, %v1699
      %v1702 = vshrl.u32 %v1337, 16
      %v1704 = vrot.slane %v1702, 1
      %v1705 = vshll.u32 %v1337, 16
      %v1707 = vrot.slane %v1705, 2
      %v1708 = vor.u32 %v1704, %v1707
      %v1709 = vsel %vm1665, %v1699, %v1708
      %v1711 = vshrl.u32 %v1338, 16
      %v1713 = vrot.slane %v1711, 1
      %v1714 = vshll.u32 %v1338, 16
      %v1716 = vrot.slane %v1714, 2
      %v1717 = vor.u32 %v1713, %v1716
      %v1718 = vsel %vm1665, %v1708, %v1717
      %v1720 = vshrl.u32 %v1339, 16
      %v1722 = vrot.slane %v1720, 1
      %v1723 = vshll.u32 %v1339, 16
      %v1725 = vrot.slane %v1723, 2
      %v1726 = vor.u32 %v1722, %v1725
      %v1727 = vsel %vm1665, %v1717, %v1726
      %v1729 = vshrl.u32 %v1340, 16
      %v1731 = vrot.slane %v1729, 1
      %v1732 = vshll.u32 %v1340, 16
      %v1734 = vrot.slane %v1732, 2
      %v1735 = vor.u32 %v1731, %v1734
      %v1736 = vsel %vm1665, %v1726, %v1735
      %v1738 = vshrl.u32 %v1341, 16
      %v1740 = vrot.slane %v1738, 1
      %v1741 = vshll.u32 %v1341, 16
      %v1743 = vrot.slane %v1741, 2
      %v1744 = vor.u32 %v1740, %v1743
      %v1745 = vsel %vm1665, %v1735, %v1744
      %v1747 = vshrl.u32 %v1342, 16
      %v1749 = vrot.slane %v1747, 1
      %v1750 = vshll.u32 %v1342, 16
      %v1752 = vrot.slane %v1750, 2
      %v1753 = vor.u32 %v1749, %v1752
      %v1754 = vsel %vm1665, %v1744, %v1753
      %v1756 = vshrl.u32 %v1343, 16
      %v1758 = vrot.slane %v1756, 1
      %v1759 = vshll.u32 %v1343, 16
      %v1761 = vrot.slane %v1759, 2
      %v1762 = vor.u32 %v1758, %v1761
      %v1763 = vsel %vm1665, %v1753, %v1762
      %v1765 = vshrl.u32 %v1344, 16
      %v1767 = vrot.slane %v1765, 1
      %v1768 = vshll.u32 %v1344, 16
      %v1770 = vrot.slane %v1768, 2
      %v1771 = vor.u32 %v1767, %v1770
      %v1772 = vsel %vm1665, %v1762, %v1771
      %v1774 = vshrl.u32 %v1345, 16
      %v1776 = vrot.slane %v1774, 1
      %v1777 = vshll.u32 %v1345, 16
      %v1779 = vrot.slane %v1777, 2
      %v1780 = vor.u32 %v1776, %v1779
      %v1781 = vsel %vm1665, %v1771, %v1780
      %v1783 = vshrl.u32 %v1346, 16
      %v1785 = vrot.slane %v1783, 1
      %v1786 = vshll.u32 %v1346, 16
      %v1788 = vrot.slane %v1786, 2
      %v1789 = vor.u32 %v1785, %v1788
      %v1790 = vsel %vm1665, %v1780, %v1789
      %v1792 = vshrl.u32 %v1347, 16
      %v1794 = vrot.slane %v1792, 1
      %v1795 = vshll.u32 %v1347, 16
      %v1797 = vrot.slane %v1795, 2
      %v1798 = vor.u32 %v1794, %v1797
      %v1799 = vsel %vm1665, %v1789, %v1798
      %v1801 = vshrl.u32 %v1348, 16
      %v1803 = vrot.slane %v1801, 1
      %v1804 = vshll.u32 %v1348, 16
      %v1806 = vrot.slane %v1804, 2
      %v1807 = vor.u32 %v1803, %v1806
      %v1808 = vsel %vm1665, %v1798, %v1807
      %v1810 = vshrl.u32 %v1349, 16
      %v1812 = vrot.slane %v1810, 1
      %v1813 = vshll.u32 %v1349, 16
      %v1815 = vrot.slane %v1813, 2
      %v1816 = vor.u32 %v1812, %v1815
      %v1817 = vsel %vm1665, %v1807, %v1816
      %v1819 = vshrl.u32 %v1350, 16
      %v1821 = vrot.slane %v1819, 1
      %v1822 = vshll.u32 %v1350, 16
      %v1824 = vrot.slane %v1822, 2
      %v1825 = vor.u32 %v1821, %v1824
      %v1826 = vsel %vm1665, %v1816, %v1825
      %v1828 = vshrl.u32 %v1664, 16
      %v1830 = vrot.slane %v1828, 1
      %v1831 = vshll.u32 %v1664, 16
      %v1833 = vrot.slane %v1831, 2
      %v1834 = vor.u32 %v1830, %v1833
      %v1835 = vsel %vm1665, %v1825, %v1834
      %v1837 = vsel %vm454, %v1682, 0
      %v1840 = vsel %vm454, %v1691, 0
      %v1843 = vsel %vm454, %v1700, 0
      %v1846 = vsel %vm454, %v1709, 0
      %v1849 = vsel %vm454, %v1718, 0
      %v1852 = vsel %vm454, %v1727, 0
      %v1855 = vsel %vm454, %v1736, 0
      %v1858 = vsel %vm454, %v1745, 0
      %v1861 = vsel %vm454, %v1754, 0
      %v1864 = vsel %vm454, %v1763, 0
      %v1867 = vsel %vm454, %v1772, 0
      %v1870 = vsel %vm454, %v1781, 0
      %v1873 = vsel %vm454, %v1790, 0
      %v1876 = vsel %vm454, %v1799, 0
      %v1879 = vsel %vm454, %v1808, 0
      %v1882 = vsel %vm454, %v1817, 0
      %v1885 = vsel %vm454, %v1826, 0
      %v1888 = vsel %vm454, %v1835, 0
      %v1891 = vsel %vm509, %v1661, 0
      %1893 = vmatprep.subr.bf16.mxu0 0
      %1894 = vmatpush1.bf16.msra.mxu0 %v1891
      %1895 = vmatprep.subr.bf16.mxu0 0
      %1896 = vmatpush1.bf16.msra.mxu0 0
      %1897 = vmatprep.subr.bf16.mxu0 0
      %1898 = vmatpush1.bf16.msra.mxu0 0
      %1899 = vmatprep.subr.bf16.mxu0 0
      %1900 = vmatpush1.bf16.msra.mxu0 0
      %1901 = vmatprep.subr.bf16.mxu0 0
      %1902 = vmatpush1.bf16.msra.mxu0 0
      %1903 = vmatprep.subr.bf16.mxu0 0
      %1904 = vmatpush1.bf16.msra.mxu0 0
      %1905 = vmatprep.subr.bf16.mxu0 0
      %1906 = vmatpush1.bf16.msra.mxu0 0
      %1907 = vmatprep.subr.bf16.mxu0 0
      %1908 = vmatpush1.bf16.msra.mxu0 0
      %1909 = vmatprep.subr.bf16.mxu0 0
      %1910 = vmatpush1.bf16.msra.mxu0 0
      %1911 = vmatprep.subr.bf16.mxu0 0
      %1912 = vmatpush1.bf16.msra.mxu0 0
      %1913 = vmatprep.subr.bf16.mxu0 0
      %1914 = vmatpush1.bf16.msra.mxu0 0
      %1915 = vmatprep.subr.bf16.mxu0 0
      %1916 = vmatpush1.bf16.msra.mxu0 0
      %1917 = vmatprep.subr.bf16.mxu0 0
      %1918 = vmatpush1.bf16.msra.mxu0 0
      %1919 = vmatprep.subr.bf16.mxu0 0
      %1920 = vmatpush1.bf16.msra.mxu0 0
      %1921 = vmatprep.subr.bf16.mxu0 0
      %1922 = vmatpush1.bf16.msra.mxu0 0
      %1923 = vmatprep.subr.bf16.mxu0 0
      %1924 = vmatpush1.bf16.msra.mxu0 0
      %1925 = vmatprep.mubr.bf16.mxu0 0
      %1926 = vmatmul.mubr.bf16.gmra.mrb[0].mxu0 %v1837
      %v1927 = vpop.f32.mrb[0].mxu0
      %v1928 = vadd.f32 0.0, %v1927
      %v1929 = vpop.f32.mrb[0].mxu0
      %v1930 = vpop.f32.mrb[0].mxu0
      %v1931 = vadd.f32 0.0, %v1930
      %v1932 = vpop.f32.mrb[0].mxu0
      %1933 = vmatprep.mubr.bf16.mxu0 0
      %1934 = vmatmul.mubr.bf16.gmra.mrb[0].mxu0 %v1840
      %v1935 = vpop.f32.mrb[0].mxu0
      %v1936 = vadd.f32 0.0, %v1935
      %v1937 = vpop.f32.mrb[0].mxu0
      %v1938 = vpop.f32.mrb[0].mxu0
      %v1939 = vadd.f32 0.0, %v1938
      %v1940 = vpop.f32.mrb[0].mxu0
      %1941 = vmatprep.mubr.bf16.mxu0 0
      %1942 = vmatmul.mubr.bf16.gmra.mrb[0].mxu0 %v1843
      %v1943 = vpop.f32.mrb[0].mxu0
      %v1944 = vadd.f32 0.0, %v1943
      %v1945 = vpop.f32.mrb[0].mxu0
      %v1946 = vpop.f32.mrb[0].mxu0
      %v1947 = vadd.f32 0.0, %v1946
      %v1948 = vpop.f32.mrb[0].mxu0
      %1949 = vmatprep.mubr.bf16.mxu0 0
      %1950 = vmatmul.mubr.bf16.gmra.mrb[0].mxu0 %v1846
      %v1951 = vpop.f32.mrb[0].mxu0
      %v1952 = vadd.f32 0.0, %v1951
      %v1953 = vpop.f32.mrb[0].mxu0
      %v1954 = vpop.f32.mrb[0].mxu0
      %v1955 = vadd.f32 0.0, %v1954
      %v1956 = vpop.f32.mrb[0].mxu0
      %1957 = vmatprep.mubr.bf16.mxu0 0
      %1958 = vmatmul.mubr.bf16.gmra.mrb[0].mxu0 %v1849
      %v1959 = vpop.f32.mrb[0].mxu0
      %v1960 = vadd.f32 0.0, %v1959
      %v1961 = vpop.f32.mrb[0].mxu0
      %v1962 = vpop.f32.mrb[0].mxu0
      %v1963 = vadd.f32 0.0, %v1962
      %v1964 = vpop.f32.mrb[0].mxu0
      %1965 = vmatprep.mubr.bf16.mxu0 0
      %1966 = vmatmul.mubr.bf16.gmra.mrb[0].mxu0 %v1852
      %v1967 = vpop.f32.mrb[0].mxu0
      %v1968 = vadd.f32 0.0, %v1967
      %v1969 = vpop.f32.mrb[0].mxu0
      %v1970 = vpop.f32.mrb[0].mxu0
      %v1971 = vadd.f32 0.0, %v1970
      %v1972 = vpop.f32.mrb[0].mxu0
      %1973 = vmatprep.mubr.bf16.mxu0 0
      %1974 = vmatmul.mubr.bf16.gmra.mrb[0].mxu0 %v1855
      %v1975 = vpop.f32.mrb[0].mxu0
      %v1976 = vadd.f32 0.0, %v1975
      %v1977 = vpop.f32.mrb[0].mxu0
      %v1978 = vpop.f32.mrb[0].mxu0
      %v1979 = vadd.f32 0.0, %v1978
      %v1980 = vpop.f32.mrb[0].mxu0
      %1981 = vmatprep.mubr.bf16.mxu0 0
      %1982 = vmatmul.mubr.bf16.gmra.mrb[0].mxu0 %v1858
      %v1983 = vpop.f32.mrb[0].mxu0
      %v1984 = vadd.f32 0.0, %v1983
      %v1985 = vpop.f32.mrb[0].mxu0
      %v1986 = vpop.f32.mrb[0].mxu0
      %v1987 = vadd.f32 0.0, %v1986
      %v1988 = vpop.f32.mrb[0].mxu0
      %1989 = vmatprep.mubr.bf16.mxu0 0
      %1990 = vmatmul.mubr.bf16.gmra.mrb[0].mxu0 %v1861
      %v1991 = vpop.f32.mrb[0].mxu0
      %v1992 = vadd.f32 0.0, %v1991
      %v1993 = vpop.f32.mrb[0].mxu0
      %v1994 = vpop.f32.mrb[0].mxu0
      %v1995 = vadd.f32 0.0, %v1994
      %v1996 = vpop.f32.mrb[0].mxu0
      %1997 = vmatprep.mubr.bf16.mxu0 0
      %1998 = vmatmul.mubr.bf16.gmra.mrb[0].mxu0 %v1864
      %v1999 = vpop.f32.mrb[0].mxu0
      %v2000 = vadd.f32 0.0, %v1999
      %v2001 = vpop.f32.mrb[0].mxu0
      %v2002 = vpop.f32.mrb[0].mxu0
      %v2003 = vadd.f32 0.0, %v2002
      %v2004 = vpop.f32.mrb[0].mxu0
      %2005 = vmatprep.mubr.bf16.mxu0 0
      %2006 = vmatmul.mubr.bf16.gmra.mrb[0].mxu0 %v1867
      %v2007 = vpop.f32.mrb[0].mxu0
      %v2008 = vadd.f32 0.0, %v2007
      %v2009 = vpop.f32.mrb[0].mxu0
      %v2010 = vpop.f32.mrb[0].mxu0
      %v2011 = vadd.f32 0.0, %v2010
      %v2012 = vpop.f32.mrb[0].mxu0
      %2013 = vmatprep.mubr.bf16.mxu0 0
      %2014 = vmatmul.mubr.bf16.gmra.mrb[0].mxu0 %v1870
      %v2015 = vpop.f32.mrb[0].mxu0
      %v2016 = vadd.f32 0.0, %v2015
      %v2017 = vpop.f32.mrb[0].mxu0
      %v2018 = vpop.f32.mrb[0].mxu0
      %v2019 = vadd.f32 0.0, %v2018
      %v2020 = vpop.f32.mrb[0].mxu0
      %2021 = vmatprep.mubr.bf16.mxu0 0
      %2022 = vmatmul.mubr.bf16.gmra.mrb[0].mxu0 %v1873
      %v2023 = vpop.f32.mrb[0].mxu0
      %v2024 = vadd.f32 0.0, %v2023
      %v2025 = vpop.f32.mrb[0].mxu0
      %v2026 = vpop.f32.mrb[0].mxu0
      %v2027 = vadd.f32 0.0, %v2026
      %v2028 = vpop.f32.mrb[0].mxu0
      %2029 = vmatprep.mubr.bf16.mxu0 0
      %2030 = vmatmul.mubr.bf16.gmra.mrb[0].mxu0 %v1876
      %v2031 = vpop.f32.mrb[0].mxu0
      %v2032 = vadd.f32 0.0, %v2031
      %v2033 = vpop.f32.mrb[0].mxu0
      %v2034 = vpop.f32.mrb[0].mxu0
      %v2035 = vadd.f32 0.0, %v2034
      %v2036 = vpop.f32.mrb[0].mxu0
      %2037 = vmatprep.mubr.bf16.mxu0 0
      %2038 = vmatmul.mubr.bf16.gmra.mrb[0].mxu0 %v1879
      %v2039 = vpop.f32.mrb[0].mxu0
      %v2040 = vadd.f32 0.0, %v2039
      %v2041 = vpop.f32.mrb[0].mxu0
      %v2042 = vpop.f32.mrb[0].mxu0
      %v2043 = vadd.f32 0.0, %v2042
      %v2044 = vpop.f32.mrb[0].mxu0
      %2045 = vmatprep.mubr.bf16.mxu0 0
      %2046 = vmatmul.mubr.bf16.gmra.mrb[0].mxu0 %v1882
      %v2047 = vpop.f32.mrb[0].mxu0
      %v2048 = vadd.f32 0.0, %v2047
      %v2049 = vpop.f32.mrb[0].mxu0
      %v2050 = vpop.f32.mrb[0].mxu0
      %v2051 = vadd.f32 0.0, %v2050
      %v2052 = vpop.f32.mrb[0].mxu0
      %2053 = vmatprep.mubr.bf16.mxu0 0
      %2054 = vmatmul.mubr.bf16.gmra.mrb[0].mxu0 %v1885
      %v2055 = vpop.f32.mrb[0].mxu0
      %v2056 = vadd.f32 0.0, %v2055
      %v2057 = vpop.f32.mrb[0].mxu0
      %v2058 = vpop.f32.mrb[0].mxu0
      %v2059 = vadd.f32 0.0, %v2058
      %v2060 = vpop.f32.mrb[0].mxu0
      %2061 = vmatprep.mubr.bf16.mxu0 0
      %2062 = vmatmul.mubr.bf16.gmra.mrb[0].mxu0 %v1888
      %v2063 = vpop.f32.mrb[0].mxu0
      %v2064 = vadd.f32 0.0, %v2063
      %v2065 = vpop.f32.mrb[0].mxu0
      %v2066 = vpop.f32.mrb[0].mxu0
      %v2067 = vadd.f32 0.0, %v2066
      %v2068 = vpop.f32.mrb[0].mxu0
      %2069 = vdwg.mxu0
      %v2070 = vadd.f32 %v1623, %v1928
      %v2071 = vadd.f32 %v1624, %v1931
      %v2072 = vadd.f32 %v1625, %v1936
      %v2073 = vadd.f32 %v1626, %v1939
      %v2074 = vadd.f32 %v1627, %v1944
      %v2075 = vadd.f32 %v1628, %v1947
      %v2076 = vadd.f32 %v1629, %v1952
      %v2077 = vadd.f32 %v1630, %v1955
      %v2078 = vadd.f32 %v1631, %v1960
      %v2079 = vadd.f32 %v1632, %v1963
      %v2080 = vadd.f32 %v1633, %v1968
      %v2081 = vadd.f32 %v1634, %v1971
      %v2082 = vadd.f32 %v1635, %v1976
      %v2083 = vadd.f32 %v1636, %v1979
      %v2084 = vadd.f32 %v1637, %v1984
      %v2085 = vadd.f32 %v1638, %v1987
      %v2086 = vadd.f32 %v1639, %v1992
      %v2087 = vadd.f32 %v1640, %v1995
      %v2088 = vadd.f32 %v1641, %v2000
      %v2089 = vadd.f32 %v1642, %v2003
      %v2090 = vadd.f32 %v1643, %v2008
      %v2091 = vadd.f32 %v1644, %v2011
      %v2092 = vadd.f32 %v1645, %v2016
      %v2093 = vadd.f32 %v1646, %v2019
      %v2094 = vadd.f32 %v1647, %v2024
      %v2095 = vadd.f32 %v1648, %v2027
      %v2096 = vadd.f32 %v1649, %v2032
      %v2097 = vadd.f32 %v1650, %v2035
      %v2098 = vadd.f32 %v1651, %v2040
      %v2099 = vadd.f32 %v1652, %v2043
      %v2100 = vadd.f32 %v1653, %v2048
      %v2101 = vadd.f32 %v1654, %v2051
      %v2102 = vadd.f32 %v1655, %v2056
      %v2103 = vadd.f32 %v1656, %v2059
      %v2104 = vadd.f32 %v1657, %v2064
      %v2105 = vadd.f32 %v1658, %v2067
      %v2106 = vld [vmem:[%s165 + $0x8] sm:$0xc]
      %s2107 = scalar_lea.vmem %s1, 10
      %v2108 = vld [vmem:[%s2107] sm:$0x3]
      %v2110 = vunpack.c.l.b16 %v2106
      %v2111 = vpack.c.b16 %v1297, %v2110
      %vm2112 = vcmask 1045504
      %v2113 = vrot.slane %v2111, 2
      %v2114 = vrot.slane %v1334, 2
      %v2115 = vsel %vm2112, %v2113, %v2114
      %v2116 = vrot.slane %v1335, 2
      %v2117 = vsel %vm2112, %v2114, %v2116
      %v2118 = vrot.slane %v1336, 2
      %v2119 = vsel %vm2112, %v2116, %v2118
      %v2120 = vrot.slane %v1337, 2
      %v2121 = vsel %vm2112, %v2118, %v2120
      %v2122 = vrot.slane %v1338, 2
      %v2123 = vsel %vm2112, %v2120, %v2122
      %v2124 = vrot.slane %v1339, 2
      %v2125 = vsel %vm2112, %v2122, %v2124
      %v2126 = vrot.slane %v1340, 2
      %v2127 = vsel %vm2112, %v2124, %v2126
      %v2128 = vrot.slane %v1341, 2
      %v2129 = vsel %vm2112, %v2126, %v2128
      %v2130 = vrot.slane %v1342, 2
      %v2131 = vsel %vm2112, %v2128, %v2130
      %v2132 = vrot.slane %v1343, 2
      %v2133 = vsel %vm2112, %v2130, %v2132
      %v2134 = vrot.slane %v1344, 2
      %v2135 = vsel %vm2112, %v2132, %v2134
      %v2136 = vrot.slane %v1345, 2
      %v2137 = vsel %vm2112, %v2134, %v2136
      %v2138 = vrot.slane %v1346, 2
      %v2139 = vsel %vm2112, %v2136, %v2138
      %v2140 = vrot.slane %v1347, 2
      %v2141 = vsel %vm2112, %v2138, %v2140
      %v2142 = vrot.slane %v1348, 2
      %v2143 = vsel %vm2112, %v2140, %v2142
      %v2144 = vrot.slane %v1349, 2
      %v2145 = vsel %vm2112, %v2142, %v2144
      %v2146 = vrot.slane %v1350, 2
      %v2147 = vsel %vm2112, %v2144, %v2146
      %v2148 = vrot.slane %v1664, 2
      %v2149 = vsel %vm2112, %v2146, %v2148
      %v2151 = vsel %vm454, %v2115, 0
      %v2154 = vsel %vm454, %v2117, 0
      %v2157 = vsel %vm454, %v2119, 0
      %v2160 = vsel %vm454, %v2121, 0
      %v2163 = vsel %vm454, %v2123, 0
      %v2166 = vsel %vm454, %v2125, 0
      %v2169 = vsel %vm454, %v2127, 0
      %v2172 = vsel %vm454, %v2129, 0
      %v2175 = vsel %vm454, %v2131, 0
      %v2178 = vsel %vm454, %v2133, 0
      %v2181 = vsel %vm454, %v2135, 0
      %v2184 = vsel %vm454, %v2137, 0
      %v2187 = vsel %vm454, %v2139, 0
      %v2190 = vsel %vm454, %v2141, 0
      %v2193 = vsel %vm454, %v2143, 0
      %v2196 = vsel %vm454, %v2145, 0
      %v2199 = vsel %vm454, %v2147, 0
      %v2202 = vsel %vm454, %v2149, 0
      %v2205 = vsel %vm509, %v2108, 0
      %2207 = vmatprep.subr.bf16.mxu0 0
      %2208 = vmatpush1.bf16.msra.mxu0 %v2205
      %2209 = vmatprep.subr.bf16.mxu0 0
      %2210 = vmatpush1.bf16.msra.mxu0 0
      %2211 = vmatprep.subr.bf16.mxu0 0
      %2212 = vmatpush1.bf16.msra.mxu0 0
      %2213 = vmatprep.subr.bf16.mxu0 0
      %2214 = vmatpush1.bf16.msra.mxu0 0
      %2215 = vmatprep.subr.bf16.mxu0 0
      %2216 = vmatpush1.bf16.msra.mxu0 0
      %2217 = vmatprep.subr.bf16.mxu0 0
      %2218 = vmatpush1.bf16.msra.mxu0 0
      %2219 = vmatprep.subr.bf16.mxu0 0
      %2220 = vmatpush1.bf16.msra.mxu0 0
      %2221 = vmatprep.subr.bf16.mxu0 0
      %2222 = vmatpush1.bf16.msra.mxu0 0
      %2223 = vmatprep.subr.bf16.mxu0 0
      %2224 = vmatpush1.bf16.msra.mxu0 0
      %2225 = vmatprep.subr.bf16.mxu0 0
      %2226 = vmatpush1.bf16.msra.mxu0 0
      %2227 = vmatprep.subr.bf16.mxu0 0
      %2228 = vmatpush1.bf16.msra.mxu0 0
      %2229 = vmatprep.subr.bf16.mxu0 0
      %2230 = vmatpush1.bf16.msra.mxu0 0
      %2231 = vmatprep.subr.bf16.mxu0 0
      %2232 = vmatpush1.bf16.msra.mxu0 0
      %2233 = vmatprep.subr.bf16.mxu0 0
      %2234 = vmatpush1.bf16.msra.mxu0 0
      %2235 = vmatprep.subr.bf16.mxu0 0
      %2236 = vmatpush1.bf16.msra.mxu0 0
      %2237 = vmatprep.subr.bf16.mxu0 0
      %2238 = vmatpush1.bf16.msra.mxu0 0
      %2239 = vmatprep.mubr.bf16.mxu0 0
      %2240 = vmatmul.mubr.bf16.gmra.mrb[0].mxu0 %v2151
      %v2241 = vpop.f32.mrb[0].mxu0
      %v2242 = vadd.f32 0.0, %v2241
      %v2243 = vpop.f32.mrb[0].mxu0
      %v2244 = vpop.f32.mrb[0].mxu0
      %v2245 = vadd.f32 0.0, %v2244
      %v2246 = vpop.f32.mrb[0].mxu0
      %2247 = vmatprep.mubr.bf16.mxu0 0
      %2248 = vmatmul.mubr.bf16.gmra.mrb[0].mxu0 %v2154
      %v2249 = vpop.f32.mrb[0].mxu0
      %v2250 = vadd.f32 0.0, %v2249
      %v2251 = vpop.f32.mrb[0].mxu0
      %v2252 = vpop.f32.mrb[0].mxu0
      %v2253 = vadd.f32 0.0, %v2252
      %v2254 = vpop.f32.mrb[0].mxu0
      %2255 = vmatprep.mubr.bf16.mxu0 0
      %2256 = vmatmul.mubr.bf16.gmra.mrb[0].mxu0 %v2157
      %v2257 = vpop.f32.mrb[0].mxu0
      %v2258 = vadd.f32 0.0, %v2257
      %v2259 = vpop.f32.mrb[0].mxu0
      %v2260 = vpop.f32.mrb[0].mxu0
      %v2261 = vadd.f32 0.0, %v2260
      %v2262 = vpop.f32.mrb[0].mxu0
      %2263 = vmatprep.mubr.bf16.mxu0 0
      %2264 = vmatmul.mubr.bf16.gmra.mrb[0].mxu0 %v2160
      %v2265 = vpop.f32.mrb[0].mxu0
      %v2266 = vadd.f32 0.0, %v2265
      %v2267 = vpop.f32.mrb[0].mxu0
      %v2268 = vpop.f32.mrb[0].mxu0
      %v2269 = vadd.f32 0.0, %v2268
      %v2270 = vpop.f32.mrb[0].mxu0
      %2271 = vmatprep.mubr.bf16.mxu0 0
      %2272 = vmatmul.mubr.bf16.gmra.mrb[0].mxu0 %v2163
      %v2273 = vpop.f32.mrb[0].mxu0
      %v2274 = vadd.f32 0.0, %v2273
      %v2275 = vpop.f32.mrb[0].mxu0
      %v2276 = vpop.f32.mrb[0].mxu0
      %v2277 = vadd.f32 0.0, %v2276
      %v2278 = vpop.f32.mrb[0].mxu0
      %2279 = vmatprep.mubr.bf16.mxu0 0
      %2280 = vmatmul.mubr.bf16.gmra.mrb[0].mxu0 %v2166
      %v2281 = vpop.f32.mrb[0].mxu0
      %v2282 = vadd.f32 0.0, %v2281
      %v2283 = vpop.f32.mrb[0].mxu0
      %v2284 = vpop.f32.mrb[0].mxu0
      %v2285 = vadd.f32 0.0, %v2284
      %v2286 = vpop.f32.mrb[0].mxu0
      %2287 = vmatprep.mubr.bf16.mxu0 0
      %2288 = vmatmul.mubr.bf16.gmra.mrb[0].mxu0 %v2169
      %v2289 = vpop.f32.mrb[0].mxu0
      %v2290 = vadd.f32 0.0, %v2289
      %v2291 = vpop.f32.mrb[0].mxu0
      %v2292 = vpop.f32.mrb[0].mxu0
      %v2293 = vadd.f32 0.0, %v2292
      %v2294 = vpop.f32.mrb[0].mxu0
      %2295 = vmatprep.mubr.bf16.mxu0 0
      %2296 = vmatmul.mubr.bf16.gmra.mrb[0].mxu0 %v2172
      %v2297 = vpop.f32.mrb[0].mxu0
      %v2298 = vadd.f32 0.0, %v2297
      %v2299 = vpop.f32.mrb[0].mxu0
      %v2300 = vpop.f32.mrb[0].mxu0
      %v2301 = vadd.f32 0.0, %v2300
      %v2302 = vpop.f32.mrb[0].mxu0
      %2303 = vmatprep.mubr.bf16.mxu0 0
      %2304 = vmatmul.mubr.bf16.gmra.mrb[0].mxu0 %v2175
      %v2305 = vpop.f32.mrb[0].mxu0
      %v2306 = vadd.f32 0.0, %v2305
      %v2307 = vpop.f32.mrb[0].mxu0
      %v2308 = vpop.f32.mrb[0].mxu0
      %v2309 = vadd.f32 0.0, %v2308
      %v2310 = vpop.f32.mrb[0].mxu0
      %2311 = vmatprep.mubr.bf16.mxu0 0
      %2312 = vmatmul.mubr.bf16.gmra.mrb[0].mxu0 %v2178
      %v2313 = vpop.f32.mrb[0].mxu0
      %v2314 = vadd.f32 0.0, %v2313
      %v2315 = vpop.f32.mrb[0].mxu0
      %v2316 = vpop.f32.mrb[0].mxu0
      %v2317 = vadd.f32 0.0, %v2316
      %v2318 = vpop.f32.mrb[0].mxu0
      %2319 = vmatprep.mubr.bf16.mxu0 0
      %2320 = vmatmul.mubr.bf16.gmra.mrb[0].mxu0 %v2181
      %v2321 = vpop.f32.mrb[0].mxu0
      %v2322 = vadd.f32 0.0, %v2321
      %v2323 = vpop.f32.mrb[0].mxu0
      %v2324 = vpop.f32.mrb[0].mxu0
      %v2325 = vadd.f32 0.0, %v2324
      %v2326 = vpop.f32.mrb[0].mxu0
      %2327 = vmatprep.mubr.bf16.mxu0 0
      %2328 = vmatmul.mubr.bf16.gmra.mrb[0].mxu0 %v2184
      %v2329 = vpop.f32.mrb[0].mxu0
      %v2330 = vadd.f32 0.0, %v2329
      %v2331 = vpop.f32.mrb[0].mxu0
      %v2332 = vpop.f32.mrb[0].mxu0
      %v2333 = vadd.f32 0.0, %v2332
      %v2334 = vpop.f32.mrb[0].mxu0
      %2335 = vmatprep.mubr.bf16.mxu0 0
      %2336 = vmatmul.mubr.bf16.gmra.mrb[0].mxu0 %v2187
      %v2337 = vpop.f32.mrb[0].mxu0
      %v2338 = vadd.f32 0.0, %v2337
      %v2339 = vpop.f32.mrb[0].mxu0
      %v2340 = vpop.f32.mrb[0].mxu0
      %v2341 = vadd.f32 0.0, %v2340
      %v2342 = vpop.f32.mrb[0].mxu0
      %2343 = vmatprep.mubr.bf16.mxu0 0
      %2344 = vmatmul.mubr.bf16.gmra.mrb[0].mxu0 %v2190
      %v2345 = vpop.f32.mrb[0].mxu0
      %v2346 = vadd.f32 0.0, %v2345
      %v2347 = vpop.f32.mrb[0].mxu0
      %v2348 = vpop.f32.mrb[0].mxu0
      %v2349 = vadd.f32 0.0, %v2348
      %v2350 = vpop.f32.mrb[0].mxu0
      %2351 = vmatprep.mubr.bf16.mxu0 0
      %2352 = vmatmul.mubr.bf16.gmra.mrb[0].mxu0 %v2193
      %v2353 = vpop.f32.mrb[0].mxu0
      %v2354 = vadd.f32 0.0, %v2353
      %v2355 = vpop.f32.mrb[0].mxu0
      %v2356 = vpop.f32.mrb[0].mxu0
      %v2357 = vadd.f32 0.0, %v2356
      %v2358 = vpop.f32.mrb[0].mxu0
      %2359 = vmatprep.mubr.bf16.mxu0 0
      %2360 = vmatmul.mubr.bf16.gmra.mrb[0].mxu0 %v2196
      %v2361 = vpop.f32.mrb[0].mxu0
      %v2362 = vadd.f32 0.0, %v2361
      %v2363 = vpop.f32.mrb[0].mxu0
      %v2364 = vpop.f32.mrb[0].mxu0
      %v2365 = vadd.f32 0.0, %v2364
      %v2366 = vpop.f32.mrb[0].mxu0
      %2367 = vmatprep.mubr.bf16.mxu0 0
      %2368 = vmatmul.mubr.bf16.gmra.mrb[0].mxu0 %v2199
      %v2369 = vpop.f32.mrb[0].mxu0
      %v2370 = vadd.f32 0.0, %v2369
      %v2371 = vpop.f32.mrb[0].mxu0
      %v2372 = vpop.f32.mrb[0].mxu0
      %v2373 = vadd.f32 0.0, %v2372
      %v2374 = vpop.f32.mrb[0].mxu0
      %2375 = vmatprep.mubr.bf16.mxu0 0
      %2376 = vmatmul.mubr.bf16.gmra.mrb[0].mxu0 %v2202
      %v2377 = vpop.f32.mrb[0].mxu0
      %v2378 = vadd.f32 0.0, %v2377
      %v2379 = vpop.f32.mrb[0].mxu0
      %v2380 = vpop.f32.mrb[0].mxu0
      %v2381 = vadd.f32 0.0, %v2380
      %v2382 = vpop.f32.mrb[0].mxu0
      %2383 = vdwg.mxu0
      %v2384 = vadd.f32 %v2070, %v2242
      %v2385 = vadd.f32 %v2071, %v2245
      %v2386 = vadd.f32 %v2072, %v2250
      %v2387 = vadd.f32 %v2073, %v2253
      %v2388 = vadd.f32 %v2074, %v2258
      %v2389 = vadd.f32 %v2075, %v2261
      %v2390 = vadd.f32 %v2076, %v2266
      %v2391 = vadd.f32 %v2077, %v2269
      %v2392 = vadd.f32 %v2078, %v2274
      %v2393 = vadd.f32 %v2079, %v2277
      %v2394 = vadd.f32 %v2080, %v2282
      %v2395 = vadd.f32 %v2081, %v2285
      %v2396 = vadd.f32 %v2082, %v2290
      %v2397 = vadd.f32 %v2083, %v2293
      %v2398 = vadd.f32 %v2084, %v2298
      %v2399 = vadd.f32 %v2085, %v2301
      %v2400 = vadd.f32 %v2086, %v2306
      %v2401 = vadd.f32 %v2087, %v2309
      %v2402 = vadd.f32 %v2088, %v2314
      %v2403 = vadd.f32 %v2089, %v2317
      %v2404 = vadd.f32 %v2090, %v2322
      %v2405 = vadd.f32 %v2091, %v2325
      %v2406 = vadd.f32 %v2092, %v2330
      %v2407 = vadd.f32 %v2093, %v2333
      %v2408 = vadd.f32 %v2094, %v2338
      %v2409 = vadd.f32 %v2095, %v2341
      %v2410 = vadd.f32 %v2096, %v2346
      %v2411 = vadd.f32 %v2097, %v2349
      %v2412 = vadd.f32 %v2098, %v2354
      %v2413 = vadd.f32 %v2099, %v2357
      %v2414 = vadd.f32 %v2100, %v2362
      %v2415 = vadd.f32 %v2101, %v2365
      %v2416 = vadd.f32 %v2102, %v2370
      %v2417 = vadd.f32 %v2103, %v2373
      %v2418 = vadd.f32 %v2104, %v2378
      %v2419 = vadd.f32 %v2105, %v2381
      %v2420 = vld [vmem:[%s165 + $0x10] sm:$0xc]
      %v2421 = vld [vmem:[%s165 + $0x14] sm:$0xf]
      %v2422 = vld [vmem:[%s165 + $0x18] sm:$0xf]
      %v2423 = vld [vmem:[%s165 + $0x1c] sm:$0xf]
      %v2424 = vld [vmem:[%s165 + $0x20] sm:$0xf]
      %v2425 = vld [vmem:[%s165 + $0x24] sm:$0xf]
      %v2426 = vld [vmem:[%s165 + $0x28] sm:$0xf]
      %v2427 = vld [vmem:[%s165 + $0x2c] sm:$0xf]
      %v2428 = vld [vmem:[%s165 + $0x30] sm:$0xf]
      %v2429 = vld [vmem:[%s165 + $0x34] sm:$0xf]
      %v2430 = vld [vmem:[%s165 + $0x38] sm:$0xf]
      %v2431 = vld [vmem:[%s165 + $0x3c] sm:$0xf]
      %v2432 = vld [vmem:[%s165 + $0x40] sm:$0xf]
      %v2433 = vld [vmem:[%s165 + $0x44] sm:$0xf]
      %v2434 = vld [vmem:[%s165 + $0x48] sm:$0xf]
      %v2435 = vld [vmem:[%s165 + $0x4c] sm:$0xf]
      %v2436 = vld [vmem:[%s165 + $0x50] sm:$0xf]
      %v2437 = vld [vmem:[%s165 + $0x54] sm:$0xf]
      %v2438 = vld [vmem:[%s165 + $0x58] sm:$0xf]
      %v2439 = vld [vmem:[%s165 + $0x5c] sm:$0xf]
      %v2440 = vld [vmem:[%s165 + $0x60] sm:$0xf]
      %v2441 = vld [vmem:[%s165 + $0x64] sm:$0xf]
      %v2442 = vld [vmem:[%s165 + $0x68] sm:$0xf]
      %v2443 = vld [vmem:[%s165 + $0x6c] sm:$0xf]
      %v2444 = vld [vmem:[%s165 + $0x70] sm:$0xf]
      %v2445 = vld [vmem:[%s165 + $0x74] sm:$0xf]
      %v2446 = vld [vmem:[%s165 + $0x78] sm:$0xf]
      %v2447 = vld [vmem:[%s165 + $0x7c] sm:$0xf]
      %v2448 = vld [vmem:[%s165 + $0x80] sm:$0xf]
      %v2449 = vld [vmem:[%s165 + $0x84] sm:$0xf]
      %v2450 = vld [vmem:[%s165 + $0x88] sm:$0xf]
      %v2451 = vld [vmem:[%s165 + $0x8c] sm:$0xf]
      %v2452 = vld [vmem:[%s165 + $0x90] sm:$0xf]
      %v2453 = vld [vmem:[%s165 + $0x94] sm:$0xf]
      %v2454 = vld [vmem:[%s165 + $0x98] sm:$0xf]
      %v2455 = vld [vmem:[%s165 + $0x9c] sm:$0xf]
      %v2456 = vld [vmem:[%s165 + $0xa0] sm:$0x3]
      %s2457 = scalar_lea.vmem %s1, 12
      %v2458 = vld [vmem:[%s2457] sm:$0x3]
      %v2496 = vunpack.c.l.b16 %v2420
      %v2497 = vunpack.c.l.b16 %v2421
      %v2498 = vunpack.c.l.b16 %v2422
      %v2499 = vunpack.c.l.b16 %v2423
      %v2500 = vunpack.c.l.b16 %v2424
      %v2501 = vunpack.c.l.b16 %v2425
      %v2502 = vunpack.c.l.b16 %v2426
      %v2503 = vunpack.c.l.b16 %v2427
      %v2504 = vunpack.c.l.b16 %v2428
      %v2505 = vunpack.c.l.b16 %v2429
      %v2506 = vunpack.c.l.b16 %v2430
      %v2507 = vunpack.c.l.b16 %v2431
      %v2508 = vunpack.c.l.b16 %v2432
      %v2509 = vunpack.c.l.b16 %v2433
      %v2510 = vunpack.c.l.b16 %v2434
      %v2511 = vunpack.c.l.b16 %v2435
      %v2512 = vunpack.c.l.b16 %v2436
      %v2513 = vunpack.c.l.b16 %v2437
      %v2514 = vunpack.c.l.b16 %v2438
      %v2515 = vunpack.c.l.b16 %v2439
      %v2516 = vunpack.c.l.b16 %v2440
      %v2517 = vunpack.c.l.b16 %v2441
      %v2518 = vunpack.c.l.b16 %v2442
      %v2519 = vunpack.c.l.b16 %v2443
      %v2520 = vunpack.c.l.b16 %v2444
      %v2521 = vunpack.c.l.b16 %v2445
      %v2522 = vunpack.c.l.b16 %v2446
      %v2523 = vunpack.c.l.b16 %v2447
      %v2524 = vunpack.c.l.b16 %v2448
      %v2525 = vunpack.c.l.b16 %v2449
      %v2526 = vunpack.c.l.b16 %v2450
      %v2527 = vunpack.c.l.b16 %v2451
      %v2528 = vunpack.c.l.b16 %v2452
      %v2529 = vunpack.c.l.b16 %v2453
      %v2530 = vunpack.c.l.b16 %v2454
      %v2531 = vunpack.c.l.b16 %v2455
      %v2532 = vunpack.c.l.b16 %v2456
      %v2533 = vpack.c.b16 %v2497, %v2496
      %v2534 = vpack.c.b16 %v2499, %v2498
      %v2535 = vpack.c.b16 %v2501, %v2500
      %v2536 = vpack.c.b16 %v2503, %v2502
      %v2537 = vpack.c.b16 %v2505, %v2504
      %v2538 = vpack.c.b16 %v2507, %v2506
      %v2539 = vpack.c.b16 %v2509, %v2508
      %v2540 = vpack.c.b16 %v2511, %v2510
      %v2541 = vpack.c.b16 %v2513, %v2512
      %v2542 = vpack.c.b16 %v2515, %v2514
      %v2543 = vpack.c.b16 %v2517, %v2516
      %v2544 = vpack.c.b16 %v2519, %v2518
      %v2545 = vpack.c.b16 %v2521, %v2520
      %v2546 = vpack.c.b16 %v2523, %v2522
      %v2547 = vpack.c.b16 %v2525, %v2524
      %v2548 = vpack.c.b16 %v2527, %v2526
      %v2549 = vpack.c.b16 %v2529, %v2528
      %v2550 = vpack.c.b16 %v2531, %v2530
      %v2551 = vpack.c.b16 %v2532, %v2532
      %v2552 = vrot.slane %v2533, 2
      %v2553 = vrot.slane %v2534, 2
      %v2554 = vsel %vm2112, %v2552, %v2553
      %v2555 = vrot.slane %v2535, 2
      %v2556 = vsel %vm2112, %v2553, %v2555
      %v2557 = vrot.slane %v2536, 2
      %v2558 = vsel %vm2112, %v2555, %v2557
      %v2559 = vrot.slane %v2537, 2
      %v2560 = vsel %vm2112, %v2557, %v2559
      %v2561 = vrot.slane %v2538, 2
      %v2562 = vsel %vm2112, %v2559, %v2561
      %v2563 = vrot.slane %v2539, 2
      %v2564 = vsel %vm2112, %v2561, %v2563
      %v2565 = vrot.slane %v2540, 2
      %v2566 = vsel %vm2112, %v2563, %v2565
      %v2567 = vrot.slane %v2541, 2
      %v2568 = vsel %vm2112, %v2565, %v2567
      %v2569 = vrot.slane %v2542, 2
      %v2570 = vsel %vm2112, %v2567, %v2569
      %v2571 = vrot.slane %v2543, 2
      %v2572 = vsel %vm2112, %v2569, %v2571
      %v2573 = vrot.slane %v2544, 2
      %v2574 = vsel %vm2112, %v2571, %v2573
      %v2575 = vrot.slane %v2545, 2
      %v2576 = vsel %vm2112, %v2573, %v2575
      %v2577 = vrot.slane %v2546, 2
      %v2578 = vsel %vm2112, %v2575, %v2577
      %v2579 = vrot.slane %v2547, 2
      %v2580 = vsel %vm2112, %v2577, %v2579
      %v2581 = vrot.slane %v2548, 2
      %v2582 = vsel %vm2112, %v2579, %v2581
      %v2583 = vrot.slane %v2549, 2
      %v2584 = vsel %vm2112, %v2581, %v2583
      %v2585 = vrot.slane %v2550, 2
      %v2586 = vsel %vm2112, %v2583, %v2585
      %v2587 = vrot.slane %v2551, 2
      %v2588 = vsel %vm2112, %v2585, %v2587
      %v2590 = vsel %vm454, %v2554, 0
      %v2593 = vsel %vm454, %v2556, 0
      %v2596 = vsel %vm454, %v2558, 0
      %v2599 = vsel %vm454, %v2560, 0
      %v2602 = vsel %vm454, %v2562, 0
      %v2605 = vsel %vm454, %v2564, 0
      %v2608 = vsel %vm454, %v2566, 0
      %v2611 = vsel %vm454, %v2568, 0
      %v2614 = vsel %vm454, %v2570, 0
      %v2617 = vsel %vm454, %v2572, 0
      %v2620 = vsel %vm454, %v2574, 0
      %v2623 = vsel %vm454, %v2576, 0
      %v2626 = vsel %vm454, %v2578, 0
      %v2629 = vsel %vm454, %v2580, 0
      %v2632 = vsel %vm454, %v2582, 0
      %v2635 = vsel %vm454, %v2584, 0
      %v2638 = vsel %vm454, %v2586, 0
      %v2641 = vsel %vm454, %v2588, 0
      %v2644 = vsel %vm509, %v2458, 0
      %2646 = vmatprep.subr.bf16.mxu0 0
      %2647 = vmatpush1.bf16.msra.mxu0 %v2644
      %2648 = vmatprep.subr.bf16.mxu0 0
      %2649 = vmatpush1.bf16.msra.mxu0 0
      %2650 = vmatprep.subr.bf16.mxu0 0
      %2651 = vmatpush1.bf16.msra.mxu0 0
      %2652 = vmatprep.subr.bf16.mxu0 0
      %2653 = vmatpush1.bf16.msra.mxu0 0
      %2654 = vmatprep.subr.bf16.mxu0 0
      %2655 = vmatpush1.bf16.msra.mxu0 0
      %2656 = vmatprep.subr.bf16.mxu0 0
      %2657 = vmatpush1.bf16.msra.mxu0 0
      %2658 = vmatprep.subr.bf16.mxu0 0
      %2659 = vmatpush1.bf16.msra.mxu0 0
      %2660 = vmatprep.subr.bf16.mxu0 0
      %2661 = vmatpush1.bf16.msra.mxu0 0
      %2662 = vmatprep.subr.bf16.mxu0 0
      %2663 = vmatpush1.bf16.msra.mxu0 0
      %2664 = vmatprep.subr.bf16.mxu0 0
      %2665 = vmatpush1.bf16.msra.mxu0 0
      %2666 = vmatprep.subr.bf16.mxu0 0
      %2667 = vmatpush1.bf16.msra.mxu0 0
      %2668 = vmatprep.subr.bf16.mxu0 0
      %2669 = vmatpush1.bf16.msra.mxu0 0
      %2670 = vmatprep.subr.bf16.mxu0 0
      %2671 = vmatpush1.bf16.msra.mxu0 0
      %2672 = vmatprep.subr.bf16.mxu0 0
      %2673 = vmatpush1.bf16.msra.mxu0 0
      %2674 = vmatprep.subr.bf16.mxu0 0
      %2675 = vmatpush1.bf16.msra.mxu0 0
      %2676 = vmatprep.subr.bf16.mxu0 0
      %2677 = vmatpush1.bf16.msra.mxu0 0
      %2678 = vmatprep.mubr.bf16.mxu0 0
      %2679 = vmatmul.mubr.bf16.gmra.mrb[0].mxu0 %v2590
      %v2680 = vpop.f32.mrb[0].mxu0
      %v2681 = vadd.f32 0.0, %v2680
      %v2682 = vpop.f32.mrb[0].mxu0
      %v2683 = vpop.f32.mrb[0].mxu0
      %v2684 = vadd.f32 0.0, %v2683
      %v2685 = vpop.f32.mrb[0].mxu0
      %2686 = vmatprep.mubr.bf16.mxu0 0
      %2687 = vmatmul.mubr.bf16.gmra.mrb[0].mxu0 %v2593
      %v2688 = vpop.f32.mrb[0].mxu0
      %v2689 = vadd.f32 0.0, %v2688
      %v2690 = vpop.f32.mrb[0].mxu0
      %v2691 = vpop.f32.mrb[0].mxu0
      %v2692 = vadd.f32 0.0, %v2691
      %v2693 = vpop.f32.mrb[0].mxu0
      %2694 = vmatprep.mubr.bf16.mxu0 0
      %2695 = vmatmul.mubr.bf16.gmra.mrb[0].mxu0 %v2596
      %v2696 = vpop.f32.mrb[0].mxu0
      %v2697 = vadd.f32 0.0, %v2696
      %v2698 = vpop.f32.mrb[0].mxu0
      %v2699 = vpop.f32.mrb[0].mxu0
      %v2700 = vadd.f32 0.0, %v2699
      %v2701 = vpop.f32.mrb[0].mxu0
      %2702 = vmatprep.mubr.bf16.mxu0 0
      %2703 = vmatmul.mubr.bf16.gmra.mrb[0].mxu0 %v2599
      %v2704 = vpop.f32.mrb[0].mxu0
      %v2705 = vadd.f32 0.0, %v2704
      %v2706 = vpop.f32.mrb[0].mxu0
      %v2707 = vpop.f32.mrb[0].mxu0
      %v2708 = vadd.f32 0.0, %v2707
      %v2709 = vpop.f32.mrb[0].mxu0
      %2710 = vmatprep.mubr.bf16.mxu0 0
      %2711 = vmatmul.mubr.bf16.gmra.mrb[0].mxu0 %v2602
      %v2712 = vpop.f32.mrb[0].mxu0
      %v2713 = vadd.f32 0.0, %v2712
      %v2714 = vpop.f32.mrb[0].mxu0
      %v2715 = vpop.f32.mrb[0].mxu0
      %v2716 = vadd.f32 0.0, %v2715
      %v2717 = vpop.f32.mrb[0].mxu0
      %2718 = vmatprep.mubr.bf16.mxu0 0
      %2719 = vmatmul.mubr.bf16.gmra.mrb[0].mxu0 %v2605
      %v2720 = vpop.f32.mrb[0].mxu0
      %v2721 = vadd.f32 0.0, %v2720
      %v2722 = vpop.f32.mrb[0].mxu0
      %v2723 = vpop.f32.mrb[0].mxu0
      %v2724 = vadd.f32 0.0, %v2723
      %v2725 = vpop.f32.mrb[0].mxu0
      %2726 = vmatprep.mubr.bf16.mxu0 0
      %2727 = vmatmul.mubr.bf16.gmra.mrb[0].mxu0 %v2608
      %v2728 = vpop.f32.mrb[0].mxu0
      %v2729 = vadd.f32 0.0, %v2728
      %v2730 = vpop.f32.mrb[0].mxu0
      %v2731 = vpop.f32.mrb[0].mxu0
      %v2732 = vadd.f32 0.0, %v2731
      %v2733 = vpop.f32.mrb[0].mxu0
      %2734 = vmatprep.mubr.bf16.mxu0 0
      %2735 = vmatmul.mubr.bf16.gmra.mrb[0].mxu0 %v2611
      %v2736 = vpop.f32.mrb[0].mxu0
      %v2737 = vadd.f32 0.0, %v2736
      %v2738 = vpop.f32.mrb[0].mxu0
      %v2739 = vpop.f32.mrb[0].mxu0
      %v2740 = vadd.f32 0.0, %v2739
      %v2741 = vpop.f32.mrb[0].mxu0
      %2742 = vmatprep.mubr.bf16.mxu0 0
      %2743 = vmatmul.mubr.bf16.gmra.mrb[0].mxu0 %v2614
      %v2744 = vpop.f32.mrb[0].mxu0
      %v2745 = vadd.f32 0.0, %v2744
      %v2746 = vpop.f32.mrb[0].mxu0
      %v2747 = vpop.f32.mrb[0].mxu0
      %v2748 = vadd.f32 0.0, %v2747
      %v2749 = vpop.f32.mrb[0].mxu0
      %2750 = vmatprep.mubr.bf16.mxu0 0
      %2751 = vmatmul.mubr.bf16.gmra.mrb[0].mxu0 %v2617
      %v2752 = vpop.f32.mrb[0].mxu0
      %v2753 = vadd.f32 0.0, %v2752
      %v2754 = vpop.f32.mrb[0].mxu0
      %v2755 = vpop.f32.mrb[0].mxu0
      %v2756 = vadd.f32 0.0, %v2755
      %v2757 = vpop.f32.mrb[0].mxu0
      %2758 = vmatprep.mubr.bf16.mxu0 0
      %2759 = vmatmul.mubr.bf16.gmra.mrb[0].mxu0 %v2620
      %v2760 = vpop.f32.mrb[0].mxu0
      %v2761 = vadd.f32 0.0, %v2760
      %v2762 = vpop.f32.mrb[0].mxu0
      %v2763 = vpop.f32.mrb[0].mxu0
      %v2764 = vadd.f32 0.0, %v2763
      %v2765 = vpop.f32.mrb[0].mxu0
      %2766 = vmatprep.mubr.bf16.mxu0 0
      %2767 = vmatmul.mubr.bf16.gmra.mrb[0].mxu0 %v2623
      %v2768 = vpop.f32.mrb[0].mxu0
      %v2769 = vadd.f32 0.0, %v2768
      %v2770 = vpop.f32.mrb[0].mxu0
      %v2771 = vpop.f32.mrb[0].mxu0
      %v2772 = vadd.f32 0.0, %v2771
      %v2773 = vpop.f32.mrb[0].mxu0
      %2774 = vmatprep.mubr.bf16.mxu0 0
      %2775 = vmatmul.mubr.bf16.gmra.mrb[0].mxu0 %v2626
      %v2776 = vpop.f32.mrb[0].mxu0
      %v2777 = vadd.f32 0.0, %v2776
      %v2778 = vpop.f32.mrb[0].mxu0
      %v2779 = vpop.f32.mrb[0].mxu0
      %v2780 = vadd.f32 0.0, %v2779
      %v2781 = vpop.f32.mrb[0].mxu0
      %2782 = vmatprep.mubr.bf16.mxu0 0
      %2783 = vmatmul.mubr.bf16.gmra.mrb[0].mxu0 %v2629
      %v2784 = vpop.f32.mrb[0].mxu0
      %v2785 = vadd.f32 0.0, %v2784
      %v2786 = vpop.f32.mrb[0].mxu0
      %v2787 = vpop.f32.mrb[0].mxu0
      %v2788 = vadd.f32 0.0, %v2787
      %v2789 = vpop.f32.mrb[0].mxu0
      %2790 = vmatprep.mubr.bf16.mxu0 0
      %2791 = vmatmul.mubr.bf16.gmra.mrb[0].mxu0 %v2632
      %v2792 = vpop.f32.mrb[0].mxu0
      %v2793 = vadd.f32 0.0, %v2792
      %v2794 = vpop.f32.mrb[0].mxu0
      %v2795 = vpop.f32.mrb[0].mxu0
      %v2796 = vadd.f32 0.0, %v2795
      %v2797 = vpop.f32.mrb[0].mxu0
      %2798 = vmatprep.mubr.bf16.mxu0 0
      %2799 = vmatmul.mubr.bf16.gmra.mrb[0].mxu0 %v2635
      %v2800 = vpop.f32.mrb[0].mxu0
      %v2801 = vadd.f32 0.0, %v2800
      %v2802 = vpop.f32.mrb[0].mxu0
      %v2803 = vpop.f32.mrb[0].mxu0
      %v2804 = vadd.f32 0.0, %v2803
      %v2805 = vpop.f32.mrb[0].mxu0
      %2806 = vmatprep.mubr.bf16.mxu0 0
      %2807 = vmatmul.mubr.bf16.gmra.mrb[0].mxu0 %v2638
      %v2808 = vpop.f32.mrb[0].mxu0
      %v2809 = vadd.f32 0.0, %v2808
      %v2810 = vpop.f32.mrb[0].mxu0
      %v2811 = vpop.f32.mrb[0].mxu0
      %v2812 = vadd.f32 0.0, %v2811
      %v2813 = vpop.f32.mrb[0].mxu0
      %2814 = vmatprep.mubr.bf16.mxu0 0
      %2815 = vmatmul.mubr.bf16.gmra.mrb[0].mxu0 %v2641
      %v2816 = vpop.f32.mrb[0].mxu0
      %v2817 = vadd.f32 0.0, %v2816
      %v2818 = vpop.f32.mrb[0].mxu0
      %v2819 = vpop.f32.mrb[0].mxu0
      %v2820 = vadd.f32 0.0, %v2819
      %v2821 = vpop.f32.mrb[0].mxu0
      %2822 = vdwg.mxu0
      %v2823 = vadd.f32 %v2384, %v2681
      %v2824 = vadd.f32 %v2385, %v2684
      %v2825 = vadd.f32 %v2386, %v2689
      %v2826 = vadd.f32 %v2387, %v2692
      %v2827 = vadd.f32 %v2388, %v2697
      %v2828 = vadd.f32 %v2389, %v2700
      %v2829 = vadd.f32 %v2390, %v2705
      %v2830 = vadd.f32 %v2391, %v2708
      %v2831 = vadd.f32 %v2392, %v2713
      %v2832 = vadd.f32 %v2393, %v2716
      %v2833 = vadd.f32 %v2394, %v2721
      %v2834 = vadd.f32 %v2395, %v2724
      %v2835 = vadd.f32 %v2396, %v2729
      %v2836 = vadd.f32 %v2397, %v2732
      %v2837 = vadd.f32 %v2398, %v2737
      %v2838 = vadd.f32 %v2399, %v2740
      %v2839 = vadd.f32 %v2400, %v2745
      %v2840 = vadd.f32 %v2401, %v2748
      %v2841 = vadd.f32 %v2402, %v2753
      %v2842 = vadd.f32 %v2403, %v2756
      %v2843 = vadd.f32 %v2404, %v2761
      %v2844 = vadd.f32 %v2405, %v2764
      %v2845 = vadd.f32 %v2406, %v2769
      %v2846 = vadd.f32 %v2407, %v2772
      %v2847 = vadd.f32 %v2408, %v2777
      %v2848 = vadd.f32 %v2409, %v2780
      %v2849 = vadd.f32 %v2410, %v2785
      %v2850 = vadd.f32 %v2411, %v2788
      %v2851 = vadd.f32 %v2412, %v2793
      %v2852 = vadd.f32 %v2413, %v2796
      %v2853 = vadd.f32 %v2414, %v2801
      %v2854 = vadd.f32 %v2415, %v2804
      %v2855 = vadd.f32 %v2416, %v2809
      %v2856 = vadd.f32 %v2417, %v2812
      %v2857 = vadd.f32 %v2418, %v2817
      %v2858 = vadd.f32 %v2419, %v2820
      %v2859 = vld [vmem:[%s165 + $0xa0] sm:$0x7]
      %s2860 = scalar_lea.vmem %s1, 14
      %v2861 = vld [vmem:[%s2860] sm:$0x3]
      %v2863 = vunpack.c.l.b16 %v2859
      %v2864 = vpack.c.b16 %v2863, %v2863
      %vm2865 = vsmask.f32 5376
      %v2867 = vshrl.u32 %v2533, 16
      %v2869 = vrot.slane %v2867, 2
      %v2870 = vshll.u32 %v2533, 16
      %v2872 = vrot.slane %v2870, 3
      %v2873 = vor.u32 %v2869, %v2872
      %v2875 = vshrl.u32 %v2534, 16
      %v2877 = vrot.slane %v2875, 2
      %v2878 = vshll.u32 %v2534, 16
      %v2880 = vrot.slane %v2878, 3
      %v2881 = vor.u32 %v2877, %v2880
      %v2882 = vsel %vm2865, %v2873, %v2881
      %v2884 = vshrl.u32 %v2535, 16
      %v2886 = vrot.slane %v2884, 2
      %v2887 = vshll.u32 %v2535, 16
      %v2889 = vrot.slane %v2887, 3
      %v2890 = vor.u32 %v2886, %v2889
      %v2891 = vsel %vm2865, %v2881, %v2890
      %v2893 = vshrl.u32 %v2536, 16
      %v2895 = vrot.slane %v2893, 2
      %v2896 = vshll.u32 %v2536, 16
      %v2898 = vrot.slane %v2896, 3
      %v2899 = vor.u32 %v2895, %v2898
      %v2900 = vsel %vm2865, %v2890, %v2899
      %v2902 = vshrl.u32 %v2537, 16
      %v2904 = vrot.slane %v2902, 2
      %v2905 = vshll.u32 %v2537, 16
      %v2907 = vrot.slane %v2905, 3
      %v2908 = vor.u32 %v2904, %v2907
      %v2909 = vsel %vm2865, %v2899, %v2908
      %v2911 = vshrl.u32 %v2538, 16
      %v2913 = vrot.slane %v2911, 2
      %v2914 = vshll.u32 %v2538, 16
      %v2916 = vrot.slane %v2914, 3
      %v2917 = vor.u32 %v2913, %v2916
      %v2918 = vsel %vm2865, %v2908, %v2917
      %v2920 = vshrl.u32 %v2539, 16
      %v2922 = vrot.slane %v2920, 2
      %v2923 = vshll.u32 %v2539, 16
      %v2925 = vrot.slane %v2923, 3
      %v2926 = vor.u32 %v2922, %v2925
      %v2927 = vsel %vm2865, %v2917, %v2926
      %v2929 = vshrl.u32 %v2540, 16
      %v2931 = vrot.slane %v2929, 2
      %v2932 = vshll.u32 %v2540, 16
      %v2934 = vrot.slane %v2932, 3
      %v2935 = vor.u32 %v2931, %v2934
      %v2936 = vsel %vm2865, %v2926, %v2935
      %v2938 = vshrl.u32 %v2541, 16
      %v2940 = vrot.slane %v2938, 2
      %v2941 = vshll.u32 %v2541, 16
      %v2943 = vrot.slane %v2941, 3
      %v2944 = vor.u32 %v2940, %v2943
      %v2945 = vsel %vm2865, %v2935, %v2944
      %v2947 = vshrl.u32 %v2542, 16
      %v2949 = vrot.slane %v2947, 2
      %v2950 = vshll.u32 %v2542, 16
      %v2952 = vrot.slane %v2950, 3
      %v2953 = vor.u32 %v2949, %v2952
      %v2954 = vsel %vm2865, %v2944, %v2953
      %v2956 = vshrl.u32 %v2543, 16
      %v2958 = vrot.slane %v2956, 2
      %v2959 = vshll.u32 %v2543, 16
      %v2961 = vrot.slane %v2959, 3
      %v2962 = vor.u32 %v2958, %v2961
      %v2963 = vsel %vm2865, %v2953, %v2962
      %v2965 = vshrl.u32 %v2544, 16
      %v2967 = vrot.slane %v2965, 2
      %v2968 = vshll.u32 %v2544, 16
      %v2970 = vrot.slane %v2968, 3
      %v2971 = vor.u32 %v2967, %v2970
      %v2972 = vsel %vm2865, %v2962, %v2971
      %v2974 = vshrl.u32 %v2545, 16
      %v2976 = vrot.slane %v2974, 2
      %v2977 = vshll.u32 %v2545, 16
      %v2979 = vrot.slane %v2977, 3
      %v2980 = vor.u32 %v2976, %v2979
      %v2981 = vsel %vm2865, %v2971, %v2980
      %v2983 = vshrl.u32 %v2546, 16
      %v2985 = vrot.slane %v2983, 2
      %v2986 = vshll.u32 %v2546, 16
      %v2988 = vrot.slane %v2986, 3
      %v2989 = vor.u32 %v2985, %v2988
      %v2990 = vsel %vm2865, %v2980, %v2989
      %v2992 = vshrl.u32 %v2547, 16
      %v2994 = vrot.slane %v2992, 2
      %v2995 = vshll.u32 %v2547, 16
      %v2997 = vrot.slane %v2995, 3
      %v2998 = vor.u32 %v2994, %v2997
      %v2999 = vsel %vm2865, %v2989, %v2998
      %v3001 = vshrl.u32 %v2548, 16
      %v3003 = vrot.slane %v3001, 2
      %v3004 = vshll.u32 %v2548, 16
      %v3006 = vrot.slane %v3004, 3
      %v3007 = vor.u32 %v3003, %v3006
      %v3008 = vsel %vm2865, %v2998, %v3007
      %v3010 = vshrl.u32 %v2549, 16
      %v3012 = vrot.slane %v3010, 2
      %v3013 = vshll.u32 %v2549, 16
      %v3015 = vrot.slane %v3013, 3
      %v3016 = vor.u32 %v3012, %v3015
      %v3017 = vsel %vm2865, %v3007, %v3016
      %v3019 = vshrl.u32 %v2550, 16
      %v3021 = vrot.slane %v3019, 2
      %v3022 = vshll.u32 %v2550, 16
      %v3024 = vrot.slane %v3022, 3
      %v3025 = vor.u32 %v3021, %v3024
      %v3026 = vsel %vm2865, %v3016, %v3025
      %v3028 = vshrl.u32 %v2864, 16
      %v3030 = vrot.slane %v3028, 2
      %v3031 = vshll.u32 %v2864, 16
      %v3033 = vrot.slane %v3031, 3
      %v3034 = vor.u32 %v3030, %v3033
      %v3035 = vsel %vm2865, %v3025, %v3034
      %v3037 = vsel %vm454, %v2882, 0
      %v3040 = vsel %vm454, %v2891, 0
      %v3043 = vsel %vm454, %v2900, 0
      %v3046 = vsel %vm454, %v2909, 0
      %v3049 = vsel %vm454, %v2918, 0
      %v3052 = vsel %vm454, %v2927, 0
      %v3055 = vsel %vm454, %v2936, 0
      %v3058 = vsel %vm454, %v2945, 0
      %v3061 = vsel %vm454, %v2954, 0
      %v3064 = vsel %vm454, %v2963, 0
      %v3067 = vsel %vm454, %v2972, 0
      %v3070 = vsel %vm454, %v2981, 0
      %v3073 = vsel %vm454, %v2990, 0
      %v3076 = vsel %vm454, %v2999, 0
      %v3079 = vsel %vm454, %v3008, 0
      %v3082 = vsel %vm454, %v3017, 0
      %v3085 = vsel %vm454, %v3026, 0
      %v3088 = vsel %vm454, %v3035, 0
      %v3091 = vsel %vm509, %v2861, 0
      %3093 = vmatprep.subr.bf16.mxu0 0
      %3094 = vmatpush1.bf16.msra.mxu0 %v3091
      %3095 = vmatprep.subr.bf16.mxu0 0
      %3096 = vmatpush1.bf16.msra.mxu0 0
      %3097 = vmatprep.subr.bf16.mxu0 0
      %3098 = vmatpush1.bf16.msra.mxu0 0
      %3099 = vmatprep.subr.bf16.mxu0 0
      %3100 = vmatpush1.bf16.msra.mxu0 0
      %3101 = vmatprep.subr.bf16.mxu0 0
      %3102 = vmatpush1.bf16.msra.mxu0 0
      %3103 = vmatprep.subr.bf16.mxu0 0
      %3104 = vmatpush1.bf16.msra.mxu0 0
      %3105 = vmatprep.subr.bf16.mxu0 0
      %3106 = vmatpush1.bf16.msra.mxu0 0
      %3107 = vmatprep.subr.bf16.mxu0 0
      %3108 = vmatpush1.bf16.msra.mxu0 0
      %3109 = vmatprep.subr.bf16.mxu0 0
      %3110 = vmatpush1.bf16.msra.mxu0 0
      %3111 = vmatprep.subr.bf16.mxu0 0
      %3112 = vmatpush1.bf16.msra.mxu0 0
      %3113 = vmatprep.subr.bf16.mxu0 0
      %3114 = vmatpush1.bf16.msra.mxu0 0
      %3115 = vmatprep.subr.bf16.mxu0 0
      %3116 = vmatpush1.bf16.msra.mxu0 0
      %3117 = vmatprep.subr.bf16.mxu0 0
      %3118 = vmatpush1.bf16.msra.mxu0 0
      %3119 = vmatprep.subr.bf16.mxu0 0
      %3120 = vmatpush1.bf16.msra.mxu0 0
      %3121 = vmatprep.subr.bf16.mxu0 0
      %3122 = vmatpush1.bf16.msra.mxu0 0
      %3123 = vmatprep.subr.bf16.mxu0 0
      %3124 = vmatpush1.bf16.msra.mxu0 0
      %3125 = vmatprep.mubr.bf16.mxu0 0
      %3126 = vmatmul.mubr.bf16.gmra.mrb[0].mxu0 %v3037
      %v3127 = vpop.f32.mrb[0].mxu0
      %v3128 = vadd.f32 0.0, %v3127
      %v3129 = vpop.f32.mrb[0].mxu0
      %v3130 = vpop.f32.mrb[0].mxu0
      %v3131 = vadd.f32 0.0, %v3130
      %v3132 = vpop.f32.mrb[0].mxu0
      %3133 = vmatprep.mubr.bf16.mxu0 0
      %3134 = vmatmul.mubr.bf16.gmra.mrb[0].mxu0 %v3040
      %v3135 = vpop.f32.mrb[0].mxu0
      %v3136 = vadd.f32 0.0, %v3135
      %v3137 = vpop.f32.mrb[0].mxu0
      %v3138 = vpop.f32.mrb[0].mxu0
      %v3139 = vadd.f32 0.0, %v3138
      %v3140 = vpop.f32.mrb[0].mxu0
      %3141 = vmatprep.mubr.bf16.mxu0 0
      %3142 = vmatmul.mubr.bf16.gmra.mrb[0].mxu0 %v3043
      %v3143 = vpop.f32.mrb[0].mxu0
      %v3144 = vadd.f32 0.0, %v3143
      %v3145 = vpop.f32.mrb[0].mxu0
      %v3146 = vpop.f32.mrb[0].mxu0
      %v3147 = vadd.f32 0.0, %v3146
      %v3148 = vpop.f32.mrb[0].mxu0
      %3149 = vmatprep.mubr.bf16.mxu0 0
      %3150 = vmatmul.mubr.bf16.gmra.mrb[0].mxu0 %v3046
      %v3151 = vpop.f32.mrb[0].mxu0
      %v3152 = vadd.f32 0.0, %v3151
      %v3153 = vpop.f32.mrb[0].mxu0
      %v3154 = vpop.f32.mrb[0].mxu0
      %v3155 = vadd.f32 0.0, %v3154
      %v3156 = vpop.f32.mrb[0].mxu0
      %3157 = vmatprep.mubr.bf16.mxu0 0
      %3158 = vmatmul.mubr.bf16.gmra.mrb[0].mxu0 %v3049
      %v3159 = vpop.f32.mrb[0].mxu0
      %v3160 = vadd.f32 0.0, %v3159
      %v3161 = vpop.f32.mrb[0].mxu0
      %v3162 = vpop.f32.mrb[0].mxu0
      %v3163 = vadd.f32 0.0, %v3162
      %v3164 = vpop.f32.mrb[0].mxu0
      %3165 = vmatprep.mubr.bf16.mxu0 0
      %3166 = vmatmul.mubr.bf16.gmra.mrb[0].mxu0 %v3052
      %v3167 = vpop.f32.mrb[0].mxu0
      %v3168 = vadd.f32 0.0, %v3167
      %v3169 = vpop.f32.mrb[0].mxu0
      %v3170 = vpop.f32.mrb[0].mxu0
      %v3171 = vadd.f32 0.0, %v3170
      %v3172 = vpop.f32.mrb[0].mxu0
      %3173 = vmatprep.mubr.bf16.mxu0 0
      %3174 = vmatmul.mubr.bf16.gmra.mrb[0].mxu0 %v3055
      %v3175 = vpop.f32.mrb[0].mxu0
      %v3176 = vadd.f32 0.0, %v3175
      %v3177 = vpop.f32.mrb[0].mxu0
      %v3178 = vpop.f32.mrb[0].mxu0
      %v3179 = vadd.f32 0.0, %v3178
      %v3180 = vpop.f32.mrb[0].mxu0
      %3181 = vmatprep.mubr.bf16.mxu0 0
      %3182 = vmatmul.mubr.bf16.gmra.mrb[0].mxu0 %v3058
      %v3183 = vpop.f32.mrb[0].mxu0
      %v3184 = vadd.f32 0.0, %v3183
      %v3185 = vpop.f32.mrb[0].mxu0
      %v3186 = vpop.f32.mrb[0].mxu0
      %v3187 = vadd.f32 0.0, %v3186
      %v3188 = vpop.f32.mrb[0].mxu0
      %3189 = vmatprep.mubr.bf16.mxu0 0
      %3190 = vmatmul.mubr.bf16.gmra.mrb[0].mxu0 %v3061
      %v3191 = vpop.f32.mrb[0].mxu0
      %v3192 = vadd.f32 0.0, %v3191
      %v3193 = vpop.f32.mrb[0].mxu0
      %v3194 = vpop.f32.mrb[0].mxu0
      %v3195 = vadd.f32 0.0, %v3194
      %v3196 = vpop.f32.mrb[0].mxu0
      %3197 = vmatprep.mubr.bf16.mxu0 0
      %3198 = vmatmul.mubr.bf16.gmra.mrb[0].mxu0 %v3064
      %v3199 = vpop.f32.mrb[0].mxu0
      %v3200 = vadd.f32 0.0, %v3199
      %v3201 = vpop.f32.mrb[0].mxu0
      %v3202 = vpop.f32.mrb[0].mxu0
      %v3203 = vadd.f32 0.0, %v3202
      %v3204 = vpop.f32.mrb[0].mxu0
      %3205 = vmatprep.mubr.bf16.mxu0 0
      %3206 = vmatmul.mubr.bf16.gmra.mrb[0].mxu0 %v3067
      %v3207 = vpop.f32.mrb[0].mxu0
      %v3208 = vadd.f32 0.0, %v3207
      %v3209 = vpop.f32.mrb[0].mxu0
      %v3210 = vpop.f32.mrb[0].mxu0
      %v3211 = vadd.f32 0.0, %v3210
      %v3212 = vpop.f32.mrb[0].mxu0
      %3213 = vmatprep.mubr.bf16.mxu0 0
      %3214 = vmatmul.mubr.bf16.gmra.mrb[0].mxu0 %v3070
      %v3215 = vpop.f32.mrb[0].mxu0
      %v3216 = vadd.f32 0.0, %v3215
      %v3217 = vpop.f32.mrb[0].mxu0
      %v3218 = vpop.f32.mrb[0].mxu0
      %v3219 = vadd.f32 0.0, %v3218
      %v3220 = vpop.f32.mrb[0].mxu0
      %3221 = vmatprep.mubr.bf16.mxu0 0
      %3222 = vmatmul.mubr.bf16.gmra.mrb[0].mxu0 %v3073
      %v3223 = vpop.f32.mrb[0].mxu0
      %v3224 = vadd.f32 0.0, %v3223
      %v3225 = vpop.f32.mrb[0].mxu0
      %v3226 = vpop.f32.mrb[0].mxu0
      %v3227 = vadd.f32 0.0, %v3226
      %v3228 = vpop.f32.mrb[0].mxu0
      %3229 = vmatprep.mubr.bf16.mxu0 0
      %3230 = vmatmul.mubr.bf16.gmra.mrb[0].mxu0 %v3076
      %v3231 = vpop.f32.mrb[0].mxu0
      %v3232 = vadd.f32 0.0, %v3231
      %v3233 = vpop.f32.mrb[0].mxu0
      %v3234 = vpop.f32.mrb[0].mxu0
      %v3235 = vadd.f32 0.0, %v3234
      %v3236 = vpop.f32.mrb[0].mxu0
      %3237 = vmatprep.mubr.bf16.mxu0 0
      %3238 = vmatmul.mubr.bf16.gmra.mrb[0].mxu0 %v3079
      %v3239 = vpop.f32.mrb[0].mxu0
      %v3240 = vadd.f32 0.0, %v3239
      %v3241 = vpop.f32.mrb[0].mxu0
      %v3242 = vpop.f32.mrb[0].mxu0
      %v3243 = vadd.f32 0.0, %v3242
      %v3244 = vpop.f32.mrb[0].mxu0
      %3245 = vmatprep.mubr.bf16.mxu0 0
      %3246 = vmatmul.mubr.bf16.gmra.mrb[0].mxu0 %v3082
      %v3247 = vpop.f32.mrb[0].mxu0
      %v3248 = vadd.f32 0.0, %v3247
      %v3249 = vpop.f32.mrb[0].mxu0
      %v3250 = vpop.f32.mrb[0].mxu0
      %v3251 = vadd.f32 0.0, %v3250
      %v3252 = vpop.f32.mrb[0].mxu0
      %3253 = vmatprep.mubr.bf16.mxu0 0
      %3254 = vmatmul.mubr.bf16.gmra.mrb[0].mxu0 %v3085
      %v3255 = vpop.f32.mrb[0].mxu0
      %v3256 = vadd.f32 0.0, %v3255
      %v3257 = vpop.f32.mrb[0].mxu0
      %v3258 = vpop.f32.mrb[0].mxu0
      %v3259 = vadd.f32 0.0, %v3258
      %v3260 = vpop.f32.mrb[0].mxu0
      %3261 = vmatprep.mubr.bf16.mxu0 0
      %3262 = vmatmul.mubr.bf16.gmra.mrb[0].mxu0 %v3088
      %v3263 = vpop.f32.mrb[0].mxu0
      %v3264 = vadd.f32 0.0, %v3263
      %v3265 = vpop.f32.mrb[0].mxu0
      %v3266 = vpop.f32.mrb[0].mxu0
      %v3267 = vadd.f32 0.0, %v3266
      %v3268 = vpop.f32.mrb[0].mxu0
      %3269 = vdwg.mxu0
      %v3270 = vadd.f32 %v2823, %v3128
      %v3271 = vadd.f32 %v2824, %v3131
      %v3272 = vadd.f32 %v2825, %v3136
      %v3273 = vadd.f32 %v2826, %v3139
      %v3274 = vadd.f32 %v2827, %v3144
      %v3275 = vadd.f32 %v2828, %v3147
      %v3276 = vadd.f32 %v2829, %v3152
      %v3277 = vadd.f32 %v2830, %v3155
      %v3278 = vadd.f32 %v2831, %v3160
      %v3279 = vadd.f32 %v2832, %v3163
      %v3280 = vadd.f32 %v2833, %v3168
      %v3281 = vadd.f32 %v2834, %v3171
      %v3282 = vadd.f32 %v2835, %v3176
      %v3283 = vadd.f32 %v2836, %v3179
      %v3284 = vadd.f32 %v2837, %v3184
      %v3285 = vadd.f32 %v2838, %v3187
      %v3286 = vadd.f32 %v2839, %v3192
      %v3287 = vadd.f32 %v2840, %v3195
      %v3288 = vadd.f32 %v2841, %v3200
      %v3289 = vadd.f32 %v2842, %v3203
      %v3290 = vadd.f32 %v2843, %v3208
      %v3291 = vadd.f32 %v2844, %v3211
      %v3292 = vadd.f32 %v2845, %v3216
      %v3293 = vadd.f32 %v2846, %v3219
      %v3294 = vadd.f32 %v2847, %v3224
      %v3295 = vadd.f32 %v2848, %v3227
      %v3296 = vadd.f32 %v2849, %v3232
      %v3297 = vadd.f32 %v2850, %v3235
      %v3298 = vadd.f32 %v2851, %v3240
      %v3299 = vadd.f32 %v2852, %v3243
      %v3300 = vadd.f32 %v2853, %v3248
      %v3301 = vadd.f32 %v2854, %v3251
      %v3302 = vadd.f32 %v2855, %v3256
      %v3303 = vadd.f32 %v2856, %v3259
      %v3304 = vadd.f32 %v2857, %v3264
      %v3305 = vadd.f32 %v2858, %v3267
      %v3306 = vld [vmem:[%s165 + $0x10] sm:$0x8]
      %s3307 = scalar_lea.vmem %s1, 16
      %v3308 = vld [vmem:[%s3307] sm:$0x3]
      %v3310 = vunpack.c.l.b16 %v3306
      %v3311 = vpack.c.b16 %v2497, %v3310
      %vm3312 = vcmask 1044480
      %v3313 = vrot.slane %v3311, 3
      %v3314 = vrot.slane %v2534, 3
      %v3315 = vsel %vm3312, %v3313, %v3314
      %v3316 = vrot.slane %v2535, 3
      %v3317 = vsel %vm3312, %v3314, %v3316
      %v3318 = vrot.slane %v2536, 3
      %v3319 = vsel %vm3312, %v3316, %v3318
      %v3320 = vrot.slane %v2537, 3
      %v3321 = vsel %vm3312, %v3318, %v3320
      %v3322 = vrot.slane %v2538, 3
      %v3323 = vsel %vm3312, %v3320, %v3322
      %v3324 = vrot.slane %v2539, 3
      %v3325 = vsel %vm3312, %v3322, %v3324
      %v3326 = vrot.slane %v2540, 3
      %v3327 = vsel %vm3312, %v3324, %v3326
      %v3328 = vrot.slane %v2541, 3
      %v3329 = vsel %vm3312, %v3326, %v3328
      %v3330 = vrot.slane %v2542, 3
      %v3331 = vsel %vm3312, %v3328, %v3330
      %v3332 = vrot.slane %v2543, 3
      %v3333 = vsel %vm3312, %v3330, %v3332
      %v3334 = vrot.slane %v2544, 3
      %v3335 = vsel %vm3312, %v3332, %v3334
      %v3336 = vrot.slane %v2545, 3
      %v3337 = vsel %vm3312, %v3334, %v3336
      %v3338 = vrot.slane %v2546, 3
      %v3339 = vsel %vm3312, %v3336, %v3338
      %v3340 = vrot.slane %v2547, 3
      %v3341 = vsel %vm3312, %v3338, %v3340
      %v3342 = vrot.slane %v2548, 3
      %v3343 = vsel %vm3312, %v3340, %v3342
      %v3344 = vrot.slane %v2549, 3
      %v3345 = vsel %vm3312, %v3342, %v3344
      %v3346 = vrot.slane %v2550, 3
      %v3347 = vsel %vm3312, %v3344, %v3346
      %v3348 = vrot.slane %v2864, 3
      %v3349 = vsel %vm3312, %v3346, %v3348
      %v3351 = vsel %vm454, %v3315, 0
      %v3354 = vsel %vm454, %v3317, 0
      %v3357 = vsel %vm454, %v3319, 0
      %v3360 = vsel %vm454, %v3321, 0
      %v3363 = vsel %vm454, %v3323, 0
      %v3366 = vsel %vm454, %v3325, 0
      %v3369 = vsel %vm454, %v3327, 0
      %v3372 = vsel %vm454, %v3329, 0
      %v3375 = vsel %vm454, %v3331, 0
      %v3378 = vsel %vm454, %v3333, 0
      %v3381 = vsel %vm454, %v3335, 0
      %v3384 = vsel %vm454, %v3337, 0
      %v3387 = vsel %vm454, %v3339, 0
      %v3390 = vsel %vm454, %v3341, 0
      %v3393 = vsel %vm454, %v3343, 0
      %v3396 = vsel %vm454, %v3345, 0
      %v3399 = vsel %vm454, %v3347, 0
      %v3402 = vsel %vm454, %v3349, 0
      %v3405 = vsel %vm509, %v3308, 0
      %3407 = vmatprep.subr.bf16.mxu0 0
      %3408 = vmatpush1.bf16.msra.mxu0 %v3405
      %3409 = vmatprep.subr.bf16.mxu0 0
      %3410 = vmatpush1.bf16.msra.mxu0 0
      %3411 = vmatprep.subr.bf16.mxu0 0
      %3412 = vmatpush1.bf16.msra.mxu0 0
      %3413 = vmatprep.subr.bf16.mxu0 0
      %3414 = vmatpush1.bf16.msra.mxu0 0
      %3415 = vmatprep.subr.bf16.mxu0 0
      %3416 = vmatpush1.bf16.msra.mxu0 0
      %3417 = vmatprep.subr.bf16.mxu0 0
      %3418 = vmatpush1.bf16.msra.mxu0 0
      %3419 = vmatprep.subr.bf16.mxu0 0
      %3420 = vmatpush1.bf16.msra.mxu0 0
      %3421 = vmatprep.subr.bf16.mxu0 0
      %3422 = vmatpush1.bf16.msra.mxu0 0
      %3423 = vmatprep.subr.bf16.mxu0 0
      %3424 = vmatpush1.bf16.msra.mxu0 0
      %3425 = vmatprep.subr.bf16.mxu0 0
      %3426 = vmatpush1.bf16.msra.mxu0 0
      %3427 = vmatprep.subr.bf16.mxu0 0
      %3428 = vmatpush1.bf16.msra.mxu0 0
      %3429 = vmatprep.subr.bf16.mxu0 0
      %3430 = vmatpush1.bf16.msra.mxu0 0
      %3431 = vmatprep.subr.bf16.mxu0 0
      %3432 = vmatpush1.bf16.msra.mxu0 0
      %3433 = vmatprep.subr.bf16.mxu0 0
      %3434 = vmatpush1.bf16.msra.mxu0 0
      %3435 = vmatprep.subr.bf16.mxu0 0
      %3436 = vmatpush1.bf16.msra.mxu0 0
      %3437 = vmatprep.subr.bf16.mxu0 0
      %3438 = vmatpush1.bf16.msra.mxu0 0
      %3439 = vmatprep.mubr.bf16.mxu0 0
      %3440 = vmatmul.mubr.bf16.gmra.mrb[0].mxu0 %v3351
      %v3441 = vpop.f32.mrb[0].mxu0
      %v3442 = vadd.f32 0.0, %v3441
      %v3443 = vpop.f32.mrb[0].mxu0
      %v3444 = vpop.f32.mrb[0].mxu0
      %v3445 = vadd.f32 0.0, %v3444
      %v3446 = vpop.f32.mrb[0].mxu0
      %3447 = vmatprep.mubr.bf16.mxu0 0
      %3448 = vmatmul.mubr.bf16.gmra.mrb[0].mxu0 %v3354
      %v3449 = vpop.f32.mrb[0].mxu0
      %v3450 = vadd.f32 0.0, %v3449
      %v3451 = vpop.f32.mrb[0].mxu0
      %v3452 = vpop.f32.mrb[0].mxu0
      %v3453 = vadd.f32 0.0, %v3452
      %v3454 = vpop.f32.mrb[0].mxu0
      %3455 = vmatprep.mubr.bf16.mxu0 0
      %3456 = vmatmul.mubr.bf16.gmra.mrb[0].mxu0 %v3357
      %v3457 = vpop.f32.mrb[0].mxu0
      %v3458 = vadd.f32 0.0, %v3457
      %v3459 = vpop.f32.mrb[0].mxu0
      %v3460 = vpop.f32.mrb[0].mxu0
      %v3461 = vadd.f32 0.0, %v3460
      %v3462 = vpop.f32.mrb[0].mxu0
      %3463 = vmatprep.mubr.bf16.mxu0 0
      %3464 = vmatmul.mubr.bf16.gmra.mrb[0].mxu0 %v3360
      %v3465 = vpop.f32.mrb[0].mxu0
      %v3466 = vadd.f32 0.0, %v3465
      %v3467 = vpop.f32.mrb[0].mxu0
      %v3468 = vpop.f32.mrb[0].mxu0
      %v3469 = vadd.f32 0.0, %v3468
      %v3470 = vpop.f32.mrb[0].mxu0
      %3471 = vmatprep.mubr.bf16.mxu0 0
      %3472 = vmatmul.mubr.bf16.gmra.mrb[0].mxu0 %v3363
      %v3473 = vpop.f32.mrb[0].mxu0
      %v3474 = vadd.f32 0.0, %v3473
      %v3475 = vpop.f32.mrb[0].mxu0
      %v3476 = vpop.f32.mrb[0].mxu0
      %v3477 = vadd.f32 0.0, %v3476
      %v3478 = vpop.f32.mrb[0].mxu0
      %3479 = vmatprep.mubr.bf16.mxu0 0
      %3480 = vmatmul.mubr.bf16.gmra.mrb[0].mxu0 %v3366
      %v3481 = vpop.f32.mrb[0].mxu0
      %v3482 = vadd.f32 0.0, %v3481
      %v3483 = vpop.f32.mrb[0].mxu0
      %v3484 = vpop.f32.mrb[0].mxu0
      %v3485 = vadd.f32 0.0, %v3484
      %v3486 = vpop.f32.mrb[0].mxu0
      %3487 = vmatprep.mubr.bf16.mxu0 0
      %3488 = vmatmul.mubr.bf16.gmra.mrb[0].mxu0 %v3369
      %v3489 = vpop.f32.mrb[0].mxu0
      %v3490 = vadd.f32 0.0, %v3489
      %v3491 = vpop.f32.mrb[0].mxu0
      %v3492 = vpop.f32.mrb[0].mxu0
      %v3493 = vadd.f32 0.0, %v3492
      %v3494 = vpop.f32.mrb[0].mxu0
      %3495 = vmatprep.mubr.bf16.mxu0 0
      %3496 = vmatmul.mubr.bf16.gmra.mrb[0].mxu0 %v3372
      %v3497 = vpop.f32.mrb[0].mxu0
      %v3498 = vadd.f32 0.0, %v3497
      %v3499 = vpop.f32.mrb[0].mxu0
      %v3500 = vpop.f32.mrb[0].mxu0
      %v3501 = vadd.f32 0.0, %v3500
      %v3502 = vpop.f32.mrb[0].mxu0
      %3503 = vmatprep.mubr.bf16.mxu0 0
      %3504 = vmatmul.mubr.bf16.gmra.mrb[0].mxu0 %v3375
      %v3505 = vpop.f32.mrb[0].mxu0
      %v3506 = vadd.f32 0.0, %v3505
      %v3507 = vpop.f32.mrb[0].mxu0
      %v3508 = vpop.f32.mrb[0].mxu0
      %v3509 = vadd.f32 0.0, %v3508
      %v3510 = vpop.f32.mrb[0].mxu0
      %3511 = vmatprep.mubr.bf16.mxu0 0
      %3512 = vmatmul.mubr.bf16.gmra.mrb[0].mxu0 %v3378
      %v3513 = vpop.f32.mrb[0].mxu0
      %v3514 = vadd.f32 0.0, %v3513
      %v3515 = vpop.f32.mrb[0].mxu0
      %v3516 = vpop.f32.mrb[0].mxu0
      %v3517 = vadd.f32 0.0, %v3516
      %v3518 = vpop.f32.mrb[0].mxu0
      %3519 = vmatprep.mubr.bf16.mxu0 0
      %3520 = vmatmul.mubr.bf16.gmra.mrb[0].mxu0 %v3381
      %v3521 = vpop.f32.mrb[0].mxu0
      %v3522 = vadd.f32 0.0, %v3521
      %v3523 = vpop.f32.mrb[0].mxu0
      %v3524 = vpop.f32.mrb[0].mxu0
      %v3525 = vadd.f32 0.0, %v3524
      %v3526 = vpop.f32.mrb[0].mxu0
      %3527 = vmatprep.mubr.bf16.mxu0 0
      %3528 = vmatmul.mubr.bf16.gmra.mrb[0].mxu0 %v3384
      %v3529 = vpop.f32.mrb[0].mxu0
      %v3530 = vadd.f32 0.0, %v3529
      %v3531 = vpop.f32.mrb[0].mxu0
      %v3532 = vpop.f32.mrb[0].mxu0
      %v3533 = vadd.f32 0.0, %v3532
      %v3534 = vpop.f32.mrb[0].mxu0
      %3535 = vmatprep.mubr.bf16.mxu0 0
      %3536 = vmatmul.mubr.bf16.gmra.mrb[0].mxu0 %v3387
      %v3537 = vpop.f32.mrb[0].mxu0
      %v3538 = vadd.f32 0.0, %v3537
      %v3539 = vpop.f32.mrb[0].mxu0
      %v3540 = vpop.f32.mrb[0].mxu0
      %v3541 = vadd.f32 0.0, %v3540
      %v3542 = vpop.f32.mrb[0].mxu0
      %3543 = vmatprep.mubr.bf16.mxu0 0
      %3544 = vmatmul.mubr.bf16.gmra.mrb[0].mxu0 %v3390
      %v3545 = vpop.f32.mrb[0].mxu0
      %v3546 = vadd.f32 0.0, %v3545
      %v3547 = vpop.f32.mrb[0].mxu0
      %v3548 = vpop.f32.mrb[0].mxu0
      %v3549 = vadd.f32 0.0, %v3548
      %v3550 = vpop.f32.mrb[0].mxu0
      %3551 = vmatprep.mubr.bf16.mxu0 0
      %3552 = vmatmul.mubr.bf16.gmra.mrb[0].mxu0 %v3393
      %v3553 = vpop.f32.mrb[0].mxu0
      %v3554 = vadd.f32 0.0, %v3553
      %v3555 = vpop.f32.mrb[0].mxu0
      %v3556 = vpop.f32.mrb[0].mxu0
      %v3557 = vadd.f32 0.0, %v3556
      %v3558 = vpop.f32.mrb[0].mxu0
      %3559 = vmatprep.mubr.bf16.mxu0 0
      %3560 = vmatmul.mubr.bf16.gmra.mrb[0].mxu0 %v3396
      %v3561 = vpop.f32.mrb[0].mxu0
      %v3562 = vadd.f32 0.0, %v3561
      %v3563 = vpop.f32.mrb[0].mxu0
      %v3564 = vpop.f32.mrb[0].mxu0
      %v3565 = vadd.f32 0.0, %v3564
      %v3566 = vpop.f32.mrb[0].mxu0
      %3567 = vmatprep.mubr.bf16.mxu0 0
      %3568 = vmatmul.mubr.bf16.gmra.mrb[0].mxu0 %v3399
      %v3569 = vpop.f32.mrb[0].mxu0
      %v3570 = vadd.f32 0.0, %v3569
      %v3571 = vpop.f32.mrb[0].mxu0
      %v3572 = vpop.f32.mrb[0].mxu0
      %v3573 = vadd.f32 0.0, %v3572
      %v3574 = vpop.f32.mrb[0].mxu0
      %3575 = vmatprep.mubr.bf16.mxu0 0
      %3576 = vmatmul.mubr.bf16.gmra.mrb[0].mxu0 %v3402
      %v3577 = vpop.f32.mrb[0].mxu0
      %v3578 = vadd.f32 0.0, %v3577
      %v3579 = vpop.f32.mrb[0].mxu0
      %v3580 = vpop.f32.mrb[0].mxu0
      %v3581 = vadd.f32 0.0, %v3580
      %v3582 = vpop.f32.mrb[0].mxu0
      %3583 = vdwg.mxu0
      %v3584 = vadd.f32 %v3270, %v3442
      %v3585 = vadd.f32 %v3271, %v3445
      %v3586 = vadd.f32 %v3272, %v3450
      %v3587 = vadd.f32 %v3273, %v3453
      %v3588 = vadd.f32 %v3274, %v3458
      %v3589 = vadd.f32 %v3275, %v3461
      %v3590 = vadd.f32 %v3276, %v3466
      %v3591 = vadd.f32 %v3277, %v3469
      %v3592 = vadd.f32 %v3278, %v3474
      %v3593 = vadd.f32 %v3279, %v3477
      %v3594 = vadd.f32 %v3280, %v3482
      %v3595 = vadd.f32 %v3281, %v3485
      %v3596 = vadd.f32 %v3282, %v3490
      %v3597 = vadd.f32 %v3283, %v3493
      %v3598 = vadd.f32 %v3284, %v3498
      %v3599 = vadd.f32 %v3285, %v3501
      %v3600 = vadd.f32 %v3286, %v3506
      %v3601 = vadd.f32 %v3287, %v3509
      %v3602 = vadd.f32 %v3288, %v3514
      %v3603 = vadd.f32 %v3289, %v3517
      %v3604 = vadd.f32 %v3290, %v3522
      %v3605 = vadd.f32 %v3291, %v3525
      %v3606 = vadd.f32 %v3292, %v3530
      %v3607 = vadd.f32 %v3293, %v3533
      %v3608 = vadd.f32 %v3294, %v3538
      %v3609 = vadd.f32 %v3295, %v3541
      %v3610 = vadd.f32 %v3296, %v3546
      %v3611 = vadd.f32 %v3297, %v3549
      %v3612 = vadd.f32 %v3298, %v3554
      %v3613 = vadd.f32 %v3299, %v3557
      %v3614 = vadd.f32 %v3300, %v3562
      %v3615 = vadd.f32 %v3301, %v3565
      %v3616 = vadd.f32 %v3302, %v3570
      %v3617 = vadd.f32 %v3303, %v3573
      %v3618 = vadd.f32 %v3304, %v3578
      %v3619 = vadd.f32 %v3305, %v3581
      %v3620 = vld [vmem:[%s2] sm:$0x1]
      %v3622 = vlaneseq
      %v3623 = vshrl.u32 %v3622, 7
      %v3624 = vsub.s32 0, %v3623
      %v3625 = vrot.slane %v3620, %v3624
      %v3627 = vadd.f32 %v3584, %v3625
      %v3628 = vadd.f32 %v3585, %v3625
      %v3629 = vadd.f32 %v3586, %v3625
      %v3630 = vadd.f32 %v3587, %v3625
      %v3631 = vadd.f32 %v3588, %v3625
      %v3632 = vadd.f32 %v3589, %v3625
      %v3633 = vadd.f32 %v3590, %v3625
      %v3634 = vadd.f32 %v3591, %v3625
      %v3635 = vadd.f32 %v3592, %v3625
      %v3636 = vadd.f32 %v3593, %v3625
      %v3637 = vadd.f32 %v3594, %v3625
      %v3638 = vadd.f32 %v3595, %v3625
      %v3639 = vadd.f32 %v3596, %v3625
      %v3640 = vadd.f32 %v3597, %v3625
      %v3641 = vadd.f32 %v3598, %v3625
      %v3642 = vadd.f32 %v3599, %v3625
      %v3643 = vadd.f32 %v3600, %v3625
      %v3644 = vadd.f32 %v3601, %v3625
      %v3645 = vadd.f32 %v3602, %v3625
      %v3646 = vadd.f32 %v3603, %v3625
      %v3647 = vadd.f32 %v3604, %v3625
      %v3648 = vadd.f32 %v3605, %v3625
      %v3649 = vadd.f32 %v3606, %v3625
      %v3650 = vadd.f32 %v3607, %v3625
      %v3651 = vadd.f32 %v3608, %v3625
      %v3652 = vadd.f32 %v3609, %v3625
      %v3653 = vadd.f32 %v3610, %v3625
      %v3654 = vadd.f32 %v3611, %v3625
      %v3655 = vadd.f32 %v3612, %v3625
      %v3656 = vadd.f32 %v3613, %v3625
      %v3657 = vadd.f32 %v3614, %v3625
      %v3658 = vadd.f32 %v3615, %v3625
      %v3659 = vadd.f32 %v3616, %v3625
      %v3660 = vadd.f32 %v3617, %v3625
      %v3661 = vadd.f32 %v3618, %v3625
      %v3662 = vadd.f32 %v3619, %v3625
      %vm3663 = vcmp.ge.f32.partialorder %v3627, 0.0
      %vm3664 = vcmp.ge.f32.partialorder %v3628, 0.0
      %vm3665 = vcmp.ge.f32.partialorder %v3629, 0.0
      %vm3666 = vcmp.ge.f32.partialorder %v3630, 0.0
      %vm3667 = vcmp.ge.f32.partialorder %v3631, 0.0
      %vm3668 = vcmp.ge.f32.partialorder %v3632, 0.0
      %vm3669 = vcmp.ge.f32.partialorder %v3633, 0.0
      %vm3670 = vcmp.ge.f32.partialorder %v3634, 0.0
      %vm3671 = vcmp.ge.f32.partialorder %v3635, 0.0
      %vm3672 = vcmp.ge.f32.partialorder %v3636, 0.0
      %vm3673 = vcmp.ge.f32.partialorder %v3637, 0.0
      %vm3674 = vcmp.ge.f32.partialorder %v3638, 0.0
      %vm3675 = vcmp.ge.f32.partialorder %v3639, 0.0
      %vm3676 = vcmp.ge.f32.partialorder %v3640, 0.0
      %vm3677 = vcmp.ge.f32.partialorder %v3641, 0.0
      %vm3678 = vcmp.ge.f32.partialorder %v3642, 0.0
      %vm3679 = vcmp.ge.f32.partialorder %v3643, 0.0
      %vm3680 = vcmp.ge.f32.partialorder %v3644, 0.0
      %vm3681 = vcmp.ge.f32.partialorder %v3645, 0.0
      %vm3682 = vcmp.ge.f32.partialorder %v3646, 0.0
      %vm3683 = vcmp.ge.f32.partialorder %v3647, 0.0
      %vm3684 = vcmp.ge.f32.partialorder %v3648, 0.0
      %vm3685 = vcmp.ge.f32.partialorder %v3649, 0.0
      %vm3686 = vcmp.ge.f32.partialorder %v3650, 0.0
      %vm3687 = vcmp.ge.f32.partialorder %v3651, 0.0
      %vm3688 = vcmp.ge.f32.partialorder %v3652, 0.0
      %vm3689 = vcmp.ge.f32.partialorder %v3653, 0.0
      %vm3690 = vcmp.ge.f32.partialorder %v3654, 0.0
      %vm3691 = vcmp.ge.f32.partialorder %v3655, 0.0
      %vm3692 = vcmp.ge.f32.partialorder %v3656, 0.0
      %vm3693 = vcmp.ge.f32.partialorder %v3657, 0.0
      %vm3694 = vcmp.ge.f32.partialorder %v3658, 0.0
      %vm3695 = vcmp.ge.f32.partialorder %v3659, 0.0
      %vm3696 = vcmp.ge.f32.partialorder %v3660, 0.0
      %vm3697 = vcmp.ge.f32.partialorder %v3661, 0.0
      %vm3698 = vcmp.ge.f32.partialorder %v3662, 0.0
      %v3699 = vmul.f32 %v3627, 0.2
      %v3700 = vmul.f32 %v3628, 0.2
      %v3701 = vmul.f32 %v3629, 0.2
      %v3702 = vmul.f32 %v3630, 0.2
      %v3703 = vmul.f32 %v3631, 0.2
      %v3704 = vmul.f32 %v3632, 0.2
      %v3705 = vmul.f32 %v3633, 0.2
      %v3706 = vmul.f32 %v3634, 0.2
      %v3707 = vmul.f32 %v3635, 0.2
      %v3708 = vmul.f32 %v3636, 0.2
      %v3709 = vmul.f32 %v3637, 0.2
      %v3710 = vmul.f32 %v3638, 0.2
      %v3711 = vmul.f32 %v3639, 0.2
      %v3712 = vmul.f32 %v3640, 0.2
      %v3713 = vmul.f32 %v3641, 0.2
      %v3714 = vmul.f32 %v3642, 0.2
      %v3715 = vmul.f32 %v3643, 0.2
      %v3716 = vmul.f32 %v3644, 0.2
      %v3717 = vmul.f32 %v3645, 0.2
      %v3718 = vmul.f32 %v3646, 0.2
      %v3719 = vmul.f32 %v3647, 0.2
      %v3720 = vmul.f32 %v3648, 0.2
      %v3721 = vmul.f32 %v3649, 0.2
      %v3722 = vmul.f32 %v3650, 0.2
      %v3723 = vmul.f32 %v3651, 0.2
      %v3724 = vmul.f32 %v3652, 0.2
      %v3725 = vmul.f32 %v3653, 0.2
      %v3726 = vmul.f32 %v3654, 0.2
      %v3727 = vmul.f32 %v3655, 0.2
      %v3728 = vmul.f32 %v3656, 0.2
      %v3729 = vmul.f32 %v3657, 0.2
      %v3730 = vmul.f32 %v3658, 0.2
      %v3731 = vmul.f32 %v3659, 0.2
      %v3732 = vmul.f32 %v3660, 0.2
      %v3733 = vmul.f32 %v3661, 0.2
      %v3734 = vmul.f32 %v3662, 0.2
      %v3735 = vsel %vm3663, %v3627, %v3699
      %v3736 = vsel %vm3664, %v3628, %v3700
      %v3737 = vsel %vm3665, %v3629, %v3701
      %v3738 = vsel %vm3666, %v3630, %v3702
      %v3739 = vsel %vm3667, %v3631, %v3703
      %v3740 = vsel %vm3668, %v3632, %v3704
      %v3741 = vsel %vm3669, %v3633, %v3705
      %v3742 = vsel %vm3670, %v3634, %v3706
      %v3743 = vsel %vm3671, %v3635, %v3707
      %v3744 = vsel %vm3672, %v3636, %v3708
      %v3745 = vsel %vm3673, %v3637, %v3709
      %v3746 = vsel %vm3674, %v3638, %v3710
      %v3747 = vsel %vm3675, %v3639, %v3711
      %v3748 = vsel %vm3676, %v3640, %v3712
      %v3749 = vsel %vm3677, %v3641, %v3713
      %v3750 = vsel %vm3678, %v3642, %v3714
      %v3751 = vsel %vm3679, %v3643, %v3715
      %v3752 = vsel %vm3680, %v3644, %v3716
      %v3753 = vsel %vm3681, %v3645, %v3717
      %v3754 = vsel %vm3682, %v3646, %v3718
      %v3755 = vsel %vm3683, %v3647, %v3719
      %v3756 = vsel %vm3684, %v3648, %v3720
      %v3757 = vsel %vm3685, %v3649, %v3721
      %v3758 = vsel %vm3686, %v3650, %v3722
      %v3759 = vsel %vm3687, %v3651, %v3723
      %v3760 = vsel %vm3688, %v3652, %v3724
      %v3761 = vsel %vm3689, %v3653, %v3725
      %v3762 = vsel %vm3690, %v3654, %v3726
      %v3763 = vsel %vm3691, %v3655, %v3727
      %v3764 = vsel %vm3692, %v3656, %v3728
      %v3765 = vsel %vm3693, %v3657, %v3729
      %v3766 = vsel %vm3694, %v3658, %v3730
      %v3767 = vsel %vm3695, %v3659, %v3731
      %v3768 = vsel %vm3696, %v3660, %v3732
      %v3769 = vsel %vm3697, %v3661, %v3733
      %v3770 = vsel %vm3698, %v3662, %v3734
      %v3771 = vpack.c.bf16 %v3736, %v3735
      %v3772 = vpack.c.bf16 %v3738, %v3737
      %v3773 = vpack.c.bf16 %v3740, %v3739
      %v3774 = vpack.c.bf16 %v3742, %v3741
      %v3775 = vpack.c.bf16 %v3744, %v3743
      %v3776 = vpack.c.bf16 %v3746, %v3745
      %v3777 = vpack.c.bf16 %v3748, %v3747
      %v3778 = vpack.c.bf16 %v3750, %v3749
      %v3779 = vpack.c.bf16 %v3752, %v3751
      %v3780 = vpack.c.bf16 %v3754, %v3753
      %v3781 = vpack.c.bf16 %v3756, %v3755
      %v3782 = vpack.c.bf16 %v3758, %v3757
      %v3783 = vpack.c.bf16 %v3760, %v3759
      %v3784 = vpack.c.bf16 %v3762, %v3761
      %v3785 = vpack.c.bf16 %v3764, %v3763
      %v3786 = vpack.c.bf16 %v3766, %v3765
      %v3787 = vpack.c.bf16 %v3768, %v3767
      %v3788 = vpack.c.bf16 %v3770, %v3769
      %v3807 = vunpack.c.l.b16 %v3771
      %v3808 = vunpack.c.h.b16 %v3771
      %v3809 = vunpack.c.l.b16 %v3772
      %v3810 = vunpack.c.h.b16 %v3772
      %v3811 = vunpack.c.l.b16 %v3773
      %v3812 = vunpack.c.h.b16 %v3773
      %v3813 = vunpack.c.l.b16 %v3774
      %v3814 = vunpack.c.h.b16 %v3774
      %v3815 = vunpack.c.l.b16 %v3775
      %v3816 = vunpack.c.h.b16 %v3775
      %v3817 = vunpack.c.l.b16 %v3776
      %v3818 = vunpack.c.h.b16 %v3776
      %v3819 = vunpack.c.l.b16 %v3777
      %v3820 = vunpack.c.h.b16 %v3777
      %v3821 = vunpack.c.l.b16 %v3778
      %v3822 = vunpack.c.h.b16 %v3778
      %v3823 = vunpack.c.l.b16 %v3779
      %v3824 = vunpack.c.h.b16 %v3779
      %v3825 = vunpack.c.l.b16 %v3780
      %v3826 = vunpack.c.h.b16 %v3780
      %v3827 = vunpack.c.l.b16 %v3781
      %v3828 = vunpack.c.h.b16 %v3781
      %v3829 = vunpack.c.l.b16 %v3782
      %v3830 = vunpack.c.h.b16 %v3782
      %v3831 = vunpack.c.l.b16 %v3783
      %v3832 = vunpack.c.h.b16 %v3783
      %v3833 = vunpack.c.l.b16 %v3784
      %v3834 = vunpack.c.h.b16 %v3784
      %v3835 = vunpack.c.l.b16 %v3785
      %v3836 = vunpack.c.h.b16 %v3785
      %v3837 = vunpack.c.l.b16 %v3786
      %v3838 = vunpack.c.h.b16 %v3786
      %v3839 = vunpack.c.l.b16 %v3787
      %v3840 = vunpack.c.h.b16 %v3787
      %v3841 = vunpack.c.l.b16 %v3788
      %v3842 = vunpack.c.h.b16 %v3788
      %v3843 = vpack.c.b16 %v3807, %v3807
      %v3844 = vpack.c.b16 %v3808, %v3808
      %v3845 = vpack.c.b16 %v3809, %v3809
      %v3846 = vpack.c.b16 %v3810, %v3810
      %v3847 = vpack.c.b16 %v3811, %v3811
      %v3848 = vpack.c.b16 %v3812, %v3812
      %v3849 = vpack.c.b16 %v3813, %v3813
      %v3850 = vpack.c.b16 %v3814, %v3814
      %v3851 = vpack.c.b16 %v3815, %v3815
      %v3852 = vpack.c.b16 %v3816, %v3816
      %v3853 = vpack.c.b16 %v3817, %v3817
      %v3854 = vpack.c.b16 %v3818, %v3818
      %v3855 = vpack.c.b16 %v3819, %v3819
      %v3856 = vpack.c.b16 %v3820, %v3820
      %v3857 = vpack.c.b16 %v3821, %v3821
      %v3858 = vpack.c.b16 %v3822, %v3822
      %v3859 = vpack.c.b16 %v3823, %v3823
      %v3860 = vpack.c.b16 %v3824, %v3824
      %v3861 = vpack.c.b16 %v3825, %v3825
      %v3862 = vpack.c.b16 %v3826, %v3826
      %v3863 = vpack.c.b16 %v3827, %v3827
      %v3864 = vpack.c.b16 %v3828, %v3828
      %v3865 = vpack.c.b16 %v3829, %v3829
      %v3866 = vpack.c.b16 %v3830, %v3830
      %v3867 = vpack.c.b16 %v3831, %v3831
      %v3868 = vpack.c.b16 %v3832, %v3832
      %v3869 = vpack.c.b16 %v3833, %v3833
      %v3870 = vpack.c.b16 %v3834, %v3834
      %v3871 = vpack.c.b16 %v3835, %v3835
      %v3872 = vpack.c.b16 %v3836, %v3836
      %v3873 = vpack.c.b16 %v3837, %v3837
      %v3874 = vpack.c.b16 %v3838, %v3838
      %v3875 = vpack.c.b16 %v3839, %v3839
      %v3876 = vpack.c.b16 %v3840, %v3840
      %v3877 = vpack.c.b16 %v3841, %v3841
      %v3878 = vpack.c.b16 %v3842, %v3842
      %vm3915 = vcmask 125952
      %3916 = vst.msk [vmem:[%s170] sm:$0xf] %vm3915, %v3843
      %3917 = vst.msk [vmem:[%s170 + $0x4] sm:$0xf] %vm3915, %v3844
      %3918 = vst.msk [vmem:[%s170 + $0x8] sm:$0xf] %vm3915, %v3845
      %3919 = vst.msk [vmem:[%s170 + $0xc] sm:$0xf] %vm3915, %v3846
      %3920 = vst.msk [vmem:[%s170 + $0x10] sm:$0xf] %vm3915, %v3847
      %3921 = vst.msk [vmem:[%s170 + $0x14] sm:$0xf] %vm3915, %v3848
      %3922 = vst.msk [vmem:[%s170 + $0x18] sm:$0xf] %vm3915, %v3849
      %3923 = vst.msk [vmem:[%s170 + $0x1c] sm:$0xf] %vm3915, %v3850
      %3924 = vst.msk [vmem:[%s170 + $0x20] sm:$0xf] %vm3915, %v3851
      %3925 = vst.msk [vmem:[%s170 + $0x24] sm:$0xf] %vm3915, %v3852
      %3926 = vst.msk [vmem:[%s170 + $0x28] sm:$0xf] %vm3915, %v3853
      %3927 = vst.msk [vmem:[%s170 + $0x2c] sm:$0xf] %vm3915, %v3854
      %3928 = vst.msk [vmem:[%s170 + $0x30] sm:$0xf] %vm3915, %v3855
      %3929 = vst.msk [vmem:[%s170 + $0x34] sm:$0xf] %vm3915, %v3856
      %3930 = vst.msk [vmem:[%s170 + $0x38] sm:$0xf] %vm3915, %v3857
      %3931 = vst.msk [vmem:[%s170 + $0x3c] sm:$0xf] %vm3915, %v3858
      %3932 = vst.msk [vmem:[%s170 + $0x40] sm:$0xf] %vm3915, %v3859
      %3933 = vst.msk [vmem:[%s170 + $0x44] sm:$0xf] %vm3915, %v3860
      %3934 = vst.msk [vmem:[%s170 + $0x48] sm:$0xf] %vm3915, %v3861
      %3935 = vst.msk [vmem:[%s170 + $0x4c] sm:$0xf] %vm3915, %v3862
      %3936 = vst.msk [vmem:[%s170 + $0x50] sm:$0xf] %vm3915, %v3863
      %3937 = vst.msk [vmem:[%s170 + $0x54] sm:$0xf] %vm3915, %v3864
      %3938 = vst.msk [vmem:[%s170 + $0x58] sm:$0xf] %vm3915, %v3865
      %3939 = vst.msk [vmem:[%s170 + $0x5c] sm:$0xf] %vm3915, %v3866
      %3940 = vst.msk [vmem:[%s170 + $0x60] sm:$0xf] %vm3915, %v3867
      %3941 = vst.msk [vmem:[%s170 + $0x64] sm:$0xf] %vm3915, %v3868
      %3942 = vst.msk [vmem:[%s170 + $0x68] sm:$0xf] %vm3915, %v3869
      %3943 = vst.msk [vmem:[%s170 + $0x6c] sm:$0xf] %vm3915, %v3870
      %3944 = vst.msk [vmem:[%s170 + $0x70] sm:$0xf] %vm3915, %v3871
      %3945 = vst.msk [vmem:[%s170 + $0x74] sm:$0xf] %vm3915, %v3872
      %3946 = vst.msk [vmem:[%s170 + $0x78] sm:$0xf] %vm3915, %v3873
      %3947 = vst.msk [vmem:[%s170 + $0x7c] sm:$0xf] %vm3915, %v3874
      %3948 = vst.msk [vmem:[%s170 + $0x80] sm:$0xf] %vm3915, %v3875
      %3949 = vst.msk [vmem:[%s170 + $0x84] sm:$0xf] %vm3915, %v3876
      %3950 = vst.msk [vmem:[%s170 + $0x88] sm:$0xf] %vm3915, %v3877
      %3951 = vst.msk [vmem:[%s170 + $0x8c] sm:$0xf] %vm3915, %v3878
      %p3952 = scmp.lt.s32.totalorder %s14, 1
      %s3953 = scalar_select %p3952, %s14, 1
      %s3954 = smul.addr %s3953, 36
      %s3955 = smul.addr %s3954, 4
      %s3956 = scalar_lea.vmem %s3, %s3955
      // Predicated region
      $region33: #{encoder_latent_forward.6} parent=31 // pred_check
        %p3957 = pneg %p100
      $region34: #{encoder_latent_forward.6} parent=31 // pred_check_branch
        %3959 = sbr.rel (%p3957) target = $region36
      $region35: #{encoder_latent_forward.6} parent=31 // pred_region
        _
      $region36: #{encoder_latent_forward.6} parent=31 // pred_fallthru
        _
    $region32: #{encoder_latent_forward.6} parent=5 // pred_fallthru
      _
    %p3960 = scmp.le.s32.totalorder 2, %s9
    // Predicated region
    $region37: #{encoder_latent_forward.6} parent=5 // pred_check
      %p3961 = pneg %p3960
    $region38: #{encoder_latent_forward.6} parent=5 // pred_check_branch
      %3963 = sbr.rel (%p3961) target = $region40
    $region39: #{encoder_latent_forward.6} parent=5 // pred_region
      %s3964 = ssub.s32 %s9, 2
      // Predicated region
      $region41: #{encoder_latent_forward.6} parent=39 // pred_check
        %p3965 = pneg %p106
      $region42: #{encoder_latent_forward.6} parent=39 // pred_check_branch
        %3967 = sbr.rel (%p3965) target = $region44
      $region43: #{encoder_latent_forward.6} parent=39 // pred_region
        %p3968 = scmp.lt.s32.totalorder %s15, 1
        %s3969 = scalar_select %p3968, %s15, 1
        %s3970 = smul.addr %s3969, 36
        %s3971 = smul.addr %s3970, 4
        %s3972 = scalar_lea.vmem %s3, %s3971
      $region44: #{encoder_latent_forward.6} parent=39 // pred_fallthru
        _
    $region40: #{encoder_latent_forward.6} parent=5 // pred_fallthru
      _
  $region6: #{encoder_latent_forward.6} parent=0 // loop_footer
    %s13 = sadd.s32 1, %s9
  $region7: #{encoder_latent_forward.6} parent=0 // loop_footer_branch
    %8 = sbr.rel target = $region3
  $region8: #{encoder_latent_forward.6} parent=0 // loop_exit
    _

// kernel: encoder_latent_forward.11
$region0: #{encoder_latent_forward.11}
  #allocation0 [shape = 'u32[]', space=smem, size = 0x4, offset = 0x4, fixed_abs, tag = 'smem constant byte address 0x4 - core index']
  #allocation1 [shape = 'u32[144,128]{1,0:T(1,128)}', space=vmem, size = 0x12000, scoped, tag = 'internal scratch']
  %s0 = inlined_call_operand.vmem [shape: bf16[2,128], index: 0, kind: input, shape index: {}]
  %s1 = inlined_call_operand.vmem [shape: bf16[128,1024], index: 1, kind: input, shape index: {}]
  %s2 = inlined_call_operand.vmem [shape: f32[1,1024], index: 2, kind: input, shape index: {}]
  %s3 = inlined_call_operand.vmem [shape: f32[2,1024], index: 3, kind: output, shape index: {}]
  %s4 = sld [smem:[#allocation0]]
  $region86: #{encoder_latent_forward.11} parent=0
    _
  %s6 = ssub.s32 1, %s4
  %s7 = scalar_select 0, %s6, %s4
  $region1: #{encoder_latent_forward.11} parent=0
    #allocation2 [shape = 'u8[65536]{0}', space=vmem, size = 0x10000, scoped, tag = 'input window, operand 1']
    loop: start=0, step=1, limit=10
    $region2: #{encoder_latent_forward.11} parent=1 // loop_pre_header
      _
    $region3: #{encoder_latent_forward.11} parent=1 // loop_header
      %s9 = sphi 0, %s13
      %p10 = scmp.ge.s32.totalorder %s9, 10
      %s17 = sphi 0, %s17
      %s19 = sphi 0, %s17
      %s20 = sphi 0, %s19
      %s34 = sphi 0, %s20
      %s40 = sphi 0, %s42
      %s43 = sphi 0, %s40
      %s44 = sphi 0, %s43
      %s60 = sphi 0, %s44
      %s66 = sphi 0, %s68
      %s69 = sphi 0, %s66
      %s70 = sphi 0, %s69
      %s86 = sphi 0, %s70
      %s92 = sphi 0, %s94
      %s95 = sphi 0, %s92
      %s96 = sphi 0, %s95
      %s112 = sphi 0, %s96
    $region4: #{encoder_latent_forward.11} parent=1 // loop_header_branch
      %12 = sbr.rel (%p10) target = $region8
    $region5: #{encoder_latent_forward.11} parent=1 // loop_body
      %s14 = ssub.s32 %s9, 1
      %s15 = ssub.s32 %s9, 2
      %s16 = sadd.s32 %s9, 1
      %s18 = sadd.s32 %s17, 1
      %p21 = scmp.eq.s32.totalorder %s9, 7
      %p22 = scmp.ne.s32.totalorder %s17, %s19
      %p23 = scmp.eq.s32.totalorder %s9, 0
      %p24 = por %p22, %p23
      %p25 = scmp.ne.s32.totalorder %s17, %s19
      %p26 = scmp.eq.s32.totalorder %s14, 7
      %p27 = por %p25, %p26
      %p28 = scmp.ne.s32.totalorder %s19, %s20
      %p29 = scmp.eq.s32.totalorder %s14, 0
      %p30 = por %p28, %p29
      %p31 = scmp.ne.s32.totalorder %s19, %s20
      %p32 = scmp.eq.s32.totalorder %s15, 7
      %p33 = por %p31, %p32
      %p35 = scmp.ne.s32.totalorder %s20, %s34
      %p36 = scmp.eq.s32.totalorder %s15, 0
      %p37 = por %p35, %p36
      %s38 = ssub.s32 %s9, %s16
      %p39 = scmp.eq.s32.totalorder %s38, 0
      %s41 = sadd.s32 %s40, 1
      %s42 = scalar_select %p39, %s40, %s41
      %p45 = pneg %p39
      %p46 = scmp.eq.s32.totalorder %s9, 7
      %p47 = por %p45, %p46
      %p48 = scmp.ne.s32.totalorder %s40, %s43
      %p49 = scmp.eq.s32.totalorder %s9, 0
      %p50 = por %p48, %p49
      %p51 = scmp.ne.s32.totalorder %s40, %s43
      %p52 = scmp.eq.s32.totalorder %s14, 7
      %p53 = por %p51, %p52
      %p54 = scmp.ne.s32.totalorder %s43, %s44
      %p55 = scmp.eq.s32.totalorder %s14, 0
      %p56 = por %p54, %p55
      %p57 = scmp.ne.s32.totalorder %s43, %s44
      %p58 = scmp.eq.s32.totalorder %s15, 7
      %p59 = por %p57, %p58
      %p61 = scmp.ne.s32.totalorder %s44, %s60
      %p62 = scmp.eq.s32.totalorder %s15, 0
      %p63 = por %p61, %p62
      %s64 = ssub.s32 %s9, %s16
      %p65 = scmp.eq.s32.totalorder %s64, 0
      %s67 = sadd.s32 %s66, 1
      %s68 = scalar_select %p65, %s66, %s67
      %p71 = pneg %p65
      %p72 = scmp.eq.s32.totalorder %s9, 7
      %p73 = por %p71, %p72
      %p74 = scmp.ne.s32.totalorder %s66, %s69
      %p75 = scmp.eq.s32.totalorder %s9, 0
      %p76 = por %p74, %p75
      %p77 = scmp.ne.s32.totalorder %s66, %s69
      %p78 = scmp.eq.s32.totalorder %s14, 7
      %p79 = por %p77, %p78
      %p80 = scmp.ne.s32.totalorder %s69, %s70
      %p81 = scmp.eq.s32.totalorder %s14, 0
      %p82 = por %p80, %p81
      %p83 = scmp.ne.s32.totalorder %s69, %s70
      %p84 = scmp.eq.s32.totalorder %s15, 7
      %p85 = por %p83, %p84
      %p87 = scmp.ne.s32.totalorder %s70, %s86
      %p88 = scmp.eq.s32.totalorder %s15, 0
      %p89 = por %p87, %p88
      %s90 = ssub.s32 %s9, %s16
      %p91 = scmp.eq.s32.totalorder %s90, 0
      %s93 = sadd.s32 %s92, 1
      %s94 = scalar_select %p91, %s92, %s93
      %p97 = pneg %p91
      %p98 = scmp.eq.s32.totalorder %s9, 7
      %p99 = por %p97, %p98
      %p100 = scmp.ne.s32.totalorder %s92, %s95
      %p101 = scmp.eq.s32.totalorder %s9, 0
      %p102 = por %p100, %p101
      %p103 = scmp.ne.s32.totalorder %s92, %s95
      %p104 = scmp.eq.s32.totalorder %s14, 7
      %p105 = por %p103, %p104
      %p106 = scmp.ne.s32.totalorder %s95, %s96
      %p107 = scmp.eq.s32.totalorder %s14, 0
      %p108 = por %p106, %p107
      %p109 = scmp.ne.s32.totalorder %s95, %s96
      %p110 = scmp.eq.s32.totalorder %s15, 7
      %p111 = por %p109, %p110
      %p113 = scmp.ne.s32.totalorder %s96, %s112
      %p114 = scmp.eq.s32.totalorder %s15, 0
      %p115 = por %p113, %p114
      %p116 = scmp.le.s32.totalorder 1, %s9
      %p117 = scmp.lt.s32.totalorder %s9, 9
      %p118 = pnand %p116, %p117
      %p119 = pneg %p118
      // Predicated region
      $region9: #{encoder_latent_forward.11} parent=5 // pred_check
        _
      $region10: #{encoder_latent_forward.11} parent=5 // pred_check_branch
        %121 = sbr.rel (%p118) target = $region12
      $region11: #{encoder_latent_forward.11} parent=5 // pred_region
        %s122 = ssub.s32 %s9, 1
        // Predicated region
        $region13: #{encoder_latent_forward.11} parent=11 // pred_check
          %p123 = pneg %p30
        $region14: #{encoder_latent_forward.11} parent=11 // pred_check_branch
          %125 = sbr.rel (%p123) target = $region16
        $region15: #{encoder_latent_forward.11} parent=11 // pred_region
          _
        $region16: #{encoder_latent_forward.11} parent=11 // pred_fallthru
          _
      $region12: #{encoder_latent_forward.11} parent=5 // pred_fallthru
        _
      %p126 = scmp.lt.s32.totalorder %s9, 8
      // Predicated region
      $region17: #{encoder_latent_forward.11} parent=5 // pred_check
        %p127 = pneg %p126
      $region18: #{encoder_latent_forward.11} parent=5 // pred_check_branch
        %129 = sbr.rel (%p127) target = $region20
      $region19: #{encoder_latent_forward.11} parent=5 // pred_region
        // Predicated region
        $region21: #{encoder_latent_forward.11} parent=19 // pred_check
          %p130 = pneg %p50
        $region22: #{encoder_latent_forward.11} parent=19 // pred_check_branch
          %132 = sbr.rel (%p130) target = $region24
        $region23: #{encoder_latent_forward.11} parent=19 // pred_region
          %s133 = sand.u32 %s40, 1
          %s134 = sand.u32 %s40, 1
          %s135 = smul.addr %s134, 64
          %s136 = scalar_lea.vmem [#allocation2], %s135
          %s137 = smul.addr %s9, 4
          %s138 = scalar_lea.vmem %s1, %s137
          // Predicated region
          $region25: #{encoder_latent_forward.11} parent=23 // pred_check
            _
          $region26: #{encoder_latent_forward.11} parent=23 // pred_check_branch
            %140 = sbr.rel (0) target = $region28
          $region27: #{encoder_latent_forward.11} parent=23 // pred_region
            // Predicated region
            $region29: #{encoder_latent_forward.11} parent=27 // pred_check
              _
            $region30: #{encoder_latent_forward.11} parent=27 // pred_check_branch
              %142 = sbr.rel target = $region32
            $region31: #{encoder_latent_forward.11} parent=27 // pred_region
              // Predicated region
              $region44: #{encoder_latent_forward.11} parent=31 // pred_check
                _
              $region45: #{encoder_latent_forward.11} parent=31 // pred_check_branch
                %187 = sbr.rel (0) target = $region47
              $region46: #{encoder_latent_forward.11} parent=31 // pred_region
                loop: start=0, step=1, limit=1
                $region48: #{encoder_latent_forward.11} parent=46 // loop_pre_header
                  _
                $region49: #{encoder_latent_forward.11} parent=46 // loop_header
                  %s189 = sphi 0, %s193
                  %p190 = scmp.ge.s32.totalorder %s189, 1
                  %s194 = sphi %s138, %s138
                  %s195 = sphi %s136, %s136
                $region50: #{encoder_latent_forward.11} parent=46 // loop_header_branch
                  %192 = sbr.rel (%p190) target = $region54
                $region51: #{encoder_latent_forward.11} parent=46 // loop_body
                  _
                $region52: #{encoder_latent_forward.11} parent=46 // loop_footer
                  %s193 = sadd.s32 1, %s189
                $region53: #{encoder_latent_forward.11} parent=46 // loop_footer_branch
                  %188 = sbr.rel target = $region49
                $region54: #{encoder_latent_forward.11} parent=46 // loop_exit
                  _
                loop: start=0, step=1, limit=1
                $region55: #{encoder_latent_forward.11} parent=46 // loop_pre_header
                  _
                $region56: #{encoder_latent_forward.11} parent=46 // loop_header
                  %s198 = sphi 0, %s202
                  %p199 = scmp.ge.s32.totalorder %s198, 1
                  %s203 = sphi %s138, %s138
                  %s204 = sphi %s136, %s136
                $region57: #{encoder_latent_forward.11} parent=46 // loop_header_branch
                  %201 = sbr.rel (%p199) target = $region61
                $region58: #{encoder_latent_forward.11} parent=46 // loop_body
                  %v205 = vld [vmem:[%s203] sm:$0xf]
                  %206 = vst [vmem:[%s204] sm:$0xf] %v205
                  %v207 = vld [vmem:[%s203 + $0x20] sm:$0xf]
                  %208 = vst [vmem:[%s204 + $0x4] sm:$0xf] %v207
                  %v209 = vld [vmem:[%s203 + $0x40] sm:$0xf]
                  %210 = vst [vmem:[%s204 + $0x8] sm:$0xf] %v209
                  %v211 = vld [vmem:[%s203 + $0x60] sm:$0xf]
                  %212 = vst [vmem:[%s204 + $0xc] sm:$0xf] %v211
                  %v213 = vld [vmem:[%s203 + $0x80] sm:$0xf]
                  %214 = vst [vmem:[%s204 + $0x10] sm:$0xf] %v213
                  %v215 = vld [vmem:[%s203 + $0xa0] sm:$0xf]
                  %216 = vst [vmem:[%s204 + $0x14] sm:$0xf] %v215
                  %v217 = vld [vmem:[%s203 + $0xc0] sm:$0xf]
                  %218 = vst [vmem:[%s204 + $0x18] sm:$0xf] %v217
                  %v219 = vld [vmem:[%s203 + $0xe0] sm:$0xf]
                  %220 = vst [vmem:[%s204 + $0x1c] sm:$0xf] %v219
                  %v221 = vld [vmem:[%s203 + $0x100] sm:$0xf]
                  %222 = vst [vmem:[%s204 + $0x20] sm:$0xf] %v221
                  %v223 = vld [vmem:[%s203 + $0x120] sm:$0xf]
                  %224 = vst [vmem:[%s204 + $0x24] sm:$0xf] %v223
                  %v225 = vld [vmem:[%s203 + $0x140] sm:$0xf]
                  %226 = vst [vmem:[%s204 + $0x28] sm:$0xf] %v225
                  %v227 = vld [vmem:[%s203 + $0x160] sm:$0xf]
                  %228 = vst [vmem:[%s204 + $0x2c] sm:$0xf] %v227
                  %v229 = vld [vmem:[%s203 + $0x180] sm:$0xf]
                  %230 = vst [vmem:[%s204 + $0x30] sm:$0xf] %v229
                  %v231 = vld [vmem:[%s203 + $0x1a0] sm:$0xf]
                  %232 = vst [vmem:[%s204 + $0x34] sm:$0xf] %v231
                  %v233 = vld [vmem:[%s203 + $0x1c0] sm:$0xf]
                  %234 = vst [vmem:[%s204 + $0x38] sm:$0xf] %v233
                  %v235 = vld [vmem:[%s203 + $0x1e0] sm:$0xf]
                  %236 = vst [vmem:[%s204 + $0x3c] sm:$0xf] %v235
                $region59: #{encoder_latent_forward.11} parent=46 // loop_footer
                  %s202 = sadd.s32 1, %s198
                $region60: #{encoder_latent_forward.11} parent=46 // loop_footer_branch
                  %197 = sbr.rel target = $region56
                $region61: #{encoder_latent_forward.11} parent=46 // loop_exit
                  _
              $region47: #{encoder_latent_forward.11} parent=31 // pred_fallthru
                _
            $region32: #{encoder_latent_forward.11} parent=27 // pred_fallthru
              _
            // Predicated region
            $region33: #{encoder_latent_forward.11} parent=27 // pred_check
              _
            $region34: #{encoder_latent_forward.11} parent=27 // pred_check_branch
              %144 = sbr.rel (0) target = $region36
            $region35: #{encoder_latent_forward.11} parent=27 // pred_region
              loop: start=0, step=1, limit=1
              $region37: #{encoder_latent_forward.11} parent=35 // loop_pre_header
                _
              $region38: #{encoder_latent_forward.11} parent=35 // loop_header
                %s147 = sphi 0, %s151
                %p148 = scmp.ge.s32.totalorder %s147, 1
                %s152 = sphi %s138, %s138
                %s153 = sphi %s136, %s136
              $region39: #{encoder_latent_forward.11} parent=35 // loop_header_branch
                %150 = sbr.rel (%p148) target = $region43
              $region40: #{encoder_latent_forward.11} parent=35 // loop_body
                %v154 = vld [vmem:[%s152] sm:$0xf]
                %155 = vst [vmem:[%s153] sm:$0xf] %v154
                %v156 = vld [vmem:[%s152 + $0x20] sm:$0xf]
                %157 = vst [vmem:[%s153 + $0x4] sm:$0xf] %v156
                %v158 = vld [vmem:[%s152 + $0x40] sm:$0xf]
                %159 = vst [vmem:[%s153 + $0x8] sm:$0xf] %v158
                %v160 = vld [vmem:[%s152 + $0x60] sm:$0xf]
                %161 = vst [vmem:[%s153 + $0xc] sm:$0xf] %v160
                %v162 = vld [vmem:[%s152 + $0x80] sm:$0xf]
                %163 = vst [vmem:[%s153 + $0x10] sm:$0xf] %v162
                %v164 = vld [vmem:[%s152 + $0xa0] sm:$0xf]
                %165 = vst [vmem:[%s153 + $0x14] sm:$0xf] %v164
                %v166 = vld [vmem:[%s152 + $0xc0] sm:$0xf]
                %167 = vst [vmem:[%s153 + $0x18] sm:$0xf] %v166
                %v168 = vld [vmem:[%s152 + $0xe0] sm:$0xf]
                %169 = vst [vmem:[%s153 + $0x1c] sm:$0xf] %v168
                %v170 = vld [vmem:[%s152 + $0x100] sm:$0xf]
                %171 = vst [vmem:[%s153 + $0x20] sm:$0xf] %v170
                %v172 = vld [vmem:[%s152 + $0x120] sm:$0xf]
                %173 = vst [vmem:[%s153 + $0x24] sm:$0xf] %v172
                %v174 = vld [vmem:[%s152 + $0x140] sm:$0xf]
                %175 = vst [vmem:[%s153 + $0x28] sm:$0xf] %v174
                %v176 = vld [vmem:[%s152 + $0x160] sm:$0xf]
                %177 = vst [vmem:[%s153 + $0x2c] sm:$0xf] %v176
                %v178 = vld [vmem:[%s152 + $0x180] sm:$0xf]
                %179 = vst [vmem:[%s153 + $0x30] sm:$0xf] %v178
                %v180 = vld [vmem:[%s152 + $0x1a0] sm:$0xf]
                %181 = vst [vmem:[%s153 + $0x34] sm:$0xf] %v180
                %v182 = vld [vmem:[%s152 + $0x1c0] sm:$0xf]
                %183 = vst [vmem:[%s153 + $0x38] sm:$0xf] %v182
                %v184 = vld [vmem:[%s152 + $0x1e0] sm:$0xf]
                %185 = vst [vmem:[%s153 + $0x3c] sm:$0xf] %v184
              $region41: #{encoder_latent_forward.11} parent=35 // loop_footer
                %s151 = sadd.s32 1, %s147
              $region42: #{encoder_latent_forward.11} parent=35 // loop_footer_branch
                %146 = sbr.rel target = $region38
              $region43: #{encoder_latent_forward.11} parent=35 // loop_exit
                _
            $region36: #{encoder_latent_forward.11} parent=27 // pred_fallthru
              _
          $region28: #{encoder_latent_forward.11} parent=23 // pred_fallthru
            _
          %237 = vnop
        $region24: #{encoder_latent_forward.11} parent=19 // pred_fallthru
          _
        // Predicated region
        $region62: #{encoder_latent_forward.11} parent=19 // pred_check
          %p238 = pneg %p76
        $region63: #{encoder_latent_forward.11} parent=19 // pred_check_branch
          %240 = sbr.rel (%p238) target = $region65
        $region64: #{encoder_latent_forward.11} parent=19 // pred_region
          %p241 = scmp.lt.s32.totalorder %s9, 7
          %s242 = scalar_select %p241, %s9, 7
          %s243 = scalar_lea.vmem %s2, %s242
        $region65: #{encoder_latent_forward.11} parent=19 // pred_fallthru
          _
      $region20: #{encoder_latent_forward.11} parent=5 // pred_fallthru
        _
      %p244 = scmp.le.s32.totalorder 1, %s9
      %p245 = scmp.lt.s32.totalorder %s9, 9
      %p246 = pnand %p244, %p245
      %p247 = pneg %p246
      // Predicated region
      $region66: #{encoder_latent_forward.11} parent=5 // pred_check
        _
      $region67: #{encoder_latent_forward.11} parent=5 // pred_check_branch
        %249 = sbr.rel (%p246) target = $region69
      $region68: #{encoder_latent_forward.11} parent=5 // pred_region
        %s250 = ssub.s32 %s9, 1
        %s251 = sand.u32 %s43, 1
        %s252 = sand.u32 %s43, 1
        %s253 = smul.addr %s252, 64
        %s254 = scalar_lea.vmem [#allocation2], %s253
        // Predicated region
        $region70: #{encoder_latent_forward.11} parent=68 // pred_check
          %p255 = pneg %p56
        $region71: #{encoder_latent_forward.11} parent=68 // pred_check_branch
          %257 = sbr.rel (%p255) target = $region73
        $region72: #{encoder_latent_forward.11} parent=68 // pred_region
          _
        $region73: #{encoder_latent_forward.11} parent=68 // pred_fallthru
          _
        %p258 = pneg %p30
        %p259 = pneg %p27
        %s260 = sand.u32 %s43, 1
        %s261 = sand.u32 %s43, 1
        %s262 = smul.addr %s261, 64
        %s263 = scalar_lea.vmem [#allocation2], %s262
        %p264 = pneg %p56
        %p265 = pneg %p53
        %p266 = scmp.lt.s32.totalorder %s14, 7
        %s267 = scalar_select %p266, %s14, 7
        %s268 = scalar_lea.vmem %s2, %s267
        %p269 = pneg %p82
        %p270 = pneg %p79
        %p271 = pneg %p108
        %p272 = pneg %p105
        %p273 = scmp.lt.s32.totalorder %s14, 7
        %s274 = scalar_select %p273, %s14, 7
        %s275 = smul.addr %s274, 2
        %s276 = scalar_lea.vmem %s3, %s275
        %p277 = scmp.lt.s32.totalorder %s14, 7
        %s278 = scalar_select %p277, %s14, 7
        %s279 = scalar_lea.vmem %s2, %s278
        %p280 = scmp.lt.s32.totalorder %s14, 7
        %s281 = scalar_select %p280, %s14, 7
        %s282 = smul.addr %s281, 2
        %s283 = scalar_lea.vmem %s3, %s282
        %v285 = vld [vmem:[%s0] sm:$0x1]
        %v286 = vld [vmem:[%s254] sm:$0xf]
        %v287 = vld [vmem:[%s254 + $0x4] sm:$0xf]
        %v288 = vld [vmem:[%s254 + $0x8] sm:$0xf]
        %v289 = vld [vmem:[%s254 + $0xc] sm:$0xf]
        %v290 = vld [vmem:[%s254 + $0x10] sm:$0xf]
        %v291 = vld [vmem:[%s254 + $0x14] sm:$0xf]
        %v292 = vld [vmem:[%s254 + $0x18] sm:$0xf]
        %v293 = vld [vmem:[%s254 + $0x1c] sm:$0xf]
        %v294 = vld [vmem:[%s254 + $0x20] sm:$0xf]
        %v295 = vld [vmem:[%s254 + $0x24] sm:$0xf]
        %v296 = vld [vmem:[%s254 + $0x28] sm:$0xf]
        %v297 = vld [vmem:[%s254 + $0x2c] sm:$0xf]
        %v298 = vld [vmem:[%s254 + $0x30] sm:$0xf]
        %v299 = vld [vmem:[%s254 + $0x34] sm:$0xf]
        %v300 = vld [vmem:[%s254 + $0x38] sm:$0xf]
        %v301 = vld [vmem:[%s254 + $0x3c] sm:$0xf]
        %v302 = vld [vmem:[%s279] sm:$0x1]
        %v304 = vlaneseq
        %v305 = vshrl.u32 %v304, 7
        %v306 = vsub.s32 0, %v305
        %v307 = vrot.slane %v302, %v306
        %v325 = vunpack.c.l.b16 %v286
        %v326 = vunpack.c.l.b16 %v287
        %v327 = vunpack.c.l.b16 %v288
        %v328 = vunpack.c.l.b16 %v289
        %v329 = vunpack.c.l.b16 %v290
        %v330 = vunpack.c.l.b16 %v291
        %v331 = vunpack.c.l.b16 %v292
        %v332 = vunpack.c.l.b16 %v293
        %v333 = vunpack.c.l.b16 %v294
        %v334 = vunpack.c.l.b16 %v295
        %v335 = vunpack.c.l.b16 %v296
        %v336 = vunpack.c.l.b16 %v297
        %v337 = vunpack.c.l.b16 %v298
        %v338 = vunpack.c.l.b16 %v299
        %v339 = vunpack.c.l.b16 %v300
        %v340 = vunpack.c.l.b16 %v301
        %v341 = vpack.c.b16 %v326, %v325
        %v342 = vpack.c.b16 %v328, %v327
        %v343 = vpack.c.b16 %v330, %v329
        %v344 = vpack.c.b16 %v332, %v331
        %v345 = vpack.c.b16 %v334, %v333
        %v346 = vpack.c.b16 %v336, %v335
        %v347 = vpack.c.b16 %v338, %v337
        %v348 = vpack.c.b16 %v340, %v339
        %357 = vmatprep.subr.bf16.mxu0 0
        %358 = vmatpush1.bf16.msra.mxu0 %v341
        %359 = vmatprep.subr.bf16.mxu0 0
        %360 = vmatpush1.bf16.msra.mxu0 %v342
        %361 = vmatprep.subr.bf16.mxu0 0
        %362 = vmatpush1.bf16.msra.mxu0 %v343
        %363 = vmatprep.subr.bf16.mxu0 0
        %364 = vmatpush1.bf16.msra.mxu0 %v344
        %365 = vmatprep.subr.bf16.mxu0 0
        %366 = vmatpush1.bf16.msra.mxu0 %v345
        %367 = vmatprep.subr.bf16.mxu0 0
        %368 = vmatpush1.bf16.msra.mxu0 %v346
        %369 = vmatprep.subr.bf16.mxu0 0
        %370 = vmatpush1.bf16.msra.mxu0 %v347
        %371 = vmatprep.subr.bf16.mxu0 0
        %372 = vmatpush1.bf16.msra.mxu0 %v348
        %373 = vmatprep.subr.bf16.mxu0 0
        %374 = vmatpush1.bf16.msra.mxu0 0
        %375 = vmatprep.subr.bf16.mxu0 0
        %376 = vmatpush1.bf16.msra.mxu0 0
        %377 = vmatprep.subr.bf16.mxu0 0
        %378 = vmatpush1.bf16.msra.mxu0 0
        %379 = vmatprep.subr.bf16.mxu0 0
        %380 = vmatpush1.bf16.msra.mxu0 0
        %381 = vmatprep.subr.bf16.mxu0 0
        %382 = vmatpush1.bf16.msra.mxu0 0
        %383 = vmatprep.subr.bf16.mxu0 0
        %384 = vmatpush1.bf16.msra.mxu0 0
        %385 = vmatprep.subr.bf16.mxu0 0
        %386 = vmatpush1.bf16.msra.mxu0 0
        %387 = vmatprep.subr.bf16.mxu0 0
        %388 = vmatpush1.bf16.msra.mxu0 0
        %389 = vmatprep.mubr.bf16.mxu0 0
        %390 = vmatmul.mubr.bf16.gmra.mrb[0].mxu0 %v285
        %v391 = vpop.f32.mrb[0].mxu0
        %v392 = vadd.f32 %v307, %v391
        %v393 = vpop.f32.mrb[0].mxu0
        %v394 = vpop.f32.mrb[0].mxu0
        %v395 = vpop.f32.mrb[0].mxu0
        %396 = vdwg.mxu0
        %v397 = vtanh.pop %v392
        %398 = vst [vmem:[%s283] sm:$0x3] %v397
        %p399 = scmp.lt.s32.totalorder %s14, 7
        %s400 = scalar_select %p399, %s14, 7
        %s401 = smul.addr %s400, 2
        %s402 = scalar_lea.vmem %s3, %s401
        // Predicated region
        $region74: #{encoder_latent_forward.11} parent=68 // pred_check
          %p403 = pneg %p105
        $region75: #{encoder_latent_forward.11} parent=68 // pred_check_branch
          %405 = sbr.rel (%p403) target = $region77
        $region76: #{encoder_latent_forward.11} parent=68 // pred_region
          _
        $region77: #{encoder_latent_forward.11} parent=68 // pred_fallthru
          _
      $region69: #{encoder_latent_forward.11} parent=5 // pred_fallthru
        _
      %p406 = scmp.le.s32.totalorder 2, %s9
      // Predicated region
      $region78: #{encoder_latent_forward.11} parent=5 // pred_check
        %p407 = pneg %p406
      $region79: #{encoder_latent_forward.11} parent=5 // pred_check_branch
        %409 = sbr.rel (%p407) target = $region81
      $region80: #{encoder_latent_forward.11} parent=5 // pred_region
        %s410 = ssub.s32 %s9, 2
        // Predicated region
        $region82: #{encoder_latent_forward.11} parent=80 // pred_check
          %p411 = pneg %p111
        $region83: #{encoder_latent_forward.11} parent=80 // pred_check_branch
          %413 = sbr.rel (%p411) target = $region85
        $region84: #{encoder_latent_forward.11} parent=80 // pred_region
          %p414 = scmp.lt.s32.totalorder %s15, 7
          %s415 = scalar_select %p414, %s15, 7
          %s416 = smul.addr %s415, 2
          %s417 = scalar_lea.vmem %s3, %s416
        $region85: #{encoder_latent_forward.11} parent=80 // pred_fallthru
          _
      $region81: #{encoder_latent_forward.11} parent=5 // pred_fallthru
        _
    $region6: #{encoder_latent_forward.11} parent=1 // loop_footer
      %s13 = sadd.s32 1, %s9
    $region7: #{encoder_latent_forward.11} parent=1 // loop_footer_branch
      %8 = sbr.rel target = $region3
    $region8: #{encoder_latent_forward.11} parent=1 // loop_exit
      _

// kernel: encoder_latent_forward.10
$region0: #{encoder_latent_forward.10}
  #allocation0 [shape = 'u32[]', space=smem, size = 0x4, offset = 0x4, fixed_abs, tag = 'smem constant byte address 0x4 - core index']
  #allocation1 [shape = 'u32[144,128]{1,0:T(1,128)}', space=vmem, size = 0x12000, scoped, tag = 'internal scratch']
  %s0 = inlined_call_operand.vmem [shape: bf16[2,512], index: 0, kind: input, shape index: {}]
  %s1 = inlined_call_operand.vmem [shape: bf16[512,128], index: 1, kind: input, shape index: {}]
  %s2 = inlined_call_operand.vmem [shape: f32[1,128], index: 2, kind: input, shape index: {}]
  %s3 = inlined_call_operand.vmem [shape: f32[2,128], index: 3, kind: output, shape index: {}]
  %s4 = sld [smem:[#allocation0]]
  $region22: #{encoder_latent_forward.10} parent=0
    _
  %s6 = ssub.s32 1, %s4
  %s7 = scalar_select 0, %s6, %s4
  // Predicated region
  $region2: #{encoder_latent_forward.10} parent=0 // pred_check
    _
  $region3: #{encoder_latent_forward.10} parent=0 // pred_check_branch
    %9 = sbr.rel (0) target = $region5
  $region4: #{encoder_latent_forward.10} parent=0 // pred_region
    _
  $region5: #{encoder_latent_forward.10} parent=0 // pred_fallthru
    _
  // Predicated region
  $region6: #{encoder_latent_forward.10} parent=0 // pred_check
    _
  $region7: #{encoder_latent_forward.10} parent=0 // pred_check_branch
    %11 = sbr.rel (0) target = $region9
  $region8: #{encoder_latent_forward.10} parent=0 // pred_region
    _
  $region9: #{encoder_latent_forward.10} parent=0 // pred_fallthru
    _
  // Predicated region
  $region10: #{encoder_latent_forward.10} parent=0 // pred_check
    _
  $region11: #{encoder_latent_forward.10} parent=0 // pred_check_branch
    %13 = sbr.rel (0) target = $region13
  $region12: #{encoder_latent_forward.10} parent=0 // pred_region
    _
  $region13: #{encoder_latent_forward.10} parent=0 // pred_fallthru
    _
  %v15 = vld [vmem:[%s0] sm:$0xf]
  %v16 = vld [vmem:[%s1] sm:$0xf]
  %v17 = vld [vmem:[%s1 + $0x4] sm:$0xf]
  %v18 = vld [vmem:[%s1 + $0x8] sm:$0xf]
  %v19 = vld [vmem:[%s1 + $0xc] sm:$0xf]
  %v20 = vld [vmem:[%s1 + $0x10] sm:$0xf]
  %v21 = vld [vmem:[%s1 + $0x14] sm:$0xf]
  %v22 = vld [vmem:[%s1 + $0x18] sm:$0xf]
  %v23 = vld [vmem:[%s1 + $0x1c] sm:$0xf]
  %v24 = vld [vmem:[%s1 + $0x20] sm:$0xf]
  %v25 = vld [vmem:[%s1 + $0x24] sm:$0xf]
  %v26 = vld [vmem:[%s1 + $0x28] sm:$0xf]
  %v27 = vld [vmem:[%s1 + $0x2c] sm:$0xf]
  %v28 = vld [vmem:[%s1 + $0x30] sm:$0xf]
  %v29 = vld [vmem:[%s1 + $0x34] sm:$0xf]
  %v30 = vld [vmem:[%s1 + $0x38] sm:$0xf]
  %v31 = vld [vmem:[%s1 + $0x3c] sm:$0xf]
  %v32 = vld [vmem:[%s1 + $0x40] sm:$0xf]
  %v33 = vld [vmem:[%s1 + $0x44] sm:$0xf]
  %v34 = vld [vmem:[%s1 + $0x48] sm:$0xf]
  %v35 = vld [vmem:[%s1 + $0x4c] sm:$0xf]
  %v36 = vld [vmem:[%s1 + $0x50] sm:$0xf]
  %v37 = vld [vmem:[%s1 + $0x54] sm:$0xf]
  %v38 = vld [vmem:[%s1 + $0x58] sm:$0xf]
  %v39 = vld [vmem:[%s1 + $0x5c] sm:$0xf]
  %v40 = vld [vmem:[%s1 + $0x60] sm:$0xf]
  %v41 = vld [vmem:[%s1 + $0x64] sm:$0xf]
  %v42 = vld [vmem:[%s1 + $0x68] sm:$0xf]
  %v43 = vld [vmem:[%s1 + $0x6c] sm:$0xf]
  %v44 = vld [vmem:[%s1 + $0x70] sm:$0xf]
  %v45 = vld [vmem:[%s1 + $0x74] sm:$0xf]
  %v46 = vld [vmem:[%s1 + $0x78] sm:$0xf]
  %v47 = vld [vmem:[%s1 + $0x7c] sm:$0xf]
  %v48 = vld [vmem:[%s1 + $0x80] sm:$0xf]
  %v49 = vld [vmem:[%s1 + $0x84] sm:$0xf]
  %v50 = vld [vmem:[%s1 + $0x88] sm:$0xf]
  %v51 = vld [vmem:[%s1 + $0x8c] sm:$0xf]
  %v52 = vld [vmem:[%s1 + $0x90] sm:$0xf]
  %v53 = vld [vmem:[%s1 + $0x94] sm:$0xf]
  %v54 = vld [vmem:[%s1 + $0x98] sm:$0xf]
  %v55 = vld [vmem:[%s1 + $0x9c] sm:$0xf]
  %v56 = vld [vmem:[%s1 + $0xa0] sm:$0xf]
  %v57 = vld [vmem:[%s1 + $0xa4] sm:$0xf]
  %v58 = vld [vmem:[%s1 + $0xa8] sm:$0xf]
  %v59 = vld [vmem:[%s1 + $0xac] sm:$0xf]
  %v60 = vld [vmem:[%s1 + $0xb0] sm:$0xf]
  %v61 = vld [vmem:[%s1 + $0xb4] sm:$0xf]
  %v62 = vld [vmem:[%s1 + $0xb8] sm:$0xf]
  %v63 = vld [vmem:[%s1 + $0xbc] sm:$0xf]
  %v64 = vld [vmem:[%s1 + $0xc0] sm:$0xf]
  %v65 = vld [vmem:[%s1 + $0xc4] sm:$0xf]
  %v66 = vld [vmem:[%s1 + $0xc8] sm:$0xf]
  %v67 = vld [vmem:[%s1 + $0xcc] sm:$0xf]
  %v68 = vld [vmem:[%s1 + $0xd0] sm:$0xf]
  %v69 = vld [vmem:[%s1 + $0xd4] sm:$0xf]
  %v70 = vld [vmem:[%s1 + $0xd8] sm:$0xf]
  %v71 = vld [vmem:[%s1 + $0xdc] sm:$0xf]
  %v72 = vld [vmem:[%s1 + $0xe0] sm:$0xf]
  %v73 = vld [vmem:[%s1 + $0xe4] sm:$0xf]
  %v74 = vld [vmem:[%s1 + $0xe8] sm:$0xf]
  %v75 = vld [vmem:[%s1 + $0xec] sm:$0xf]
  %v76 = vld [vmem:[%s1 + $0xf0] sm:$0xf]
  %v77 = vld [vmem:[%s1 + $0xf4] sm:$0xf]
  %v78 = vld [vmem:[%s1 + $0xf8] sm:$0xf]
  %v79 = vld [vmem:[%s1 + $0xfc] sm:$0xf]
  %v80 = vld [vmem:[%s2] sm:$0x1]
  %v82 = vlaneseq
  %v83 = vshrl.u32 %v82, 7
  %v84 = vsub.s32 0, %v83
  %v85 = vrot.slane %v80, %v84
  %v89 = vunpack.c.l.s4 1966171168
  %v90 = vunpack.c.0.s8 %v89
  %v91 = vlaneseq
  %v92 = vshrl.u32 %v91, 7
  %v93 = vsub.s32 %v90, %v92
  %v94 = vrot.slane %v15, %v93
  %v95 = vcombine.high %v94, %v94
  %v97 = vunpack.c.l.s4 1966171168
  %v98 = vunpack.c.0.s8 %v97
  %v99 = vlaneseq
  %v100 = vshrl.u32 %v99, 7
  %v101 = vsub.s32 %v98, %v100
  %v102 = vrot.slane %v94, %v101
  %v104 = vunpack.c.l.s4 1966171168
  %v105 = vunpack.c.0.s8 %v104
  %v106 = vlaneseq
  %v107 = vshrl.u32 %v106, 7
  %v108 = vsub.s32 %v105, %v107
  %v109 = vrot.slane %v95, %v108
  %v110 = vcombine.high %v102, %v102
  %v111 = vcombine.high %v109, %v109
  %v180 = vunpack.c.l.b16 %v16
  %v181 = vunpack.c.l.b16 %v17
  %v182 = vunpack.c.l.b16 %v18
  %v183 = vunpack.c.l.b16 %v19
  %v184 = vunpack.c.l.b16 %v20
  %v185 = vunpack.c.l.b16 %v21
  %v186 = vunpack.c.l.b16 %v22
  %v187 = vunpack.c.l.b16 %v23
  %v188 = vunpack.c.l.b16 %v24
  %v189 = vunpack.c.l.b16 %v25
  %v190 = vunpack.c.l.b16 %v26
  %v191 = vunpack.c.l.b16 %v27
  %v192 = vunpack.c.l.b16 %v28
  %v193 = vunpack.c.l.b16 %v29
  %v194 = vunpack.c.l.b16 %v30
  %v195 = vunpack.c.l.b16 %v31
  %v196 = vunpack.c.l.b16 %v32
  %v197 = vunpack.c.l.b16 %v33
  %v198 = vunpack.c.l.b16 %v34
  %v199 = vunpack.c.l.b16 %v35
  %v200 = vunpack.c.l.b16 %v36
  %v201 = vunpack.c.l.b16 %v37
  %v202 = vunpack.c.l.b16 %v38
  %v203 = vunpack.c.l.b16 %v39
  %v204 = vunpack.c.l.b16 %v40
  %v205 = vunpack.c.l.b16 %v41
  %v206 = vunpack.c.l.b16 %v42
  %v207 = vunpack.c.l.b16 %v43
  %v208 = vunpack.c.l.b16 %v44
  %v209 = vunpack.c.l.b16 %v45
  %v210 = vunpack.c.l.b16 %v46
  %v211 = vunpack.c.l.b16 %v47
  %v212 = vunpack.c.l.b16 %v48
  %v213 = vunpack.c.l.b16 %v49
  %v214 = vunpack.c.l.b16 %v50
  %v215 = vunpack.c.l.b16 %v51
  %v216 = vunpack.c.l.b16 %v52
  %v217 = vunpack.c.l.b16 %v53
  %v218 = vunpack.c.l.b16 %v54
  %v219 = vunpack.c.l.b16 %v55
  %v220 = vunpack.c.l.b16 %v56
  %v221 = vunpack.c.l.b16 %v57
  %v222 = vunpack.c.l.b16 %v58
  %v223 = vunpack.c.l.b16 %v59
  %v224 = vunpack.c.l.b16 %v60
  %v225 = vunpack.c.l.b16 %v61
  %v226 = vunpack.c.l.b16 %v62
  %v227 = vunpack.c.l.b16 %v63
  %v228 = vunpack.c.l.b16 %v64
  %v229 = vunpack.c.l.b16 %v65
  %v230 = vunpack.c.l.b16 %v66
  %v231 = vunpack.c.l.b16 %v67
  %v232 = vunpack.c.l.b16 %v68
  %v233 = vunpack.c.l.b16 %v69
  %v234 = vunpack.c.l.b16 %v70
  %v235 = vunpack.c.l.b16 %v71
  %v236 = vunpack.c.l.b16 %v72
  %v237 = vunpack.c.l.b16 %v73
  %v238 = vunpack.c.l.b16 %v74
  %v239 = vunpack.c.l.b16 %v75
  %v240 = vunpack.c.l.b16 %v76
  %v241 = vunpack.c.l.b16 %v77
  %v242 = vunpack.c.l.b16 %v78
  %v243 = vunpack.c.l.b16 %v79
  %v244 = vpack.c.b16 %v181, %v180
  %v245 = vpack.c.b16 %v183, %v182
  %v246 = vpack.c.b16 %v185, %v184
  %v247 = vpack.c.b16 %v187, %v186
  %v248 = vpack.c.b16 %v189, %v188
  %v249 = vpack.c.b16 %v191, %v190
  %v250 = vpack.c.b16 %v193, %v192
  %v251 = vpack.c.b16 %v195, %v194
  %v252 = vpack.c.b16 %v197, %v196
  %v253 = vpack.c.b16 %v199, %v198
  %v254 = vpack.c.b16 %v201, %v200
  %v255 = vpack.c.b16 %v203, %v202
  %v256 = vpack.c.b16 %v205, %v204
  %v257 = vpack.c.b16 %v207, %v206
  %v258 = vpack.c.b16 %v209, %v208
  %v259 = vpack.c.b16 %v211, %v210
  %v260 = vpack.c.b16 %v213, %v212
  %v261 = vpack.c.b16 %v215, %v214
  %v262 = vpack.c.b16 %v217, %v216
  %v263 = vpack.c.b16 %v219, %v218
  %v264 = vpack.c.b16 %v221, %v220
  %v265 = vpack.c.b16 %v223, %v222
  %v266 = vpack.c.b16 %v225, %v224
  %v267 = vpack.c.b16 %v227, %v226
  %v268 = vpack.c.b16 %v229, %v228
  %v269 = vpack.c.b16 %v231, %v230
  %v270 = vpack.c.b16 %v233, %v232
  %v271 = vpack.c.b16 %v235, %v234
  %v272 = vpack.c.b16 %v237, %v236
  %v273 = vpack.c.b16 %v239, %v238
  %v274 = vpack.c.b16 %v241, %v240
  %v275 = vpack.c.b16 %v243, %v242
  %308 = vmatprep.subr.bf16.mxu0 0
  %309 = vmatpush1.bf16.msra.mxu0 %v244
  %310 = vmatprep.subr.bf16.mxu0 0
  %311 = vmatpush1.bf16.msra.mxu0 %v245
  %312 = vmatprep.subr.bf16.mxu0 0
  %313 = vmatpush1.bf16.msra.mxu0 %v246
  %314 = vmatprep.subr.bf16.mxu0 0
  %315 = vmatpush1.bf16.msra.mxu0 %v247
  %316 = vmatprep.subr.bf16.mxu0 0
  %317 = vmatpush1.bf16.msra.mxu0 %v248
  %318 = vmatprep.subr.bf16.mxu0 0
  %319 = vmatpush1.bf16.msra.mxu0 %v249
  %320 = vmatprep.subr.bf16.mxu0 0
  %321 = vmatpush1.bf16.msra.mxu0 %v250
  %322 = vmatprep.subr.bf16.mxu0 0
  %323 = vmatpush1.bf16.msra.mxu0 %v251
  %324 = vmatprep.subr.bf16.mxu0 0
  %325 = vmatpush1.bf16.msra.mxu0 %v252
  %326 = vmatprep.subr.bf16.mxu0 0
  %327 = vmatpush1.bf16.msra.mxu0 %v253
  %328 = vmatprep.subr.bf16.mxu0 0
  %329 = vmatpush1.bf16.msra.mxu0 %v254
  %330 = vmatprep.subr.bf16.mxu0 0
  %331 = vmatpush1.bf16.msra.mxu0 %v255
  %332 = vmatprep.subr.bf16.mxu0 0
  %333 = vmatpush1.bf16.msra.mxu0 %v256
  %334 = vmatprep.subr.bf16.mxu0 0
  %335 = vmatpush1.bf16.msra.mxu0 %v257
  %336 = vmatprep.subr.bf16.mxu0 0
  %337 = vmatpush1.bf16.msra.mxu0 %v258
  %338 = vmatprep.subr.bf16.mxu0 0
  %339 = vmatpush1.bf16.msra.mxu0 %v259
  %340 = vmatprep.mubr.bf16.mxu0 %v109
  %341 = vmatmul.mubr.bf16.gmra.mrb[0].mxu0 %v102
  %v342 = vpop.f32.mrb[0].mxu0
  %v343 = vadd.f32 %v85, %v342
  %v344 = vpop.f32.mrb[0].mxu0
  %v345 = vpop.f32.mrb[0].mxu0
  %v346 = vpop.f32.mrb[0].mxu0
  %347 = vdwg.mxu0
  %348 = vmatprep.subr.bf16.mxu0 0
  %349 = vmatpush1.bf16.msra.mxu0 %v260
  %350 = vmatprep.subr.bf16.mxu0 0
  %351 = vmatpush1.bf16.msra.mxu0 %v261
  %352 = vmatprep.subr.bf16.mxu0 0
  %353 = vmatpush1.bf16.msra.mxu0 %v262
  %354 = vmatprep.subr.bf16.mxu0 0
  %355 = vmatpush1.bf16.msra.mxu0 %v263
  %356 = vmatprep.subr.bf16.mxu0 0
  %357 = vmatpush1.bf16.msra.mxu0 %v264
  %358 = vmatprep.subr.bf16.mxu0 0
  %359 = vmatpush1.bf16.msra.mxu0 %v265
  %360 = vmatprep.subr.bf16.mxu0 0
  %361 = vmatpush1.bf16.msra.mxu0 %v266
  %362 = vmatprep.subr.bf16.mxu0 0
  %363 = vmatpush1.bf16.msra.mxu0 %v267
  %364 = vmatprep.subr.bf16.mxu0 0
  %365 = vmatpush1.bf16.msra.mxu0 %v268
  %366 = vmatprep.subr.bf16.mxu0 0
  %367 = vmatpush1.bf16.msra.mxu0 %v269
  %368 = vmatprep.subr.bf16.mxu0 0
  %369 = vmatpush1.bf16.msra.mxu0 %v270
  %370 = vmatprep.subr.bf16.mxu0 0
  %371 = vmatpush1.bf16.msra.mxu0 %v271
  %372 = vmatprep.subr.bf16.mxu0 0
  %373 = vmatpush1.bf16.msra.mxu0 %v272
  %374 = vmatprep.subr.bf16.mxu0 0
  %375 = vmatpush1.bf16.msra.mxu0 %v273
  %376 = vmatprep.subr.bf16.mxu0 0
  %377 = vmatpush1.bf16.msra.mxu0 %v274
  %378 = vmatprep.subr.bf16.mxu0 0
  %379 = vmatpush1.bf16.msra.mxu0 %v275
  %380 = vmatprep.mubr.bf16.mxu0 %v111
  %381 = vmatmul.mubr.bf16.gmra.mrb[0].mxu0 %v110
  %v382 = vpop.f32.mrb[0].mxu0
  %v383 = vadd.f32 %v343, %v382
  %v384 = vpop.f32.mrb[0].mxu0
  %v385 = vpop.f32.mrb[0].mxu0
  %v386 = vpop.f32.mrb[0].mxu0
  %387 = vdwg.mxu0
  %388 = vst [vmem:[%s3] sm:$0x3] %v383
  // Predicated region
  $region14: #{encoder_latent_forward.10} parent=0 // pred_check
    _
  $region15: #{encoder_latent_forward.10} parent=0 // pred_check_branch
    %390 = sbr.rel (0) target = $region17
  $region16: #{encoder_latent_forward.10} parent=0 // pred_region
    _
  $region17: #{encoder_latent_forward.10} parent=0 // pred_fallthru
    _
  // Predicated region
  $region18: #{encoder_latent_forward.10} parent=0 // pred_check
    _
  $region19: #{encoder_latent_forward.10} parent=0 // pred_check_branch
    %392 = sbr.rel (0) target = $region21
  $region20: #{encoder_latent_forward.10} parent=0 // pred_region
    _
  $region21: #{encoder_latent_forward.10} parent=0 // pred_fallthru
    _

</llo_original>
